<compile_context>
chip_gen: v6e
topology: v6e:2x2x1
jax: 0.10.0
libtpu: 0.0.40
codegen_flags: <defaults>
</compile_context>

<pallas_src>
import functools

import jax
import jax.numpy as jnp
import numpy as np
from jax.experimental import pallas as pl
from jax.experimental.pallas import tpu as pltpu


def _round_up(x, m):
    return ((x + m - 1) // m) * m


def _pick_bt(B, block_b):
    """Batch-tile size: lane-dense (2, bt) out block needs bt % 128 == 0 or bt == B."""
    cands = [bt for bt in range(128, block_b + 1, 128) if B % bt == 0]
    if not cands:
        # TODO(synk): ragged B (no 128-multiple divisor) falls back to a single
        # full-batch block; a cdiv grid + in-kernel masking would keep
        # pipelining / v7x megacore sharding for such sizes.
        return B
    multi = [bt for bt in cands if B // bt >= 2]   # >=2 steps -> v7x 2-TC sharding
    return max(multi) if multi else max(cands)


def _cola_kernel(pos_feat_ref, neg_feat_ref, pos_adj_ref, neg_adj_ref,
                 w_ref, b_ref, wd_ref, alpha_ref, bd_ref, out_ref, *, S):
    # pos_feat_ref/neg_feat_ref: (S, bt, Fin_p)   node-major features
    # pos_adj_ref /neg_adj_ref : (S, bt, S)       adj[i, b, j] = weight of j -> i
    # out_ref                  : (2, bt)          row 0 = pos scores, row 1 = neg
    bt = pos_feat_ref.shape[1]
    fin_p = pos_feat_ref.shape[2]
    fout_p = w_ref.shape[1]

    alpha = alpha_ref[0, 0]        # PReLU slope (scalar, SMEM)
    bd = bd_ref[0, 0]              # Bilinear bias (scalar, SMEM)

    W = w_ref[...].astype(jnp.bfloat16)            # (Fin_p, Fout_p) MXU operand
    Wd = wd_ref[...].astype(jnp.bfloat16)          # (Fout_p, Fout_p)
    bias = jnp.broadcast_to(b_ref[...], (bt, fout_p))   # hoisted broadcast

    def prelu(x):
        return jnp.where(x > 0, x, alpha * x)

    def l2norm(x):  # F.normalize(p=2, dim=1), eps=1e-12  (rsqrt -> EUP slot)
        ss = jnp.sum(x * x, axis=-1, keepdims=True)
        return x * jax.lax.rsqrt(jnp.maximum(ss, 1e-24))

    def gcn(feat_ref, adj_ref):
        # One big bf16 MXU projection for all S node slabs of this channel.
        x = feat_ref[...].reshape(S * bt, fin_p)            # aligned slabs: free
        xw = jnp.dot(x.astype(jnp.bfloat16), W,
                     preferred_element_type=jnp.float32)    # (S*bt, Fout_p) f32
        xw_node = [xw[j * bt:(j + 1) * bt, :] for j in range(S)]

        # Anchor projection reuses node-0 rows (original, un-zeroed features).
        anchor = prelu(xw_node[0] + bias)                   # (bt, Fout_p)

        # Weighted message passing on the VPU (unrolled FMAs). The anchor's
        # features are zeroed before the conv in the reference, so source
        # node j == 0 contributes nothing and is skipped entirely.
        adj = adj_ref[...]                                  # (S, bt, S)
        pool_acc = jnp.zeros((bt, fout_p), jnp.float32)
        for i in range(S):                                  # destination node
            h_i = jnp.zeros((bt, fout_p), jnp.float32)
            for j in range(1, S):                           # source node
                h_i = h_i + adj[i, :, j:j + 1] * xw_node[j]
            pool_acc = pool_acc + prelu(h_i + bias)
        pool = pool_acc * (1.0 / S)                         # DGL AvgPooling
        return l2norm(pool), l2norm(anchor)

    pos_pool_n, anchor_n = gcn(pos_feat_ref, pos_adj_ref)
    neg_pool_n, _ = gcn(neg_feat_ref, neg_adj_ref)

    # Bilinear discriminator: both channels scored against the POSITIVE anchor.
    proj_pos = jnp.dot(pos_pool_n.astype(jnp.bfloat16), Wd,
                       preferred_element_type=jnp.float32)  # (bt, Fout_p)
    proj_neg = jnp.dot(neg_pool_n.astype(jnp.bfloat16), Wd,
                       preferred_element_type=jnp.float32)
    out_ref[0, :] = jnp.sum(proj_pos * anchor_n, axis=-1) + bd
    out_ref[1, :] = jnp.sum(proj_neg * anchor_n, axis=-1) + bd


def cola_forward(pos_feat, pos_adj, neg_feat, neg_adj, params, *,
                 block_b=512, vmem_limit_bytes=32 * 1024 * 1024):
    W, b, Wd = params["W"], params["b"], params["Wd"]
    alpha, bd = params["alpha"], params["bd"]
    S, B, Fin = pos_feat.shape
    Fout = W.shape[1]

    # Pad feature dims to full 128-lane tiles (zero columns are free in matmul).
    Fin_p, Fout_p = _round_up(Fin, 128), _round_up(Fout, 128)

    def pad_last(x, n):
        if x.shape[-1] == n:
            return x
        return jnp.pad(x, [(0, 0)] * (x.ndim - 1) + [(0, n - x.shape[-1])])

    pos_feat_p = pad_last(pos_feat, Fin_p)
    neg_feat_p = pad_last(neg_feat, Fin_p)
    W_p = jnp.pad(W, ((0, Fin_p - Fin), (0, Fout_p - Fout)))
    b_p = jnp.pad(b, (0, Fout_p - Fout)).reshape(1, Fout_p)
    Wd_p = jnp.pad(Wd, ((0, Fout_p - Fout), (0, Fout_p - Fout)))

    bt = _pick_bt(B, block_b)
    grid = (B // bt,)

    flops = 2 * (2 * B * S * Fin_p * Fout_p        # projections (pos + neg)
                 + 2 * B * S * (S - 1) * Fout_p    # message passing
                 + 2 * B * Fout_p * Fout_p)        # discriminator
    bytes_accessed = 4 * (2 * B * S * Fin_p + 2 * B * S * S
                          + Fin_p * Fout_p + Fout_p * Fout_p + Fout_p + 2 * B)
    cost = pl.CostEstimate(flops=int(flops), transcendentals=int(4 * B),
                           bytes_accessed=int(bytes_accessed))

    kernel = functools.partial(_cola_kernel, S=S)
    smem = pl.BlockSpec(memory_space=pltpu.MemorySpace.SMEM)

    out = pl.pallas_call(
        kernel,
        out_shape=jax.ShapeDtypeStruct((2, B), jnp.float32),
        grid=grid,
        in_specs=[
            pl.BlockSpec((S, bt, Fin_p), lambda i: (0, i, 0)),   # pos features
            pl.BlockSpec((S, bt, Fin_p), lambda i: (0, i, 0)),   # neg features
            pl.BlockSpec((S, bt, S), lambda i: (0, i, 0)),       # pos adjacency
            pl.BlockSpec((S, bt, S), lambda i: (0, i, 0)),       # neg adjacency
            pl.BlockSpec((Fin_p, Fout_p), lambda i: (0, 0)),     # GCN weight
            pl.BlockSpec((1, Fout_p), lambda i: (0, 0)),         # GCN bias
            pl.BlockSpec((Fout_p, Fout_p), lambda i: (0, 0)),    # Bilinear weight
            smem,                                                # PReLU alpha
            smem,                                                # Bilinear bias
        ],
        out_specs=pl.BlockSpec((2, bt), lambda i: (0, i)),       # lane-dense scores
        compiler_params=pltpu.CompilerParams(
            dimension_semantics=("parallel",),
            vmem_limit_bytes=vmem_limit_bytes),
        cost_estimate=cost,
    )(pos_feat_p, neg_feat_p, pos_adj, neg_adj, W_p, b_p, Wd_p,
      alpha.reshape(1, 1), bd.reshape(1, 1))

    # matches `pos_scores[:, 0], neg_scores[:, 0]`
    return out[0], out[1]


def cola_reference(pos_feat, pos_adj, neg_feat, neg_adj, params):
    """Pure-JAX (f32) reference mirroring the PyTorch/DGL semantics."""
    W, b, Wd = params["W"], params["b"], params["Wd"]
    alpha, bd = params["alpha"], params["bd"]

    def prelu(x):
        return jnp.where(x > 0, x, alpha * x)

    def l2norm(x):
        n = jnp.linalg.norm(x, axis=-1, keepdims=True)
        return x / jnp.maximum(n, 1e-12)

    def gcn(feat, adj):                       # feat (S,B,Fin), adj (S,B,S)
        anchor = feat[0]                      # original anchor features
        anchor_out = prelu(anchor @ W + b)
        featz = feat.at[0].set(0.0)           # anchors zeroed before the conv
        xw = jnp.einsum("sbf,fo->sbo", featz, W)
        h = prelu(jnp.einsum("ibj,jbo->ibo", adj, xw) + b)
        pool = h.mean(axis=0)                 # AvgPooling over subgraph nodes
        return l2norm(pool), l2norm(anchor_out)

    pos_pool, anchor = gcn(pos_feat, pos_adj)
    neg_pool, _ = gcn(neg_feat, neg_adj)

    def disc(r, a):
        return jnp.sum((r @ Wd) * a, axis=-1) + bd

    return disc(pos_pool, anchor), disc(neg_pool, anchor)


if __name__ == "__main__":
    # B subgraphs of S=4 nodes (module's subgraph_size), Fin=128 (real datasets
    # have Fin >= 128; 128 keeps the feature DMA/matmul lane-dense with no pad),
    # Fout=64 (module default, padded to 128 internally).
    B, S, Fin, Fout = 256, 4, 128, 64

    key = jax.random.PRNGKey(0)
    k1, k2, k3, k4, k5, k6 = jax.random.split(key, 6)

    # Deterministic init mirroring the module: GCN weight xavier_uniform,
    # bias zeros, PReLU slope 0.25, Bilinear weight xavier-ish, bias 0.
    lim_w = float(np.sqrt(6.0 / (Fin + Fout)))
    W = jax.random.uniform(k1, (Fin, Fout), jnp.float32, -lim_w, lim_w)
    b = jnp.zeros((Fout,), jnp.float32)
    lim_d = float(np.sqrt(6.0 / (Fout + Fout)))
    Wd = jax.random.uniform(k2, (Fout, Fout), jnp.float32, -lim_d, lim_d)
    params = dict(W=W, b=b, Wd=Wd,
                  alpha=jnp.array(0.25, jnp.float32),
                  bd=jnp.array(0.0, jnp.float32))

    # Node-major subgraph features and dense weighted adjacencies.
    pos_feat = jax.random.normal(k3, (S, B, Fin), jnp.float32)
    neg_feat = jax.random.normal(k4, (S, B, Fin), jnp.float32)
    pos_adj = jax.random.uniform(k5, (S, B, S), jnp.float32)
    neg_adj = jax.random.uniform(k6, (S, B, S), jnp.float32)

    pos_scores, neg_scores = cola_forward(pos_feat, pos_adj, neg_feat, neg_adj,
                                          params)
    jax.block_until_ready((pos_scores, neg_scores))

    ref_pos, ref_neg = cola_reference(pos_feat, pos_adj, neg_feat, neg_adj,
                                      params)
    # bf16 MXU operands (f32 accumulation) in the kernel -> loosened tolerances
    # vs the full-f32 reference.
    np.testing.assert_allclose(np.asarray(pos_scores), np.asarray(ref_pos),
                               rtol=2e-2, atol=2e-2)
    np.testing.assert_allclose(np.asarray(neg_scores), np.asarray(ref_neg),
                               rtol=2e-2, atol=2e-2)
    print("KERNEL_OK")
</pallas_src>

<mosaic_0001>
module attributes {stable_mosaic.version = 11 : i64} {
  func.func @_cola_kernel(%arg0: i32, %arg1: memref<4x128x128xf32, #tpu.memory_space<vmem>>, %arg2: memref<4x128x128xf32, #tpu.memory_space<vmem>>, %arg3: memref<4x128x4xf32, #tpu.memory_space<vmem>>, %arg4: memref<4x128x4xf32, #tpu.memory_space<vmem>>, %arg5: memref<128x128xf32, #tpu.memory_space<vmem>>, %arg6: memref<1x128xf32, #tpu.memory_space<vmem>>, %arg7: memref<128x128xf32, #tpu.memory_space<vmem>>, %arg8: memref<1x1xf32, #tpu.memory_space<smem>>, %arg9: memref<1x1xf32, #tpu.memory_space<smem>>, %arg10: memref<2x128xf32, #tpu.memory_space<vmem>>) attributes {dimension_semantics = [#tpu.dimension_semantics<parallel>], iteration_bounds = array<i64: 2>, scalar_prefetch = 0 : i64, scratch_operands = 0 : i64, tpu.core_type = #tpu.core_type<tc>, window_params = [{transform_indices = @transform_0, window_bounds = array<i64: 4, 128, 128>}, {transform_indices = @transform_1, window_bounds = array<i64: 4, 128, 128>}, {transform_indices = @transform_2, window_bounds = array<i64: 4, 128, 4>}, {transform_indices = @transform_3, window_bounds = array<i64: 4, 128, 4>}, {pipeline_mode = #tpu.pipeline_mode<synchronous>, transform_indices = @transform_4, window_bounds = array<i64: 128, 128>}, {pipeline_mode = #tpu.pipeline_mode<synchronous>, transform_indices = @transform_5, window_bounds = array<i64: 1, 128>}, {pipeline_mode = #tpu.pipeline_mode<synchronous>, transform_indices = @transform_6, window_bounds = array<i64: 128, 128>}, {transform_indices = @transform_7, window_bounds = array<i64: 1, 1>}, {transform_indices = @transform_8, window_bounds = array<i64: 1, 1>}, {transform_indices = @transform_9, window_bounds = array<i64: 2, 128>}]} {
    %c0 = arith.constant 0 : index
    %c0_0 = arith.constant 0 : index
    %0 = memref.load %arg8[%c0, %c0_0] : memref<1x1xf32, #tpu.memory_space<smem>>
    %c0_1 = arith.constant 0 : index
    %c0_2 = arith.constant 0 : index
    %1 = memref.load %arg9[%c0_1, %c0_2] : memref<1x1xf32, #tpu.memory_space<smem>>
    %c0_3 = arith.constant 0 : index
    %c0_4 = arith.constant 0 : index
    %2 = vector.load %arg5[%c0_3, %c0_4] : memref<128x128xf32, #tpu.memory_space<vmem>>, vector<128x128xf32>
    %3 = arith.truncf %2 : vector<128x128xf32> to vector<128x128xbf16>
    %c0_5 = arith.constant 0 : index
    %c0_6 = arith.constant 0 : index
    %4 = vector.load %arg7[%c0_5, %c0_6] : memref<128x128xf32, #tpu.memory_space<vmem>>, vector<128x128xf32>
    %5 = arith.truncf %4 : vector<128x128xf32> to vector<128x128xbf16>
    %c0_7 = arith.constant 0 : index
    %c0_8 = arith.constant 0 : index
    %6 = vector.load %arg6[%c0_7, %c0_8] : memref<1x128xf32, #tpu.memory_space<vmem>>, vector<1x128xf32>
    %7 = vector.shape_cast %6 : vector<1x128xf32> to vector<1x128xf32>
    %8 = vector.broadcast %7 : vector<1x128xf32> to vector<128x128xf32>
    %c0_9 = arith.constant 0 : index
    %c0_10 = arith.constant 0 : index
    %c0_11 = arith.constant 0 : index
    %9 = vector.load %arg1[%c0_9, %c0_10, %c0_11] : memref<4x128x128xf32, #tpu.memory_space<vmem>>, vector<4x128x128xf32>
    %10 = vector.shape_cast %9 : vector<4x128x128xf32> to vector<512x128xf32>
    %11 = arith.truncf %10 : vector<512x128xf32> to vector<512x128xbf16>
    %cst = arith.constant dense<0.000000e+00> : vector<512x128xf32>
    %12 = tpu.matmul %11, %3, %cst {dimension_numbers = #tpu.dot_dimension_numbers<[1], [0], [0], [1], [0, 0, 1, 1], [], []>} : vector<512x128xbf16>, vector<128x128xbf16>, vector<512x128xf32> -> vector<512x128xf32>
    %13 = vector.extract_strided_slice %12 {offsets = [0, 0], sizes = [128, 128], strides = [1, 1]} : vector<512x128xf32> to vector<128x128xf32>
    %14 = vector.extract_strided_slice %12 {offsets = [128, 0], sizes = [128, 128], strides = [1, 1]} : vector<512x128xf32> to vector<128x128xf32>
    %15 = vector.extract_strided_slice %12 {offsets = [256, 0], sizes = [128, 128], strides = [1, 1]} : vector<512x128xf32> to vector<128x128xf32>
    %16 = vector.extract_strided_slice %12 {offsets = [384, 0], sizes = [128, 128], strides = [1, 1]} : vector<512x128xf32> to vector<128x128xf32>
    %17 = arith.addf %13, %8 : vector<128x128xf32>
    %cst_12 = arith.constant 0.000000e+00 : f32
    %18 = vector.broadcast %cst_12 : f32 to vector<128x128xf32>
    %19 = arith.cmpf ogt, %17, %18 : vector<128x128xf32>
    %20 = vector.broadcast %0 : f32 to vector<128x128xf32>
    %21 = arith.mulf %20, %17 : vector<128x128xf32>
    %22 = arith.select %19, %17, %21 : vector<128x128xi1>, vector<128x128xf32>
    %c0_13 = arith.constant 0 : index
    %c0_14 = arith.constant 0 : index
    %c0_15 = arith.constant 0 : index
    %23 = vector.load %arg3[%c0_13, %c0_14, %c0_15] : memref<4x128x4xf32, #tpu.memory_space<vmem>>, vector<4x128x4xf32>
    %cst_16 = arith.constant 0.000000e+00 : f32
    %24 = vector.broadcast %cst_16 : f32 to vector<128x128xf32>
    %cst_17 = arith.constant 0.000000e+00 : f32
    %25 = vector.broadcast %cst_17 : f32 to vector<128x128xf32>
    %26 = vector.extract_strided_slice %23 {offsets = [0, 0, 1], sizes = [1, 128, 1], strides = [1, 1, 1]} : vector<4x128x4xf32> to vector<1x128x1xf32>
    %27 = vector.shape_cast %26 : vector<1x128x1xf32> to vector<128x1xf32>
    %28 = vector.broadcast %27 : vector<128x1xf32> to vector<128x128xf32>
    %29 = arith.mulf %28, %14 : vector<128x128xf32>
    %30 = arith.addf %25, %29 : vector<128x128xf32>
    %31 = vector.extract_strided_slice %23 {offsets = [0, 0, 2], sizes = [1, 128, 1], strides = [1, 1, 1]} : vector<4x128x4xf32> to vector<1x128x1xf32>
    %32 = vector.shape_cast %31 : vector<1x128x1xf32> to vector<128x1xf32>
    %33 = vector.broadcast %32 : vector<128x1xf32> to vector<128x128xf32>
    %34 = arith.mulf %33, %15 : vector<128x128xf32>
    %35 = arith.addf %30, %34 : vector<128x128xf32>
    %36 = vector.extract_strided_slice %23 {offsets = [0, 0, 3], sizes = [1, 128, 1], strides = [1, 1, 1]} : vector<4x128x4xf32> to vector<1x128x1xf32>
    %37 = vector.shape_cast %36 : vector<1x128x1xf32> to vector<128x1xf32>
    %38 = vector.broadcast %37 : vector<128x1xf32> to vector<128x128xf32>
    %39 = arith.mulf %38, %16 : vector<128x128xf32>
    %40 = arith.addf %35, %39 : vector<128x128xf32>
    %41 = arith.addf %40, %8 : vector<128x128xf32>
    %cst_18 = arith.constant 0.000000e+00 : f32
    %42 = vector.broadcast %cst_18 : f32 to vector<128x128xf32>
    %43 = arith.cmpf ogt, %41, %42 : vector<128x128xf32>
    %44 = vector.broadcast %0 : f32 to vector<128x128xf32>
    %45 = arith.mulf %44, %41 : vector<128x128xf32>
    %46 = arith.select %43, %41, %45 : vector<128x128xi1>, vector<128x128xf32>
    %47 = arith.addf %24, %46 : vector<128x128xf32>
    %cst_19 = arith.constant 0.000000e+00 : f32
    %48 = vector.broadcast %cst_19 : f32 to vector<128x128xf32>
    %49 = vector.extract_strided_slice %23 {offsets = [1, 0, 1], sizes = [1, 128, 1], strides = [1, 1, 1]} : vector<4x128x4xf32> to vector<1x128x1xf32>
    %50 = vector.shape_cast %49 : vector<1x128x1xf32> to vector<128x1xf32>
    %51 = vector.broadcast %50 : vector<128x1xf32> to vector<128x128xf32>
    %52 = arith.mulf %51, %14 : vector<128x128xf32>
    %53 = arith.addf %48, %52 : vector<128x128xf32>
    %54 = vector.extract_strided_slice %23 {offsets = [1, 0, 2], sizes = [1, 128, 1], strides = [1, 1, 1]} : vector<4x128x4xf32> to vector<1x128x1xf32>
    %55 = vector.shape_cast %54 : vector<1x128x1xf32> to vector<128x1xf32>
    %56 = vector.broadcast %55 : vector<128x1xf32> to vector<128x128xf32>
    %57 = arith.mulf %56, %15 : vector<128x128xf32>
    %58 = arith.addf %53, %57 : vector<128x128xf32>
    %59 = vector.extract_strided_slice %23 {offsets = [1, 0, 3], sizes = [1, 128, 1], strides = [1, 1, 1]} : vector<4x128x4xf32> to vector<1x128x1xf32>
    %60 = vector.shape_cast %59 : vector<1x128x1xf32> to vector<128x1xf32>
    %61 = vector.broadcast %60 : vector<128x1xf32> to vector<128x128xf32>
    %62 = arith.mulf %61, %16 : vector<128x128xf32>
    %63 = arith.addf %58, %62 : vector<128x128xf32>
    %64 = arith.addf %63, %8 : vector<128x128xf32>
    %cst_20 = arith.constant 0.000000e+00 : f32
    %65 = vector.broadcast %cst_20 : f32 to vector<128x128xf32>
    %66 = arith.cmpf ogt, %64, %65 : vector<128x128xf32>
    %67 = vector.broadcast %0 : f32 to vector<128x128xf32>
    %68 = arith.mulf %67, %64 : vector<128x128xf32>
    %69 = arith.select %66, %64, %68 : vector<128x128xi1>, vector<128x128xf32>
    %70 = arith.addf %47, %69 : vector<128x128xf32>
    %cst_21 = arith.constant 0.000000e+00 : f32
    %71 = vector.broadcast %cst_21 : f32 to vector<128x128xf32>
    %72 = vector.extract_strided_slice %23 {offsets = [2, 0, 1], sizes = [1, 128, 1], strides = [1, 1, 1]} : vector<4x128x4xf32> to vector<1x128x1xf32>
    %73 = vector.shape_cast %72 : vector<1x128x1xf32> to vector<128x1xf32>
    %74 = vector.broadcast %73 : vector<128x1xf32> to vector<128x128xf32>
    %75 = arith.mulf %74, %14 : vector<128x128xf32>
    %76 = arith.addf %71, %75 : vector<128x128xf32>
    %77 = vector.extract_strided_slice %23 {offsets = [2, 0, 2], sizes = [1, 128, 1], strides = [1, 1, 1]} : vector<4x128x4xf32> to vector<1x128x1xf32>
    %78 = vector.shape_cast %77 : vector<1x128x1xf32> to vector<128x1xf32>
    %79 = vector.broadcast %78 : vector<128x1xf32> to vector<128x128xf32>
    %80 = arith.mulf %79, %15 : vector<128x128xf32>
    %81 = arith.addf %76, %80 : vector<128x128xf32>
    %82 = vector.extract_strided_slice %23 {offsets = [2, 0, 3], sizes = [1, 128, 1], strides = [1, 1, 1]} : vector<4x128x4xf32> to vector<1x128x1xf32>
    %83 = vector.shape_cast %82 : vector<1x128x1xf32> to vector<128x1xf32>
    %84 = vector.broadcast %83 : vector<128x1xf32> to vector<128x128xf32>
    %85 = arith.mulf %84, %16 : vector<128x128xf32>
    %86 = arith.addf %81, %85 : vector<128x128xf32>
    %87 = arith.addf %86, %8 : vector<128x128xf32>
    %cst_22 = arith.constant 0.000000e+00 : f32
    %88 = vector.broadcast %cst_22 : f32 to vector<128x128xf32>
    %89 = arith.cmpf ogt, %87, %88 : vector<128x128xf32>
    %90 = vector.broadcast %0 : f32 to vector<128x128xf32>
    %91 = arith.mulf %90, %87 : vector<128x128xf32>
    %92 = arith.select %89, %87, %91 : vector<128x128xi1>, vector<128x128xf32>
    %93 = arith.addf %70, %92 : vector<128x128xf32>
    %cst_23 = arith.constant 0.000000e+00 : f32
    %94 = vector.broadcast %cst_23 : f32 to vector<128x128xf32>
    %95 = vector.extract_strided_slice %23 {offsets = [3, 0, 1], sizes = [1, 128, 1], strides = [1, 1, 1]} : vector<4x128x4xf32> to vector<1x128x1xf32>
    %96 = vector.shape_cast %95 : vector<1x128x1xf32> to vector<128x1xf32>
    %97 = vector.broadcast %96 : vector<128x1xf32> to vector<128x128xf32>
    %98 = arith.mulf %97, %14 : vector<128x128xf32>
    %99 = arith.addf %94, %98 : vector<128x128xf32>
    %100 = vector.extract_strided_slice %23 {offsets = [3, 0, 2], sizes = [1, 128, 1], strides = [1, 1, 1]} : vector<4x128x4xf32> to vector<1x128x1xf32>
    %101 = vector.shape_cast %100 : vector<1x128x1xf32> to vector<128x1xf32>
    %102 = vector.broadcast %101 : vector<128x1xf32> to vector<128x128xf32>
    %103 = arith.mulf %102, %15 : vector<128x128xf32>
    %104 = arith.addf %99, %103 : vector<128x128xf32>
    %105 = vector.extract_strided_slice %23 {offsets = [3, 0, 3], sizes = [1, 128, 1], strides = [1, 1, 1]} : vector<4x128x4xf32> to vector<1x128x1xf32>
    %106 = vector.shape_cast %105 : vector<1x128x1xf32> to vector<128x1xf32>
    %107 = vector.broadcast %106 : vector<128x1xf32> to vector<128x128xf32>
    %108 = arith.mulf %107, %16 : vector<128x128xf32>
    %109 = arith.addf %104, %108 : vector<128x128xf32>
    %110 = arith.addf %109, %8 : vector<128x128xf32>
    %cst_24 = arith.constant 0.000000e+00 : f32
    %111 = vector.broadcast %cst_24 : f32 to vector<128x128xf32>
    %112 = arith.cmpf ogt, %110, %111 : vector<128x128xf32>
    %113 = vector.broadcast %0 : f32 to vector<128x128xf32>
    %114 = arith.mulf %113, %110 : vector<128x128xf32>
    %115 = arith.select %112, %110, %114 : vector<128x128xi1>, vector<128x128xf32>
    %116 = arith.addf %93, %115 : vector<128x128xf32>
    %cst_25 = arith.constant 2.500000e-01 : f32
    %117 = vector.broadcast %cst_25 : f32 to vector<128x128xf32>
    %118 = arith.mulf %116, %117 : vector<128x128xf32>
    %119 = arith.mulf %118, %118 : vector<128x128xf32>
    %cst_26 = arith.constant dense<0.000000e+00> : vector<128xf32>
    %120 = vector.multi_reduction <add>, %119, %cst_26 [1] : vector<128x128xf32> to vector<128xf32>
    %121 = vector.shape_cast %120 : vector<128xf32> to vector<128x1xf32>
    %cst_27 = arith.constant 1.000000e-24 : f32
    %122 = vector.broadcast %cst_27 : f32 to vector<128x1xf32>
    %123 = arith.maximumf %121, %122 : vector<128x1xf32>
    %124 = math.rsqrt %123 : vector<128x1xf32>
    %125 = vector.broadcast %124 : vector<128x1xf32> to vector<128x128xf32>
    %126 = arith.mulf %118, %125 : vector<128x128xf32>
    %127 = arith.mulf %22, %22 : vector<128x128xf32>
    %cst_28 = arith.constant dense<0.000000e+00> : vector<128xf32>
    %128 = vector.multi_reduction <add>, %127, %cst_28 [1] : vector<128x128xf32> to vector<128xf32>
    %129 = vector.shape_cast %128 : vector<128xf32> to vector<128x1xf32>
    %cst_29 = arith.constant 1.000000e-24 : f32
    %130 = vector.broadcast %cst_29 : f32 to vector<128x1xf32>
    %131 = arith.maximumf %129, %130 : vector<128x1xf32>
    %132 = math.rsqrt %131 : vector<128x1xf32>
    %133 = vector.broadcast %132 : vector<128x1xf32> to vector<128x128xf32>
    %134 = arith.mulf %22, %133 : vector<128x128xf32>
    %c0_30 = arith.constant 0 : index
    %c0_31 = arith.constant 0 : index
    %c0_32 = arith.constant 0 : index
    %135 = vector.load %arg2[%c0_30, %c0_31, %c0_32] : memref<4x128x128xf32, #tpu.memory_space<vmem>>, vector<4x128x128xf32>
    %136 = vector.shape_cast %135 : vector<4x128x128xf32> to vector<512x128xf32>
    %137 = arith.truncf %136 : vector<512x128xf32> to vector<512x128xbf16>
    %cst_33 = arith.constant dense<0.000000e+00> : vector<512x128xf32>
    %138 = tpu.matmul %137, %3, %cst_33 {dimension_numbers = #tpu.dot_dimension_numbers<[1], [0], [0], [1], [0, 0, 1, 1], [], []>} : vector<512x128xbf16>, vector<128x128xbf16>, vector<512x128xf32> -> vector<512x128xf32>
    %139 = vector.extract_strided_slice %138 {offsets = [128, 0], sizes = [128, 128], strides = [1, 1]} : vector<512x128xf32> to vector<128x128xf32>
    %140 = vector.extract_strided_slice %138 {offsets = [256, 0], sizes = [128, 128], strides = [1, 1]} : vector<512x128xf32> to vector<128x128xf32>
    %141 = vector.extract_strided_slice %138 {offsets = [384, 0], sizes = [128, 128], strides = [1, 1]} : vector<512x128xf32> to vector<128x128xf32>
    %c0_34 = arith.constant 0 : index
    %c0_35 = arith.constant 0 : index
    %c0_36 = arith.constant 0 : index
    %142 = vector.load %arg4[%c0_34, %c0_35, %c0_36] : memref<4x128x4xf32, #tpu.memory_space<vmem>>, vector<4x128x4xf32>
    %cst_37 = arith.constant 0.000000e+00 : f32
    %143 = vector.broadcast %cst_37 : f32 to vector<128x128xf32>
    %cst_38 = arith.constant 0.000000e+00 : f32
    %144 = vector.broadcast %cst_38 : f32 to vector<128x128xf32>
    %145 = vector.extract_strided_slice %142 {offsets = [0, 0, 1], sizes = [1, 128, 1], strides = [1, 1, 1]} : vector<4x128x4xf32> to vector<1x128x1xf32>
    %146 = vector.shape_cast %145 : vector<1x128x1xf32> to vector<128x1xf32>
    %147 = vector.broadcast %146 : vector<128x1xf32> to vector<128x128xf32>
    %148 = arith.mulf %147, %139 : vector<128x128xf32>
    %149 = arith.addf %144, %148 : vector<128x128xf32>
    %150 = vector.extract_strided_slice %142 {offsets = [0, 0, 2], sizes = [1, 128, 1], strides = [1, 1, 1]} : vector<4x128x4xf32> to vector<1x128x1xf32>
    %151 = vector.shape_cast %150 : vector<1x128x1xf32> to vector<128x1xf32>
    %152 = vector.broadcast %151 : vector<128x1xf32> to vector<128x128xf32>
    %153 = arith.mulf %152, %140 : vector<128x128xf32>
    %154 = arith.addf %149, %153 : vector<128x128xf32>
    %155 = vector.extract_strided_slice %142 {offsets = [0, 0, 3], sizes = [1, 128, 1], strides = [1, 1, 1]} : vector<4x128x4xf32> to vector<1x128x1xf32>
    %156 = vector.shape_cast %155 : vector<1x128x1xf32> to vector<128x1xf32>
    %157 = vector.broadcast %156 : vector<128x1xf32> to vector<128x128xf32>
    %158 = arith.mulf %157, %141 : vector<128x128xf32>
    %159 = arith.addf %154, %158 : vector<128x128xf32>
    %160 = arith.addf %159, %8 : vector<128x128xf32>
    %cst_39 = arith.constant 0.000000e+00 : f32
    %161 = vector.broadcast %cst_39 : f32 to vector<128x128xf32>
    %162 = arith.cmpf ogt, %160, %161 : vector<128x128xf32>
    %163 = vector.broadcast %0 : f32 to vector<128x128xf32>
    %164 = arith.mulf %163, %160 : vector<128x128xf32>
    %165 = arith.select %162, %160, %164 : vector<128x128xi1>, vector<128x128xf32>
    %166 = arith.addf %143, %165 : vector<128x128xf32>
    %cst_40 = arith.constant 0.000000e+00 : f32
    %167 = vector.broadcast %cst_40 : f32 to vector<128x128xf32>
    %168 = vector.extract_strided_slice %142 {offsets = [1, 0, 1], sizes = [1, 128, 1], strides = [1, 1, 1]} : vector<4x128x4xf32> to vector<1x128x1xf32>
    %169 = vector.shape_cast %168 : vector<1x128x1xf32> to vector<128x1xf32>
    %170 = vector.broadcast %169 : vector<128x1xf32> to vector<128x128xf32>
    %171 = arith.mulf %170, %139 : vector<128x128xf32>
    %172 = arith.addf %167, %171 : vector<128x128xf32>
    %173 = vector.extract_strided_slice %142 {offsets = [1, 0, 2], sizes = [1, 128, 1], strides = [1, 1, 1]} : vector<4x128x4xf32> to vector<1x128x1xf32>
    %174 = vector.shape_cast %173 : vector<1x128x1xf32> to vector<128x1xf32>
    %175 = vector.broadcast %174 : vector<128x1xf32> to vector<128x128xf32>
    %176 = arith.mulf %175, %140 : vector<128x128xf32>
    %177 = arith.addf %172, %176 : vector<128x128xf32>
    %178 = vector.extract_strided_slice %142 {offsets = [1, 0, 3], sizes = [1, 128, 1], strides = [1, 1, 1]} : vector<4x128x4xf32> to vector<1x128x1xf32>
    %179 = vector.shape_cast %178 : vector<1x128x1xf32> to vector<128x1xf32>
    %180 = vector.broadcast %179 : vector<128x1xf32> to vector<128x128xf32>
    %181 = arith.mulf %180, %141 : vector<128x128xf32>
    %182 = arith.addf %177, %181 : vector<128x128xf32>
    %183 = arith.addf %182, %8 : vector<128x128xf32>
    %cst_41 = arith.constant 0.000000e+00 : f32
    %184 = vector.broadcast %cst_41 : f32 to vector<128x128xf32>
    %185 = arith.cmpf ogt, %183, %184 : vector<128x128xf32>
    %186 = vector.broadcast %0 : f32 to vector<128x128xf32>
    %187 = arith.mulf %186, %183 : vector<128x128xf32>
    %188 = arith.select %185, %183, %187 : vector<128x128xi1>, vector<128x128xf32>
    %189 = arith.addf %166, %188 : vector<128x128xf32>
    %cst_42 = arith.constant 0.000000e+00 : f32
    %190 = vector.broadcast %cst_42 : f32 to vector<128x128xf32>
    %191 = vector.extract_strided_slice %142 {offsets = [2, 0, 1], sizes = [1, 128, 1], strides = [1, 1, 1]} : vector<4x128x4xf32> to vector<1x128x1xf32>
    %192 = vector.shape_cast %191 : vector<1x128x1xf32> to vector<128x1xf32>
    %193 = vector.broadcast %192 : vector<128x1xf32> to vector<128x128xf32>
    %194 = arith.mulf %193, %139 : vector<128x128xf32>
    %195 = arith.addf %190, %194 : vector<128x128xf32>
    %196 = vector.extract_strided_slice %142 {offsets = [2, 0, 2], sizes = [1, 128, 1], strides = [1, 1, 1]} : vector<4x128x4xf32> to vector<1x128x1xf32>
    %197 = vector.shape_cast %196 : vector<1x128x1xf32> to vector<128x1xf32>
    %198 = vector.broadcast %197 : vector<128x1xf32> to vector<128x128xf32>
    %199 = arith.mulf %198, %140 : vector<128x128xf32>
    %200 = arith.addf %195, %199 : vector<128x128xf32>
    %201 = vector.extract_strided_slice %142 {offsets = [2, 0, 3], sizes = [1, 128, 1], strides = [1, 1, 1]} : vector<4x128x4xf32> to vector<1x128x1xf32>
    %202 = vector.shape_cast %201 : vector<1x128x1xf32> to vector<128x1xf32>
    %203 = vector.broadcast %202 : vector<128x1xf32> to vector<128x128xf32>
    %204 = arith.mulf %203, %141 : vector<128x128xf32>
    %205 = arith.addf %200, %204 : vector<128x128xf32>
    %206 = arith.addf %205, %8 : vector<128x128xf32>
    %cst_43 = arith.constant 0.000000e+00 : f32
    %207 = vector.broadcast %cst_43 : f32 to vector<128x128xf32>
    %208 = arith.cmpf ogt, %206, %207 : vector<128x128xf32>
    %209 = vector.broadcast %0 : f32 to vector<128x128xf32>
    %210 = arith.mulf %209, %206 : vector<128x128xf32>
    %211 = arith.select %208, %206, %210 : vector<128x128xi1>, vector<128x128xf32>
    %212 = arith.addf %189, %211 : vector<128x128xf32>
    %cst_44 = arith.constant 0.000000e+00 : f32
    %213 = vector.broadcast %cst_44 : f32 to vector<128x128xf32>
    %214 = vector.extract_strided_slice %142 {offsets = [3, 0, 1], sizes = [1, 128, 1], strides = [1, 1, 1]} : vector<4x128x4xf32> to vector<1x128x1xf32>
    %215 = vector.shape_cast %214 : vector<1x128x1xf32> to vector<128x1xf32>
    %216 = vector.broadcast %215 : vector<128x1xf32> to vector<128x128xf32>
    %217 = arith.mulf %216, %139 : vector<128x128xf32>
    %218 = arith.addf %213, %217 : vector<128x128xf32>
    %219 = vector.extract_strided_slice %142 {offsets = [3, 0, 2], sizes = [1, 128, 1], strides = [1, 1, 1]} : vector<4x128x4xf32> to vector<1x128x1xf32>
    %220 = vector.shape_cast %219 : vector<1x128x1xf32> to vector<128x1xf32>
    %221 = vector.broadcast %220 : vector<128x1xf32> to vector<128x128xf32>
    %222 = arith.mulf %221, %140 : vector<128x128xf32>
    %223 = arith.addf %218, %222 : vector<128x128xf32>
    %224 = vector.extract_strided_slice %142 {offsets = [3, 0, 3], sizes = [1, 128, 1], strides = [1, 1, 1]} : vector<4x128x4xf32> to vector<1x128x1xf32>
    %225 = vector.shape_cast %224 : vector<1x128x1xf32> to vector<128x1xf32>
    %226 = vector.broadcast %225 : vector<128x1xf32> to vector<128x128xf32>
    %227 = arith.mulf %226, %141 : vector<128x128xf32>
    %228 = arith.addf %223, %227 : vector<128x128xf32>
    %229 = arith.addf %228, %8 : vector<128x128xf32>
    %cst_45 = arith.constant 0.000000e+00 : f32
    %230 = vector.broadcast %cst_45 : f32 to vector<128x128xf32>
    %231 = arith.cmpf ogt, %229, %230 : vector<128x128xf32>
    %232 = vector.broadcast %0 : f32 to vector<128x128xf32>
    %233 = arith.mulf %232, %229 : vector<128x128xf32>
    %234 = arith.select %231, %229, %233 : vector<128x128xi1>, vector<128x128xf32>
    %235 = arith.addf %212, %234 : vector<128x128xf32>
    %cst_46 = arith.constant 2.500000e-01 : f32
    %236 = vector.broadcast %cst_46 : f32 to vector<128x128xf32>
    %237 = arith.mulf %235, %236 : vector<128x128xf32>
    %238 = arith.mulf %237, %237 : vector<128x128xf32>
    %cst_47 = arith.constant dense<0.000000e+00> : vector<128xf32>
    %239 = vector.multi_reduction <add>, %238, %cst_47 [1] : vector<128x128xf32> to vector<128xf32>
    %240 = vector.shape_cast %239 : vector<128xf32> to vector<128x1xf32>
    %cst_48 = arith.constant 1.000000e-24 : f32
    %241 = vector.broadcast %cst_48 : f32 to vector<128x1xf32>
    %242 = arith.maximumf %240, %241 : vector<128x1xf32>
    %243 = math.rsqrt %242 : vector<128x1xf32>
    %244 = vector.broadcast %243 : vector<128x1xf32> to vector<128x128xf32>
    %245 = arith.mulf %237, %244 : vector<128x128xf32>
    %246 = arith.truncf %126 : vector<128x128xf32> to vector<128x128xbf16>
    %cst_49 = arith.constant dense<0.000000e+00> : vector<128x128xf32>
    %247 = tpu.matmul %246, %5, %cst_49 {dimension_numbers = #tpu.dot_dimension_numbers<[1], [0], [0], [1], [0, 0, 1, 1], [], []>} : vector<128x128xbf16>, vector<128x128xbf16>, vector<128x128xf32> -> vector<128x128xf32>
    %248 = arith.truncf %245 : vector<128x128xf32> to vector<128x128xbf16>
    %cst_50 = arith.constant dense<0.000000e+00> : vector<128x128xf32>
    %249 = tpu.matmul %248, %5, %cst_50 {dimension_numbers = #tpu.dot_dimension_numbers<[1], [0], [0], [1], [0, 0, 1, 1], [], []>} : vector<128x128xbf16>, vector<128x128xbf16>, vector<128x128xf32> -> vector<128x128xf32>
    %250 = arith.mulf %247, %134 : vector<128x128xf32>
    %cst_51 = arith.constant dense<0.000000e+00> : vector<128xf32>
    %251 = vector.multi_reduction <add>, %250, %cst_51 [1] : vector<128x128xf32> to vector<128xf32>
    %252 = vector.broadcast %1 : f32 to vector<128xf32>
    %253 = arith.addf %251, %252 : vector<128xf32>
    %c0_52 = arith.constant 0 : index
    %c0_53 = arith.constant 0 : index
    %254 = vector.load %arg10[%c0_52, %c0_53] : memref<2x128xf32, #tpu.memory_space<vmem>>, vector<1x128xf32>
    %255 = vector.shape_cast %254 : vector<1x128xf32> to vector<128xf32>
    %256 = vector.shape_cast %253 : vector<128xf32> to vector<1x128xf32>
    tpu.vector_store %arg10[%c0_52, %c0_53], %256 {strides = array<i32>} : memref<2x128xf32, #tpu.memory_space<vmem>>, vector<1x128xf32>,
    %257 = arith.mulf %249, %134 : vector<128x128xf32>
    %cst_54 = arith.constant dense<0.000000e+00> : vector<128xf32>
    %258 = vector.multi_reduction <add>, %257, %cst_54 [1] : vector<128x128xf32> to vector<128xf32>
    %259 = vector.broadcast %1 : f32 to vector<128xf32>
    %260 = arith.addf %258, %259 : vector<128xf32>
    %c1 = arith.constant 1 : index
    %c0_55 = arith.constant 0 : index
    %261 = vector.load %arg10[%c1, %c0_55] : memref<2x128xf32, #tpu.memory_space<vmem>>, vector<1x128xf32>
    %262 = vector.shape_cast %261 : vector<1x128xf32> to vector<128xf32>
    %263 = vector.shape_cast %260 : vector<128xf32> to vector<1x128xf32>
    tpu.vector_store %arg10[%c1, %c0_55], %263 {strides = array<i32>} : memref<2x128xf32, #tpu.memory_space<vmem>>, vector<1x128xf32>,
    return
  }
  func.func @transform_0(%arg0: i32) -> (i32, i32, i32) {
    %c0_i32 = arith.constant 0 : i32
    %c0_i32_0 = arith.constant 0 : i32
    %c0_i32_1 = arith.constant 0 : i32
    return %c0_i32, %arg0, %c0_i32_0 : i32, i32, i32
  }
  func.func @transform_1(%arg0: i32) -> (i32, i32, i32) {
    %c0_i32 = arith.constant 0 : i32
    %c0_i32_0 = arith.constant 0 : i32
    %c0_i32_1 = arith.constant 0 : i32
    return %c0_i32, %arg0, %c0_i32_0 : i32, i32, i32
  }
  func.func @transform_2(%arg0: i32) -> (i32, i32, i32) {
    %c0_i32 = arith.constant 0 : i32
    %c0_i32_0 = arith.constant 0 : i32
    %c0_i32_1 = arith.constant 0 : i32
    return %c0_i32, %arg0, %c0_i32_0 : i32, i32, i32
  }
  func.func @transform_3(%arg0: i32) -> (i32, i32, i32) {
    %c0_i32 = arith.constant 0 : i32
    %c0_i32_0 = arith.constant 0 : i32
    %c0_i32_1 = arith.constant 0 : i32
    return %c0_i32, %arg0, %c0_i32_0 : i32, i32, i32
  }
  func.func @transform_4(%arg0: i32) -> (i32, i32) {
    %c0_i32 = arith.constant 0 : i32
    %c0_i32_0 = arith.constant 0 : i32
    %c0_i32_1 = arith.constant 0 : i32
    return %c0_i32, %c0_i32_0 : i32, i32
  }
  func.func @transform_5(%arg0: i32) -> (i32, i32) {
    %c0_i32 = arith.constant 0 : i32
    %c0_i32_0 = arith.constant 0 : i32
    %c0_i32_1 = arith.constant 0 : i32
    return %c0_i32, %c0_i32_0 : i32, i32
  }
  func.func @transform_6(%arg0: i32) -> (i32, i32) {
    %c0_i32 = arith.constant 0 : i32
    %c0_i32_0 = arith.constant 0 : i32
    %c0_i32_1 = arith.constant 0 : i32
    return %c0_i32, %c0_i32_0 : i32, i32
  }
  func.func @transform_7(%arg0: i32) -> (i32, i32) {
    %c0_i32 = arith.constant 0 : i32
    %c0_i32_0 = arith.constant 0 : i32
    %c0_i32_1 = arith.constant 0 : i32
    return %c0_i32, %c0_i32_0 : i32, i32
  }
  func.func @transform_8(%arg0: i32) -> (i32, i32) {
    %c0_i32 = arith.constant 0 : i32
    %c0_i32_0 = arith.constant 0 : i32
    %c0_i32_1 = arith.constant 0 : i32
    return %c0_i32, %c0_i32_0 : i32, i32
  }
  func.func @transform_9(%arg0: i32) -> (i32, i32) {
    %c0_i32 = arith.constant 0 : i32
    %c0_i32_0 = arith.constant 0 : i32
    return %c0_i32, %arg0 : i32, i32
  }
}

</mosaic_0001>

<llo_original>
// kernel: tpu_custom_call.1
$region0: #{tpu_custom_call.1}
  #allocation0 [shape = 'u32[]', space=smem, size = 0x4, offset = 0x4, fixed_abs, tag = 'smem constant byte address 0x4 - core index']
  #allocation1 [shape = 'u32[144,128]{1,0:T(1,128)}', space=vmem, size = 0x12000, scoped, tag = 'internal scratch']
  #allocation2 [shape = 'f32[1,1]{1,0:T(1,128)S(6)}', space=smem, size = 0x200, scoped, tag = 'scoped memory for tpu_custom_call.1']
  #allocation3 [shape = 'f32[1,1]{1,0:T(1,128)S(6)}', space=smem, size = 0x200, scoped, tag = 'scoped memory for tpu_custom_call.1']
  %s0 = inlined_call_operand.vmem [shape: f32[4,256,128], index: 0, kind: input, shape index: {}]
  %s1 = inlined_call_operand.vmem [shape: f32[4,256,128], index: 1, kind: input, shape index: {}]
  %s2 = inlined_call_operand.vmem [shape: f32[4,256,4], index: 2, kind: input, shape index: {}]
  %s3 = inlined_call_operand.vmem [shape: f32[4,256,4], index: 3, kind: input, shape index: {}]
  %s4 = inlined_call_operand.hbm [shape: f32[128,128], index: 4, kind: input, shape index: {}]
  %s5 = inlined_call_operand.vmem [shape: f32[1,128], index: 5, kind: input, shape index: {}]
  %s6 = inlined_call_operand.hbm [shape: f32[128,128], index: 6, kind: input, shape index: {}]
  %s7 = inlined_call_operand.<no memory space> [shape: f32[1,1], index: 7, kind: input, shape index: {}]
  %s8 = inlined_call_operand.<no memory space> [shape: f32[1,1], index: 8, kind: input, shape index: {}]
  %s9 = inlined_call_operand.hbm [shape: f32[2,256], index: 9, kind: output, shape index: {}]
  %s10 = sld [smem:[#allocation0]]
  $region229: #{tpu_custom_call.1} parent=0
    _
  %s12 = ssub.s32 1, %s10
  %s13 = scalar_select 0, %s12, %s10
  %14 = sst [smem:[#allocation2]] %s7
  %15 = sst [smem:[#allocation3]] %s8
  $region1: #{tpu_custom_call.1} parent=0
    #allocation4 [shape = 'u8[524288]{0}', space=vmem, size = 0x80000, scoped, tag = 'input window, operand 0']
    #allocation5 [shape = 'u8[524288]{0}', space=vmem, size = 0x80000, scoped, tag = 'input window, operand 1']
    #allocation6 [shape = 'u8[524288]{0}', space=vmem, size = 0x80000, scoped, tag = 'input window, operand 2']
    #allocation7 [shape = 'u8[524288]{0}', space=vmem, size = 0x80000, scoped, tag = 'input window, operand 3']
    #allocation8 [shape = 'u8[65536]{0}', space=vmem, size = 0x10000, scoped, tag = 'input window, operand 4, single buffered']
    #allocation9 [shape = 's32[2]{0}', space=sflag, size = 0x8, scoped, tag = 'scoped memory for tpu_custom_call.1']
    #allocation10 [shape = 's32[2]{0}', space=sflag, size = 0x8, scoped, tag = 'scoped memory for tpu_custom_call.1']
    #allocation11 [shape = 'u8[65536]{0}', space=vmem, size = 0x10000, scoped, tag = 'input window, operand 6, single buffered']
    #allocation12 [shape = 's32[1]{0}', space=sflag, size = 0x4, scoped, tag = 'scoped memory for tpu_custom_call.1']
    #allocation13 [shape = 'u8[2048]{0}', space=vmem, size = 0x800, scoped, tag = 'output window, operand 0']
    %16 = vsyncpa [#allocation9], 0
    %17 = vsyncpa [#allocation12], 0
    %18 = vsyncpa [#allocation10], 0
    %s19 = scalar_lea.sflag [#allocation10], 1
    %20 = vsyncpa %s19, 0
    loop: start=0, step=1, limit=4
    $region2: #{tpu_custom_call.1} parent=1 // loop_pre_header
      _
    $region3: #{tpu_custom_call.1} parent=1 // loop_header
      %s22 = sphi 0, %s26
      %p23 = scmp.ge.s32.totalorder %s22, 4
      %s32 = sphi 0, %s34
      %s35 = sphi 0, %s32
      %s36 = sphi 0, %s35
      %s52 = sphi 0, %s36
      %s58 = sphi 0, %s60
      %s61 = sphi 0, %s58
      %s62 = sphi 0, %s61
      %s78 = sphi 0, %s62
      %s84 = sphi 0, %s86
      %s87 = sphi 0, %s84
      %s88 = sphi 0, %s87
      %s104 = sphi 0, %s88
      %s110 = sphi 0, %s112
      %s113 = sphi 0, %s110
      %s114 = sphi 0, %s113
      %s130 = sphi 0, %s114
      %s134 = sphi 0, %s134
      %s136 = sphi 0, %s134
      %s137 = sphi 0, %s136
      %s151 = sphi 0, %s137
      %s155 = sphi 0, %s155
      %s157 = sphi 0, %s155
      %s158 = sphi 0, %s157
      %s172 = sphi 0, %s158
      %s176 = sphi 0, %s176
      %s178 = sphi 0, %s176
      %s179 = sphi 0, %s178
      %s193 = sphi 0, %s179
      %s197 = sphi 0, %s197
      %s199 = sphi 0, %s197
      %s200 = sphi 0, %s199
      %s214 = sphi 0, %s200
      %s218 = sphi 0, %s218
      %s220 = sphi 0, %s218
      %s221 = sphi 0, %s220
      %s235 = sphi 0, %s221
      %s241 = sphi 0, %s243
      %s244 = sphi 0, %s241
      %s245 = sphi 0, %s244
      %s261 = sphi 0, %s245
    $region4: #{tpu_custom_call.1} parent=1 // loop_header_branch
      %25 = sbr.rel (%p23) target = $region8
    $region5: #{tpu_custom_call.1} parent=1 // loop_body
      %s27 = ssub.s32 %s22, 1
      %s28 = ssub.s32 %s22, 2
      %s29 = sadd.s32 %s22, 1
      %s30 = ssub.s32 %s22, %s29
      %p31 = scmp.eq.s32.totalorder %s30, 0
      %s33 = sadd.s32 %s32, 1
      %s34 = scalar_select %p31, %s32, %s33
      %p37 = pneg %p31
      %p38 = scmp.eq.s32.totalorder %s22, 1
      %p39 = por %p37, %p38
      %p40 = scmp.ne.s32.totalorder %s32, %s35
      %p41 = scmp.eq.s32.totalorder %s22, 0
      %p42 = por %p40, %p41
      %p43 = scmp.ne.s32.totalorder %s32, %s35
      %p44 = scmp.eq.s32.totalorder %s27, 1
      %p45 = por %p43, %p44
      %p46 = scmp.ne.s32.totalorder %s35, %s36
      %p47 = scmp.eq.s32.totalorder %s27, 0
      %p48 = por %p46, %p47
      %p49 = scmp.ne.s32.totalorder %s35, %s36
      %p50 = scmp.eq.s32.totalorder %s28, 1
      %p51 = por %p49, %p50
      %p53 = scmp.ne.s32.totalorder %s36, %s52
      %p54 = scmp.eq.s32.totalorder %s28, 0
      %p55 = por %p53, %p54
      %s56 = ssub.s32 %s22, %s29
      %p57 = scmp.eq.s32.totalorder %s56, 0
      %s59 = sadd.s32 %s58, 1
      %s60 = scalar_select %p57, %s58, %s59
      %p63 = pneg %p57
      %p64 = scmp.eq.s32.totalorder %s22, 1
      %p65 = por %p63, %p64
      %p66 = scmp.ne.s32.totalorder %s58, %s61
      %p67 = scmp.eq.s32.totalorder %s22, 0
      %p68 = por %p66, %p67
      %p69 = scmp.ne.s32.totalorder %s58, %s61
      %p70 = scmp.eq.s32.totalorder %s27, 1
      %p71 = por %p69, %p70
      %p72 = scmp.ne.s32.totalorder %s61, %s62
      %p73 = scmp.eq.s32.totalorder %s27, 0
      %p74 = por %p72, %p73
      %p75 = scmp.ne.s32.totalorder %s61, %s62
      %p76 = scmp.eq.s32.totalorder %s28, 1
      %p77 = por %p75, %p76
      %p79 = scmp.ne.s32.totalorder %s62, %s78
      %p80 = scmp.eq.s32.totalorder %s28, 0
      %p81 = por %p79, %p80
      %s82 = ssub.s32 %s22, %s29
      %p83 = scmp.eq.s32.totalorder %s82, 0
      %s85 = sadd.s32 %s84, 1
      %s86 = scalar_select %p83, %s84, %s85
      %p89 = pneg %p83
      %p90 = scmp.eq.s32.totalorder %s22, 1
      %p91 = por %p89, %p90
      %p92 = scmp.ne.s32.totalorder %s84, %s87
      %p93 = scmp.eq.s32.totalorder %s22, 0
      %p94 = por %p92, %p93
      %p95 = scmp.ne.s32.totalorder %s84, %s87
      %p96 = scmp.eq.s32.totalorder %s27, 1
      %p97 = por %p95, %p96
      %p98 = scmp.ne.s32.totalorder %s87, %s88
      %p99 = scmp.eq.s32.totalorder %s27, 0
      %p100 = por %p98, %p99
      %p101 = scmp.ne.s32.totalorder %s87, %s88
      %p102 = scmp.eq.s32.totalorder %s28, 1
      %p103 = por %p101, %p102
      %p105 = scmp.ne.s32.totalorder %s88, %s104
      %p106 = scmp.eq.s32.totalorder %s28, 0
      %p107 = por %p105, %p106
      %s108 = ssub.s32 %s22, %s29
      %p109 = scmp.eq.s32.totalorder %s108, 0
      %s111 = sadd.s32 %s110, 1
      %s112 = scalar_select %p109, %s110, %s111
      %p115 = pneg %p109
      %p116 = scmp.eq.s32.totalorder %s22, 1
      %p117 = por %p115, %p116
      %p118 = scmp.ne.s32.totalorder %s110, %s113
      %p119 = scmp.eq.s32.totalorder %s22, 0
      %p120 = por %p118, %p119
      %p121 = scmp.ne.s32.totalorder %s110, %s113
      %p122 = scmp.eq.s32.totalorder %s27, 1
      %p123 = por %p121, %p122
      %p124 = scmp.ne.s32.totalorder %s113, %s114
      %p125 = scmp.eq.s32.totalorder %s27, 0
      %p126 = por %p124, %p125
      %p127 = scmp.ne.s32.totalorder %s113, %s114
      %p128 = scmp.eq.s32.totalorder %s28, 1
      %p129 = por %p127, %p128
      %p131 = scmp.ne.s32.totalorder %s114, %s130
      %p132 = scmp.eq.s32.totalorder %s28, 0
      %p133 = por %p131, %p132
      %s135 = sadd.s32 %s134, 1
      %p138 = scmp.eq.s32.totalorder %s22, 1
      %p139 = scmp.ne.s32.totalorder %s134, %s136
      %p140 = scmp.eq.s32.totalorder %s22, 0
      %p141 = por %p139, %p140
      %p142 = scmp.ne.s32.totalorder %s134, %s136
      %p143 = scmp.eq.s32.totalorder %s27, 1
      %p144 = por %p142, %p143
      %p145 = scmp.ne.s32.totalorder %s136, %s137
      %p146 = scmp.eq.s32.totalorder %s27, 0
      %p147 = por %p145, %p146
      %p148 = scmp.ne.s32.totalorder %s136, %s137
      %p149 = scmp.eq.s32.totalorder %s28, 1
      %p150 = por %p148, %p149
      %p152 = scmp.ne.s32.totalorder %s137, %s151
      %p153 = scmp.eq.s32.totalorder %s28, 0
      %p154 = por %p152, %p153
      %s156 = sadd.s32 %s155, 1
      %p159 = scmp.eq.s32.totalorder %s22, 1
      %p160 = scmp.ne.s32.totalorder %s155, %s157
      %p161 = scmp.eq.s32.totalorder %s22, 0
      %p162 = por %p160, %p161
      %p163 = scmp.ne.s32.totalorder %s155, %s157
      %p164 = scmp.eq.s32.totalorder %s27, 1
      %p165 = por %p163, %p164
      %p166 = scmp.ne.s32.totalorder %s157, %s158
      %p167 = scmp.eq.s32.totalorder %s27, 0
      %p168 = por %p166, %p167
      %p169 = scmp.ne.s32.totalorder %s157, %s158
      %p170 = scmp.eq.s32.totalorder %s28, 1
      %p171 = por %p169, %p170
      %p173 = scmp.ne.s32.totalorder %s158, %s172
      %p174 = scmp.eq.s32.totalorder %s28, 0
      %p175 = por %p173, %p174
      %s177 = sadd.s32 %s176, 1
      %p180 = scmp.eq.s32.totalorder %s22, 1
      %p181 = scmp.ne.s32.totalorder %s176, %s178
      %p182 = scmp.eq.s32.totalorder %s22, 0
      %p183 = por %p181, %p182
      %p184 = scmp.ne.s32.totalorder %s176, %s178
      %p185 = scmp.eq.s32.totalorder %s27, 1
      %p186 = por %p184, %p185
      %p187 = scmp.ne.s32.totalorder %s178, %s179
      %p188 = scmp.eq.s32.totalorder %s27, 0
      %p189 = por %p187, %p188
      %p190 = scmp.ne.s32.totalorder %s178, %s179
      %p191 = scmp.eq.s32.totalorder %s28, 1
      %p192 = por %p190, %p191
      %p194 = scmp.ne.s32.totalorder %s179, %s193
      %p195 = scmp.eq.s32.totalorder %s28, 0
      %p196 = por %p194, %p195
      %s198 = sadd.s32 %s197, 1
      %p201 = scmp.eq.s32.totalorder %s22, 1
      %p202 = scmp.ne.s32.totalorder %s197, %s199
      %p203 = scmp.eq.s32.totalorder %s22, 0
      %p204 = por %p202, %p203
      %p205 = scmp.ne.s32.totalorder %s197, %s199
      %p206 = scmp.eq.s32.totalorder %s27, 1
      %p207 = por %p205, %p206
      %p208 = scmp.ne.s32.totalorder %s199, %s200
      %p209 = scmp.eq.s32.totalorder %s27, 0
      %p210 = por %p208, %p209
      %p211 = scmp.ne.s32.totalorder %s199, %s200
      %p212 = scmp.eq.s32.totalorder %s28, 1
      %p213 = por %p211, %p212
      %p215 = scmp.ne.s32.totalorder %s200, %s214
      %p216 = scmp.eq.s32.totalorder %s28, 0
      %p217 = por %p215, %p216
      %s219 = sadd.s32 %s218, 1
      %p222 = scmp.eq.s32.totalorder %s22, 1
      %p223 = scmp.ne.s32.totalorder %s218, %s220
      %p224 = scmp.eq.s32.totalorder %s22, 0
      %p225 = por %p223, %p224
      %p226 = scmp.ne.s32.totalorder %s218, %s220
      %p227 = scmp.eq.s32.totalorder %s27, 1
      %p228 = por %p226, %p227
      %p229 = scmp.ne.s32.totalorder %s220, %s221
      %p230 = scmp.eq.s32.totalorder %s27, 0
      %p231 = por %p229, %p230
      %p232 = scmp.ne.s32.totalorder %s220, %s221
      %p233 = scmp.eq.s32.totalorder %s28, 1
      %p234 = por %p232, %p233
      %p236 = scmp.ne.s32.totalorder %s221, %s235
      %p237 = scmp.eq.s32.totalorder %s28, 0
      %p238 = por %p236, %p237
      %s239 = ssub.s32 %s22, %s29
      %p240 = scmp.eq.s32.totalorder %s239, 0
      %s242 = sadd.s32 %s241, 1
      %s243 = scalar_select %p240, %s241, %s242
      %p246 = pneg %p240
      %p247 = scmp.eq.s32.totalorder %s22, 1
      %p248 = por %p246, %p247
      %p249 = scmp.ne.s32.totalorder %s241, %s244
      %p250 = scmp.eq.s32.totalorder %s22, 0
      %p251 = por %p249, %p250
      %p252 = scmp.ne.s32.totalorder %s241, %s244
      %p253 = scmp.eq.s32.totalorder %s27, 1
      %p254 = por %p252, %p253
      %p255 = scmp.ne.s32.totalorder %s244, %s245
      %p256 = scmp.eq.s32.totalorder %s27, 0
      %p257 = por %p255, %p256
      %p258 = scmp.ne.s32.totalorder %s244, %s245
      %p259 = scmp.eq.s32.totalorder %s28, 1
      %p260 = por %p258, %p259
      %p262 = scmp.ne.s32.totalorder %s245, %s261
      %p263 = scmp.eq.s32.totalorder %s28, 0
      %p264 = por %p262, %p263
      %p265 = scmp.le.s32.totalorder 1, %s22
      %p266 = scmp.lt.s32.totalorder %s22, 3
      %p267 = pnand %p265, %p266
      %p268 = pneg %p267
      // Predicated region
      $region9: #{tpu_custom_call.1} parent=5 // pred_check
        _
      $region10: #{tpu_custom_call.1} parent=5 // pred_check_branch
        %270 = sbr.rel (%p267) target = $region12
      $region11: #{tpu_custom_call.1} parent=5 // pred_region
        %s271 = ssub.s32 %s22, 1
        // Predicated region
        $region13: #{tpu_custom_call.1} parent=11 // pred_check
          %p272 = pneg %p147
        $region14: #{tpu_custom_call.1} parent=11 // pred_check_branch
          %274 = sbr.rel (%p272) target = $region16
        $region15: #{tpu_custom_call.1} parent=11 // pred_region
          %s276 = ssub.s32 2048, 2048
          %277 = vsyncadd [#allocation9], %s276
          %s278 = sshll.u32 [#allocation8], 4
          %s279 = int_to_ptr.vmem [resolvable:$true] %s278
          %284 = dma.hbm_to_vmem [thread:$0]  %s4, 2048, %s279, [#allocation9], 128, 128, 8
        $region16: #{tpu_custom_call.1} parent=11 // pred_fallthru
          _
        // Predicated region
        $region17: #{tpu_custom_call.1} parent=11 // pred_check
          %p285 = pneg %p168
        $region18: #{tpu_custom_call.1} parent=11 // pred_check_branch
          %287 = sbr.rel (%p285) target = $region20
        $region19: #{tpu_custom_call.1} parent=11 // pred_region
          _
        $region20: #{tpu_custom_call.1} parent=11 // pred_fallthru
          _
        // Predicated region
        $region21: #{tpu_custom_call.1} parent=11 // pred_check
          %p288 = pneg %p189
        $region22: #{tpu_custom_call.1} parent=11 // pred_check_branch
          %290 = sbr.rel (%p288) target = $region24
        $region23: #{tpu_custom_call.1} parent=11 // pred_region
          %s292 = ssub.s32 2048, 2048
          %293 = vsyncadd [#allocation12], %s292
          %s294 = sshll.u32 [#allocation11], 4
          %s295 = int_to_ptr.vmem [resolvable:$true] %s294
          %300 = dma.hbm_to_vmem [thread:$0]  %s6, 2048, %s295, [#allocation12], 128, 128, 8
        $region24: #{tpu_custom_call.1} parent=11 // pred_fallthru
          _
        // Predicated region
        $region25: #{tpu_custom_call.1} parent=11 // pred_check
          %p301 = pneg %p210
        $region26: #{tpu_custom_call.1} parent=11 // pred_check_branch
          %303 = sbr.rel (%p301) target = $region28
        $region27: #{tpu_custom_call.1} parent=11 // pred_region
          _
        $region28: #{tpu_custom_call.1} parent=11 // pred_fallthru
          _
        // Predicated region
        $region29: #{tpu_custom_call.1} parent=11 // pred_check
          %p304 = pneg %p231
        $region30: #{tpu_custom_call.1} parent=11 // pred_check_branch
          %306 = sbr.rel (%p304) target = $region32
        $region31: #{tpu_custom_call.1} parent=11 // pred_region
          _
        $region32: #{tpu_custom_call.1} parent=11 // pred_fallthru
          _
      $region12: #{tpu_custom_call.1} parent=5 // pred_fallthru
        _
      %p307 = scmp.lt.s32.totalorder %s22, 2
      // Predicated region
      $region33: #{tpu_custom_call.1} parent=5 // pred_check
        %p308 = pneg %p307
      $region34: #{tpu_custom_call.1} parent=5 // pred_check_branch
        %310 = sbr.rel (%p308) target = $region36
      $region35: #{tpu_custom_call.1} parent=5 // pred_region
        // Predicated region
        $region37: #{tpu_custom_call.1} parent=35 // pred_check
          %p311 = pneg %p42
        $region38: #{tpu_custom_call.1} parent=35 // pred_check_branch
          %313 = sbr.rel (%p311) target = $region40
        $region39: #{tpu_custom_call.1} parent=35 // pred_region
          %s314 = sand.u32 %s32, 1
          %s315 = sand.u32 %s32, 1
          %s316 = smul.addr %s315, 512
          %s317 = scalar_lea.vmem [#allocation4], %s316
          %s318 = smul.u32 16, %s22
          %s319 = smul.addr %s318, 8
          %s320 = scalar_lea.vmem %s0, %s319
          // Predicated region
          $region41: #{tpu_custom_call.1} parent=39 // pred_check
            _
          $region42: #{tpu_custom_call.1} parent=39 // pred_check_branch
            %322 = sbr.rel (0) target = $region44
          $region43: #{tpu_custom_call.1} parent=39 // pred_region
            // Predicated region
            $region45: #{tpu_custom_call.1} parent=43 // pred_check
              _
            $region46: #{tpu_custom_call.1} parent=43 // pred_check_branch
              %324 = sbr.rel (0) target = $region48
            $region47: #{tpu_custom_call.1} parent=43 // pred_region
              // Predicated region
              $region60: #{tpu_custom_call.1} parent=47 // pred_check
                _
              $region61: #{tpu_custom_call.1} parent=47 // pred_check_branch
                %466 = sbr.rel (0) target = $region63
              $region62: #{tpu_custom_call.1} parent=47 // pred_region
                loop: start=0, step=1, limit=1
                $region64: #{tpu_custom_call.1} parent=62 // loop_pre_header
                  _
                $region65: #{tpu_custom_call.1} parent=62 // loop_header
                  %s468 = sphi 0, %s472
                  %p469 = scmp.ge.s32.totalorder %s468, 1
                  %s473 = sphi %s320, %s320
                  %s474 = sphi %s317, %s317
                $region66: #{tpu_custom_call.1} parent=62 // loop_header_branch
                  %471 = sbr.rel (%p469) target = $region70
                $region67: #{tpu_custom_call.1} parent=62 // loop_body
                  %v475 = vld [vmem:[%s473] sm:$0xff]
                  %476 = vst [vmem:[%s474] sm:$0xff] %v475
                  %v477 = vld [vmem:[%s473 + $0x8] sm:$0xff]
                  %478 = vst [vmem:[%s474 + $0x8] sm:$0xff] %v477
                  %v479 = vld [vmem:[%s473 + $0x10] sm:$0xff]
                  %480 = vst [vmem:[%s474 + $0x10] sm:$0xff] %v479
                  %v481 = vld [vmem:[%s473 + $0x18] sm:$0xff]
                  %482 = vst [vmem:[%s474 + $0x18] sm:$0xff] %v481
                  %v483 = vld [vmem:[%s473 + $0x20] sm:$0xff]
                  %484 = vst [vmem:[%s474 + $0x20] sm:$0xff] %v483
                  %v485 = vld [vmem:[%s473 + $0x28] sm:$0xff]
                  %486 = vst [vmem:[%s474 + $0x28] sm:$0xff] %v485
                  %v487 = vld [vmem:[%s473 + $0x30] sm:$0xff]
                  %488 = vst [vmem:[%s474 + $0x30] sm:$0xff] %v487
                  %v489 = vld [vmem:[%s473 + $0x38] sm:$0xff]
                  %490 = vst [vmem:[%s474 + $0x38] sm:$0xff] %v489
                  %v491 = vld [vmem:[%s473 + $0x40] sm:$0xff]
                  %492 = vst [vmem:[%s474 + $0x40] sm:$0xff] %v491
                  %v493 = vld [vmem:[%s473 + $0x48] sm:$0xff]
                  %494 = vst [vmem:[%s474 + $0x48] sm:$0xff] %v493
                  %v495 = vld [vmem:[%s473 + $0x50] sm:$0xff]
                  %496 = vst [vmem:[%s474 + $0x50] sm:$0xff] %v495
                  %v497 = vld [vmem:[%s473 + $0x58] sm:$0xff]
                  %498 = vst [vmem:[%s474 + $0x58] sm:$0xff] %v497
                  %v499 = vld [vmem:[%s473 + $0x60] sm:$0xff]
                  %500 = vst [vmem:[%s474 + $0x60] sm:$0xff] %v499
                  %v501 = vld [vmem:[%s473 + $0x68] sm:$0xff]
                  %502 = vst [vmem:[%s474 + $0x68] sm:$0xff] %v501
                  %v503 = vld [vmem:[%s473 + $0x70] sm:$0xff]
                  %504 = vst [vmem:[%s474 + $0x70] sm:$0xff] %v503
                  %v505 = vld [vmem:[%s473 + $0x78] sm:$0xff]
                  %506 = vst [vmem:[%s474 + $0x78] sm:$0xff] %v505
                  %v507 = vld [vmem:[%s473 + $0x100] sm:$0xff]
                  %508 = vst [vmem:[%s474 + $0x80] sm:$0xff] %v507
                  %v509 = vld [vmem:[%s473 + $0x108] sm:$0xff]
                  %510 = vst [vmem:[%s474 + $0x88] sm:$0xff] %v509
                  %v511 = vld [vmem:[%s473 + $0x110] sm:$0xff]
                  %512 = vst [vmem:[%s474 + $0x90] sm:$0xff] %v511
                  %v513 = vld [vmem:[%s473 + $0x118] sm:$0xff]
                  %514 = vst [vmem:[%s474 + $0x98] sm:$0xff] %v513
                  %v515 = vld [vmem:[%s473 + $0x120] sm:$0xff]
                  %516 = vst [vmem:[%s474 + $0xa0] sm:$0xff] %v515
                  %v517 = vld [vmem:[%s473 + $0x128] sm:$0xff]
                  %518 = vst [vmem:[%s474 + $0xa8] sm:$0xff] %v517
                  %v519 = vld [vmem:[%s473 + $0x130] sm:$0xff]
                  %520 = vst [vmem:[%s474 + $0xb0] sm:$0xff] %v519
                  %v521 = vld [vmem:[%s473 + $0x138] sm:$0xff]
                  %522 = vst [vmem:[%s474 + $0xb8] sm:$0xff] %v521
                  %v523 = vld [vmem:[%s473 + $0x140] sm:$0xff]
                  %524 = vst [vmem:[%s474 + $0xc0] sm:$0xff] %v523
                  %v525 = vld [vmem:[%s473 + $0x148] sm:$0xff]
                  %526 = vst [vmem:[%s474 + $0xc8] sm:$0xff] %v525
                  %v527 = vld [vmem:[%s473 + $0x150] sm:$0xff]
                  %528 = vst [vmem:[%s474 + $0xd0] sm:$0xff] %v527
                  %v529 = vld [vmem:[%s473 + $0x158] sm:$0xff]
                  %530 = vst [vmem:[%s474 + $0xd8] sm:$0xff] %v529
                  %v531 = vld [vmem:[%s473 + $0x160] sm:$0xff]
                  %532 = vst [vmem:[%s474 + $0xe0] sm:$0xff] %v531
                  %v533 = vld [vmem:[%s473 + $0x168] sm:$0xff]
                  %534 = vst [vmem:[%s474 + $0xe8] sm:$0xff] %v533
                  %v535 = vld [vmem:[%s473 + $0x170] sm:$0xff]
                  %536 = vst [vmem:[%s474 + $0xf0] sm:$0xff] %v535
                  %v537 = vld [vmem:[%s473 + $0x178] sm:$0xff]
                  %538 = vst [vmem:[%s474 + $0xf8] sm:$0xff] %v537
                  %v539 = vld [vmem:[%s473 + $0x200] sm:$0xff]
                  %540 = vst [vmem:[%s474 + $0x100] sm:$0xff] %v539
                  %v541 = vld [vmem:[%s473 + $0x208] sm:$0xff]
                  %542 = vst [vmem:[%s474 + $0x108] sm:$0xff] %v541
                  %v543 = vld [vmem:[%s473 + $0x210] sm:$0xff]
                  %544 = vst [vmem:[%s474 + $0x110] sm:$0xff] %v543
                  %v545 = vld [vmem:[%s473 + $0x218] sm:$0xff]
                  %546 = vst [vmem:[%s474 + $0x118] sm:$0xff] %v545
                  %v547 = vld [vmem:[%s473 + $0x220] sm:$0xff]
                  %548 = vst [vmem:[%s474 + $0x120] sm:$0xff] %v547
                  %v549 = vld [vmem:[%s473 + $0x228] sm:$0xff]
                  %550 = vst [vmem:[%s474 + $0x128] sm:$0xff] %v549
                  %v551 = vld [vmem:[%s473 + $0x230] sm:$0xff]
                  %552 = vst [vmem:[%s474 + $0x130] sm:$0xff] %v551
                  %v553 = vld [vmem:[%s473 + $0x238] sm:$0xff]
                  %554 = vst [vmem:[%s474 + $0x138] sm:$0xff] %v553
                  %v555 = vld [vmem:[%s473 + $0x240] sm:$0xff]
                  %556 = vst [vmem:[%s474 + $0x140] sm:$0xff] %v555
                  %v557 = vld [vmem:[%s473 + $0x248] sm:$0xff]
                  %558 = vst [vmem:[%s474 + $0x148] sm:$0xff] %v557
                  %v559 = vld [vmem:[%s473 + $0x250] sm:$0xff]
                  %560 = vst [vmem:[%s474 + $0x150] sm:$0xff] %v559
                  %v561 = vld [vmem:[%s473 + $0x258] sm:$0xff]
                  %562 = vst [vmem:[%s474 + $0x158] sm:$0xff] %v561
                  %v563 = vld [vmem:[%s473 + $0x260] sm:$0xff]
                  %564 = vst [vmem:[%s474 + $0x160] sm:$0xff] %v563
                  %v565 = vld [vmem:[%s473 + $0x268] sm:$0xff]
                  %566 = vst [vmem:[%s474 + $0x168] sm:$0xff] %v565
                  %v567 = vld [vmem:[%s473 + $0x270] sm:$0xff]
                  %568 = vst [vmem:[%s474 + $0x170] sm:$0xff] %v567
                  %v569 = vld [vmem:[%s473 + $0x278] sm:$0xff]
                  %570 = vst [vmem:[%s474 + $0x178] sm:$0xff] %v569
                  %v571 = vld [vmem:[%s473 + $0x300] sm:$0xff]
                  %572 = vst [vmem:[%s474 + $0x180] sm:$0xff] %v571
                  %v573 = vld [vmem:[%s473 + $0x308] sm:$0xff]
                  %574 = vst [vmem:[%s474 + $0x188] sm:$0xff] %v573
                  %v575 = vld [vmem:[%s473 + $0x310] sm:$0xff]
                  %576 = vst [vmem:[%s474 + $0x190] sm:$0xff] %v575
                  %v577 = vld [vmem:[%s473 + $0x318] sm:$0xff]
                  %578 = vst [vmem:[%s474 + $0x198] sm:$0xff] %v577
                  %v579 = vld [vmem:[%s473 + $0x320] sm:$0xff]
                  %580 = vst [vmem:[%s474 + $0x1a0] sm:$0xff] %v579
                  %v581 = vld [vmem:[%s473 + $0x328] sm:$0xff]
                  %582 = vst [vmem:[%s474 + $0x1a8] sm:$0xff] %v581
                  %v583 = vld [vmem:[%s473 + $0x330] sm:$0xff]
                  %584 = vst [vmem:[%s474 + $0x1b0] sm:$0xff] %v583
                  %v585 = vld [vmem:[%s473 + $0x338] sm:$0xff]
                  %586 = vst [vmem:[%s474 + $0x1b8] sm:$0xff] %v585
                  %v587 = vld [vmem:[%s473 + $0x340] sm:$0xff]
                  %588 = vst [vmem:[%s474 + $0x1c0] sm:$0xff] %v587
                  %v589 = vld [vmem:[%s473 + $0x348] sm:$0xff]
                  %590 = vst [vmem:[%s474 + $0x1c8] sm:$0xff] %v589
                  %v591 = vld [vmem:[%s473 + $0x350] sm:$0xff]
                  %592 = vst [vmem:[%s474 + $0x1d0] sm:$0xff] %v591
                  %v593 = vld [vmem:[%s473 + $0x358] sm:$0xff]
                  %594 = vst [vmem:[%s474 + $0x1d8] sm:$0xff] %v593
                  %v595 = vld [vmem:[%s473 + $0x360] sm:$0xff]
                  %596 = vst [vmem:[%s474 + $0x1e0] sm:$0xff] %v595
                  %v597 = vld [vmem:[%s473 + $0x368] sm:$0xff]
                  %598 = vst [vmem:[%s474 + $0x1e8] sm:$0xff] %v597
                  %v599 = vld [vmem:[%s473 + $0x370] sm:$0xff]
                  %600 = vst [vmem:[%s474 + $0x1f0] sm:$0xff] %v599
                  %v601 = vld [vmem:[%s473 + $0x378] sm:$0xff]
                  %602 = vst [vmem:[%s474 + $0x1f8] sm:$0xff] %v601
                $region68: #{tpu_custom_call.1} parent=62 // loop_footer
                  %s472 = sadd.s32 1, %s468
                $region69: #{tpu_custom_call.1} parent=62 // loop_footer_branch
                  %467 = sbr.rel target = $region65
                $region70: #{tpu_custom_call.1} parent=62 // loop_exit
                  _
              $region63: #{tpu_custom_call.1} parent=47 // pred_fallthru
                _
              // Predicated region
              $region71: #{tpu_custom_call.1} parent=47 // pred_check
                _
              $region72: #{tpu_custom_call.1} parent=47 // pred_check_branch
                %604 = sbr.rel target = $region74
              $region73: #{tpu_custom_call.1} parent=47 // pred_region
                _
              $region74: #{tpu_custom_call.1} parent=47 // pred_fallthru
                _
            $region48: #{tpu_custom_call.1} parent=43 // pred_fallthru
              _
            // Predicated region
            $region49: #{tpu_custom_call.1} parent=43 // pred_check
              _
            $region50: #{tpu_custom_call.1} parent=43 // pred_check_branch
              %326 = sbr.rel target = $region52
            $region51: #{tpu_custom_call.1} parent=43 // pred_region
              %s328 = ssub.s32 256, 1
              loop: start=0, step=1, limit=1
              $region53: #{tpu_custom_call.1} parent=51 // loop_pre_header
                _
              $region54: #{tpu_custom_call.1} parent=51 // loop_header
                %s330 = sphi 0, %s334
                %p331 = scmp.ge.s32.totalorder %s330, 1
                %s335 = sphi %s320, %s320
                %s336 = sphi %s317, %s317
              $region55: #{tpu_custom_call.1} parent=51 // loop_header_branch
                %333 = sbr.rel (%p331) target = $region59
              $region56: #{tpu_custom_call.1} parent=51 // loop_body
                %v337 = vld [vmem:[%s335] sm:%s328]
                %338 = vst [vmem:[%s336] sm:%s328] %v337
                %v339 = vld [vmem:[%s335 + $0x8] sm:%s328]
                %340 = vst [vmem:[%s336 + $0x8] sm:%s328] %v339
                %v341 = vld [vmem:[%s335 + $0x10] sm:%s328]
                %342 = vst [vmem:[%s336 + $0x10] sm:%s328] %v341
                %v343 = vld [vmem:[%s335 + $0x18] sm:%s328]
                %344 = vst [vmem:[%s336 + $0x18] sm:%s328] %v343
                %v345 = vld [vmem:[%s335 + $0x20] sm:%s328]
                %346 = vst [vmem:[%s336 + $0x20] sm:%s328] %v345
                %v347 = vld [vmem:[%s335 + $0x28] sm:%s328]
                %348 = vst [vmem:[%s336 + $0x28] sm:%s328] %v347
                %v349 = vld [vmem:[%s335 + $0x30] sm:%s328]
                %350 = vst [vmem:[%s336 + $0x30] sm:%s328] %v349
                %v351 = vld [vmem:[%s335 + $0x38] sm:%s328]
                %352 = vst [vmem:[%s336 + $0x38] sm:%s328] %v351
                %v353 = vld [vmem:[%s335 + $0x40] sm:%s328]
                %354 = vst [vmem:[%s336 + $0x40] sm:%s328] %v353
                %v355 = vld [vmem:[%s335 + $0x48] sm:%s328]
                %356 = vst [vmem:[%s336 + $0x48] sm:%s328] %v355
                %v357 = vld [vmem:[%s335 + $0x50] sm:%s328]
                %358 = vst [vmem:[%s336 + $0x50] sm:%s328] %v357
                %v359 = vld [vmem:[%s335 + $0x58] sm:%s328]
                %360 = vst [vmem:[%s336 + $0x58] sm:%s328] %v359
                %v361 = vld [vmem:[%s335 + $0x60] sm:%s328]
                %362 = vst [vmem:[%s336 + $0x60] sm:%s328] %v361
                %v363 = vld [vmem:[%s335 + $0x68] sm:%s328]
                %364 = vst [vmem:[%s336 + $0x68] sm:%s328] %v363
                %v365 = vld [vmem:[%s335 + $0x70] sm:%s328]
                %366 = vst [vmem:[%s336 + $0x70] sm:%s328] %v365
                %v367 = vld [vmem:[%s335 + $0x78] sm:%s328]
                %368 = vst [vmem:[%s336 + $0x78] sm:%s328] %v367
                %v369 = vld [vmem:[%s335 + $0x100] sm:%s328]
                %370 = vst [vmem:[%s336 + $0x80] sm:%s328] %v369
                %v371 = vld [vmem:[%s335 + $0x108] sm:%s328]
                %372 = vst [vmem:[%s336 + $0x88] sm:%s328] %v371
                %v373 = vld [vmem:[%s335 + $0x110] sm:%s328]
                %374 = vst [vmem:[%s336 + $0x90] sm:%s328] %v373
                %v375 = vld [vmem:[%s335 + $0x118] sm:%s328]
                %376 = vst [vmem:[%s336 + $0x98] sm:%s328] %v375
                %v377 = vld [vmem:[%s335 + $0x120] sm:%s328]
                %378 = vst [vmem:[%s336 + $0xa0] sm:%s328] %v377
                %v379 = vld [vmem:[%s335 + $0x128] sm:%s328]
                %380 = vst [vmem:[%s336 + $0xa8] sm:%s328] %v379
                %v381 = vld [vmem:[%s335 + $0x130] sm:%s328]
                %382 = vst [vmem:[%s336 + $0xb0] sm:%s328] %v381
                %v383 = vld [vmem:[%s335 + $0x138] sm:%s328]
                %384 = vst [vmem:[%s336 + $0xb8] sm:%s328] %v383
                %v385 = vld [vmem:[%s335 + $0x140] sm:%s328]
                %386 = vst [vmem:[%s336 + $0xc0] sm:%s328] %v385
                %v387 = vld [vmem:[%s335 + $0x148] sm:%s328]
                %388 = vst [vmem:[%s336 + $0xc8] sm:%s328] %v387
                %v389 = vld [vmem:[%s335 + $0x150] sm:%s328]
                %390 = vst [vmem:[%s336 + $0xd0] sm:%s328] %v389
                %v391 = vld [vmem:[%s335 + $0x158] sm:%s328]
                %392 = vst [vmem:[%s336 + $0xd8] sm:%s328] %v391
                %v393 = vld [vmem:[%s335 + $0x160] sm:%s328]
                %394 = vst [vmem:[%s336 + $0xe0] sm:%s328] %v393
                %v395 = vld [vmem:[%s335 + $0x168] sm:%s328]
                %396 = vst [vmem:[%s336 + $0xe8] sm:%s328] %v395
                %v397 = vld [vmem:[%s335 + $0x170] sm:%s328]
                %398 = vst [vmem:[%s336 + $0xf0] sm:%s328] %v397
                %v399 = vld [vmem:[%s335 + $0x178] sm:%s328]
                %400 = vst [vmem:[%s336 + $0xf8] sm:%s328] %v399
                %v401 = vld [vmem:[%s335 + $0x200] sm:%s328]
                %402 = vst [vmem:[%s336 + $0x100] sm:%s328] %v401
                %v403 = vld [vmem:[%s335 + $0x208] sm:%s328]
                %404 = vst [vmem:[%s336 + $0x108] sm:%s328] %v403
                %v405 = vld [vmem:[%s335 + $0x210] sm:%s328]
                %406 = vst [vmem:[%s336 + $0x110] sm:%s328] %v405
                %v407 = vld [vmem:[%s335 + $0x218] sm:%s328]
                %408 = vst [vmem:[%s336 + $0x118] sm:%s328] %v407
                %v409 = vld [vmem:[%s335 + $0x220] sm:%s328]
                %410 = vst [vmem:[%s336 + $0x120] sm:%s328] %v409
                %v411 = vld [vmem:[%s335 + $0x228] sm:%s328]
                %412 = vst [vmem:[%s336 + $0x128] sm:%s328] %v411
                %v413 = vld [vmem:[%s335 + $0x230] sm:%s328]
                %414 = vst [vmem:[%s336 + $0x130] sm:%s328] %v413
                %v415 = vld [vmem:[%s335 + $0x238] sm:%s328]
                %416 = vst [vmem:[%s336 + $0x138] sm:%s328] %v415
                %v417 = vld [vmem:[%s335 + $0x240] sm:%s328]
                %418 = vst [vmem:[%s336 + $0x140] sm:%s328] %v417
                %v419 = vld [vmem:[%s335 + $0x248] sm:%s328]
                %420 = vst [vmem:[%s336 + $0x148] sm:%s328] %v419
                %v421 = vld [vmem:[%s335 + $0x250] sm:%s328]
                %422 = vst [vmem:[%s336 + $0x150] sm:%s328] %v421
                %v423 = vld [vmem:[%s335 + $0x258] sm:%s328]
                %424 = vst [vmem:[%s336 + $0x158] sm:%s328] %v423
                %v425 = vld [vmem:[%s335 + $0x260] sm:%s328]
                %426 = vst [vmem:[%s336 + $0x160] sm:%s328] %v425
                %v427 = vld [vmem:[%s335 + $0x268] sm:%s328]
                %428 = vst [vmem:[%s336 + $0x168] sm:%s328] %v427
                %v429 = vld [vmem:[%s335 + $0x270] sm:%s328]
                %430 = vst [vmem:[%s336 + $0x170] sm:%s328] %v429
                %v431 = vld [vmem:[%s335 + $0x278] sm:%s328]
                %432 = vst [vmem:[%s336 + $0x178] sm:%s328] %v431
                %v433 = vld [vmem:[%s335 + $0x300] sm:%s328]
                %434 = vst [vmem:[%s336 + $0x180] sm:%s328] %v433
                %v435 = vld [vmem:[%s335 + $0x308] sm:%s328]
                %436 = vst [vmem:[%s336 + $0x188] sm:%s328] %v435
                %v437 = vld [vmem:[%s335 + $0x310] sm:%s328]
                %438 = vst [vmem:[%s336 + $0x190] sm:%s328] %v437
                %v439 = vld [vmem:[%s335 + $0x318] sm:%s328]
                %440 = vst [vmem:[%s336 + $0x198] sm:%s328] %v439
                %v441 = vld [vmem:[%s335 + $0x320] sm:%s328]
                %442 = vst [vmem:[%s336 + $0x1a0] sm:%s328] %v441
                %v443 = vld [vmem:[%s335 + $0x328] sm:%s328]
                %444 = vst [vmem:[%s336 + $0x1a8] sm:%s328] %v443
                %v445 = vld [vmem:[%s335 + $0x330] sm:%s328]
                %446 = vst [vmem:[%s336 + $0x1b0] sm:%s328] %v445
                %v447 = vld [vmem:[%s335 + $0x338] sm:%s328]
                %448 = vst [vmem:[%s336 + $0x1b8] sm:%s328] %v447
                %v449 = vld [vmem:[%s335 + $0x340] sm:%s328]
                %450 = vst [vmem:[%s336 + $0x1c0] sm:%s328] %v449
                %v451 = vld [vmem:[%s335 + $0x348] sm:%s328]
                %452 = vst [vmem:[%s336 + $0x1c8] sm:%s328] %v451
                %v453 = vld [vmem:[%s335 + $0x350] sm:%s328]
                %454 = vst [vmem:[%s336 + $0x1d0] sm:%s328] %v453
                %v455 = vld [vmem:[%s335 + $0x358] sm:%s328]
                %456 = vst [vmem:[%s336 + $0x1d8] sm:%s328] %v455
                %v457 = vld [vmem:[%s335 + $0x360] sm:%s328]
                %458 = vst [vmem:[%s336 + $0x1e0] sm:%s328] %v457
                %v459 = vld [vmem:[%s335 + $0x368] sm:%s328]
                %460 = vst [vmem:[%s336 + $0x1e8] sm:%s328] %v459
                %v461 = vld [vmem:[%s335 + $0x370] sm:%s328]
                %462 = vst [vmem:[%s336 + $0x1f0] sm:%s328] %v461
                %v463 = vld [vmem:[%s335 + $0x378] sm:%s328]
                %464 = vst [vmem:[%s336 + $0x1f8] sm:%s328] %v463
              $region57: #{tpu_custom_call.1} parent=51 // loop_footer
                %s334 = sadd.s32 1, %s330
              $region58: #{tpu_custom_call.1} parent=51 // loop_footer_branch
                %329 = sbr.rel target = $region54
              $region59: #{tpu_custom_call.1} parent=51 // loop_exit
                _
            $region52: #{tpu_custom_call.1} parent=43 // pred_fallthru
              _
          $region44: #{tpu_custom_call.1} parent=39 // pred_fallthru
            _
          %605 = vnop
        $region40: #{tpu_custom_call.1} parent=35 // pred_fallthru
          _
        // Predicated region
        $region75: #{tpu_custom_call.1} parent=35 // pred_check
          %p606 = pneg %p68
        $region76: #{tpu_custom_call.1} parent=35 // pred_check_branch
          %608 = sbr.rel (%p606) target = $region78
        $region77: #{tpu_custom_call.1} parent=35 // pred_region
          %s609 = sand.u32 %s58, 1
          %s610 = sand.u32 %s58, 1
          %s611 = smul.addr %s610, 512
          %s612 = scalar_lea.vmem [#allocation5], %s611
          %s613 = smul.u32 16, %s22
          %s614 = smul.addr %s613, 8
          %s615 = scalar_lea.vmem %s1, %s614
          // Predicated region
          $region79: #{tpu_custom_call.1} parent=77 // pred_check
            _
          $region80: #{tpu_custom_call.1} parent=77 // pred_check_branch
            %617 = sbr.rel (0) target = $region82
          $region81: #{tpu_custom_call.1} parent=77 // pred_region
            // Predicated region
            $region83: #{tpu_custom_call.1} parent=81 // pred_check
              _
            $region84: #{tpu_custom_call.1} parent=81 // pred_check_branch
              %619 = sbr.rel (0) target = $region86
            $region85: #{tpu_custom_call.1} parent=81 // pred_region
              // Predicated region
              $region98: #{tpu_custom_call.1} parent=85 // pred_check
                _
              $region99: #{tpu_custom_call.1} parent=85 // pred_check_branch
                %761 = sbr.rel (0) target = $region101
              $region100: #{tpu_custom_call.1} parent=85 // pred_region
                loop: start=0, step=1, limit=1
                $region102: #{tpu_custom_call.1} parent=100 // loop_pre_header
                  _
                $region103: #{tpu_custom_call.1} parent=100 // loop_header
                  %s763 = sphi 0, %s767
                  %p764 = scmp.ge.s32.totalorder %s763, 1
                  %s768 = sphi %s615, %s615
                  %s769 = sphi %s612, %s612
                $region104: #{tpu_custom_call.1} parent=100 // loop_header_branch
                  %766 = sbr.rel (%p764) target = $region108
                $region105: #{tpu_custom_call.1} parent=100 // loop_body
                  %v770 = vld [vmem:[%s768] sm:$0xff]
                  %771 = vst [vmem:[%s769] sm:$0xff] %v770
                  %v772 = vld [vmem:[%s768 + $0x8] sm:$0xff]
                  %773 = vst [vmem:[%s769 + $0x8] sm:$0xff] %v772
                  %v774 = vld [vmem:[%s768 + $0x10] sm:$0xff]
                  %775 = vst [vmem:[%s769 + $0x10] sm:$0xff] %v774
                  %v776 = vld [vmem:[%s768 + $0x18] sm:$0xff]
                  %777 = vst [vmem:[%s769 + $0x18] sm:$0xff] %v776
                  %v778 = vld [vmem:[%s768 + $0x20] sm:$0xff]
                  %779 = vst [vmem:[%s769 + $0x20] sm:$0xff] %v778
                  %v780 = vld [vmem:[%s768 + $0x28] sm:$0xff]
                  %781 = vst [vmem:[%s769 + $0x28] sm:$0xff] %v780
                  %v782 = vld [vmem:[%s768 + $0x30] sm:$0xff]
                  %783 = vst [vmem:[%s769 + $0x30] sm:$0xff] %v782
                  %v784 = vld [vmem:[%s768 + $0x38] sm:$0xff]
                  %785 = vst [vmem:[%s769 + $0x38] sm:$0xff] %v784
                  %v786 = vld [vmem:[%s768 + $0x40] sm:$0xff]
                  %787 = vst [vmem:[%s769 + $0x40] sm:$0xff] %v786
                  %v788 = vld [vmem:[%s768 + $0x48] sm:$0xff]
                  %789 = vst [vmem:[%s769 + $0x48] sm:$0xff] %v788
                  %v790 = vld [vmem:[%s768 + $0x50] sm:$0xff]
                  %791 = vst [vmem:[%s769 + $0x50] sm:$0xff] %v790
                  %v792 = vld [vmem:[%s768 + $0x58] sm:$0xff]
                  %793 = vst [vmem:[%s769 + $0x58] sm:$0xff] %v792
                  %v794 = vld [vmem:[%s768 + $0x60] sm:$0xff]
                  %795 = vst [vmem:[%s769 + $0x60] sm:$0xff] %v794
                  %v796 = vld [vmem:[%s768 + $0x68] sm:$0xff]
                  %797 = vst [vmem:[%s769 + $0x68] sm:$0xff] %v796
                  %v798 = vld [vmem:[%s768 + $0x70] sm:$0xff]
                  %799 = vst [vmem:[%s769 + $0x70] sm:$0xff] %v798
                  %v800 = vld [vmem:[%s768 + $0x78] sm:$0xff]
                  %801 = vst [vmem:[%s769 + $0x78] sm:$0xff] %v800
                  %v802 = vld [vmem:[%s768 + $0x100] sm:$0xff]
                  %803 = vst [vmem:[%s769 + $0x80] sm:$0xff] %v802
                  %v804 = vld [vmem:[%s768 + $0x108] sm:$0xff]
                  %805 = vst [vmem:[%s769 + $0x88] sm:$0xff] %v804
                  %v806 = vld [vmem:[%s768 + $0x110] sm:$0xff]
                  %807 = vst [vmem:[%s769 + $0x90] sm:$0xff] %v806
                  %v808 = vld [vmem:[%s768 + $0x118] sm:$0xff]
                  %809 = vst [vmem:[%s769 + $0x98] sm:$0xff] %v808
                  %v810 = vld [vmem:[%s768 + $0x120] sm:$0xff]
                  %811 = vst [vmem:[%s769 + $0xa0] sm:$0xff] %v810
                  %v812 = vld [vmem:[%s768 + $0x128] sm:$0xff]
                  %813 = vst [vmem:[%s769 + $0xa8] sm:$0xff] %v812
                  %v814 = vld [vmem:[%s768 + $0x130] sm:$0xff]
                  %815 = vst [vmem:[%s769 + $0xb0] sm:$0xff] %v814
                  %v816 = vld [vmem:[%s768 + $0x138] sm:$0xff]
                  %817 = vst [vmem:[%s769 + $0xb8] sm:$0xff] %v816
                  %v818 = vld [vmem:[%s768 + $0x140] sm:$0xff]
                  %819 = vst [vmem:[%s769 + $0xc0] sm:$0xff] %v818
                  %v820 = vld [vmem:[%s768 + $0x148] sm:$0xff]
                  %821 = vst [vmem:[%s769 + $0xc8] sm:$0xff] %v820
                  %v822 = vld [vmem:[%s768 + $0x150] sm:$0xff]
                  %823 = vst [vmem:[%s769 + $0xd0] sm:$0xff] %v822
                  %v824 = vld [vmem:[%s768 + $0x158] sm:$0xff]
                  %825 = vst [vmem:[%s769 + $0xd8] sm:$0xff] %v824
                  %v826 = vld [vmem:[%s768 + $0x160] sm:$0xff]
                  %827 = vst [vmem:[%s769 + $0xe0] sm:$0xff] %v826
                  %v828 = vld [vmem:[%s768 + $0x168] sm:$0xff]
                  %829 = vst [vmem:[%s769 + $0xe8] sm:$0xff] %v828
                  %v830 = vld [vmem:[%s768 + $0x170] sm:$0xff]
                  %831 = vst [vmem:[%s769 + $0xf0] sm:$0xff] %v830
                  %v832 = vld [vmem:[%s768 + $0x178] sm:$0xff]
                  %833 = vst [vmem:[%s769 + $0xf8] sm:$0xff] %v832
                  %v834 = vld [vmem:[%s768 + $0x200] sm:$0xff]
                  %835 = vst [vmem:[%s769 + $0x100] sm:$0xff] %v834
                  %v836 = vld [vmem:[%s768 + $0x208] sm:$0xff]
                  %837 = vst [vmem:[%s769 + $0x108] sm:$0xff] %v836
                  %v838 = vld [vmem:[%s768 + $0x210] sm:$0xff]
                  %839 = vst [vmem:[%s769 + $0x110] sm:$0xff] %v838
                  %v840 = vld [vmem:[%s768 + $0x218] sm:$0xff]
                  %841 = vst [vmem:[%s769 + $0x118] sm:$0xff] %v840
                  %v842 = vld [vmem:[%s768 + $0x220] sm:$0xff]
                  %843 = vst [vmem:[%s769 + $0x120] sm:$0xff] %v842
                  %v844 = vld [vmem:[%s768 + $0x228] sm:$0xff]
                  %845 = vst [vmem:[%s769 + $0x128] sm:$0xff] %v844
                  %v846 = vld [vmem:[%s768 + $0x230] sm:$0xff]
                  %847 = vst [vmem:[%s769 + $0x130] sm:$0xff] %v846
                  %v848 = vld [vmem:[%s768 + $0x238] sm:$0xff]
                  %849 = vst [vmem:[%s769 + $0x138] sm:$0xff] %v848
                  %v850 = vld [vmem:[%s768 + $0x240] sm:$0xff]
                  %851 = vst [vmem:[%s769 + $0x140] sm:$0xff] %v850
                  %v852 = vld [vmem:[%s768 + $0x248] sm:$0xff]
                  %853 = vst [vmem:[%s769 + $0x148] sm:$0xff] %v852
                  %v854 = vld [vmem:[%s768 + $0x250] sm:$0xff]
                  %855 = vst [vmem:[%s769 + $0x150] sm:$0xff] %v854
                  %v856 = vld [vmem:[%s768 + $0x258] sm:$0xff]
                  %857 = vst [vmem:[%s769 + $0x158] sm:$0xff] %v856
                  %v858 = vld [vmem:[%s768 + $0x260] sm:$0xff]
                  %859 = vst [vmem:[%s769 + $0x160] sm:$0xff] %v858
                  %v860 = vld [vmem:[%s768 + $0x268] sm:$0xff]
                  %861 = vst [vmem:[%s769 + $0x168] sm:$0xff] %v860
                  %v862 = vld [vmem:[%s768 + $0x270] sm:$0xff]
                  %863 = vst [vmem:[%s769 + $0x170] sm:$0xff] %v862
                  %v864 = vld [vmem:[%s768 + $0x278] sm:$0xff]
                  %865 = vst [vmem:[%s769 + $0x178] sm:$0xff] %v864
                  %v866 = vld [vmem:[%s768 + $0x300] sm:$0xff]
                  %867 = vst [vmem:[%s769 + $0x180] sm:$0xff] %v866
                  %v868 = vld [vmem:[%s768 + $0x308] sm:$0xff]
                  %869 = vst [vmem:[%s769 + $0x188] sm:$0xff] %v868
                  %v870 = vld [vmem:[%s768 + $0x310] sm:$0xff]
                  %871 = vst [vmem:[%s769 + $0x190] sm:$0xff] %v870
                  %v872 = vld [vmem:[%s768 + $0x318] sm:$0xff]
                  %873 = vst [vmem:[%s769 + $0x198] sm:$0xff] %v872
                  %v874 = vld [vmem:[%s768 + $0x320] sm:$0xff]
                  %875 = vst [vmem:[%s769 + $0x1a0] sm:$0xff] %v874
                  %v876 = vld [vmem:[%s768 + $0x328] sm:$0xff]
                  %877 = vst [vmem:[%s769 + $0x1a8] sm:$0xff] %v876
                  %v878 = vld [vmem:[%s768 + $0x330] sm:$0xff]
                  %879 = vst [vmem:[%s769 + $0x1b0] sm:$0xff] %v878
                  %v880 = vld [vmem:[%s768 + $0x338] sm:$0xff]
                  %881 = vst [vmem:[%s769 + $0x1b8] sm:$0xff] %v880
                  %v882 = vld [vmem:[%s768 + $0x340] sm:$0xff]
                  %883 = vst [vmem:[%s769 + $0x1c0] sm:$0xff] %v882
                  %v884 = vld [vmem:[%s768 + $0x348] sm:$0xff]
                  %885 = vst [vmem:[%s769 + $0x1c8] sm:$0xff] %v884
                  %v886 = vld [vmem:[%s768 + $0x350] sm:$0xff]
                  %887 = vst [vmem:[%s769 + $0x1d0] sm:$0xff] %v886
                  %v888 = vld [vmem:[%s768 + $0x358] sm:$0xff]
                  %889 = vst [vmem:[%s769 + $0x1d8] sm:$0xff] %v888
                  %v890 = vld [vmem:[%s768 + $0x360] sm:$0xff]
                  %891 = vst [vmem:[%s769 + $0x1e0] sm:$0xff] %v890
                  %v892 = vld [vmem:[%s768 + $0x368] sm:$0xff]
                  %893 = vst [vmem:[%s769 + $0x1e8] sm:$0xff] %v892
                  %v894 = vld [vmem:[%s768 + $0x370] sm:$0xff]
                  %895 = vst [vmem:[%s769 + $0x1f0] sm:$0xff] %v894
                  %v896 = vld [vmem:[%s768 + $0x378] sm:$0xff]
                  %897 = vst [vmem:[%s769 + $0x1f8] sm:$0xff] %v896
                $region106: #{tpu_custom_call.1} parent=100 // loop_footer
                  %s767 = sadd.s32 1, %s763
                $region107: #{tpu_custom_call.1} parent=100 // loop_footer_branch
                  %762 = sbr.rel target = $region103
                $region108: #{tpu_custom_call.1} parent=100 // loop_exit
                  _
              $region101: #{tpu_custom_call.1} parent=85 // pred_fallthru
                _
              // Predicated region
              $region109: #{tpu_custom_call.1} parent=85 // pred_check
                _
              $region110: #{tpu_custom_call.1} parent=85 // pred_check_branch
                %899 = sbr.rel target = $region112
              $region111: #{tpu_custom_call.1} parent=85 // pred_region
                _
              $region112: #{tpu_custom_call.1} parent=85 // pred_fallthru
                _
            $region86: #{tpu_custom_call.1} parent=81 // pred_fallthru
              _
            // Predicated region
            $region87: #{tpu_custom_call.1} parent=81 // pred_check
              _
            $region88: #{tpu_custom_call.1} parent=81 // pred_check_branch
              %621 = sbr.rel target = $region90
            $region89: #{tpu_custom_call.1} parent=81 // pred_region
              %s623 = ssub.s32 256, 1
              loop: start=0, step=1, limit=1
              $region91: #{tpu_custom_call.1} parent=89 // loop_pre_header
                _
              $region92: #{tpu_custom_call.1} parent=89 // loop_header
                %s625 = sphi 0, %s629
                %p626 = scmp.ge.s32.totalorder %s625, 1
                %s630 = sphi %s615, %s615
                %s631 = sphi %s612, %s612
              $region93: #{tpu_custom_call.1} parent=89 // loop_header_branch
                %628 = sbr.rel (%p626) target = $region97
              $region94: #{tpu_custom_call.1} parent=89 // loop_body
                %v632 = vld [vmem:[%s630] sm:%s623]
                %633 = vst [vmem:[%s631] sm:%s623] %v632
                %v634 = vld [vmem:[%s630 + $0x8] sm:%s623]
                %635 = vst [vmem:[%s631 + $0x8] sm:%s623] %v634
                %v636 = vld [vmem:[%s630 + $0x10] sm:%s623]
                %637 = vst [vmem:[%s631 + $0x10] sm:%s623] %v636
                %v638 = vld [vmem:[%s630 + $0x18] sm:%s623]
                %639 = vst [vmem:[%s631 + $0x18] sm:%s623] %v638
                %v640 = vld [vmem:[%s630 + $0x20] sm:%s623]
                %641 = vst [vmem:[%s631 + $0x20] sm:%s623] %v640
                %v642 = vld [vmem:[%s630 + $0x28] sm:%s623]
                %643 = vst [vmem:[%s631 + $0x28] sm:%s623] %v642
                %v644 = vld [vmem:[%s630 + $0x30] sm:%s623]
                %645 = vst [vmem:[%s631 + $0x30] sm:%s623] %v644
                %v646 = vld [vmem:[%s630 + $0x38] sm:%s623]
                %647 = vst [vmem:[%s631 + $0x38] sm:%s623] %v646
                %v648 = vld [vmem:[%s630 + $0x40] sm:%s623]
                %649 = vst [vmem:[%s631 + $0x40] sm:%s623] %v648
                %v650 = vld [vmem:[%s630 + $0x48] sm:%s623]
                %651 = vst [vmem:[%s631 + $0x48] sm:%s623] %v650
                %v652 = vld [vmem:[%s630 + $0x50] sm:%s623]
                %653 = vst [vmem:[%s631 + $0x50] sm:%s623] %v652
                %v654 = vld [vmem:[%s630 + $0x58] sm:%s623]
                %655 = vst [vmem:[%s631 + $0x58] sm:%s623] %v654
                %v656 = vld [vmem:[%s630 + $0x60] sm:%s623]
                %657 = vst [vmem:[%s631 + $0x60] sm:%s623] %v656
                %v658 = vld [vmem:[%s630 + $0x68] sm:%s623]
                %659 = vst [vmem:[%s631 + $0x68] sm:%s623] %v658
                %v660 = vld [vmem:[%s630 + $0x70] sm:%s623]
                %661 = vst [vmem:[%s631 + $0x70] sm:%s623] %v660
                %v662 = vld [vmem:[%s630 + $0x78] sm:%s623]
                %663 = vst [vmem:[%s631 + $0x78] sm:%s623] %v662
                %v664 = vld [vmem:[%s630 + $0x100] sm:%s623]
                %665 = vst [vmem:[%s631 + $0x80] sm:%s623] %v664
                %v666 = vld [vmem:[%s630 + $0x108] sm:%s623]
                %667 = vst [vmem:[%s631 + $0x88] sm:%s623] %v666
                %v668 = vld [vmem:[%s630 + $0x110] sm:%s623]
                %669 = vst [vmem:[%s631 + $0x90] sm:%s623] %v668
                %v670 = vld [vmem:[%s630 + $0x118] sm:%s623]
                %671 = vst [vmem:[%s631 + $0x98] sm:%s623] %v670
                %v672 = vld [vmem:[%s630 + $0x120] sm:%s623]
                %673 = vst [vmem:[%s631 + $0xa0] sm:%s623] %v672
                %v674 = vld [vmem:[%s630 + $0x128] sm:%s623]
                %675 = vst [vmem:[%s631 + $0xa8] sm:%s623] %v674
                %v676 = vld [vmem:[%s630 + $0x130] sm:%s623]
                %677 = vst [vmem:[%s631 + $0xb0] sm:%s623] %v676
                %v678 = vld [vmem:[%s630 + $0x138] sm:%s623]
                %679 = vst [vmem:[%s631 + $0xb8] sm:%s623] %v678
                %v680 = vld [vmem:[%s630 + $0x140] sm:%s623]
                %681 = vst [vmem:[%s631 + $0xc0] sm:%s623] %v680
                %v682 = vld [vmem:[%s630 + $0x148] sm:%s623]
                %683 = vst [vmem:[%s631 + $0xc8] sm:%s623] %v682
                %v684 = vld [vmem:[%s630 + $0x150] sm:%s623]
                %685 = vst [vmem:[%s631 + $0xd0] sm:%s623] %v684
                %v686 = vld [vmem:[%s630 + $0x158] sm:%s623]
                %687 = vst [vmem:[%s631 + $0xd8] sm:%s623] %v686
                %v688 = vld [vmem:[%s630 + $0x160] sm:%s623]
                %689 = vst [vmem:[%s631 + $0xe0] sm:%s623] %v688
                %v690 = vld [vmem:[%s630 + $0x168] sm:%s623]
                %691 = vst [vmem:[%s631 + $0xe8] sm:%s623] %v690
                %v692 = vld [vmem:[%s630 + $0x170] sm:%s623]
                %693 = vst [vmem:[%s631 + $0xf0] sm:%s623] %v692
                %v694 = vld [vmem:[%s630 + $0x178] sm:%s623]
                %695 = vst [vmem:[%s631 + $0xf8] sm:%s623] %v694
                %v696 = vld [vmem:[%s630 + $0x200] sm:%s623]
                %697 = vst [vmem:[%s631 + $0x100] sm:%s623] %v696
                %v698 = vld [vmem:[%s630 + $0x208] sm:%s623]
                %699 = vst [vmem:[%s631 + $0x108] sm:%s623] %v698
                %v700 = vld [vmem:[%s630 + $0x210] sm:%s623]
                %701 = vst [vmem:[%s631 + $0x110] sm:%s623] %v700
                %v702 = vld [vmem:[%s630 + $0x218] sm:%s623]
                %703 = vst [vmem:[%s631 + $0x118] sm:%s623] %v702
                %v704 = vld [vmem:[%s630 + $0x220] sm:%s623]
                %705 = vst [vmem:[%s631 + $0x120] sm:%s623] %v704
                %v706 = vld [vmem:[%s630 + $0x228] sm:%s623]
                %707 = vst [vmem:[%s631 + $0x128] sm:%s623] %v706
                %v708 = vld [vmem:[%s630 + $0x230] sm:%s623]
                %709 = vst [vmem:[%s631 + $0x130] sm:%s623] %v708
                %v710 = vld [vmem:[%s630 + $0x238] sm:%s623]
                %711 = vst [vmem:[%s631 + $0x138] sm:%s623] %v710
                %v712 = vld [vmem:[%s630 + $0x240] sm:%s623]
                %713 = vst [vmem:[%s631 + $0x140] sm:%s623] %v712
                %v714 = vld [vmem:[%s630 + $0x248] sm:%s623]
                %715 = vst [vmem:[%s631 + $0x148] sm:%s623] %v714
                %v716 = vld [vmem:[%s630 + $0x250] sm:%s623]
                %717 = vst [vmem:[%s631 + $0x150] sm:%s623] %v716
                %v718 = vld [vmem:[%s630 + $0x258] sm:%s623]
                %719 = vst [vmem:[%s631 + $0x158] sm:%s623] %v718
                %v720 = vld [vmem:[%s630 + $0x260] sm:%s623]
                %721 = vst [vmem:[%s631 + $0x160] sm:%s623] %v720
                %v722 = vld [vmem:[%s630 + $0x268] sm:%s623]
                %723 = vst [vmem:[%s631 + $0x168] sm:%s623] %v722
                %v724 = vld [vmem:[%s630 + $0x270] sm:%s623]
                %725 = vst [vmem:[%s631 + $0x170] sm:%s623] %v724
                %v726 = vld [vmem:[%s630 + $0x278] sm:%s623]
                %727 = vst [vmem:[%s631 + $0x178] sm:%s623] %v726
                %v728 = vld [vmem:[%s630 + $0x300] sm:%s623]
                %729 = vst [vmem:[%s631 + $0x180] sm:%s623] %v728
                %v730 = vld [vmem:[%s630 + $0x308] sm:%s623]
                %731 = vst [vmem:[%s631 + $0x188] sm:%s623] %v730
                %v732 = vld [vmem:[%s630 + $0x310] sm:%s623]
                %733 = vst [vmem:[%s631 + $0x190] sm:%s623] %v732
                %v734 = vld [vmem:[%s630 + $0x318] sm:%s623]
                %735 = vst [vmem:[%s631 + $0x198] sm:%s623] %v734
                %v736 = vld [vmem:[%s630 + $0x320] sm:%s623]
                %737 = vst [vmem:[%s631 + $0x1a0] sm:%s623] %v736
                %v738 = vld [vmem:[%s630 + $0x328] sm:%s623]
                %739 = vst [vmem:[%s631 + $0x1a8] sm:%s623] %v738
                %v740 = vld [vmem:[%s630 + $0x330] sm:%s623]
                %741 = vst [vmem:[%s631 + $0x1b0] sm:%s623] %v740
                %v742 = vld [vmem:[%s630 + $0x338] sm:%s623]
                %743 = vst [vmem:[%s631 + $0x1b8] sm:%s623] %v742
                %v744 = vld [vmem:[%s630 + $0x340] sm:%s623]
                %745 = vst [vmem:[%s631 + $0x1c0] sm:%s623] %v744
                %v746 = vld [vmem:[%s630 + $0x348] sm:%s623]
                %747 = vst [vmem:[%s631 + $0x1c8] sm:%s623] %v746
                %v748 = vld [vmem:[%s630 + $0x350] sm:%s623]
                %749 = vst [vmem:[%s631 + $0x1d0] sm:%s623] %v748
                %v750 = vld [vmem:[%s630 + $0x358] sm:%s623]
                %751 = vst [vmem:[%s631 + $0x1d8] sm:%s623] %v750
                %v752 = vld [vmem:[%s630 + $0x360] sm:%s623]
                %753 = vst [vmem:[%s631 + $0x1e0] sm:%s623] %v752
                %v754 = vld [vmem:[%s630 + $0x368] sm:%s623]
                %755 = vst [vmem:[%s631 + $0x1e8] sm:%s623] %v754
                %v756 = vld [vmem:[%s630 + $0x370] sm:%s623]
                %757 = vst [vmem:[%s631 + $0x1f0] sm:%s623] %v756
                %v758 = vld [vmem:[%s630 + $0x378] sm:%s623]
                %759 = vst [vmem:[%s631 + $0x1f8] sm:%s623] %v758
              $region95: #{tpu_custom_call.1} parent=89 // loop_footer
                %s629 = sadd.s32 1, %s625
              $region96: #{tpu_custom_call.1} parent=89 // loop_footer_branch
                %624 = sbr.rel target = $region92
              $region97: #{tpu_custom_call.1} parent=89 // loop_exit
                _
            $region90: #{tpu_custom_call.1} parent=81 // pred_fallthru
              _
          $region82: #{tpu_custom_call.1} parent=77 // pred_fallthru
            _
          %900 = vnop
        $region78: #{tpu_custom_call.1} parent=35 // pred_fallthru
          _
        // Predicated region
        $region113: #{tpu_custom_call.1} parent=35 // pred_check
          %p901 = pneg %p94
        $region114: #{tpu_custom_call.1} parent=35 // pred_check_branch
          %903 = sbr.rel (%p901) target = $region116
        $region115: #{tpu_custom_call.1} parent=35 // pred_region
          %s904 = sand.u32 %s84, 1
          %s905 = sand.u32 %s84, 1
          %s906 = smul.addr %s905, 512
          %s907 = scalar_lea.vmem [#allocation6], %s906
          %s908 = smul.u32 16, %s22
          %s909 = smul.addr %s908, 8
          %s910 = scalar_lea.vmem %s2, %s909
          // Predicated region
          $region117: #{tpu_custom_call.1} parent=115 // pred_check
            _
          $region118: #{tpu_custom_call.1} parent=115 // pred_check_branch
            %912 = sbr.rel (0) target = $region120
          $region119: #{tpu_custom_call.1} parent=115 // pred_region
            // Predicated region
            $region121: #{tpu_custom_call.1} parent=119 // pred_check
              _
            $region122: #{tpu_custom_call.1} parent=119 // pred_check_branch
              %914 = sbr.rel (0) target = $region124
            $region123: #{tpu_custom_call.1} parent=119 // pred_region
              // Predicated region
              $region136: #{tpu_custom_call.1} parent=123 // pred_check
                _
              $region137: #{tpu_custom_call.1} parent=123 // pred_check_branch
                %1056 = sbr.rel (0) target = $region139
              $region138: #{tpu_custom_call.1} parent=123 // pred_region
                loop: start=0, step=1, limit=1
                $region140: #{tpu_custom_call.1} parent=138 // loop_pre_header
                  _
                $region141: #{tpu_custom_call.1} parent=138 // loop_header
                  %s1058 = sphi 0, %s1062
                  %p1059 = scmp.ge.s32.totalorder %s1058, 1
                  %s1063 = sphi %s910, %s910
                  %s1064 = sphi %s907, %s907
                $region142: #{tpu_custom_call.1} parent=138 // loop_header_branch
                  %1061 = sbr.rel (%p1059) target = $region146
                $region143: #{tpu_custom_call.1} parent=138 // loop_body
                  %v1065 = vld [vmem:[%s1063] sm:$0xff]
                  %1066 = vst [vmem:[%s1064] sm:$0xff] %v1065
                  %v1067 = vld [vmem:[%s1063 + $0x8] sm:$0xff]
                  %1068 = vst [vmem:[%s1064 + $0x8] sm:$0xff] %v1067
                  %v1069 = vld [vmem:[%s1063 + $0x10] sm:$0xff]
                  %1070 = vst [vmem:[%s1064 + $0x10] sm:$0xff] %v1069
                  %v1071 = vld [vmem:[%s1063 + $0x18] sm:$0xff]
                  %1072 = vst [vmem:[%s1064 + $0x18] sm:$0xff] %v1071
                  %v1073 = vld [vmem:[%s1063 + $0x20] sm:$0xff]
                  %1074 = vst [vmem:[%s1064 + $0x20] sm:$0xff] %v1073
                  %v1075 = vld [vmem:[%s1063 + $0x28] sm:$0xff]
                  %1076 = vst [vmem:[%s1064 + $0x28] sm:$0xff] %v1075
                  %v1077 = vld [vmem:[%s1063 + $0x30] sm:$0xff]
                  %1078 = vst [vmem:[%s1064 + $0x30] sm:$0xff] %v1077
                  %v1079 = vld [vmem:[%s1063 + $0x38] sm:$0xff]
                  %1080 = vst [vmem:[%s1064 + $0x38] sm:$0xff] %v1079
                  %v1081 = vld [vmem:[%s1063 + $0x40] sm:$0xff]
                  %1082 = vst [vmem:[%s1064 + $0x40] sm:$0xff] %v1081
                  %v1083 = vld [vmem:[%s1063 + $0x48] sm:$0xff]
                  %1084 = vst [vmem:[%s1064 + $0x48] sm:$0xff] %v1083
                  %v1085 = vld [vmem:[%s1063 + $0x50] sm:$0xff]
                  %1086 = vst [vmem:[%s1064 + $0x50] sm:$0xff] %v1085
                  %v1087 = vld [vmem:[%s1063 + $0x58] sm:$0xff]
                  %1088 = vst [vmem:[%s1064 + $0x58] sm:$0xff] %v1087
                  %v1089 = vld [vmem:[%s1063 + $0x60] sm:$0xff]
                  %1090 = vst [vmem:[%s1064 + $0x60] sm:$0xff] %v1089
                  %v1091 = vld [vmem:[%s1063 + $0x68] sm:$0xff]
                  %1092 = vst [vmem:[%s1064 + $0x68] sm:$0xff] %v1091
                  %v1093 = vld [vmem:[%s1063 + $0x70] sm:$0xff]
                  %1094 = vst [vmem:[%s1064 + $0x70] sm:$0xff] %v1093
                  %v1095 = vld [vmem:[%s1063 + $0x78] sm:$0xff]
                  %1096 = vst [vmem:[%s1064 + $0x78] sm:$0xff] %v1095
                  %v1097 = vld [vmem:[%s1063 + $0x100] sm:$0xff]
                  %1098 = vst [vmem:[%s1064 + $0x80] sm:$0xff] %v1097
                  %v1099 = vld [vmem:[%s1063 + $0x108] sm:$0xff]
                  %1100 = vst [vmem:[%s1064 + $0x88] sm:$0xff] %v1099
                  %v1101 = vld [vmem:[%s1063 + $0x110] sm:$0xff]
                  %1102 = vst [vmem:[%s1064 + $0x90] sm:$0xff] %v1101
                  %v1103 = vld [vmem:[%s1063 + $0x118] sm:$0xff]
                  %1104 = vst [vmem:[%s1064 + $0x98] sm:$0xff] %v1103
                  %v1105 = vld [vmem:[%s1063 + $0x120] sm:$0xff]
                  %1106 = vst [vmem:[%s1064 + $0xa0] sm:$0xff] %v1105
                  %v1107 = vld [vmem:[%s1063 + $0x128] sm:$0xff]
                  %1108 = vst [vmem:[%s1064 + $0xa8] sm:$0xff] %v1107
                  %v1109 = vld [vmem:[%s1063 + $0x130] sm:$0xff]
                  %1110 = vst [vmem:[%s1064 + $0xb0] sm:$0xff] %v1109
                  %v1111 = vld [vmem:[%s1063 + $0x138] sm:$0xff]
                  %1112 = vst [vmem:[%s1064 + $0xb8] sm:$0xff] %v1111
                  %v1113 = vld [vmem:[%s1063 + $0x140] sm:$0xff]
                  %1114 = vst [vmem:[%s1064 + $0xc0] sm:$0xff] %v1113
                  %v1115 = vld [vmem:[%s1063 + $0x148] sm:$0xff]
                  %1116 = vst [vmem:[%s1064 + $0xc8] sm:$0xff] %v1115
                  %v1117 = vld [vmem:[%s1063 + $0x150] sm:$0xff]
                  %1118 = vst [vmem:[%s1064 + $0xd0] sm:$0xff] %v1117
                  %v1119 = vld [vmem:[%s1063 + $0x158] sm:$0xff]
                  %1120 = vst [vmem:[%s1064 + $0xd8] sm:$0xff] %v1119
                  %v1121 = vld [vmem:[%s1063 + $0x160] sm:$0xff]
                  %1122 = vst [vmem:[%s1064 + $0xe0] sm:$0xff] %v1121
                  %v1123 = vld [vmem:[%s1063 + $0x168] sm:$0xff]
                  %1124 = vst [vmem:[%s1064 + $0xe8] sm:$0xff] %v1123
                  %v1125 = vld [vmem:[%s1063 + $0x170] sm:$0xff]
                  %1126 = vst [vmem:[%s1064 + $0xf0] sm:$0xff] %v1125
                  %v1127 = vld [vmem:[%s1063 + $0x178] sm:$0xff]
                  %1128 = vst [vmem:[%s1064 + $0xf8] sm:$0xff] %v1127
                  %v1129 = vld [vmem:[%s1063 + $0x200] sm:$0xff]
                  %1130 = vst [vmem:[%s1064 + $0x100] sm:$0xff] %v1129
                  %v1131 = vld [vmem:[%s1063 + $0x208] sm:$0xff]
                  %1132 = vst [vmem:[%s1064 + $0x108] sm:$0xff] %v1131
                  %v1133 = vld [vmem:[%s1063 + $0x210] sm:$0xff]
                  %1134 = vst [vmem:[%s1064 + $0x110] sm:$0xff] %v1133
                  %v1135 = vld [vmem:[%s1063 + $0x218] sm:$0xff]
                  %1136 = vst [vmem:[%s1064 + $0x118] sm:$0xff] %v1135
                  %v1137 = vld [vmem:[%s1063 + $0x220] sm:$0xff]
                  %1138 = vst [vmem:[%s1064 + $0x120] sm:$0xff] %v1137
                  %v1139 = vld [vmem:[%s1063 + $0x228] sm:$0xff]
                  %1140 = vst [vmem:[%s1064 + $0x128] sm:$0xff] %v1139
                  %v1141 = vld [vmem:[%s1063 + $0x230] sm:$0xff]
                  %1142 = vst [vmem:[%s1064 + $0x130] sm:$0xff] %v1141
                  %v1143 = vld [vmem:[%s1063 + $0x238] sm:$0xff]
                  %1144 = vst [vmem:[%s1064 + $0x138] sm:$0xff] %v1143
                  %v1145 = vld [vmem:[%s1063 + $0x240] sm:$0xff]
                  %1146 = vst [vmem:[%s1064 + $0x140] sm:$0xff] %v1145
                  %v1147 = vld [vmem:[%s1063 + $0x248] sm:$0xff]
                  %1148 = vst [vmem:[%s1064 + $0x148] sm:$0xff] %v1147
                  %v1149 = vld [vmem:[%s1063 + $0x250] sm:$0xff]
                  %1150 = vst [vmem:[%s1064 + $0x150] sm:$0xff] %v1149
                  %v1151 = vld [vmem:[%s1063 + $0x258] sm:$0xff]
                  %1152 = vst [vmem:[%s1064 + $0x158] sm:$0xff] %v1151
                  %v1153 = vld [vmem:[%s1063 + $0x260] sm:$0xff]
                  %1154 = vst [vmem:[%s1064 + $0x160] sm:$0xff] %v1153
                  %v1155 = vld [vmem:[%s1063 + $0x268] sm:$0xff]
                  %1156 = vst [vmem:[%s1064 + $0x168] sm:$0xff] %v1155
                  %v1157 = vld [vmem:[%s1063 + $0x270] sm:$0xff]
                  %1158 = vst [vmem:[%s1064 + $0x170] sm:$0xff] %v1157
                  %v1159 = vld [vmem:[%s1063 + $0x278] sm:$0xff]
                  %1160 = vst [vmem:[%s1064 + $0x178] sm:$0xff] %v1159
                  %v1161 = vld [vmem:[%s1063 + $0x300] sm:$0xff]
                  %1162 = vst [vmem:[%s1064 + $0x180] sm:$0xff] %v1161
                  %v1163 = vld [vmem:[%s1063 + $0x308] sm:$0xff]
                  %1164 = vst [vmem:[%s1064 + $0x188] sm:$0xff] %v1163
                  %v1165 = vld [vmem:[%s1063 + $0x310] sm:$0xff]
                  %1166 = vst [vmem:[%s1064 + $0x190] sm:$0xff] %v1165
                  %v1167 = vld [vmem:[%s1063 + $0x318] sm:$0xff]
                  %1168 = vst [vmem:[%s1064 + $0x198] sm:$0xff] %v1167
                  %v1169 = vld [vmem:[%s1063 + $0x320] sm:$0xff]
                  %1170 = vst [vmem:[%s1064 + $0x1a0] sm:$0xff] %v1169
                  %v1171 = vld [vmem:[%s1063 + $0x328] sm:$0xff]
                  %1172 = vst [vmem:[%s1064 + $0x1a8] sm:$0xff] %v1171
                  %v1173 = vld [vmem:[%s1063 + $0x330] sm:$0xff]
                  %1174 = vst [vmem:[%s1064 + $0x1b0] sm:$0xff] %v1173
                  %v1175 = vld [vmem:[%s1063 + $0x338] sm:$0xff]
                  %1176 = vst [vmem:[%s1064 + $0x1b8] sm:$0xff] %v1175
                  %v1177 = vld [vmem:[%s1063 + $0x340] sm:$0xff]
                  %1178 = vst [vmem:[%s1064 + $0x1c0] sm:$0xff] %v1177
                  %v1179 = vld [vmem:[%s1063 + $0x348] sm:$0xff]
                  %1180 = vst [vmem:[%s1064 + $0x1c8] sm:$0xff] %v1179
                  %v1181 = vld [vmem:[%s1063 + $0x350] sm:$0xff]
                  %1182 = vst [vmem:[%s1064 + $0x1d0] sm:$0xff] %v1181
                  %v1183 = vld [vmem:[%s1063 + $0x358] sm:$0xff]
                  %1184 = vst [vmem:[%s1064 + $0x1d8] sm:$0xff] %v1183
                  %v1185 = vld [vmem:[%s1063 + $0x360] sm:$0xff]
                  %1186 = vst [vmem:[%s1064 + $0x1e0] sm:$0xff] %v1185
                  %v1187 = vld [vmem:[%s1063 + $0x368] sm:$0xff]
                  %1188 = vst [vmem:[%s1064 + $0x1e8] sm:$0xff] %v1187
                  %v1189 = vld [vmem:[%s1063 + $0x370] sm:$0xff]
                  %1190 = vst [vmem:[%s1064 + $0x1f0] sm:$0xff] %v1189
                  %v1191 = vld [vmem:[%s1063 + $0x378] sm:$0xff]
                  %1192 = vst [vmem:[%s1064 + $0x1f8] sm:$0xff] %v1191
                $region144: #{tpu_custom_call.1} parent=138 // loop_footer
                  %s1062 = sadd.s32 1, %s1058
                $region145: #{tpu_custom_call.1} parent=138 // loop_footer_branch
                  %1057 = sbr.rel target = $region141
                $region146: #{tpu_custom_call.1} parent=138 // loop_exit
                  _
              $region139: #{tpu_custom_call.1} parent=123 // pred_fallthru
                _
              // Predicated region
              $region147: #{tpu_custom_call.1} parent=123 // pred_check
                _
              $region148: #{tpu_custom_call.1} parent=123 // pred_check_branch
                %1194 = sbr.rel target = $region150
              $region149: #{tpu_custom_call.1} parent=123 // pred_region
                _
              $region150: #{tpu_custom_call.1} parent=123 // pred_fallthru
                _
            $region124: #{tpu_custom_call.1} parent=119 // pred_fallthru
              _
            // Predicated region
            $region125: #{tpu_custom_call.1} parent=119 // pred_check
              _
            $region126: #{tpu_custom_call.1} parent=119 // pred_check_branch
              %916 = sbr.rel target = $region128
            $region127: #{tpu_custom_call.1} parent=119 // pred_region
              %s918 = ssub.s32 256, 1
              loop: start=0, step=1, limit=1
              $region129: #{tpu_custom_call.1} parent=127 // loop_pre_header
                _
              $region130: #{tpu_custom_call.1} parent=127 // loop_header
                %s920 = sphi 0, %s924
                %p921 = scmp.ge.s32.totalorder %s920, 1
                %s925 = sphi %s910, %s910
                %s926 = sphi %s907, %s907
              $region131: #{tpu_custom_call.1} parent=127 // loop_header_branch
                %923 = sbr.rel (%p921) target = $region135
              $region132: #{tpu_custom_call.1} parent=127 // loop_body
                %v927 = vld [vmem:[%s925] sm:%s918]
                %928 = vst [vmem:[%s926] sm:%s918] %v927
                %v929 = vld [vmem:[%s925 + $0x8] sm:%s918]
                %930 = vst [vmem:[%s926 + $0x8] sm:%s918] %v929
                %v931 = vld [vmem:[%s925 + $0x10] sm:%s918]
                %932 = vst [vmem:[%s926 + $0x10] sm:%s918] %v931
                %v933 = vld [vmem:[%s925 + $0x18] sm:%s918]
                %934 = vst [vmem:[%s926 + $0x18] sm:%s918] %v933
                %v935 = vld [vmem:[%s925 + $0x20] sm:%s918]
                %936 = vst [vmem:[%s926 + $0x20] sm:%s918] %v935
                %v937 = vld [vmem:[%s925 + $0x28] sm:%s918]
                %938 = vst [vmem:[%s926 + $0x28] sm:%s918] %v937
                %v939 = vld [vmem:[%s925 + $0x30] sm:%s918]
                %940 = vst [vmem:[%s926 + $0x30] sm:%s918] %v939
                %v941 = vld [vmem:[%s925 + $0x38] sm:%s918]
                %942 = vst [vmem:[%s926 + $0x38] sm:%s918] %v941
                %v943 = vld [vmem:[%s925 + $0x40] sm:%s918]
                %944 = vst [vmem:[%s926 + $0x40] sm:%s918] %v943
                %v945 = vld [vmem:[%s925 + $0x48] sm:%s918]
                %946 = vst [vmem:[%s926 + $0x48] sm:%s918] %v945
                %v947 = vld [vmem:[%s925 + $0x50] sm:%s918]
                %948 = vst [vmem:[%s926 + $0x50] sm:%s918] %v947
                %v949 = vld [vmem:[%s925 + $0x58] sm:%s918]
                %950 = vst [vmem:[%s926 + $0x58] sm:%s918] %v949
                %v951 = vld [vmem:[%s925 + $0x60] sm:%s918]
                %952 = vst [vmem:[%s926 + $0x60] sm:%s918] %v951
                %v953 = vld [vmem:[%s925 + $0x68] sm:%s918]
                %954 = vst [vmem:[%s926 + $0x68] sm:%s918] %v953
                %v955 = vld [vmem:[%s925 + $0x70] sm:%s918]
                %956 = vst [vmem:[%s926 + $0x70] sm:%s918] %v955
                %v957 = vld [vmem:[%s925 + $0x78] sm:%s918]
                %958 = vst [vmem:[%s926 + $0x78] sm:%s918] %v957
                %v959 = vld [vmem:[%s925 + $0x100] sm:%s918]
                %960 = vst [vmem:[%s926 + $0x80] sm:%s918] %v959
                %v961 = vld [vmem:[%s925 + $0x108] sm:%s918]
                %962 = vst [vmem:[%s926 + $0x88] sm:%s918] %v961
                %v963 = vld [vmem:[%s925 + $0x110] sm:%s918]
                %964 = vst [vmem:[%s926 + $0x90] sm:%s918] %v963
                %v965 = vld [vmem:[%s925 + $0x118] sm:%s918]
                %966 = vst [vmem:[%s926 + $0x98] sm:%s918] %v965
                %v967 = vld [vmem:[%s925 + $0x120] sm:%s918]
                %968 = vst [vmem:[%s926 + $0xa0] sm:%s918] %v967
                %v969 = vld [vmem:[%s925 + $0x128] sm:%s918]
                %970 = vst [vmem:[%s926 + $0xa8] sm:%s918] %v969
                %v971 = vld [vmem:[%s925 + $0x130] sm:%s918]
                %972 = vst [vmem:[%s926 + $0xb0] sm:%s918] %v971
                %v973 = vld [vmem:[%s925 + $0x138] sm:%s918]
                %974 = vst [vmem:[%s926 + $0xb8] sm:%s918] %v973
                %v975 = vld [vmem:[%s925 + $0x140] sm:%s918]
                %976 = vst [vmem:[%s926 + $0xc0] sm:%s918] %v975
                %v977 = vld [vmem:[%s925 + $0x148] sm:%s918]
                %978 = vst [vmem:[%s926 + $0xc8] sm:%s918] %v977
                %v979 = vld [vmem:[%s925 + $0x150] sm:%s918]
                %980 = vst [vmem:[%s926 + $0xd0] sm:%s918] %v979
                %v981 = vld [vmem:[%s925 + $0x158] sm:%s918]
                %982 = vst [vmem:[%s926 + $0xd8] sm:%s918] %v981
                %v983 = vld [vmem:[%s925 + $0x160] sm:%s918]
                %984 = vst [vmem:[%s926 + $0xe0] sm:%s918] %v983
                %v985 = vld [vmem:[%s925 + $0x168] sm:%s918]
                %986 = vst [vmem:[%s926 + $0xe8] sm:%s918] %v985
                %v987 = vld [vmem:[%s925 + $0x170] sm:%s918]
                %988 = vst [vmem:[%s926 + $0xf0] sm:%s918] %v987
                %v989 = vld [vmem:[%s925 + $0x178] sm:%s918]
                %990 = vst [vmem:[%s926 + $0xf8] sm:%s918] %v989
                %v991 = vld [vmem:[%s925 + $0x200] sm:%s918]
                %992 = vst [vmem:[%s926 + $0x100] sm:%s918] %v991
                %v993 = vld [vmem:[%s925 + $0x208] sm:%s918]
                %994 = vst [vmem:[%s926 + $0x108] sm:%s918] %v993
                %v995 = vld [vmem:[%s925 + $0x210] sm:%s918]
                %996 = vst [vmem:[%s926 + $0x110] sm:%s918] %v995
                %v997 = vld [vmem:[%s925 + $0x218] sm:%s918]
                %998 = vst [vmem:[%s926 + $0x118] sm:%s918] %v997
                %v999 = vld [vmem:[%s925 + $0x220] sm:%s918]
                %1000 = vst [vmem:[%s926 + $0x120] sm:%s918] %v999
                %v1001 = vld [vmem:[%s925 + $0x228] sm:%s918]
                %1002 = vst [vmem:[%s926 + $0x128] sm:%s918] %v1001
                %v1003 = vld [vmem:[%s925 + $0x230] sm:%s918]
                %1004 = vst [vmem:[%s926 + $0x130] sm:%s918] %v1003
                %v1005 = vld [vmem:[%s925 + $0x238] sm:%s918]
                %1006 = vst [vmem:[%s926 + $0x138] sm:%s918] %v1005
                %v1007 = vld [vmem:[%s925 + $0x240] sm:%s918]
                %1008 = vst [vmem:[%s926 + $0x140] sm:%s918] %v1007
                %v1009 = vld [vmem:[%s925 + $0x248] sm:%s918]
                %1010 = vst [vmem:[%s926 + $0x148] sm:%s918] %v1009
                %v1011 = vld [vmem:[%s925 + $0x250] sm:%s918]
                %1012 = vst [vmem:[%s926 + $0x150] sm:%s918] %v1011
                %v1013 = vld [vmem:[%s925 + $0x258] sm:%s918]
                %1014 = vst [vmem:[%s926 + $0x158] sm:%s918] %v1013
                %v1015 = vld [vmem:[%s925 + $0x260] sm:%s918]
                %1016 = vst [vmem:[%s926 + $0x160] sm:%s918] %v1015
                %v1017 = vld [vmem:[%s925 + $0x268] sm:%s918]
                %1018 = vst [vmem:[%s926 + $0x168] sm:%s918] %v1017
                %v1019 = vld [vmem:[%s925 + $0x270] sm:%s918]
                %1020 = vst [vmem:[%s926 + $0x170] sm:%s918] %v1019
                %v1021 = vld [vmem:[%s925 + $0x278] sm:%s918]
                %1022 = vst [vmem:[%s926 + $0x178] sm:%s918] %v1021
                %v1023 = vld [vmem:[%s925 + $0x300] sm:%s918]
                %1024 = vst [vmem:[%s926 + $0x180] sm:%s918] %v1023
                %v1025 = vld [vmem:[%s925 + $0x308] sm:%s918]
                %1026 = vst [vmem:[%s926 + $0x188] sm:%s918] %v1025
                %v1027 = vld [vmem:[%s925 + $0x310] sm:%s918]
                %1028 = vst [vmem:[%s926 + $0x190] sm:%s918] %v1027
                %v1029 = vld [vmem:[%s925 + $0x318] sm:%s918]
                %1030 = vst [vmem:[%s926 + $0x198] sm:%s918] %v1029
                %v1031 = vld [vmem:[%s925 + $0x320] sm:%s918]
                %1032 = vst [vmem:[%s926 + $0x1a0] sm:%s918] %v1031
                %v1033 = vld [vmem:[%s925 + $0x328] sm:%s918]
                %1034 = vst [vmem:[%s926 + $0x1a8] sm:%s918] %v1033
                %v1035 = vld [vmem:[%s925 + $0x330] sm:%s918]
                %1036 = vst [vmem:[%s926 + $0x1b0] sm:%s918] %v1035
                %v1037 = vld [vmem:[%s925 + $0x338] sm:%s918]
                %1038 = vst [vmem:[%s926 + $0x1b8] sm:%s918] %v1037
                %v1039 = vld [vmem:[%s925 + $0x340] sm:%s918]
                %1040 = vst [vmem:[%s926 + $0x1c0] sm:%s918] %v1039
                %v1041 = vld [vmem:[%s925 + $0x348] sm:%s918]
                %1042 = vst [vmem:[%s926 + $0x1c8] sm:%s918] %v1041
                %v1043 = vld [vmem:[%s925 + $0x350] sm:%s918]
                %1044 = vst [vmem:[%s926 + $0x1d0] sm:%s918] %v1043
                %v1045 = vld [vmem:[%s925 + $0x358] sm:%s918]
                %1046 = vst [vmem:[%s926 + $0x1d8] sm:%s918] %v1045
                %v1047 = vld [vmem:[%s925 + $0x360] sm:%s918]
                %1048 = vst [vmem:[%s926 + $0x1e0] sm:%s918] %v1047
                %v1049 = vld [vmem:[%s925 + $0x368] sm:%s918]
                %1050 = vst [vmem:[%s926 + $0x1e8] sm:%s918] %v1049
                %v1051 = vld [vmem:[%s925 + $0x370] sm:%s918]
                %1052 = vst [vmem:[%s926 + $0x1f0] sm:%s918] %v1051
                %v1053 = vld [vmem:[%s925 + $0x378] sm:%s918]
                %1054 = vst [vmem:[%s926 + $0x1f8] sm:%s918] %v1053
              $region133: #{tpu_custom_call.1} parent=127 // loop_footer
                %s924 = sadd.s32 1, %s920
              $region134: #{tpu_custom_call.1} parent=127 // loop_footer_branch
                %919 = sbr.rel target = $region130
              $region135: #{tpu_custom_call.1} parent=127 // loop_exit
                _
            $region128: #{tpu_custom_call.1} parent=119 // pred_fallthru
              _
          $region120: #{tpu_custom_call.1} parent=115 // pred_fallthru
            _
          %1195 = vnop
        $region116: #{tpu_custom_call.1} parent=35 // pred_fallthru
          _
        // Predicated region
        $region151: #{tpu_custom_call.1} parent=35 // pred_check
          %p1196 = pneg %p120
        $region152: #{tpu_custom_call.1} parent=35 // pred_check_branch
          %1198 = sbr.rel (%p1196) target = $region154
        $region153: #{tpu_custom_call.1} parent=35 // pred_region
          %s1199 = sand.u32 %s110, 1
          %s1200 = sand.u32 %s110, 1
          %s1201 = smul.addr %s1200, 512
          %s1202 = scalar_lea.vmem [#allocation7], %s1201
          %s1203 = smul.u32 16, %s22
          %s1204 = smul.addr %s1203, 8
          %s1205 = scalar_lea.vmem %s3, %s1204
          // Predicated region
          $region155: #{tpu_custom_call.1} parent=153 // pred_check
            _
          $region156: #{tpu_custom_call.1} parent=153 // pred_check_branch
            %1207 = sbr.rel (0) target = $region158
          $region157: #{tpu_custom_call.1} parent=153 // pred_region
            // Predicated region
            $region159: #{tpu_custom_call.1} parent=157 // pred_check
              _
            $region160: #{tpu_custom_call.1} parent=157 // pred_check_branch
              %1209 = sbr.rel (0) target = $region162
            $region161: #{tpu_custom_call.1} parent=157 // pred_region
              // Predicated region
              $region174: #{tpu_custom_call.1} parent=161 // pred_check
                _
              $region175: #{tpu_custom_call.1} parent=161 // pred_check_branch
                %1351 = sbr.rel (0) target = $region177
              $region176: #{tpu_custom_call.1} parent=161 // pred_region
                loop: start=0, step=1, limit=1
                $region178: #{tpu_custom_call.1} parent=176 // loop_pre_header
                  _
                $region179: #{tpu_custom_call.1} parent=176 // loop_header
                  %s1353 = sphi 0, %s1357
                  %p1354 = scmp.ge.s32.totalorder %s1353, 1
                  %s1358 = sphi %s1205, %s1205
                  %s1359 = sphi %s1202, %s1202
                $region180: #{tpu_custom_call.1} parent=176 // loop_header_branch
                  %1356 = sbr.rel (%p1354) target = $region184
                $region181: #{tpu_custom_call.1} parent=176 // loop_body
                  %v1360 = vld [vmem:[%s1358] sm:$0xff]
                  %1361 = vst [vmem:[%s1359] sm:$0xff] %v1360
                  %v1362 = vld [vmem:[%s1358 + $0x8] sm:$0xff]
                  %1363 = vst [vmem:[%s1359 + $0x8] sm:$0xff] %v1362
                  %v1364 = vld [vmem:[%s1358 + $0x10] sm:$0xff]
                  %1365 = vst [vmem:[%s1359 + $0x10] sm:$0xff] %v1364
                  %v1366 = vld [vmem:[%s1358 + $0x18] sm:$0xff]
                  %1367 = vst [vmem:[%s1359 + $0x18] sm:$0xff] %v1366
                  %v1368 = vld [vmem:[%s1358 + $0x20] sm:$0xff]
                  %1369 = vst [vmem:[%s1359 + $0x20] sm:$0xff] %v1368
                  %v1370 = vld [vmem:[%s1358 + $0x28] sm:$0xff]
                  %1371 = vst [vmem:[%s1359 + $0x28] sm:$0xff] %v1370
                  %v1372 = vld [vmem:[%s1358 + $0x30] sm:$0xff]
                  %1373 = vst [vmem:[%s1359 + $0x30] sm:$0xff] %v1372
                  %v1374 = vld [vmem:[%s1358 + $0x38] sm:$0xff]
                  %1375 = vst [vmem:[%s1359 + $0x38] sm:$0xff] %v1374
                  %v1376 = vld [vmem:[%s1358 + $0x40] sm:$0xff]
                  %1377 = vst [vmem:[%s1359 + $0x40] sm:$0xff] %v1376
                  %v1378 = vld [vmem:[%s1358 + $0x48] sm:$0xff]
                  %1379 = vst [vmem:[%s1359 + $0x48] sm:$0xff] %v1378
                  %v1380 = vld [vmem:[%s1358 + $0x50] sm:$0xff]
                  %1381 = vst [vmem:[%s1359 + $0x50] sm:$0xff] %v1380
                  %v1382 = vld [vmem:[%s1358 + $0x58] sm:$0xff]
                  %1383 = vst [vmem:[%s1359 + $0x58] sm:$0xff] %v1382
                  %v1384 = vld [vmem:[%s1358 + $0x60] sm:$0xff]
                  %1385 = vst [vmem:[%s1359 + $0x60] sm:$0xff] %v1384
                  %v1386 = vld [vmem:[%s1358 + $0x68] sm:$0xff]
                  %1387 = vst [vmem:[%s1359 + $0x68] sm:$0xff] %v1386
                  %v1388 = vld [vmem:[%s1358 + $0x70] sm:$0xff]
                  %1389 = vst [vmem:[%s1359 + $0x70] sm:$0xff] %v1388
                  %v1390 = vld [vmem:[%s1358 + $0x78] sm:$0xff]
                  %1391 = vst [vmem:[%s1359 + $0x78] sm:$0xff] %v1390
                  %v1392 = vld [vmem:[%s1358 + $0x100] sm:$0xff]
                  %1393 = vst [vmem:[%s1359 + $0x80] sm:$0xff] %v1392
                  %v1394 = vld [vmem:[%s1358 + $0x108] sm:$0xff]
                  %1395 = vst [vmem:[%s1359 + $0x88] sm:$0xff] %v1394
                  %v1396 = vld [vmem:[%s1358 + $0x110] sm:$0xff]
                  %1397 = vst [vmem:[%s1359 + $0x90] sm:$0xff] %v1396
                  %v1398 = vld [vmem:[%s1358 + $0x118] sm:$0xff]
                  %1399 = vst [vmem:[%s1359 + $0x98] sm:$0xff] %v1398
                  %v1400 = vld [vmem:[%s1358 + $0x120] sm:$0xff]
                  %1401 = vst [vmem:[%s1359 + $0xa0] sm:$0xff] %v1400
                  %v1402 = vld [vmem:[%s1358 + $0x128] sm:$0xff]
                  %1403 = vst [vmem:[%s1359 + $0xa8] sm:$0xff] %v1402
                  %v1404 = vld [vmem:[%s1358 + $0x130] sm:$0xff]
                  %1405 = vst [vmem:[%s1359 + $0xb0] sm:$0xff] %v1404
                  %v1406 = vld [vmem:[%s1358 + $0x138] sm:$0xff]
                  %1407 = vst [vmem:[%s1359 + $0xb8] sm:$0xff] %v1406
                  %v1408 = vld [vmem:[%s1358 + $0x140] sm:$0xff]
                  %1409 = vst [vmem:[%s1359 + $0xc0] sm:$0xff] %v1408
                  %v1410 = vld [vmem:[%s1358 + $0x148] sm:$0xff]
                  %1411 = vst [vmem:[%s1359 + $0xc8] sm:$0xff] %v1410
                  %v1412 = vld [vmem:[%s1358 + $0x150] sm:$0xff]
                  %1413 = vst [vmem:[%s1359 + $0xd0] sm:$0xff] %v1412
                  %v1414 = vld [vmem:[%s1358 + $0x158] sm:$0xff]
                  %1415 = vst [vmem:[%s1359 + $0xd8] sm:$0xff] %v1414
                  %v1416 = vld [vmem:[%s1358 + $0x160] sm:$0xff]
                  %1417 = vst [vmem:[%s1359 + $0xe0] sm:$0xff] %v1416
                  %v1418 = vld [vmem:[%s1358 + $0x168] sm:$0xff]
                  %1419 = vst [vmem:[%s1359 + $0xe8] sm:$0xff] %v1418
                  %v1420 = vld [vmem:[%s1358 + $0x170] sm:$0xff]
                  %1421 = vst [vmem:[%s1359 + $0xf0] sm:$0xff] %v1420
                  %v1422 = vld [vmem:[%s1358 + $0x178] sm:$0xff]
                  %1423 = vst [vmem:[%s1359 + $0xf8] sm:$0xff] %v1422
                  %v1424 = vld [vmem:[%s1358 + $0x200] sm:$0xff]
                  %1425 = vst [vmem:[%s1359 + $0x100] sm:$0xff] %v1424
                  %v1426 = vld [vmem:[%s1358 + $0x208] sm:$0xff]
                  %1427 = vst [vmem:[%s1359 + $0x108] sm:$0xff] %v1426
                  %v1428 = vld [vmem:[%s1358 + $0x210] sm:$0xff]
                  %1429 = vst [vmem:[%s1359 + $0x110] sm:$0xff] %v1428
                  %v1430 = vld [vmem:[%s1358 + $0x218] sm:$0xff]
                  %1431 = vst [vmem:[%s1359 + $0x118] sm:$0xff] %v1430
                  %v1432 = vld [vmem:[%s1358 + $0x220] sm:$0xff]
                  %1433 = vst [vmem:[%s1359 + $0x120] sm:$0xff] %v1432
                  %v1434 = vld [vmem:[%s1358 + $0x228] sm:$0xff]
                  %1435 = vst [vmem:[%s1359 + $0x128] sm:$0xff] %v1434
                  %v1436 = vld [vmem:[%s1358 + $0x230] sm:$0xff]
                  %1437 = vst [vmem:[%s1359 + $0x130] sm:$0xff] %v1436
                  %v1438 = vld [vmem:[%s1358 + $0x238] sm:$0xff]
                  %1439 = vst [vmem:[%s1359 + $0x138] sm:$0xff] %v1438
                  %v1440 = vld [vmem:[%s1358 + $0x240] sm:$0xff]
                  %1441 = vst [vmem:[%s1359 + $0x140] sm:$0xff] %v1440
                  %v1442 = vld [vmem:[%s1358 + $0x248] sm:$0xff]
                  %1443 = vst [vmem:[%s1359 + $0x148] sm:$0xff] %v1442
                  %v1444 = vld [vmem:[%s1358 + $0x250] sm:$0xff]
                  %1445 = vst [vmem:[%s1359 + $0x150] sm:$0xff] %v1444
                  %v1446 = vld [vmem:[%s1358 + $0x258] sm:$0xff]
                  %1447 = vst [vmem:[%s1359 + $0x158] sm:$0xff] %v1446
                  %v1448 = vld [vmem:[%s1358 + $0x260] sm:$0xff]
                  %1449 = vst [vmem:[%s1359 + $0x160] sm:$0xff] %v1448
                  %v1450 = vld [vmem:[%s1358 + $0x268] sm:$0xff]
                  %1451 = vst [vmem:[%s1359 + $0x168] sm:$0xff] %v1450
                  %v1452 = vld [vmem:[%s1358 + $0x270] sm:$0xff]
                  %1453 = vst [vmem:[%s1359 + $0x170] sm:$0xff] %v1452
                  %v1454 = vld [vmem:[%s1358 + $0x278] sm:$0xff]
                  %1455 = vst [vmem:[%s1359 + $0x178] sm:$0xff] %v1454
                  %v1456 = vld [vmem:[%s1358 + $0x300] sm:$0xff]
                  %1457 = vst [vmem:[%s1359 + $0x180] sm:$0xff] %v1456
                  %v1458 = vld [vmem:[%s1358 + $0x308] sm:$0xff]
                  %1459 = vst [vmem:[%s1359 + $0x188] sm:$0xff] %v1458
                  %v1460 = vld [vmem:[%s1358 + $0x310] sm:$0xff]
                  %1461 = vst [vmem:[%s1359 + $0x190] sm:$0xff] %v1460
                  %v1462 = vld [vmem:[%s1358 + $0x318] sm:$0xff]
                  %1463 = vst [vmem:[%s1359 + $0x198] sm:$0xff] %v1462
                  %v1464 = vld [vmem:[%s1358 + $0x320] sm:$0xff]
                  %1465 = vst [vmem:[%s1359 + $0x1a0] sm:$0xff] %v1464
                  %v1466 = vld [vmem:[%s1358 + $0x328] sm:$0xff]
                  %1467 = vst [vmem:[%s1359 + $0x1a8] sm:$0xff] %v1466
                  %v1468 = vld [vmem:[%s1358 + $0x330] sm:$0xff]
                  %1469 = vst [vmem:[%s1359 + $0x1b0] sm:$0xff] %v1468
                  %v1470 = vld [vmem:[%s1358 + $0x338] sm:$0xff]
                  %1471 = vst [vmem:[%s1359 + $0x1b8] sm:$0xff] %v1470
                  %v1472 = vld [vmem:[%s1358 + $0x340] sm:$0xff]
                  %1473 = vst [vmem:[%s1359 + $0x1c0] sm:$0xff] %v1472
                  %v1474 = vld [vmem:[%s1358 + $0x348] sm:$0xff]
                  %1475 = vst [vmem:[%s1359 + $0x1c8] sm:$0xff] %v1474
                  %v1476 = vld [vmem:[%s1358 + $0x350] sm:$0xff]
                  %1477 = vst [vmem:[%s1359 + $0x1d0] sm:$0xff] %v1476
                  %v1478 = vld [vmem:[%s1358 + $0x358] sm:$0xff]
                  %1479 = vst [vmem:[%s1359 + $0x1d8] sm:$0xff] %v1478
                  %v1480 = vld [vmem:[%s1358 + $0x360] sm:$0xff]
                  %1481 = vst [vmem:[%s1359 + $0x1e0] sm:$0xff] %v1480
                  %v1482 = vld [vmem:[%s1358 + $0x368] sm:$0xff]
                  %1483 = vst [vmem:[%s1359 + $0x1e8] sm:$0xff] %v1482
                  %v1484 = vld [vmem:[%s1358 + $0x370] sm:$0xff]
                  %1485 = vst [vmem:[%s1359 + $0x1f0] sm:$0xff] %v1484
                  %v1486 = vld [vmem:[%s1358 + $0x378] sm:$0xff]
                  %1487 = vst [vmem:[%s1359 + $0x1f8] sm:$0xff] %v1486
                $region182: #{tpu_custom_call.1} parent=176 // loop_footer
                  %s1357 = sadd.s32 1, %s1353
                $region183: #{tpu_custom_call.1} parent=176 // loop_footer_branch
                  %1352 = sbr.rel target = $region179
                $region184: #{tpu_custom_call.1} parent=176 // loop_exit
                  _
              $region177: #{tpu_custom_call.1} parent=161 // pred_fallthru
                _
              // Predicated region
              $region185: #{tpu_custom_call.1} parent=161 // pred_check
                _
              $region186: #{tpu_custom_call.1} parent=161 // pred_check_branch
                %1489 = sbr.rel target = $region188
              $region187: #{tpu_custom_call.1} parent=161 // pred_region
                _
              $region188: #{tpu_custom_call.1} parent=161 // pred_fallthru
                _
            $region162: #{tpu_custom_call.1} parent=157 // pred_fallthru
              _
            // Predicated region
            $region163: #{tpu_custom_call.1} parent=157 // pred_check
              _
            $region164: #{tpu_custom_call.1} parent=157 // pred_check_branch
              %1211 = sbr.rel target = $region166
            $region165: #{tpu_custom_call.1} parent=157 // pred_region
              %s1213 = ssub.s32 256, 1
              loop: start=0, step=1, limit=1
              $region167: #{tpu_custom_call.1} parent=165 // loop_pre_header
                _
              $region168: #{tpu_custom_call.1} parent=165 // loop_header
                %s1215 = sphi 0, %s1219
                %p1216 = scmp.ge.s32.totalorder %s1215, 1
                %s1220 = sphi %s1205, %s1205
                %s1221 = sphi %s1202, %s1202
              $region169: #{tpu_custom_call.1} parent=165 // loop_header_branch
                %1218 = sbr.rel (%p1216) target = $region173
              $region170: #{tpu_custom_call.1} parent=165 // loop_body
                %v1222 = vld [vmem:[%s1220] sm:%s1213]
                %1223 = vst [vmem:[%s1221] sm:%s1213] %v1222
                %v1224 = vld [vmem:[%s1220 + $0x8] sm:%s1213]
                %1225 = vst [vmem:[%s1221 + $0x8] sm:%s1213] %v1224
                %v1226 = vld [vmem:[%s1220 + $0x10] sm:%s1213]
                %1227 = vst [vmem:[%s1221 + $0x10] sm:%s1213] %v1226
                %v1228 = vld [vmem:[%s1220 + $0x18] sm:%s1213]
                %1229 = vst [vmem:[%s1221 + $0x18] sm:%s1213] %v1228
                %v1230 = vld [vmem:[%s1220 + $0x20] sm:%s1213]
                %1231 = vst [vmem:[%s1221 + $0x20] sm:%s1213] %v1230
                %v1232 = vld [vmem:[%s1220 + $0x28] sm:%s1213]
                %1233 = vst [vmem:[%s1221 + $0x28] sm:%s1213] %v1232
                %v1234 = vld [vmem:[%s1220 + $0x30] sm:%s1213]
                %1235 = vst [vmem:[%s1221 + $0x30] sm:%s1213] %v1234
                %v1236 = vld [vmem:[%s1220 + $0x38] sm:%s1213]
                %1237 = vst [vmem:[%s1221 + $0x38] sm:%s1213] %v1236
                %v1238 = vld [vmem:[%s1220 + $0x40] sm:%s1213]
                %1239 = vst [vmem:[%s1221 + $0x40] sm:%s1213] %v1238
                %v1240 = vld [vmem:[%s1220 + $0x48] sm:%s1213]
                %1241 = vst [vmem:[%s1221 + $0x48] sm:%s1213] %v1240
                %v1242 = vld [vmem:[%s1220 + $0x50] sm:%s1213]
                %1243 = vst [vmem:[%s1221 + $0x50] sm:%s1213] %v1242
                %v1244 = vld [vmem:[%s1220 + $0x58] sm:%s1213]
                %1245 = vst [vmem:[%s1221 + $0x58] sm:%s1213] %v1244
                %v1246 = vld [vmem:[%s1220 + $0x60] sm:%s1213]
                %1247 = vst [vmem:[%s1221 + $0x60] sm:%s1213] %v1246
                %v1248 = vld [vmem:[%s1220 + $0x68] sm:%s1213]
                %1249 = vst [vmem:[%s1221 + $0x68] sm:%s1213] %v1248
                %v1250 = vld [vmem:[%s1220 + $0x70] sm:%s1213]
                %1251 = vst [vmem:[%s1221 + $0x70] sm:%s1213] %v1250
                %v1252 = vld [vmem:[%s1220 + $0x78] sm:%s1213]
                %1253 = vst [vmem:[%s1221 + $0x78] sm:%s1213] %v1252
                %v1254 = vld [vmem:[%s1220 + $0x100] sm:%s1213]
                %1255 = vst [vmem:[%s1221 + $0x80] sm:%s1213] %v1254
                %v1256 = vld [vmem:[%s1220 + $0x108] sm:%s1213]
                %1257 = vst [vmem:[%s1221 + $0x88] sm:%s1213] %v1256
                %v1258 = vld [vmem:[%s1220 + $0x110] sm:%s1213]
                %1259 = vst [vmem:[%s1221 + $0x90] sm:%s1213] %v1258
                %v1260 = vld [vmem:[%s1220 + $0x118] sm:%s1213]
                %1261 = vst [vmem:[%s1221 + $0x98] sm:%s1213] %v1260
                %v1262 = vld [vmem:[%s1220 + $0x120] sm:%s1213]
                %1263 = vst [vmem:[%s1221 + $0xa0] sm:%s1213] %v1262
                %v1264 = vld [vmem:[%s1220 + $0x128] sm:%s1213]
                %1265 = vst [vmem:[%s1221 + $0xa8] sm:%s1213] %v1264
                %v1266 = vld [vmem:[%s1220 + $0x130] sm:%s1213]
                %1267 = vst [vmem:[%s1221 + $0xb0] sm:%s1213] %v1266
                %v1268 = vld [vmem:[%s1220 + $0x138] sm:%s1213]
                %1269 = vst [vmem:[%s1221 + $0xb8] sm:%s1213] %v1268
                %v1270 = vld [vmem:[%s1220 + $0x140] sm:%s1213]
                %1271 = vst [vmem:[%s1221 + $0xc0] sm:%s1213] %v1270
                %v1272 = vld [vmem:[%s1220 + $0x148] sm:%s1213]
                %1273 = vst [vmem:[%s1221 + $0xc8] sm:%s1213] %v1272
                %v1274 = vld [vmem:[%s1220 + $0x150] sm:%s1213]
                %1275 = vst [vmem:[%s1221 + $0xd0] sm:%s1213] %v1274
                %v1276 = vld [vmem:[%s1220 + $0x158] sm:%s1213]
                %1277 = vst [vmem:[%s1221 + $0xd8] sm:%s1213] %v1276
                %v1278 = vld [vmem:[%s1220 + $0x160] sm:%s1213]
                %1279 = vst [vmem:[%s1221 + $0xe0] sm:%s1213] %v1278
                %v1280 = vld [vmem:[%s1220 + $0x168] sm:%s1213]
                %1281 = vst [vmem:[%s1221 + $0xe8] sm:%s1213] %v1280
                %v1282 = vld [vmem:[%s1220 + $0x170] sm:%s1213]
                %1283 = vst [vmem:[%s1221 + $0xf0] sm:%s1213] %v1282
                %v1284 = vld [vmem:[%s1220 + $0x178] sm:%s1213]
                %1285 = vst [vmem:[%s1221 + $0xf8] sm:%s1213] %v1284
                %v1286 = vld [vmem:[%s1220 + $0x200] sm:%s1213]
                %1287 = vst [vmem:[%s1221 + $0x100] sm:%s1213] %v1286
                %v1288 = vld [vmem:[%s1220 + $0x208] sm:%s1213]
                %1289 = vst [vmem:[%s1221 + $0x108] sm:%s1213] %v1288
                %v1290 = vld [vmem:[%s1220 + $0x210] sm:%s1213]
                %1291 = vst [vmem:[%s1221 + $0x110] sm:%s1213] %v1290
                %v1292 = vld [vmem:[%s1220 + $0x218] sm:%s1213]
                %1293 = vst [vmem:[%s1221 + $0x118] sm:%s1213] %v1292
                %v1294 = vld [vmem:[%s1220 + $0x220] sm:%s1213]
                %1295 = vst [vmem:[%s1221 + $0x120] sm:%s1213] %v1294
                %v1296 = vld [vmem:[%s1220 + $0x228] sm:%s1213]
                %1297 = vst [vmem:[%s1221 + $0x128] sm:%s1213] %v1296
                %v1298 = vld [vmem:[%s1220 + $0x230] sm:%s1213]
                %1299 = vst [vmem:[%s1221 + $0x130] sm:%s1213] %v1298
                %v1300 = vld [vmem:[%s1220 + $0x238] sm:%s1213]
                %1301 = vst [vmem:[%s1221 + $0x138] sm:%s1213] %v1300
                %v1302 = vld [vmem:[%s1220 + $0x240] sm:%s1213]
                %1303 = vst [vmem:[%s1221 + $0x140] sm:%s1213] %v1302
                %v1304 = vld [vmem:[%s1220 + $0x248] sm:%s1213]
                %1305 = vst [vmem:[%s1221 + $0x148] sm:%s1213] %v1304
                %v1306 = vld [vmem:[%s1220 + $0x250] sm:%s1213]
                %1307 = vst [vmem:[%s1221 + $0x150] sm:%s1213] %v1306
                %v1308 = vld [vmem:[%s1220 + $0x258] sm:%s1213]
                %1309 = vst [vmem:[%s1221 + $0x158] sm:%s1213] %v1308
                %v1310 = vld [vmem:[%s1220 + $0x260] sm:%s1213]
                %1311 = vst [vmem:[%s1221 + $0x160] sm:%s1213] %v1310
                %v1312 = vld [vmem:[%s1220 + $0x268] sm:%s1213]
                %1313 = vst [vmem:[%s1221 + $0x168] sm:%s1213] %v1312
                %v1314 = vld [vmem:[%s1220 + $0x270] sm:%s1213]
                %1315 = vst [vmem:[%s1221 + $0x170] sm:%s1213] %v1314
                %v1316 = vld [vmem:[%s1220 + $0x278] sm:%s1213]
                %1317 = vst [vmem:[%s1221 + $0x178] sm:%s1213] %v1316
                %v1318 = vld [vmem:[%s1220 + $0x300] sm:%s1213]
                %1319 = vst [vmem:[%s1221 + $0x180] sm:%s1213] %v1318
                %v1320 = vld [vmem:[%s1220 + $0x308] sm:%s1213]
                %1321 = vst [vmem:[%s1221 + $0x188] sm:%s1213] %v1320
                %v1322 = vld [vmem:[%s1220 + $0x310] sm:%s1213]
                %1323 = vst [vmem:[%s1221 + $0x190] sm:%s1213] %v1322
                %v1324 = vld [vmem:[%s1220 + $0x318] sm:%s1213]
                %1325 = vst [vmem:[%s1221 + $0x198] sm:%s1213] %v1324
                %v1326 = vld [vmem:[%s1220 + $0x320] sm:%s1213]
                %1327 = vst [vmem:[%s1221 + $0x1a0] sm:%s1213] %v1326
                %v1328 = vld [vmem:[%s1220 + $0x328] sm:%s1213]
                %1329 = vst [vmem:[%s1221 + $0x1a8] sm:%s1213] %v1328
                %v1330 = vld [vmem:[%s1220 + $0x330] sm:%s1213]
                %1331 = vst [vmem:[%s1221 + $0x1b0] sm:%s1213] %v1330
                %v1332 = vld [vmem:[%s1220 + $0x338] sm:%s1213]
                %1333 = vst [vmem:[%s1221 + $0x1b8] sm:%s1213] %v1332
                %v1334 = vld [vmem:[%s1220 + $0x340] sm:%s1213]
                %1335 = vst [vmem:[%s1221 + $0x1c0] sm:%s1213] %v1334
                %v1336 = vld [vmem:[%s1220 + $0x348] sm:%s1213]
                %1337 = vst [vmem:[%s1221 + $0x1c8] sm:%s1213] %v1336
                %v1338 = vld [vmem:[%s1220 + $0x350] sm:%s1213]
                %1339 = vst [vmem:[%s1221 + $0x1d0] sm:%s1213] %v1338
                %v1340 = vld [vmem:[%s1220 + $0x358] sm:%s1213]
                %1341 = vst [vmem:[%s1221 + $0x1d8] sm:%s1213] %v1340
                %v1342 = vld [vmem:[%s1220 + $0x360] sm:%s1213]
                %1343 = vst [vmem:[%s1221 + $0x1e0] sm:%s1213] %v1342
                %v1344 = vld [vmem:[%s1220 + $0x368] sm:%s1213]
                %1345 = vst [vmem:[%s1221 + $0x1e8] sm:%s1213] %v1344
                %v1346 = vld [vmem:[%s1220 + $0x370] sm:%s1213]
                %1347 = vst [vmem:[%s1221 + $0x1f0] sm:%s1213] %v1346
                %v1348 = vld [vmem:[%s1220 + $0x378] sm:%s1213]
                %1349 = vst [vmem:[%s1221 + $0x1f8] sm:%s1213] %v1348
              $region171: #{tpu_custom_call.1} parent=165 // loop_footer
                %s1219 = sadd.s32 1, %s1215
              $region172: #{tpu_custom_call.1} parent=165 // loop_footer_branch
                %1214 = sbr.rel target = $region168
              $region173: #{tpu_custom_call.1} parent=165 // loop_exit
                _
            $region166: #{tpu_custom_call.1} parent=157 // pred_fallthru
              _
          $region158: #{tpu_custom_call.1} parent=153 // pred_fallthru
            _
          %1490 = vnop
        $region154: #{tpu_custom_call.1} parent=35 // pred_fallthru
          _
      $region36: #{tpu_custom_call.1} parent=5 // pred_fallthru
        _
      %p1491 = scmp.le.s32.totalorder 1, %s22
      %p1492 = scmp.lt.s32.totalorder %s22, 3
      %p1493 = pnand %p1491, %p1492
      %p1494 = pneg %p1493
      // Predicated region
      $region189: #{tpu_custom_call.1} parent=5 // pred_check
        _
      $region190: #{tpu_custom_call.1} parent=5 // pred_check_branch
        %1496 = sbr.rel (%p1493) target = $region192
      $region191: #{tpu_custom_call.1} parent=5 // pred_region
        %s1497 = ssub.s32 %s22, 1
        %s1498 = sand.u32 %s35, 1
        %s1499 = sand.u32 %s35, 1
        %s1500 = smul.addr %s1499, 512
        %s1501 = scalar_lea.vmem [#allocation4], %s1500
        // Predicated region
        $region193: #{tpu_custom_call.1} parent=191 // pred_check
          %p1502 = pneg %p48
        $region194: #{tpu_custom_call.1} parent=191 // pred_check_branch
          %1504 = sbr.rel (%p1502) target = $region196
        $region195: #{tpu_custom_call.1} parent=191 // pred_region
          _
        $region196: #{tpu_custom_call.1} parent=191 // pred_fallthru
          _
        %s1505 = sand.u32 %s61, 1
        %s1506 = sand.u32 %s61, 1
        %s1507 = smul.addr %s1506, 512
        %s1508 = scalar_lea.vmem [#allocation5], %s1507
        // Predicated region
        $region197: #{tpu_custom_call.1} parent=191 // pred_check
          %p1509 = pneg %p74
        $region198: #{tpu_custom_call.1} parent=191 // pred_check_branch
          %1511 = sbr.rel (%p1509) target = $region200
        $region199: #{tpu_custom_call.1} parent=191 // pred_region
          _
        $region200: #{tpu_custom_call.1} parent=191 // pred_fallthru
          _
        %s1512 = sand.u32 %s87, 1
        %s1513 = sand.u32 %s87, 1
        %s1514 = smul.addr %s1513, 512
        %s1515 = scalar_lea.vmem [#allocation6], %s1514
        // Predicated region
        $region201: #{tpu_custom_call.1} parent=191 // pred_check
          %p1516 = pneg %p100
        $region202: #{tpu_custom_call.1} parent=191 // pred_check_branch
          %1518 = sbr.rel (%p1516) target = $region204
        $region203: #{tpu_custom_call.1} parent=191 // pred_region
          _
        $region204: #{tpu_custom_call.1} parent=191 // pred_fallthru
          _
        %s1519 = sand.u32 %s113, 1
        %s1520 = sand.u32 %s113, 1
        %s1521 = smul.addr %s1520, 512
        %s1522 = scalar_lea.vmem [#allocation7], %s1521
        // Predicated region
        $region205: #{tpu_custom_call.1} parent=191 // pred_check
          %p1523 = pneg %p126
        $region206: #{tpu_custom_call.1} parent=191 // pred_check_branch
          %1525 = sbr.rel (%p1523) target = $region208
        $region207: #{tpu_custom_call.1} parent=191 // pred_region
          _
        $region208: #{tpu_custom_call.1} parent=191 // pred_fallthru
          _
        // Predicated region
        $region209: #{tpu_custom_call.1} parent=191 // pred_check
          %p1526 = pneg %p147
        $region210: #{tpu_custom_call.1} parent=191 // pred_check_branch
          %1528 = sbr.rel (%p1526) target = $region212
        $region211: #{tpu_custom_call.1} parent=191 // pred_region
          %1529 = dma.done [#allocation9], 2048
        $region212: #{tpu_custom_call.1} parent=191 // pred_fallthru
          _
        // Predicated region
        $region213: #{tpu_custom_call.1} parent=191 // pred_check
          %p1530 = pneg %p189
        $region214: #{tpu_custom_call.1} parent=191 // pred_check_branch
          %1532 = sbr.rel (%p1530) target = $region216
        $region215: #{tpu_custom_call.1} parent=191 // pred_region
          %1533 = dma.done [#allocation12], 2048
        $region216: #{tpu_custom_call.1} parent=191 // pred_fallthru
          _
        %s1534 = sand.u32 %s35, 1
        %s1535 = sand.u32 %s35, 1
        %s1536 = smul.addr %s1535, 512
        %s1537 = scalar_lea.vmem [#allocation4], %s1536
        %p1538 = pneg %p48
        %p1539 = pneg %p45
        %s1540 = sand.u32 %s61, 1
        %s1541 = sand.u32 %s61, 1
        %s1542 = smul.addr %s1541, 512
        %s1543 = scalar_lea.vmem [#allocation5], %s1542
        %p1544 = pneg %p74
        %p1545 = pneg %p71
        %s1546 = sand.u32 %s87, 1
        %s1547 = sand.u32 %s87, 1
        %s1548 = smul.addr %s1547, 512
        %s1549 = scalar_lea.vmem [#allocation6], %s1548
        %p1550 = pneg %p100
        %p1551 = pneg %p97
        %s1552 = sand.u32 %s113, 1
        %s1553 = sand.u32 %s113, 1
        %s1554 = smul.addr %s1553, 512
        %s1555 = scalar_lea.vmem [#allocation7], %s1554
        %p1556 = pneg %p126
        %p1557 = pneg %p123
        %p1558 = pneg %p147
        %p1559 = pneg %p144
        %p1560 = pneg %p168
        %p1561 = pneg %p165
        %p1562 = pneg %p189
        %p1563 = pneg %p186
        %p1564 = pneg %p210
        %p1565 = pneg %p207
        %p1566 = pneg %p231
        %p1567 = pneg %p228
        %p1568 = pneg %p257
        %p1569 = pneg %p254
        %s1570 = sand.u32 %s244, 1
        %s1571 = scalar_lea.sflag [#allocation10], %s1570
        %s1572 = sand.u32 %s244, 1
        %s1573 = smul.addr %s1572, 2
        %s1574 = scalar_lea.vmem [#allocation13], %s1573
        %s1575 = smul.u32 16, %s27
        %s1576 = smul.u32 16, %s27
        %s1577 = smul.u32 16, %s27
        %s1578 = smul.u32 16, %s27
        %s1580 = sld [smem:[#allocation2]]
        %s1581 = sld [smem:[#allocation3]]
        %v1582 = vld [vmem:[#allocation8] sm:$0xff]
        %v1583 = vld [vmem:[#allocation8 + $0x8] sm:$0xff]
        %v1584 = vld [vmem:[#allocation8 + $0x10] sm:$0xff]
        %v1585 = vld [vmem:[#allocation8 + $0x18] sm:$0xff]
        %v1586 = vld [vmem:[#allocation8 + $0x20] sm:$0xff]
        %v1587 = vld [vmem:[#allocation8 + $0x28] sm:$0xff]
        %v1588 = vld [vmem:[#allocation8 + $0x30] sm:$0xff]
        %v1589 = vld [vmem:[#allocation8 + $0x38] sm:$0xff]
        %v1590 = vld [vmem:[#allocation8 + $0x40] sm:$0xff]
        %v1591 = vld [vmem:[#allocation8 + $0x48] sm:$0xff]
        %v1592 = vld [vmem:[#allocation8 + $0x50] sm:$0xff]
        %v1593 = vld [vmem:[#allocation8 + $0x58] sm:$0xff]
        %v1594 = vld [vmem:[#allocation8 + $0x60] sm:$0xff]
        %v1595 = vld [vmem:[#allocation8 + $0x68] sm:$0xff]
        %v1596 = vld [vmem:[#allocation8 + $0x70] sm:$0xff]
        %v1597 = vld [vmem:[#allocation8 + $0x78] sm:$0xff]
        %v1598 = vpack.c.bf16 %v1583, %v1582
        %v1599 = vpack.c.bf16 %v1585, %v1584
        %v1600 = vpack.c.bf16 %v1587, %v1586
        %v1601 = vpack.c.bf16 %v1589, %v1588
        %v1602 = vpack.c.bf16 %v1591, %v1590
        %v1603 = vpack.c.bf16 %v1593, %v1592
        %v1604 = vpack.c.bf16 %v1595, %v1594
        %v1605 = vpack.c.bf16 %v1597, %v1596
        %v1606 = vld [vmem:[#allocation11] sm:$0xff]
        %v1607 = vld [vmem:[#allocation11 + $0x8] sm:$0xff]
        %v1608 = vld [vmem:[#allocation11 + $0x10] sm:$0xff]
        %v1609 = vld [vmem:[#allocation11 + $0x18] sm:$0xff]
        %v1610 = vld [vmem:[#allocation11 + $0x20] sm:$0xff]
        %v1611 = vld [vmem:[#allocation11 + $0x28] sm:$0xff]
        %v1612 = vld [vmem:[#allocation11 + $0x30] sm:$0xff]
        %v1613 = vld [vmem:[#allocation11 + $0x38] sm:$0xff]
        %v1614 = vld [vmem:[#allocation11 + $0x40] sm:$0xff]
        %v1615 = vld [vmem:[#allocation11 + $0x48] sm:$0xff]
        %v1616 = vld [vmem:[#allocation11 + $0x50] sm:$0xff]
        %v1617 = vld [vmem:[#allocation11 + $0x58] sm:$0xff]
        %v1618 = vld [vmem:[#allocation11 + $0x60] sm:$0xff]
        %v1619 = vld [vmem:[#allocation11 + $0x68] sm:$0xff]
        %v1620 = vld [vmem:[#allocation11 + $0x70] sm:$0xff]
        %v1621 = vld [vmem:[#allocation11 + $0x78] sm:$0xff]
        %v1622 = vpack.c.bf16 %v1607, %v1606
        %v1623 = vpack.c.bf16 %v1609, %v1608
        %v1624 = vpack.c.bf16 %v1611, %v1610
        %v1625 = vpack.c.bf16 %v1613, %v1612
        %v1626 = vpack.c.bf16 %v1615, %v1614
        %v1627 = vpack.c.bf16 %v1617, %v1616
        %v1628 = vpack.c.bf16 %v1619, %v1618
        %v1629 = vpack.c.bf16 %v1621, %v1620
        %v1630 = vld [vmem:[%s5] sm:$0x1]
        %v1632 = vlaneseq
        %v1633 = vshrl.u32 %v1632, 7
        %v1634 = vsub.s32 0, %v1633
        %v1635 = vrot.slane %v1630, %v1634
        %v1637 = vld [vmem:[%s1501] sm:$0xff]
        %v1638 = vld [vmem:[%s1501 + $0x8] sm:$0xff]
        %v1639 = vld [vmem:[%s1501 + $0x10] sm:$0xff]
        %v1640 = vld [vmem:[%s1501 + $0x18] sm:$0xff]
        %v1641 = vld [vmem:[%s1501 + $0x20] sm:$0xff]
        %v1642 = vld [vmem:[%s1501 + $0x28] sm:$0xff]
        %v1643 = vld [vmem:[%s1501 + $0x30] sm:$0xff]
        %v1644 = vld [vmem:[%s1501 + $0x38] sm:$0xff]
        %v1645 = vld [vmem:[%s1501 + $0x40] sm:$0xff]
        %v1646 = vld [vmem:[%s1501 + $0x48] sm:$0xff]
        %v1647 = vld [vmem:[%s1501 + $0x50] sm:$0xff]
        %v1648 = vld [vmem:[%s1501 + $0x58] sm:$0xff]
        %v1649 = vld [vmem:[%s1501 + $0x60] sm:$0xff]
        %v1650 = vld [vmem:[%s1501 + $0x68] sm:$0xff]
        %v1651 = vld [vmem:[%s1501 + $0x70] sm:$0xff]
        %v1652 = vld [vmem:[%s1501 + $0x78] sm:$0xff]
        %v1653 = vld [vmem:[%s1501 + $0x80] sm:$0xff]
        %v1654 = vld [vmem:[%s1501 + $0x88] sm:$0xff]
        %v1655 = vld [vmem:[%s1501 + $0x90] sm:$0xff]
        %v1656 = vld [vmem:[%s1501 + $0x98] sm:$0xff]
        %v1657 = vld [vmem:[%s1501 + $0xa0] sm:$0xff]
        %v1658 = vld [vmem:[%s1501 + $0xa8] sm:$0xff]
        %v1659 = vld [vmem:[%s1501 + $0xb0] sm:$0xff]
        %v1660 = vld [vmem:[%s1501 + $0xb8] sm:$0xff]
        %v1661 = vld [vmem:[%s1501 + $0xc0] sm:$0xff]
        %v1662 = vld [vmem:[%s1501 + $0xc8] sm:$0xff]
        %v1663 = vld [vmem:[%s1501 + $0xd0] sm:$0xff]
        %v1664 = vld [vmem:[%s1501 + $0xd8] sm:$0xff]
        %v1665 = vld [vmem:[%s1501 + $0xe0] sm:$0xff]
        %v1666 = vld [vmem:[%s1501 + $0xe8] sm:$0xff]
        %v1667 = vld [vmem:[%s1501 + $0xf0] sm:$0xff]
        %v1668 = vld [vmem:[%s1501 + $0xf8] sm:$0xff]
        %v1669 = vld [vmem:[%s1501 + $0x100] sm:$0xff]
        %v1670 = vld [vmem:[%s1501 + $0x108] sm:$0xff]
        %v1671 = vld [vmem:[%s1501 + $0x110] sm:$0xff]
        %v1672 = vld [vmem:[%s1501 + $0x118] sm:$0xff]
        %v1673 = vld [vmem:[%s1501 + $0x120] sm:$0xff]
        %v1674 = vld [vmem:[%s1501 + $0x128] sm:$0xff]
        %v1675 = vld [vmem:[%s1501 + $0x130] sm:$0xff]
        %v1676 = vld [vmem:[%s1501 + $0x138] sm:$0xff]
        %v1677 = vld [vmem:[%s1501 + $0x140] sm:$0xff]
        %v1678 = vld [vmem:[%s1501 + $0x148] sm:$0xff]
        %v1679 = vld [vmem:[%s1501 + $0x150] sm:$0xff]
        %v1680 = vld [vmem:[%s1501 + $0x158] sm:$0xff]
        %v1681 = vld [vmem:[%s1501 + $0x160] sm:$0xff]
        %v1682 = vld [vmem:[%s1501 + $0x168] sm:$0xff]
        %v1683 = vld [vmem:[%s1501 + $0x170] sm:$0xff]
        %v1684 = vld [vmem:[%s1501 + $0x178] sm:$0xff]
        %v1685 = vld [vmem:[%s1501 + $0x180] sm:$0xff]
        %v1686 = vld [vmem:[%s1501 + $0x188] sm:$0xff]
        %v1687 = vld [vmem:[%s1501 + $0x190] sm:$0xff]
        %v1688 = vld [vmem:[%s1501 + $0x198] sm:$0xff]
        %v1689 = vld [vmem:[%s1501 + $0x1a0] sm:$0xff]
        %v1690 = vld [vmem:[%s1501 + $0x1a8] sm:$0xff]
        %v1691 = vld [vmem:[%s1501 + $0x1b0] sm:$0xff]
        %v1692 = vld [vmem:[%s1501 + $0x1b8] sm:$0xff]
        %v1693 = vld [vmem:[%s1501 + $0x1c0] sm:$0xff]
        %v1694 = vld [vmem:[%s1501 + $0x1c8] sm:$0xff]
        %v1695 = vld [vmem:[%s1501 + $0x1d0] sm:$0xff]
        %v1696 = vld [vmem:[%s1501 + $0x1d8] sm:$0xff]
        %v1697 = vld [vmem:[%s1501 + $0x1e0] sm:$0xff]
        %v1698 = vld [vmem:[%s1501 + $0x1e8] sm:$0xff]
        %v1699 = vld [vmem:[%s1501 + $0x1f0] sm:$0xff]
        %v1700 = vld [vmem:[%s1501 + $0x1f8] sm:$0xff]
        %v1701 = vpack.c.bf16 %v1638, %v1637
        %v1702 = vpack.c.bf16 %v1640, %v1639
        %v1703 = vpack.c.bf16 %v1642, %v1641
        %v1704 = vpack.c.bf16 %v1644, %v1643
        %v1705 = vpack.c.bf16 %v1646, %v1645
        %v1706 = vpack.c.bf16 %v1648, %v1647
        %v1707 = vpack.c.bf16 %v1650, %v1649
        %v1708 = vpack.c.bf16 %v1652, %v1651
        %v1709 = vpack.c.bf16 %v1654, %v1653
        %v1710 = vpack.c.bf16 %v1656, %v1655
        %v1711 = vpack.c.bf16 %v1658, %v1657
        %v1712 = vpack.c.bf16 %v1660, %v1659
        %v1713 = vpack.c.bf16 %v1662, %v1661
        %v1714 = vpack.c.bf16 %v1664, %v1663
        %v1715 = vpack.c.bf16 %v1666, %v1665
        %v1716 = vpack.c.bf16 %v1668, %v1667
        %v1717 = vpack.c.bf16 %v1670, %v1669
        %v1718 = vpack.c.bf16 %v1672, %v1671
        %v1719 = vpack.c.bf16 %v1674, %v1673
        %v1720 = vpack.c.bf16 %v1676, %v1675
        %v1721 = vpack.c.bf16 %v1678, %v1677
        %v1722 = vpack.c.bf16 %v1680, %v1679
        %v1723 = vpack.c.bf16 %v1682, %v1681
        %v1724 = vpack.c.bf16 %v1684, %v1683
        %v1725 = vpack.c.bf16 %v1686, %v1685
        %v1726 = vpack.c.bf16 %v1688, %v1687
        %v1727 = vpack.c.bf16 %v1690, %v1689
        %v1728 = vpack.c.bf16 %v1692, %v1691
        %v1729 = vpack.c.bf16 %v1694, %v1693
        %v1730 = vpack.c.bf16 %v1696, %v1695
        %v1731 = vpack.c.bf16 %v1698, %v1697
        %v1732 = vpack.c.bf16 %v1700, %v1699
        %1733 = vmatprep.subr.bf16.mxu0 0
        %1734 = vmatpush1.bf16.msra.mxu0 %v1605
        %1735 = vmatprep.subr.bf16.mxu0 0
        %1736 = vmatpush1.bf16.msra.mxu0 %v1604
        %1737 = vmatprep.subr.bf16.mxu0 0
        %1738 = vmatpush1.bf16.msra.mxu0 %v1603
        %1739 = vmatprep.subr.bf16.mxu0 0
        %1740 = vmatpush1.bf16.msra.mxu0 %v1602
        %1741 = vmatprep.subr.bf16.mxu0 0
        %1742 = vmatpush1.bf16.msra.mxu0 %v1601
        %1743 = vmatprep.subr.bf16.mxu0 0
        %1744 = vmatpush1.bf16.msra.mxu0 %v1600
        %1745 = vmatprep.subr.bf16.mxu0 0
        %1746 = vmatpush1.bf16.msra.mxu0 %v1599
        %1747 = vmatprep.subr.bf16.mxu0 0
        %1748 = vmatpush1.bf16.msra.mxu0 %v1598
        %1749 = vmatprep.subr.bf16.mxu0 0
        %1750 = vmatpush2.bf16.msra.mxu0 0
        %1751 = vmatprep.subr.bf16.mxu0 0
        %1752 = vmatpush2.bf16.msra.mxu0 0
        %1753 = vmatprep.subr.bf16.mxu0 0
        %1754 = vmatpush2.bf16.msra.mxu0 0
        %1755 = vmatprep.subr.bf16.mxu0 0
        %1756 = vmatpush2.bf16.msra.mxu0 0
        %1757 = vmatprep.subr.bf16.mxu0 0
        %1758 = vmatpush2.bf16.msra.mxu0 0
        %1759 = vmatprep.subr.bf16.mxu0 0
        %1760 = vmatpush2.bf16.msra.mxu0 0
        %1761 = vmatprep.subr.bf16.mxu0 0
        %1762 = vmatpush2.bf16.msra.mxu0 0
        %1763 = vmatprep.subr.bf16.mxu0 0
        %1764 = vmatpush2.bf16.msra.mxu0 0
        %1765 = vmatprep.mubr.bf16.mxu0 0
        %1766 = vmatmul.mubr.bf16.gmra.mxu0 %v1701
        %v1767 = vpop.f32.mrf.mxu0
        %v1768 = vadd.f32 0.0, %v1767
        %v1769 = vpop.f32.mrf.mxu0
        %v1770 = vpop.f32.mrf.mxu0
        %v1771 = vadd.f32 0.0, %v1770
        %v1772 = vpop.f32.mrf.mxu0
        %1773 = vmatprep.mubr.bf16.mxu0 0
        %1774 = vmatmul.mubr.bf16.gmra.mxu0 %v1702
        %v1775 = vpop.f32.mrf.mxu0
        %v1776 = vadd.f32 0.0, %v1775
        %v1777 = vpop.f32.mrf.mxu0
        %v1778 = vpop.f32.mrf.mxu0
        %v1779 = vadd.f32 0.0, %v1778
        %v1780 = vpop.f32.mrf.mxu0
        %1781 = vmatprep.mubr.bf16.mxu0 0
        %1782 = vmatmul.mubr.bf16.gmra.mxu0 %v1703
        %v1783 = vpop.f32.mrf.mxu0
        %v1784 = vadd.f32 0.0, %v1783
        %v1785 = vpop.f32.mrf.mxu0
        %v1786 = vpop.f32.mrf.mxu0
        %v1787 = vadd.f32 0.0, %v1786
        %v1788 = vpop.f32.mrf.mxu0
        %1789 = vmatprep.mubr.bf16.mxu0 0
        %1790 = vmatmul.mubr.bf16.gmra.mxu0 %v1704
        %v1791 = vpop.f32.mrf.mxu0
        %v1792 = vadd.f32 0.0, %v1791
        %v1793 = vpop.f32.mrf.mxu0
        %v1794 = vpop.f32.mrf.mxu0
        %v1795 = vadd.f32 0.0, %v1794
        %v1796 = vpop.f32.mrf.mxu0
        %1797 = vmatprep.mubr.bf16.mxu0 0
        %1798 = vmatmul.mubr.bf16.gmra.mxu0 %v1705
        %v1799 = vpop.f32.mrf.mxu0
        %v1800 = vadd.f32 0.0, %v1799
        %v1801 = vpop.f32.mrf.mxu0
        %v1802 = vpop.f32.mrf.mxu0
        %v1803 = vadd.f32 0.0, %v1802
        %v1804 = vpop.f32.mrf.mxu0
        %1805 = vmatprep.mubr.bf16.mxu0 0
        %1806 = vmatmul.mubr.bf16.gmra.mxu0 %v1706
        %v1807 = vpop.f32.mrf.mxu0
        %v1808 = vadd.f32 0.0, %v1807
        %v1809 = vpop.f32.mrf.mxu0
        %v1810 = vpop.f32.mrf.mxu0
        %v1811 = vadd.f32 0.0, %v1810
        %v1812 = vpop.f32.mrf.mxu0
        %1813 = vmatprep.mubr.bf16.mxu0 0
        %1814 = vmatmul.mubr.bf16.gmra.mxu0 %v1707
        %v1815 = vpop.f32.mrf.mxu0
        %v1816 = vadd.f32 0.0, %v1815
        %v1817 = vpop.f32.mrf.mxu0
        %v1818 = vpop.f32.mrf.mxu0
        %v1819 = vadd.f32 0.0, %v1818
        %v1820 = vpop.f32.mrf.mxu0
        %1821 = vmatprep.mubr.bf16.mxu0 0
        %1822 = vmatmul.mubr.bf16.gmra.mxu0 %v1708
        %v1823 = vpop.f32.mrf.mxu0
        %v1824 = vadd.f32 0.0, %v1823
        %v1825 = vpop.f32.mrf.mxu0
        %v1826 = vpop.f32.mrf.mxu0
        %v1827 = vadd.f32 0.0, %v1826
        %v1828 = vpop.f32.mrf.mxu0
        %1829 = vmatprep.mubr.bf16.mxu0 0
        %1830 = vmatmul.mubr.bf16.gmra.mxu0 %v1709
        %v1831 = vpop.f32.mrf.mxu0
        %v1832 = vadd.f32 0.0, %v1831
        %v1833 = vpop.f32.mrf.mxu0
        %v1834 = vpop.f32.mrf.mxu0
        %v1835 = vadd.f32 0.0, %v1834
        %v1836 = vpop.f32.mrf.mxu0
        %1837 = vmatprep.mubr.bf16.mxu0 0
        %1838 = vmatmul.mubr.bf16.gmra.mxu0 %v1710
        %v1839 = vpop.f32.mrf.mxu0
        %v1840 = vadd.f32 0.0, %v1839
        %v1841 = vpop.f32.mrf.mxu0
        %v1842 = vpop.f32.mrf.mxu0
        %v1843 = vadd.f32 0.0, %v1842
        %v1844 = vpop.f32.mrf.mxu0
        %1845 = vmatprep.mubr.bf16.mxu0 0
        %1846 = vmatmul.mubr.bf16.gmra.mxu0 %v1711
        %v1847 = vpop.f32.mrf.mxu0
        %v1848 = vadd.f32 0.0, %v1847
        %v1849 = vpop.f32.mrf.mxu0
        %v1850 = vpop.f32.mrf.mxu0
        %v1851 = vadd.f32 0.0, %v1850
        %v1852 = vpop.f32.mrf.mxu0
        %1853 = vmatprep.mubr.bf16.mxu0 0
        %1854 = vmatmul.mubr.bf16.gmra.mxu0 %v1712
        %v1855 = vpop.f32.mrf.mxu0
        %v1856 = vadd.f32 0.0, %v1855
        %v1857 = vpop.f32.mrf.mxu0
        %v1858 = vpop.f32.mrf.mxu0
        %v1859 = vadd.f32 0.0, %v1858
        %v1860 = vpop.f32.mrf.mxu0
        %1861 = vmatprep.mubr.bf16.mxu0 0
        %1862 = vmatmul.mubr.bf16.gmra.mxu0 %v1713
        %v1863 = vpop.f32.mrf.mxu0
        %v1864 = vadd.f32 0.0, %v1863
        %v1865 = vpop.f32.mrf.mxu0
        %v1866 = vpop.f32.mrf.mxu0
        %v1867 = vadd.f32 0.0, %v1866
        %v1868 = vpop.f32.mrf.mxu0
        %1869 = vmatprep.mubr.bf16.mxu0 0
        %1870 = vmatmul.mubr.bf16.gmra.mxu0 %v1714
        %v1871 = vpop.f32.mrf.mxu0
        %v1872 = vadd.f32 0.0, %v1871
        %v1873 = vpop.f32.mrf.mxu0
        %v1874 = vpop.f32.mrf.mxu0
        %v1875 = vadd.f32 0.0, %v1874
        %v1876 = vpop.f32.mrf.mxu0
        %1877 = vmatprep.mubr.bf16.mxu0 0
        %1878 = vmatmul.mubr.bf16.gmra.mxu0 %v1715
        %v1879 = vpop.f32.mrf.mxu0
        %v1880 = vadd.f32 0.0, %v1879
        %v1881 = vpop.f32.mrf.mxu0
        %v1882 = vpop.f32.mrf.mxu0
        %v1883 = vadd.f32 0.0, %v1882
        %v1884 = vpop.f32.mrf.mxu0
        %1885 = vmatprep.mubr.bf16.mxu0 0
        %1886 = vmatmul.mubr.bf16.gmra.mxu0 %v1716
        %v1887 = vpop.f32.mrf.mxu0
        %v1888 = vadd.f32 0.0, %v1887
        %v1889 = vpop.f32.mrf.mxu0
        %v1890 = vpop.f32.mrf.mxu0
        %v1891 = vadd.f32 0.0, %v1890
        %v1892 = vpop.f32.mrf.mxu0
        %1893 = vmatprep.mubr.bf16.mxu0 0
        %1894 = vmatmul.mubr.bf16.gmra.mxu0 %v1717
        %v1895 = vpop.f32.mrf.mxu0
        %v1896 = vadd.f32 0.0, %v1895
        %v1897 = vpop.f32.mrf.mxu0
        %v1898 = vpop.f32.mrf.mxu0
        %v1899 = vadd.f32 0.0, %v1898
        %v1900 = vpop.f32.mrf.mxu0
        %1901 = vmatprep.mubr.bf16.mxu0 0
        %1902 = vmatmul.mubr.bf16.gmra.mxu0 %v1718
        %v1903 = vpop.f32.mrf.mxu0
        %v1904 = vadd.f32 0.0, %v1903
        %v1905 = vpop.f32.mrf.mxu0
        %v1906 = vpop.f32.mrf.mxu0
        %v1907 = vadd.f32 0.0, %v1906
        %v1908 = vpop.f32.mrf.mxu0
        %1909 = vmatprep.mubr.bf16.mxu0 0
        %1910 = vmatmul.mubr.bf16.gmra.mxu0 %v1719
        %v1911 = vpop.f32.mrf.mxu0
        %v1912 = vadd.f32 0.0, %v1911
        %v1913 = vpop.f32.mrf.mxu0
        %v1914 = vpop.f32.mrf.mxu0
        %v1915 = vadd.f32 0.0, %v1914
        %v1916 = vpop.f32.mrf.mxu0
        %1917 = vmatprep.mubr.bf16.mxu0 0
        %1918 = vmatmul.mubr.bf16.gmra.mxu0 %v1720
        %v1919 = vpop.f32.mrf.mxu0
        %v1920 = vadd.f32 0.0, %v1919
        %v1921 = vpop.f32.mrf.mxu0
        %v1922 = vpop.f32.mrf.mxu0
        %v1923 = vadd.f32 0.0, %v1922
        %v1924 = vpop.f32.mrf.mxu0
        %1925 = vmatprep.mubr.bf16.mxu0 0
        %1926 = vmatmul.mubr.bf16.gmra.mxu0 %v1721
        %v1927 = vpop.f32.mrf.mxu0
        %v1928 = vadd.f32 0.0, %v1927
        %v1929 = vpop.f32.mrf.mxu0
        %v1930 = vpop.f32.mrf.mxu0
        %v1931 = vadd.f32 0.0, %v1930
        %v1932 = vpop.f32.mrf.mxu0
        %1933 = vmatprep.mubr.bf16.mxu0 0
        %1934 = vmatmul.mubr.bf16.gmra.mxu0 %v1722
        %v1935 = vpop.f32.mrf.mxu0
        %v1936 = vadd.f32 0.0, %v1935
        %v1937 = vpop.f32.mrf.mxu0
        %v1938 = vpop.f32.mrf.mxu0
        %v1939 = vadd.f32 0.0, %v1938
        %v1940 = vpop.f32.mrf.mxu0
        %1941 = vmatprep.mubr.bf16.mxu0 0
        %1942 = vmatmul.mubr.bf16.gmra.mxu0 %v1723
        %v1943 = vpop.f32.mrf.mxu0
        %v1944 = vadd.f32 0.0, %v1943
        %v1945 = vpop.f32.mrf.mxu0
        %v1946 = vpop.f32.mrf.mxu0
        %v1947 = vadd.f32 0.0, %v1946
        %v1948 = vpop.f32.mrf.mxu0
        %1949 = vmatprep.mubr.bf16.mxu0 0
        %1950 = vmatmul.mubr.bf16.gmra.mxu0 %v1724
        %v1951 = vpop.f32.mrf.mxu0
        %v1952 = vadd.f32 0.0, %v1951
        %v1953 = vpop.f32.mrf.mxu0
        %v1954 = vpop.f32.mrf.mxu0
        %v1955 = vadd.f32 0.0, %v1954
        %v1956 = vpop.f32.mrf.mxu0
        %1957 = vmatprep.mubr.bf16.mxu0 0
        %1958 = vmatmul.mubr.bf16.gmra.mxu0 %v1725
        %v1959 = vpop.f32.mrf.mxu0
        %v1960 = vadd.f32 0.0, %v1959
        %v1961 = vpop.f32.mrf.mxu0
        %v1962 = vpop.f32.mrf.mxu0
        %v1963 = vadd.f32 0.0, %v1962
        %v1964 = vpop.f32.mrf.mxu0
        %1965 = vmatprep.mubr.bf16.mxu0 0
        %1966 = vmatmul.mubr.bf16.gmra.mxu0 %v1726
        %v1967 = vpop.f32.mrf.mxu0
        %v1968 = vadd.f32 0.0, %v1967
        %v1969 = vpop.f32.mrf.mxu0
        %v1970 = vpop.f32.mrf.mxu0
        %v1971 = vadd.f32 0.0, %v1970
        %v1972 = vpop.f32.mrf.mxu0
        %1973 = vmatprep.mubr.bf16.mxu0 0
        %1974 = vmatmul.mubr.bf16.gmra.mxu0 %v1727
        %v1975 = vpop.f32.mrf.mxu0
        %v1976 = vadd.f32 0.0, %v1975
        %v1977 = vpop.f32.mrf.mxu0
        %v1978 = vpop.f32.mrf.mxu0
        %v1979 = vadd.f32 0.0, %v1978
        %v1980 = vpop.f32.mrf.mxu0
        %1981 = vmatprep.mubr.bf16.mxu0 0
        %1982 = vmatmul.mubr.bf16.gmra.mxu0 %v1728
        %v1983 = vpop.f32.mrf.mxu0
        %v1984 = vadd.f32 0.0, %v1983
        %v1985 = vpop.f32.mrf.mxu0
        %v1986 = vpop.f32.mrf.mxu0
        %v1987 = vadd.f32 0.0, %v1986
        %v1988 = vpop.f32.mrf.mxu0
        %1989 = vmatprep.mubr.bf16.mxu0 0
        %1990 = vmatmul.mubr.bf16.gmra.mxu0 %v1729
        %v1991 = vpop.f32.mrf.mxu0
        %v1992 = vadd.f32 0.0, %v1991
        %v1993 = vpop.f32.mrf.mxu0
        %v1994 = vpop.f32.mrf.mxu0
        %v1995 = vadd.f32 0.0, %v1994
        %v1996 = vpop.f32.mrf.mxu0
        %1997 = vmatprep.mubr.bf16.mxu0 0
        %1998 = vmatmul.mubr.bf16.gmra.mxu0 %v1730
        %v1999 = vpop.f32.mrf.mxu0
        %v2000 = vadd.f32 0.0, %v1999
        %v2001 = vpop.f32.mrf.mxu0
        %v2002 = vpop.f32.mrf.mxu0
        %v2003 = vadd.f32 0.0, %v2002
        %v2004 = vpop.f32.mrf.mxu0
        %2005 = vmatprep.mubr.bf16.mxu0 0
        %2006 = vmatmul.mubr.bf16.gmra.mxu0 %v1731
        %v2007 = vpop.f32.mrf.mxu0
        %v2008 = vadd.f32 0.0, %v2007
        %v2009 = vpop.f32.mrf.mxu0
        %v2010 = vpop.f32.mrf.mxu0
        %v2011 = vadd.f32 0.0, %v2010
        %v2012 = vpop.f32.mrf.mxu0
        %2013 = vmatprep.mubr.bf16.mxu0 0
        %2014 = vmatmul.mubr.bf16.gmra.mxu0 %v1732
        %v2015 = vpop.f32.mrf.mxu0
        %v2016 = vadd.f32 0.0, %v2015
        %v2017 = vpop.f32.mrf.mxu0
        %v2018 = vpop.f32.mrf.mxu0
        %v2019 = vadd.f32 0.0, %v2018
        %v2020 = vpop.f32.mrf.mxu0
        %2021 = vdwg.mxu0
        %v2022 = vadd.f32 %v1768, %v1635
        %v2023 = vadd.f32 %v1771, %v1635
        %v2024 = vadd.f32 %v1776, %v1635
        %v2025 = vadd.f32 %v1779, %v1635
        %v2026 = vadd.f32 %v1784, %v1635
        %v2027 = vadd.f32 %v1787, %v1635
        %v2028 = vadd.f32 %v1792, %v1635
        %v2029 = vadd.f32 %v1795, %v1635
        %v2030 = vadd.f32 %v1800, %v1635
        %v2031 = vadd.f32 %v1803, %v1635
        %v2032 = vadd.f32 %v1808, %v1635
        %v2033 = vadd.f32 %v1811, %v1635
        %v2034 = vadd.f32 %v1816, %v1635
        %v2035 = vadd.f32 %v1819, %v1635
        %v2036 = vadd.f32 %v1824, %v1635
        %v2037 = vadd.f32 %v1827, %v1635
        %vm2038 = vcmp.gt.f32.partialorder %v2022, 0.0
        %vm2039 = vcmp.gt.f32.partialorder %v2023, 0.0
        %vm2040 = vcmp.gt.f32.partialorder %v2024, 0.0
        %vm2041 = vcmp.gt.f32.partialorder %v2025, 0.0
        %vm2042 = vcmp.gt.f32.partialorder %v2026, 0.0
        %vm2043 = vcmp.gt.f32.partialorder %v2027, 0.0
        %vm2044 = vcmp.gt.f32.partialorder %v2028, 0.0
        %vm2045 = vcmp.gt.f32.partialorder %v2029, 0.0
        %vm2046 = vcmp.gt.f32.partialorder %v2030, 0.0
        %vm2047 = vcmp.gt.f32.partialorder %v2031, 0.0
        %vm2048 = vcmp.gt.f32.partialorder %v2032, 0.0
        %vm2049 = vcmp.gt.f32.partialorder %v2033, 0.0
        %vm2050 = vcmp.gt.f32.partialorder %v2034, 0.0
        %vm2051 = vcmp.gt.f32.partialorder %v2035, 0.0
        %vm2052 = vcmp.gt.f32.partialorder %v2036, 0.0
        %vm2053 = vcmp.gt.f32.partialorder %v2037, 0.0
        %v2054 = vstv %s1580
        %v2055 = vmul.f32 %v2054, %v2022
        %v2056 = vmul.f32 %v2054, %v2023
        %v2057 = vmul.f32 %v2054, %v2024
        %v2058 = vmul.f32 %v2054, %v2025
        %v2059 = vmul.f32 %v2054, %v2026
        %v2060 = vmul.f32 %v2054, %v2027
        %v2061 = vmul.f32 %v2054, %v2028
        %v2062 = vmul.f32 %v2054, %v2029
        %v2063 = vmul.f32 %v2054, %v2030
        %v2064 = vmul.f32 %v2054, %v2031
        %v2065 = vmul.f32 %v2054, %v2032
        %v2066 = vmul.f32 %v2054, %v2033
        %v2067 = vmul.f32 %v2054, %v2034
        %v2068 = vmul.f32 %v2054, %v2035
        %v2069 = vmul.f32 %v2054, %v2036
        %v2070 = vmul.f32 %v2054, %v2037
        %v2071 = vsel %vm2038, %v2022, %v2055
        %v2072 = vsel %vm2039, %v2023, %v2056
        %v2073 = vsel %vm2040, %v2024, %v2057
        %v2074 = vsel %vm2041, %v2025, %v2058
        %v2075 = vsel %vm2042, %v2026, %v2059
        %v2076 = vsel %vm2043, %v2027, %v2060
        %v2077 = vsel %vm2044, %v2028, %v2061
        %v2078 = vsel %vm2045, %v2029, %v2062
        %v2079 = vsel %vm2046, %v2030, %v2063
        %v2080 = vsel %vm2047, %v2031, %v2064
        %v2081 = vsel %vm2048, %v2032, %v2065
        %v2082 = vsel %vm2049, %v2033, %v2066
        %v2083 = vsel %vm2050, %v2034, %v2067
        %v2084 = vsel %vm2051, %v2035, %v2068
        %v2085 = vsel %vm2052, %v2036, %v2069
        %v2086 = vsel %vm2053, %v2037, %v2070
        %v2087 = vld [vmem:[%s1515] sm:$0xff]
        %v2088 = vld [vmem:[%s1515 + $0x8] sm:$0xff]
        %v2089 = vld [vmem:[%s1515 + $0x10] sm:$0xff]
        %v2090 = vld [vmem:[%s1515 + $0x18] sm:$0xff]
        %v2091 = vld [vmem:[%s1515 + $0x20] sm:$0xff]
        %v2092 = vld [vmem:[%s1515 + $0x28] sm:$0xff]
        %v2093 = vld [vmem:[%s1515 + $0x30] sm:$0xff]
        %v2094 = vld [vmem:[%s1515 + $0x38] sm:$0xff]
        %v2095 = vld [vmem:[%s1515 + $0x40] sm:$0xff]
        %v2096 = vld [vmem:[%s1515 + $0x48] sm:$0xff]
        %v2097 = vld [vmem:[%s1515 + $0x50] sm:$0xff]
        %v2098 = vld [vmem:[%s1515 + $0x58] sm:$0xff]
        %v2099 = vld [vmem:[%s1515 + $0x60] sm:$0xff]
        %v2100 = vld [vmem:[%s1515 + $0x68] sm:$0xff]
        %v2101 = vld [vmem:[%s1515 + $0x70] sm:$0xff]
        %v2102 = vld [vmem:[%s1515 + $0x78] sm:$0xff]
        %v2103 = vld [vmem:[%s1515 + $0x80] sm:$0xff]
        %v2104 = vld [vmem:[%s1515 + $0x88] sm:$0xff]
        %v2105 = vld [vmem:[%s1515 + $0x90] sm:$0xff]
        %v2106 = vld [vmem:[%s1515 + $0x98] sm:$0xff]
        %v2107 = vld [vmem:[%s1515 + $0xa0] sm:$0xff]
        %v2108 = vld [vmem:[%s1515 + $0xa8] sm:$0xff]
        %v2109 = vld [vmem:[%s1515 + $0xb0] sm:$0xff]
        %v2110 = vld [vmem:[%s1515 + $0xb8] sm:$0xff]
        %v2111 = vld [vmem:[%s1515 + $0xc0] sm:$0xff]
        %v2112 = vld [vmem:[%s1515 + $0xc8] sm:$0xff]
        %v2113 = vld [vmem:[%s1515 + $0xd0] sm:$0xff]
        %v2114 = vld [vmem:[%s1515 + $0xd8] sm:$0xff]
        %v2115 = vld [vmem:[%s1515 + $0xe0] sm:$0xff]
        %v2116 = vld [vmem:[%s1515 + $0xe8] sm:$0xff]
        %v2117 = vld [vmem:[%s1515 + $0xf0] sm:$0xff]
        %v2118 = vld [vmem:[%s1515 + $0xf8] sm:$0xff]
        %v2119 = vld [vmem:[%s1515 + $0x100] sm:$0xff]
        %v2120 = vld [vmem:[%s1515 + $0x108] sm:$0xff]
        %v2121 = vld [vmem:[%s1515 + $0x110] sm:$0xff]
        %v2122 = vld [vmem:[%s1515 + $0x118] sm:$0xff]
        %v2123 = vld [vmem:[%s1515 + $0x120] sm:$0xff]
        %v2124 = vld [vmem:[%s1515 + $0x128] sm:$0xff]
        %v2125 = vld [vmem:[%s1515 + $0x130] sm:$0xff]
        %v2126 = vld [vmem:[%s1515 + $0x138] sm:$0xff]
        %v2127 = vld [vmem:[%s1515 + $0x140] sm:$0xff]
        %v2128 = vld [vmem:[%s1515 + $0x148] sm:$0xff]
        %v2129 = vld [vmem:[%s1515 + $0x150] sm:$0xff]
        %v2130 = vld [vmem:[%s1515 + $0x158] sm:$0xff]
        %v2131 = vld [vmem:[%s1515 + $0x160] sm:$0xff]
        %v2132 = vld [vmem:[%s1515 + $0x168] sm:$0xff]
        %v2133 = vld [vmem:[%s1515 + $0x170] sm:$0xff]
        %v2134 = vld [vmem:[%s1515 + $0x178] sm:$0xff]
        %v2135 = vld [vmem:[%s1515 + $0x180] sm:$0xff]
        %v2136 = vld [vmem:[%s1515 + $0x188] sm:$0xff]
        %v2137 = vld [vmem:[%s1515 + $0x190] sm:$0xff]
        %v2138 = vld [vmem:[%s1515 + $0x198] sm:$0xff]
        %v2139 = vld [vmem:[%s1515 + $0x1a0] sm:$0xff]
        %v2140 = vld [vmem:[%s1515 + $0x1a8] sm:$0xff]
        %v2141 = vld [vmem:[%s1515 + $0x1b0] sm:$0xff]
        %v2142 = vld [vmem:[%s1515 + $0x1b8] sm:$0xff]
        %v2143 = vld [vmem:[%s1515 + $0x1c0] sm:$0xff]
        %v2144 = vld [vmem:[%s1515 + $0x1c8] sm:$0xff]
        %v2145 = vld [vmem:[%s1515 + $0x1d0] sm:$0xff]
        %v2146 = vld [vmem:[%s1515 + $0x1d8] sm:$0xff]
        %v2147 = vld [vmem:[%s1515 + $0x1e0] sm:$0xff]
        %v2148 = vld [vmem:[%s1515 + $0x1e8] sm:$0xff]
        %v2149 = vld [vmem:[%s1515 + $0x1f0] sm:$0xff]
        %v2150 = vld [vmem:[%s1515 + $0x1f8] sm:$0xff]
        %2152 = vset.pattern.permute.xlu0 1
        %2153 = vperm.xlu0 %2152, %v2087
        %v2154 = vpop.permute.xlu0 %2153
        %2157 = vset.pattern.permute.xlu0 1
        %2158 = vperm.xlu0 %2157, %v2088
        %v2159 = vpop.permute.xlu0 %2158
        %2162 = vset.pattern.permute.xlu0 1
        %2163 = vperm.xlu0 %2162, %v2089
        %v2164 = vpop.permute.xlu0 %2163
        %2167 = vset.pattern.permute.xlu0 1
        %2168 = vperm.xlu0 %2167, %v2090
        %v2169 = vpop.permute.xlu0 %2168
        %2172 = vset.pattern.permute.xlu0 1
        %2173 = vperm.xlu0 %2172, %v2091
        %v2174 = vpop.permute.xlu0 %2173
        %2177 = vset.pattern.permute.xlu0 1
        %2178 = vperm.xlu0 %2177, %v2092
        %v2179 = vpop.permute.xlu0 %2178
        %2182 = vset.pattern.permute.xlu0 1
        %2183 = vperm.xlu0 %2182, %v2093
        %v2184 = vpop.permute.xlu0 %2183
        %2187 = vset.pattern.permute.xlu0 1
        %2188 = vperm.xlu0 %2187, %v2094
        %v2189 = vpop.permute.xlu0 %2188
        %2192 = vset.pattern.permute.xlu0 1
        %2193 = vperm.xlu0 %2192, %v2095
        %v2194 = vpop.permute.xlu0 %2193
        %2197 = vset.pattern.permute.xlu0 1
        %2198 = vperm.xlu0 %2197, %v2096
        %v2199 = vpop.permute.xlu0 %2198
        %2202 = vset.pattern.permute.xlu0 1
        %2203 = vperm.xlu0 %2202, %v2097
        %v2204 = vpop.permute.xlu0 %2203
        %2207 = vset.pattern.permute.xlu0 1
        %2208 = vperm.xlu0 %2207, %v2098
        %v2209 = vpop.permute.xlu0 %2208
        %2212 = vset.pattern.permute.xlu0 1
        %2213 = vperm.xlu0 %2212, %v2099
        %v2214 = vpop.permute.xlu0 %2213
        %2217 = vset.pattern.permute.xlu0 1
        %2218 = vperm.xlu0 %2217, %v2100
        %v2219 = vpop.permute.xlu0 %2218
        %2222 = vset.pattern.permute.xlu0 1
        %2223 = vperm.xlu0 %2222, %v2101
        %v2224 = vpop.permute.xlu0 %2223
        %2227 = vset.pattern.permute.xlu0 1
        %2228 = vperm.xlu0 %2227, %v2102
        %v2229 = vpop.permute.xlu0 %2228
        %v2231 = vmul.f32 %v2154, %v1832
        %v2232 = vmul.f32 %v2159, %v1835
        %v2233 = vmul.f32 %v2164, %v1840
        %v2234 = vmul.f32 %v2169, %v1843
        %v2235 = vmul.f32 %v2174, %v1848
        %v2236 = vmul.f32 %v2179, %v1851
        %v2237 = vmul.f32 %v2184, %v1856
        %v2238 = vmul.f32 %v2189, %v1859
        %v2239 = vmul.f32 %v2194, %v1864
        %v2240 = vmul.f32 %v2199, %v1867
        %v2241 = vmul.f32 %v2204, %v1872
        %v2242 = vmul.f32 %v2209, %v1875
        %v2243 = vmul.f32 %v2214, %v1880
        %v2244 = vmul.f32 %v2219, %v1883
        %v2245 = vmul.f32 %v2224, %v1888
        %v2246 = vmul.f32 %v2229, %v1891
        %v2247 = vadd.f32 %v2231, 0.0
        %v2248 = vadd.f32 %v2232, 0.0
        %v2249 = vadd.f32 %v2233, 0.0
        %v2250 = vadd.f32 %v2234, 0.0
        %v2251 = vadd.f32 %v2235, 0.0
        %v2252 = vadd.f32 %v2236, 0.0
        %v2253 = vadd.f32 %v2237, 0.0
        %v2254 = vadd.f32 %v2238, 0.0
        %v2255 = vadd.f32 %v2239, 0.0
        %v2256 = vadd.f32 %v2240, 0.0
        %v2257 = vadd.f32 %v2241, 0.0
        %v2258 = vadd.f32 %v2242, 0.0
        %v2259 = vadd.f32 %v2243, 0.0
        %v2260 = vadd.f32 %v2244, 0.0
        %v2261 = vadd.f32 %v2245, 0.0
        %v2262 = vadd.f32 %v2246, 0.0
        %2263 = vset.pattern.permute.xlu0 2
        %2264 = vperm.xlu0 %2263, %v2087
        %v2265 = vpop.permute.xlu0 %2264
        %2267 = vset.pattern.permute.xlu0 2
        %2268 = vperm.xlu0 %2267, %v2088
        %v2269 = vpop.permute.xlu0 %2268
        %2271 = vset.pattern.permute.xlu0 2
        %2272 = vperm.xlu0 %2271, %v2089
        %v2273 = vpop.permute.xlu0 %2272
        %2275 = vset.pattern.permute.xlu0 2
        %2276 = vperm.xlu0 %2275, %v2090
        %v2277 = vpop.permute.xlu0 %2276
        %2279 = vset.pattern.permute.xlu0 2
        %2280 = vperm.xlu0 %2279, %v2091
        %v2281 = vpop.permute.xlu0 %2280
        %2283 = vset.pattern.permute.xlu0 2
        %2284 = vperm.xlu0 %2283, %v2092
        %v2285 = vpop.permute.xlu0 %2284
        %2287 = vset.pattern.permute.xlu0 2
        %2288 = vperm.xlu0 %2287, %v2093
        %v2289 = vpop.permute.xlu0 %2288
        %2291 = vset.pattern.permute.xlu0 2
        %2292 = vperm.xlu0 %2291, %v2094
        %v2293 = vpop.permute.xlu0 %2292
        %2295 = vset.pattern.permute.xlu0 2
        %2296 = vperm.xlu0 %2295, %v2095
        %v2297 = vpop.permute.xlu0 %2296
        %2299 = vset.pattern.permute.xlu0 2
        %2300 = vperm.xlu0 %2299, %v2096
        %v2301 = vpop.permute.xlu0 %2300
        %2303 = vset.pattern.permute.xlu0 2
        %2304 = vperm.xlu0 %2303, %v2097
        %v2305 = vpop.permute.xlu0 %2304
        %2307 = vset.pattern.permute.xlu0 2
        %2308 = vperm.xlu0 %2307, %v2098
        %v2309 = vpop.permute.xlu0 %2308
        %2311 = vset.pattern.permute.xlu0 2
        %2312 = vperm.xlu0 %2311, %v2099
        %v2313 = vpop.permute.xlu0 %2312
        %2315 = vset.pattern.permute.xlu0 2
        %2316 = vperm.xlu0 %2315, %v2100
        %v2317 = vpop.permute.xlu0 %2316
        %2319 = vset.pattern.permute.xlu0 2
        %2320 = vperm.xlu0 %2319, %v2101
        %v2321 = vpop.permute.xlu0 %2320
        %2323 = vset.pattern.permute.xlu0 2
        %2324 = vperm.xlu0 %2323, %v2102
        %v2325 = vpop.permute.xlu0 %2324
        %v2327 = vmul.f32 %v2265, %v1896
        %v2328 = vmul.f32 %v2269, %v1899
        %v2329 = vmul.f32 %v2273, %v1904
        %v2330 = vmul.f32 %v2277, %v1907
        %v2331 = vmul.f32 %v2281, %v1912
        %v2332 = vmul.f32 %v2285, %v1915
        %v2333 = vmul.f32 %v2289, %v1920
        %v2334 = vmul.f32 %v2293, %v1923
        %v2335 = vmul.f32 %v2297, %v1928
        %v2336 = vmul.f32 %v2301, %v1931
        %v2337 = vmul.f32 %v2305, %v1936
        %v2338 = vmul.f32 %v2309, %v1939
        %v2339 = vmul.f32 %v2313, %v1944
        %v2340 = vmul.f32 %v2317, %v1947
        %v2341 = vmul.f32 %v2321, %v1952
        %v2342 = vmul.f32 %v2325, %v1955
        %v2343 = vadd.f32 %v2247, %v2327
        %v2344 = vadd.f32 %v2248, %v2328
        %v2345 = vadd.f32 %v2249, %v2329
        %v2346 = vadd.f32 %v2250, %v2330
        %v2347 = vadd.f32 %v2251, %v2331
        %v2348 = vadd.f32 %v2252, %v2332
        %v2349 = vadd.f32 %v2253, %v2333
        %v2350 = vadd.f32 %v2254, %v2334
        %v2351 = vadd.f32 %v2255, %v2335
        %v2352 = vadd.f32 %v2256, %v2336
        %v2353 = vadd.f32 %v2257, %v2337
        %v2354 = vadd.f32 %v2258, %v2338
        %v2355 = vadd.f32 %v2259, %v2339
        %v2356 = vadd.f32 %v2260, %v2340
        %v2357 = vadd.f32 %v2261, %v2341
        %v2358 = vadd.f32 %v2262, %v2342
        %2359 = vset.pattern.permute.xlu0 3
        %2360 = vperm.xlu0 %2359, %v2087
        %v2361 = vpop.permute.xlu0 %2360
        %2363 = vset.pattern.permute.xlu0 3
        %2364 = vperm.xlu0 %2363, %v2088
        %v2365 = vpop.permute.xlu0 %2364
        %2367 = vset.pattern.permute.xlu0 3
        %2368 = vperm.xlu0 %2367, %v2089
        %v2369 = vpop.permute.xlu0 %2368
        %2371 = vset.pattern.permute.xlu0 3
        %2372 = vperm.xlu0 %2371, %v2090
        %v2373 = vpop.permute.xlu0 %2372
        %2375 = vset.pattern.permute.xlu0 3
        %2376 = vperm.xlu0 %2375, %v2091
        %v2377 = vpop.permute.xlu0 %2376
        %2379 = vset.pattern.permute.xlu0 3
        %2380 = vperm.xlu0 %2379, %v2092
        %v2381 = vpop.permute.xlu0 %2380
        %2383 = vset.pattern.permute.xlu0 3
        %2384 = vperm.xlu0 %2383, %v2093
        %v2385 = vpop.permute.xlu0 %2384
        %2387 = vset.pattern.permute.xlu0 3
        %2388 = vperm.xlu0 %2387, %v2094
        %v2389 = vpop.permute.xlu0 %2388
        %2391 = vset.pattern.permute.xlu0 3
        %2392 = vperm.xlu0 %2391, %v2095
        %v2393 = vpop.permute.xlu0 %2392
        %2395 = vset.pattern.permute.xlu0 3
        %2396 = vperm.xlu0 %2395, %v2096
        %v2397 = vpop.permute.xlu0 %2396
        %2399 = vset.pattern.permute.xlu0 3
        %2400 = vperm.xlu0 %2399, %v2097
        %v2401 = vpop.permute.xlu0 %2400
        %2403 = vset.pattern.permute.xlu0 3
        %2404 = vperm.xlu0 %2403, %v2098
        %v2405 = vpop.permute.xlu0 %2404
        %2407 = vset.pattern.permute.xlu0 3
        %2408 = vperm.xlu0 %2407, %v2099
        %v2409 = vpop.permute.xlu0 %2408
        %2411 = vset.pattern.permute.xlu0 3
        %2412 = vperm.xlu0 %2411, %v2100
        %v2413 = vpop.permute.xlu0 %2412
        %2415 = vset.pattern.permute.xlu0 3
        %2416 = vperm.xlu0 %2415, %v2101
        %v2417 = vpop.permute.xlu0 %2416
        %2419 = vset.pattern.permute.xlu0 3
        %2420 = vperm.xlu0 %2419, %v2102
        %v2421 = vpop.permute.xlu0 %2420
        %v2423 = vmul.f32 %v2361, %v1960
        %v2424 = vmul.f32 %v2365, %v1963
        %v2425 = vmul.f32 %v2369, %v1968
        %v2426 = vmul.f32 %v2373, %v1971
        %v2427 = vmul.f32 %v2377, %v1976
        %v2428 = vmul.f32 %v2381, %v1979
        %v2429 = vmul.f32 %v2385, %v1984
        %v2430 = vmul.f32 %v2389, %v1987
        %v2431 = vmul.f32 %v2393, %v1992
        %v2432 = vmul.f32 %v2397, %v1995
        %v2433 = vmul.f32 %v2401, %v2000
        %v2434 = vmul.f32 %v2405, %v2003
        %v2435 = vmul.f32 %v2409, %v2008
        %v2436 = vmul.f32 %v2413, %v2011
        %v2437 = vmul.f32 %v2417, %v2016
        %v2438 = vmul.f32 %v2421, %v2019
        %v2439 = vadd.f32 %v2343, %v2423
        %v2440 = vadd.f32 %v2344, %v2424
        %v2441 = vadd.f32 %v2345, %v2425
        %v2442 = vadd.f32 %v2346, %v2426
        %v2443 = vadd.f32 %v2347, %v2427
        %v2444 = vadd.f32 %v2348, %v2428
        %v2445 = vadd.f32 %v2349, %v2429
        %v2446 = vadd.f32 %v2350, %v2430
        %v2447 = vadd.f32 %v2351, %v2431
        %v2448 = vadd.f32 %v2352, %v2432
        %v2449 = vadd.f32 %v2353, %v2433
        %v2450 = vadd.f32 %v2354, %v2434
        %v2451 = vadd.f32 %v2355, %v2435
        %v2452 = vadd.f32 %v2356, %v2436
        %v2453 = vadd.f32 %v2357, %v2437
        %v2454 = vadd.f32 %v2358, %v2438
        %v2455 = vadd.f32 %v2439, %v1635
        %v2456 = vadd.f32 %v2440, %v1635
        %v2457 = vadd.f32 %v2441, %v1635
        %v2458 = vadd.f32 %v2442, %v1635
        %v2459 = vadd.f32 %v2443, %v1635
        %v2460 = vadd.f32 %v2444, %v1635
        %v2461 = vadd.f32 %v2445, %v1635
        %v2462 = vadd.f32 %v2446, %v1635
        %v2463 = vadd.f32 %v2447, %v1635
        %v2464 = vadd.f32 %v2448, %v1635
        %v2465 = vadd.f32 %v2449, %v1635
        %v2466 = vadd.f32 %v2450, %v1635
        %v2467 = vadd.f32 %v2451, %v1635
        %v2468 = vadd.f32 %v2452, %v1635
        %v2469 = vadd.f32 %v2453, %v1635
        %v2470 = vadd.f32 %v2454, %v1635
        %vm2471 = vcmp.gt.f32.partialorder %v2455, 0.0
        %vm2472 = vcmp.gt.f32.partialorder %v2456, 0.0
        %vm2473 = vcmp.gt.f32.partialorder %v2457, 0.0
        %vm2474 = vcmp.gt.f32.partialorder %v2458, 0.0
        %vm2475 = vcmp.gt.f32.partialorder %v2459, 0.0
        %vm2476 = vcmp.gt.f32.partialorder %v2460, 0.0
        %vm2477 = vcmp.gt.f32.partialorder %v2461, 0.0
        %vm2478 = vcmp.gt.f32.partialorder %v2462, 0.0
        %vm2479 = vcmp.gt.f32.partialorder %v2463, 0.0
        %vm2480 = vcmp.gt.f32.partialorder %v2464, 0.0
        %vm2481 = vcmp.gt.f32.partialorder %v2465, 0.0
        %vm2482 = vcmp.gt.f32.partialorder %v2466, 0.0
        %vm2483 = vcmp.gt.f32.partialorder %v2467, 0.0
        %vm2484 = vcmp.gt.f32.partialorder %v2468, 0.0
        %vm2485 = vcmp.gt.f32.partialorder %v2469, 0.0
        %vm2486 = vcmp.gt.f32.partialorder %v2470, 0.0
        %v2487 = vmul.f32 %v2054, %v2455
        %v2488 = vmul.f32 %v2054, %v2456
        %v2489 = vmul.f32 %v2054, %v2457
        %v2490 = vmul.f32 %v2054, %v2458
        %v2491 = vmul.f32 %v2054, %v2459
        %v2492 = vmul.f32 %v2054, %v2460
        %v2493 = vmul.f32 %v2054, %v2461
        %v2494 = vmul.f32 %v2054, %v2462
        %v2495 = vmul.f32 %v2054, %v2463
        %v2496 = vmul.f32 %v2054, %v2464
        %v2497 = vmul.f32 %v2054, %v2465
        %v2498 = vmul.f32 %v2054, %v2466
        %v2499 = vmul.f32 %v2054, %v2467
        %v2500 = vmul.f32 %v2054, %v2468
        %v2501 = vmul.f32 %v2054, %v2469
        %v2502 = vmul.f32 %v2054, %v2470
        %v2503 = vsel %vm2471, %v2455, %v2487
        %v2504 = vsel %vm2472, %v2456, %v2488
        %v2505 = vsel %vm2473, %v2457, %v2489
        %v2506 = vsel %vm2474, %v2458, %v2490
        %v2507 = vsel %vm2475, %v2459, %v2491
        %v2508 = vsel %vm2476, %v2460, %v2492
        %v2509 = vsel %vm2477, %v2461, %v2493
        %v2510 = vsel %vm2478, %v2462, %v2494
        %v2511 = vsel %vm2479, %v2463, %v2495
        %v2512 = vsel %vm2480, %v2464, %v2496
        %v2513 = vsel %vm2481, %v2465, %v2497
        %v2514 = vsel %vm2482, %v2466, %v2498
        %v2515 = vsel %vm2483, %v2467, %v2499
        %v2516 = vsel %vm2484, %v2468, %v2500
        %v2517 = vsel %vm2485, %v2469, %v2501
        %v2518 = vsel %vm2486, %v2470, %v2502
        %v2519 = vadd.f32 %v2503, 0.0
        %v2520 = vadd.f32 %v2504, 0.0
        %v2521 = vadd.f32 %v2505, 0.0
        %v2522 = vadd.f32 %v2506, 0.0
        %v2523 = vadd.f32 %v2507, 0.0
        %v2524 = vadd.f32 %v2508, 0.0
        %v2525 = vadd.f32 %v2509, 0.0
        %v2526 = vadd.f32 %v2510, 0.0
        %v2527 = vadd.f32 %v2511, 0.0
        %v2528 = vadd.f32 %v2512, 0.0
        %v2529 = vadd.f32 %v2513, 0.0
        %v2530 = vadd.f32 %v2514, 0.0
        %v2531 = vadd.f32 %v2515, 0.0
        %v2532 = vadd.f32 %v2516, 0.0
        %v2533 = vadd.f32 %v2517, 0.0
        %v2534 = vadd.f32 %v2518, 0.0
        %2536 = vset.pattern.permute.xlu0 1
        %2537 = vperm.xlu0 %2536, %v2103
        %v2538 = vpop.permute.xlu0 %2537
        %2541 = vset.pattern.permute.xlu0 1
        %2542 = vperm.xlu0 %2541, %v2104
        %v2543 = vpop.permute.xlu0 %2542
        %2546 = vset.pattern.permute.xlu0 1
        %2547 = vperm.xlu0 %2546, %v2105
        %v2548 = vpop.permute.xlu0 %2547
        %2551 = vset.pattern.permute.xlu0 1
        %2552 = vperm.xlu0 %2551, %v2106
        %v2553 = vpop.permute.xlu0 %2552
        %2556 = vset.pattern.permute.xlu0 1
        %2557 = vperm.xlu0 %2556, %v2107
        %v2558 = vpop.permute.xlu0 %2557
        %2561 = vset.pattern.permute.xlu0 1
        %2562 = vperm.xlu0 %2561, %v2108
        %v2563 = vpop.permute.xlu0 %2562
        %2566 = vset.pattern.permute.xlu0 1
        %2567 = vperm.xlu0 %2566, %v2109
        %v2568 = vpop.permute.xlu0 %2567
        %2571 = vset.pattern.permute.xlu0 1
        %2572 = vperm.xlu0 %2571, %v2110
        %v2573 = vpop.permute.xlu0 %2572
        %2576 = vset.pattern.permute.xlu0 1
        %2577 = vperm.xlu0 %2576, %v2111
        %v2578 = vpop.permute.xlu0 %2577
        %2581 = vset.pattern.permute.xlu0 1
        %2582 = vperm.xlu0 %2581, %v2112
        %v2583 = vpop.permute.xlu0 %2582
        %2586 = vset.pattern.permute.xlu0 1
        %2587 = vperm.xlu0 %2586, %v2113
        %v2588 = vpop.permute.xlu0 %2587
        %2591 = vset.pattern.permute.xlu0 1
        %2592 = vperm.xlu0 %2591, %v2114
        %v2593 = vpop.permute.xlu0 %2592
        %2596 = vset.pattern.permute.xlu0 1
        %2597 = vperm.xlu0 %2596, %v2115
        %v2598 = vpop.permute.xlu0 %2597
        %2601 = vset.pattern.permute.xlu0 1
        %2602 = vperm.xlu0 %2601, %v2116
        %v2603 = vpop.permute.xlu0 %2602
        %2606 = vset.pattern.permute.xlu0 1
        %2607 = vperm.xlu0 %2606, %v2117
        %v2608 = vpop.permute.xlu0 %2607
        %2611 = vset.pattern.permute.xlu0 1
        %2612 = vperm.xlu0 %2611, %v2118
        %v2613 = vpop.permute.xlu0 %2612
        %v2615 = vmul.f32 %v2538, %v1832
        %v2616 = vmul.f32 %v2543, %v1835
        %v2617 = vmul.f32 %v2548, %v1840
        %v2618 = vmul.f32 %v2553, %v1843
        %v2619 = vmul.f32 %v2558, %v1848
        %v2620 = vmul.f32 %v2563, %v1851
        %v2621 = vmul.f32 %v2568, %v1856
        %v2622 = vmul.f32 %v2573, %v1859
        %v2623 = vmul.f32 %v2578, %v1864
        %v2624 = vmul.f32 %v2583, %v1867
        %v2625 = vmul.f32 %v2588, %v1872
        %v2626 = vmul.f32 %v2593, %v1875
        %v2627 = vmul.f32 %v2598, %v1880
        %v2628 = vmul.f32 %v2603, %v1883
        %v2629 = vmul.f32 %v2608, %v1888
        %v2630 = vmul.f32 %v2613, %v1891
        %v2631 = vadd.f32 %v2615, 0.0
        %v2632 = vadd.f32 %v2616, 0.0
        %v2633 = vadd.f32 %v2617, 0.0
        %v2634 = vadd.f32 %v2618, 0.0
        %v2635 = vadd.f32 %v2619, 0.0
        %v2636 = vadd.f32 %v2620, 0.0
        %v2637 = vadd.f32 %v2621, 0.0
        %v2638 = vadd.f32 %v2622, 0.0
        %v2639 = vadd.f32 %v2623, 0.0
        %v2640 = vadd.f32 %v2624, 0.0
        %v2641 = vadd.f32 %v2625, 0.0
        %v2642 = vadd.f32 %v2626, 0.0
        %v2643 = vadd.f32 %v2627, 0.0
        %v2644 = vadd.f32 %v2628, 0.0
        %v2645 = vadd.f32 %v2629, 0.0
        %v2646 = vadd.f32 %v2630, 0.0
        %2647 = vset.pattern.permute.xlu0 2
        %2648 = vperm.xlu0 %2647, %v2103
        %v2649 = vpop.permute.xlu0 %2648
        %2651 = vset.pattern.permute.xlu0 2
        %2652 = vperm.xlu0 %2651, %v2104
        %v2653 = vpop.permute.xlu0 %2652
        %2655 = vset.pattern.permute.xlu0 2
        %2656 = vperm.xlu0 %2655, %v2105
        %v2657 = vpop.permute.xlu0 %2656
        %2659 = vset.pattern.permute.xlu0 2
        %2660 = vperm.xlu0 %2659, %v2106
        %v2661 = vpop.permute.xlu0 %2660
        %2663 = vset.pattern.permute.xlu0 2
        %2664 = vperm.xlu0 %2663, %v2107
        %v2665 = vpop.permute.xlu0 %2664
        %2667 = vset.pattern.permute.xlu0 2
        %2668 = vperm.xlu0 %2667, %v2108
        %v2669 = vpop.permute.xlu0 %2668
        %2671 = vset.pattern.permute.xlu0 2
        %2672 = vperm.xlu0 %2671, %v2109
        %v2673 = vpop.permute.xlu0 %2672
        %2675 = vset.pattern.permute.xlu0 2
        %2676 = vperm.xlu0 %2675, %v2110
        %v2677 = vpop.permute.xlu0 %2676
        %2679 = vset.pattern.permute.xlu0 2
        %2680 = vperm.xlu0 %2679, %v2111
        %v2681 = vpop.permute.xlu0 %2680
        %2683 = vset.pattern.permute.xlu0 2
        %2684 = vperm.xlu0 %2683, %v2112
        %v2685 = vpop.permute.xlu0 %2684
        %2687 = vset.pattern.permute.xlu0 2
        %2688 = vperm.xlu0 %2687, %v2113
        %v2689 = vpop.permute.xlu0 %2688
        %2691 = vset.pattern.permute.xlu0 2
        %2692 = vperm.xlu0 %2691, %v2114
        %v2693 = vpop.permute.xlu0 %2692
        %2695 = vset.pattern.permute.xlu0 2
        %2696 = vperm.xlu0 %2695, %v2115
        %v2697 = vpop.permute.xlu0 %2696
        %2699 = vset.pattern.permute.xlu0 2
        %2700 = vperm.xlu0 %2699, %v2116
        %v2701 = vpop.permute.xlu0 %2700
        %2703 = vset.pattern.permute.xlu0 2
        %2704 = vperm.xlu0 %2703, %v2117
        %v2705 = vpop.permute.xlu0 %2704
        %2707 = vset.pattern.permute.xlu0 2
        %2708 = vperm.xlu0 %2707, %v2118
        %v2709 = vpop.permute.xlu0 %2708
        %v2711 = vmul.f32 %v2649, %v1896
        %v2712 = vmul.f32 %v2653, %v1899
        %v2713 = vmul.f32 %v2657, %v1904
        %v2714 = vmul.f32 %v2661, %v1907
        %v2715 = vmul.f32 %v2665, %v1912
        %v2716 = vmul.f32 %v2669, %v1915
        %v2717 = vmul.f32 %v2673, %v1920
        %v2718 = vmul.f32 %v2677, %v1923
        %v2719 = vmul.f32 %v2681, %v1928
        %v2720 = vmul.f32 %v2685, %v1931
        %v2721 = vmul.f32 %v2689, %v1936
        %v2722 = vmul.f32 %v2693, %v1939
        %v2723 = vmul.f32 %v2697, %v1944
        %v2724 = vmul.f32 %v2701, %v1947
        %v2725 = vmul.f32 %v2705, %v1952
        %v2726 = vmul.f32 %v2709, %v1955
        %v2727 = vadd.f32 %v2631, %v2711
        %v2728 = vadd.f32 %v2632, %v2712
        %v2729 = vadd.f32 %v2633, %v2713
        %v2730 = vadd.f32 %v2634, %v2714
        %v2731 = vadd.f32 %v2635, %v2715
        %v2732 = vadd.f32 %v2636, %v2716
        %v2733 = vadd.f32 %v2637, %v2717
        %v2734 = vadd.f32 %v2638, %v2718
        %v2735 = vadd.f32 %v2639, %v2719
        %v2736 = vadd.f32 %v2640, %v2720
        %v2737 = vadd.f32 %v2641, %v2721
        %v2738 = vadd.f32 %v2642, %v2722
        %v2739 = vadd.f32 %v2643, %v2723
        %v2740 = vadd.f32 %v2644, %v2724
        %v2741 = vadd.f32 %v2645, %v2725
        %v2742 = vadd.f32 %v2646, %v2726
        %2743 = vset.pattern.permute.xlu0 3
        %2744 = vperm.xlu0 %2743, %v2103
        %v2745 = vpop.permute.xlu0 %2744
        %2747 = vset.pattern.permute.xlu0 3
        %2748 = vperm.xlu0 %2747, %v2104
        %v2749 = vpop.permute.xlu0 %2748
        %2751 = vset.pattern.permute.xlu0 3
        %2752 = vperm.xlu0 %2751, %v2105
        %v2753 = vpop.permute.xlu0 %2752
        %2755 = vset.pattern.permute.xlu0 3
        %2756 = vperm.xlu0 %2755, %v2106
        %v2757 = vpop.permute.xlu0 %2756
        %2759 = vset.pattern.permute.xlu0 3
        %2760 = vperm.xlu0 %2759, %v2107
        %v2761 = vpop.permute.xlu0 %2760
        %2763 = vset.pattern.permute.xlu0 3
        %2764 = vperm.xlu0 %2763, %v2108
        %v2765 = vpop.permute.xlu0 %2764
        %2767 = vset.pattern.permute.xlu0 3
        %2768 = vperm.xlu0 %2767, %v2109
        %v2769 = vpop.permute.xlu0 %2768
        %2771 = vset.pattern.permute.xlu0 3
        %2772 = vperm.xlu0 %2771, %v2110
        %v2773 = vpop.permute.xlu0 %2772
        %2775 = vset.pattern.permute.xlu0 3
        %2776 = vperm.xlu0 %2775, %v2111
        %v2777 = vpop.permute.xlu0 %2776
        %2779 = vset.pattern.permute.xlu0 3
        %2780 = vperm.xlu0 %2779, %v2112
        %v2781 = vpop.permute.xlu0 %2780
        %2783 = vset.pattern.permute.xlu0 3
        %2784 = vperm.xlu0 %2783, %v2113
        %v2785 = vpop.permute.xlu0 %2784
        %2787 = vset.pattern.permute.xlu0 3
        %2788 = vperm.xlu0 %2787, %v2114
        %v2789 = vpop.permute.xlu0 %2788
        %2791 = vset.pattern.permute.xlu0 3
        %2792 = vperm.xlu0 %2791, %v2115
        %v2793 = vpop.permute.xlu0 %2792
        %2795 = vset.pattern.permute.xlu0 3
        %2796 = vperm.xlu0 %2795, %v2116
        %v2797 = vpop.permute.xlu0 %2796
        %2799 = vset.pattern.permute.xlu0 3
        %2800 = vperm.xlu0 %2799, %v2117
        %v2801 = vpop.permute.xlu0 %2800
        %2803 = vset.pattern.permute.xlu0 3
        %2804 = vperm.xlu0 %2803, %v2118
        %v2805 = vpop.permute.xlu0 %2804
        %v2807 = vmul.f32 %v2745, %v1960
        %v2808 = vmul.f32 %v2749, %v1963
        %v2809 = vmul.f32 %v2753, %v1968
        %v2810 = vmul.f32 %v2757, %v1971
        %v2811 = vmul.f32 %v2761, %v1976
        %v2812 = vmul.f32 %v2765, %v1979
        %v2813 = vmul.f32 %v2769, %v1984
        %v2814 = vmul.f32 %v2773, %v1987
        %v2815 = vmul.f32 %v2777, %v1992
        %v2816 = vmul.f32 %v2781, %v1995
        %v2817 = vmul.f32 %v2785, %v2000
        %v2818 = vmul.f32 %v2789, %v2003
        %v2819 = vmul.f32 %v2793, %v2008
        %v2820 = vmul.f32 %v2797, %v2011
        %v2821 = vmul.f32 %v2801, %v2016
        %v2822 = vmul.f32 %v2805, %v2019
        %v2823 = vadd.f32 %v2727, %v2807
        %v2824 = vadd.f32 %v2728, %v2808
        %v2825 = vadd.f32 %v2729, %v2809
        %v2826 = vadd.f32 %v2730, %v2810
        %v2827 = vadd.f32 %v2731, %v2811
        %v2828 = vadd.f32 %v2732, %v2812
        %v2829 = vadd.f32 %v2733, %v2813
        %v2830 = vadd.f32 %v2734, %v2814
        %v2831 = vadd.f32 %v2735, %v2815
        %v2832 = vadd.f32 %v2736, %v2816
        %v2833 = vadd.f32 %v2737, %v2817
        %v2834 = vadd.f32 %v2738, %v2818
        %v2835 = vadd.f32 %v2739, %v2819
        %v2836 = vadd.f32 %v2740, %v2820
        %v2837 = vadd.f32 %v2741, %v2821
        %v2838 = vadd.f32 %v2742, %v2822
        %v2839 = vadd.f32 %v2823, %v1635
        %v2840 = vadd.f32 %v2824, %v1635
        %v2841 = vadd.f32 %v2825, %v1635
        %v2842 = vadd.f32 %v2826, %v1635
        %v2843 = vadd.f32 %v2827, %v1635
        %v2844 = vadd.f32 %v2828, %v1635
        %v2845 = vadd.f32 %v2829, %v1635
        %v2846 = vadd.f32 %v2830, %v1635
        %v2847 = vadd.f32 %v2831, %v1635
        %v2848 = vadd.f32 %v2832, %v1635
        %v2849 = vadd.f32 %v2833, %v1635
        %v2850 = vadd.f32 %v2834, %v1635
        %v2851 = vadd.f32 %v2835, %v1635
        %v2852 = vadd.f32 %v2836, %v1635
        %v2853 = vadd.f32 %v2837, %v1635
        %v2854 = vadd.f32 %v2838, %v1635
        %vm2855 = vcmp.gt.f32.partialorder %v2839, 0.0
        %vm2856 = vcmp.gt.f32.partialorder %v2840, 0.0
        %vm2857 = vcmp.gt.f32.partialorder %v2841, 0.0
        %vm2858 = vcmp.gt.f32.partialorder %v2842, 0.0
        %vm2859 = vcmp.gt.f32.partialorder %v2843, 0.0
        %vm2860 = vcmp.gt.f32.partialorder %v2844, 0.0
        %vm2861 = vcmp.gt.f32.partialorder %v2845, 0.0
        %vm2862 = vcmp.gt.f32.partialorder %v2846, 0.0
        %vm2863 = vcmp.gt.f32.partialorder %v2847, 0.0
        %vm2864 = vcmp.gt.f32.partialorder %v2848, 0.0
        %vm2865 = vcmp.gt.f32.partialorder %v2849, 0.0
        %vm2866 = vcmp.gt.f32.partialorder %v2850, 0.0
        %vm2867 = vcmp.gt.f32.partialorder %v2851, 0.0
        %vm2868 = vcmp.gt.f32.partialorder %v2852, 0.0
        %vm2869 = vcmp.gt.f32.partialorder %v2853, 0.0
        %vm2870 = vcmp.gt.f32.partialorder %v2854, 0.0
        %v2871 = vmul.f32 %v2054, %v2839
        %v2872 = vmul.f32 %v2054, %v2840
        %v2873 = vmul.f32 %v2054, %v2841
        %v2874 = vmul.f32 %v2054, %v2842
        %v2875 = vmul.f32 %v2054, %v2843
        %v2876 = vmul.f32 %v2054, %v2844
        %v2877 = vmul.f32 %v2054, %v2845
        %v2878 = vmul.f32 %v2054, %v2846
        %v2879 = vmul.f32 %v2054, %v2847
        %v2880 = vmul.f32 %v2054, %v2848
        %v2881 = vmul.f32 %v2054, %v2849
        %v2882 = vmul.f32 %v2054, %v2850
        %v2883 = vmul.f32 %v2054, %v2851
        %v2884 = vmul.f32 %v2054, %v2852
        %v2885 = vmul.f32 %v2054, %v2853
        %v2886 = vmul.f32 %v2054, %v2854
        %v2887 = vsel %vm2855, %v2839, %v2871
        %v2888 = vsel %vm2856, %v2840, %v2872
        %v2889 = vsel %vm2857, %v2841, %v2873
        %v2890 = vsel %vm2858, %v2842, %v2874
        %v2891 = vsel %vm2859, %v2843, %v2875
        %v2892 = vsel %vm2860, %v2844, %v2876
        %v2893 = vsel %vm2861, %v2845, %v2877
        %v2894 = vsel %vm2862, %v2846, %v2878
        %v2895 = vsel %vm2863, %v2847, %v2879
        %v2896 = vsel %vm2864, %v2848, %v2880
        %v2897 = vsel %vm2865, %v2849, %v2881
        %v2898 = vsel %vm2866, %v2850, %v2882
        %v2899 = vsel %vm2867, %v2851, %v2883
        %v2900 = vsel %vm2868, %v2852, %v2884
        %v2901 = vsel %vm2869, %v2853, %v2885
        %v2902 = vsel %vm2870, %v2854, %v2886
        %v2903 = vadd.f32 %v2519, %v2887
        %v2904 = vadd.f32 %v2520, %v2888
        %v2905 = vadd.f32 %v2521, %v2889
        %v2906 = vadd.f32 %v2522, %v2890
        %v2907 = vadd.f32 %v2523, %v2891
        %v2908 = vadd.f32 %v2524, %v2892
        %v2909 = vadd.f32 %v2525, %v2893
        %v2910 = vadd.f32 %v2526, %v2894
        %v2911 = vadd.f32 %v2527, %v2895
        %v2912 = vadd.f32 %v2528, %v2896
        %v2913 = vadd.f32 %v2529, %v2897
        %v2914 = vadd.f32 %v2530, %v2898
        %v2915 = vadd.f32 %v2531, %v2899
        %v2916 = vadd.f32 %v2532, %v2900
        %v2917 = vadd.f32 %v2533, %v2901
        %v2918 = vadd.f32 %v2534, %v2902
        %2920 = vset.pattern.permute.xlu0 1
        %2921 = vperm.xlu0 %2920, %v2119
        %v2922 = vpop.permute.xlu0 %2921
        %2925 = vset.pattern.permute.xlu0 1
        %2926 = vperm.xlu0 %2925, %v2120
        %v2927 = vpop.permute.xlu0 %2926
        %2930 = vset.pattern.permute.xlu0 1
        %2931 = vperm.xlu0 %2930, %v2121
        %v2932 = vpop.permute.xlu0 %2931
        %2935 = vset.pattern.permute.xlu0 1
        %2936 = vperm.xlu0 %2935, %v2122
        %v2937 = vpop.permute.xlu0 %2936
        %2940 = vset.pattern.permute.xlu0 1
        %2941 = vperm.xlu0 %2940, %v2123
        %v2942 = vpop.permute.xlu0 %2941
        %2945 = vset.pattern.permute.xlu0 1
        %2946 = vperm.xlu0 %2945, %v2124
        %v2947 = vpop.permute.xlu0 %2946
        %2950 = vset.pattern.permute.xlu0 1
        %2951 = vperm.xlu0 %2950, %v2125
        %v2952 = vpop.permute.xlu0 %2951
        %2955 = vset.pattern.permute.xlu0 1
        %2956 = vperm.xlu0 %2955, %v2126
        %v2957 = vpop.permute.xlu0 %2956
        %2960 = vset.pattern.permute.xlu0 1
        %2961 = vperm.xlu0 %2960, %v2127
        %v2962 = vpop.permute.xlu0 %2961
        %2965 = vset.pattern.permute.xlu0 1
        %2966 = vperm.xlu0 %2965, %v2128
        %v2967 = vpop.permute.xlu0 %2966
        %2970 = vset.pattern.permute.xlu0 1
        %2971 = vperm.xlu0 %2970, %v2129
        %v2972 = vpop.permute.xlu0 %2971
        %2975 = vset.pattern.permute.xlu0 1
        %2976 = vperm.xlu0 %2975, %v2130
        %v2977 = vpop.permute.xlu0 %2976
        %2980 = vset.pattern.permute.xlu0 1
        %2981 = vperm.xlu0 %2980, %v2131
        %v2982 = vpop.permute.xlu0 %2981
        %2985 = vset.pattern.permute.xlu0 1
        %2986 = vperm.xlu0 %2985, %v2132
        %v2987 = vpop.permute.xlu0 %2986
        %2990 = vset.pattern.permute.xlu0 1
        %2991 = vperm.xlu0 %2990, %v2133
        %v2992 = vpop.permute.xlu0 %2991
        %2995 = vset.pattern.permute.xlu0 1
        %2996 = vperm.xlu0 %2995, %v2134
        %v2997 = vpop.permute.xlu0 %2996
        %v2999 = vmul.f32 %v2922, %v1832
        %v3000 = vmul.f32 %v2927, %v1835
        %v3001 = vmul.f32 %v2932, %v1840
        %v3002 = vmul.f32 %v2937, %v1843
        %v3003 = vmul.f32 %v2942, %v1848
        %v3004 = vmul.f32 %v2947, %v1851
        %v3005 = vmul.f32 %v2952, %v1856
        %v3006 = vmul.f32 %v2957, %v1859
        %v3007 = vmul.f32 %v2962, %v1864
        %v3008 = vmul.f32 %v2967, %v1867
        %v3009 = vmul.f32 %v2972, %v1872
        %v3010 = vmul.f32 %v2977, %v1875
        %v3011 = vmul.f32 %v2982, %v1880
        %v3012 = vmul.f32 %v2987, %v1883
        %v3013 = vmul.f32 %v2992, %v1888
        %v3014 = vmul.f32 %v2997, %v1891
        %v3015 = vadd.f32 %v2999, 0.0
        %v3016 = vadd.f32 %v3000, 0.0
        %v3017 = vadd.f32 %v3001, 0.0
        %v3018 = vadd.f32 %v3002, 0.0
        %v3019 = vadd.f32 %v3003, 0.0
        %v3020 = vadd.f32 %v3004, 0.0
        %v3021 = vadd.f32 %v3005, 0.0
        %v3022 = vadd.f32 %v3006, 0.0
        %v3023 = vadd.f32 %v3007, 0.0
        %v3024 = vadd.f32 %v3008, 0.0
        %v3025 = vadd.f32 %v3009, 0.0
        %v3026 = vadd.f32 %v3010, 0.0
        %v3027 = vadd.f32 %v3011, 0.0
        %v3028 = vadd.f32 %v3012, 0.0
        %v3029 = vadd.f32 %v3013, 0.0
        %v3030 = vadd.f32 %v3014, 0.0
        %3031 = vset.pattern.permute.xlu0 2
        %3032 = vperm.xlu0 %3031, %v2119
        %v3033 = vpop.permute.xlu0 %3032
        %3035 = vset.pattern.permute.xlu0 2
        %3036 = vperm.xlu0 %3035, %v2120
        %v3037 = vpop.permute.xlu0 %3036
        %3039 = vset.pattern.permute.xlu0 2
        %3040 = vperm.xlu0 %3039, %v2121
        %v3041 = vpop.permute.xlu0 %3040
        %3043 = vset.pattern.permute.xlu0 2
        %3044 = vperm.xlu0 %3043, %v2122
        %v3045 = vpop.permute.xlu0 %3044
        %3047 = vset.pattern.permute.xlu0 2
        %3048 = vperm.xlu0 %3047, %v2123
        %v3049 = vpop.permute.xlu0 %3048
        %3051 = vset.pattern.permute.xlu0 2
        %3052 = vperm.xlu0 %3051, %v2124
        %v3053 = vpop.permute.xlu0 %3052
        %3055 = vset.pattern.permute.xlu0 2
        %3056 = vperm.xlu0 %3055, %v2125
        %v3057 = vpop.permute.xlu0 %3056
        %3059 = vset.pattern.permute.xlu0 2
        %3060 = vperm.xlu0 %3059, %v2126
        %v3061 = vpop.permute.xlu0 %3060
        %3063 = vset.pattern.permute.xlu0 2
        %3064 = vperm.xlu0 %3063, %v2127
        %v3065 = vpop.permute.xlu0 %3064
        %3067 = vset.pattern.permute.xlu0 2
        %3068 = vperm.xlu0 %3067, %v2128
        %v3069 = vpop.permute.xlu0 %3068
        %3071 = vset.pattern.permute.xlu0 2
        %3072 = vperm.xlu0 %3071, %v2129
        %v3073 = vpop.permute.xlu0 %3072
        %3075 = vset.pattern.permute.xlu0 2
        %3076 = vperm.xlu0 %3075, %v2130
        %v3077 = vpop.permute.xlu0 %3076
        %3079 = vset.pattern.permute.xlu0 2
        %3080 = vperm.xlu0 %3079, %v2131
        %v3081 = vpop.permute.xlu0 %3080
        %3083 = vset.pattern.permute.xlu0 2
        %3084 = vperm.xlu0 %3083, %v2132
        %v3085 = vpop.permute.xlu0 %3084
        %3087 = vset.pattern.permute.xlu0 2
        %3088 = vperm.xlu0 %3087, %v2133
        %v3089 = vpop.permute.xlu0 %3088
        %3091 = vset.pattern.permute.xlu0 2
        %3092 = vperm.xlu0 %3091, %v2134
        %v3093 = vpop.permute.xlu0 %3092
        %v3095 = vmul.f32 %v3033, %v1896
        %v3096 = vmul.f32 %v3037, %v1899
        %v3097 = vmul.f32 %v3041, %v1904
        %v3098 = vmul.f32 %v3045, %v1907
        %v3099 = vmul.f32 %v3049, %v1912
        %v3100 = vmul.f32 %v3053, %v1915
        %v3101 = vmul.f32 %v3057, %v1920
        %v3102 = vmul.f32 %v3061, %v1923
        %v3103 = vmul.f32 %v3065, %v1928
        %v3104 = vmul.f32 %v3069, %v1931
        %v3105 = vmul.f32 %v3073, %v1936
        %v3106 = vmul.f32 %v3077, %v1939
        %v3107 = vmul.f32 %v3081, %v1944
        %v3108 = vmul.f32 %v3085, %v1947
        %v3109 = vmul.f32 %v3089, %v1952
        %v3110 = vmul.f32 %v3093, %v1955
        %v3111 = vadd.f32 %v3015, %v3095
        %v3112 = vadd.f32 %v3016, %v3096
        %v3113 = vadd.f32 %v3017, %v3097
        %v3114 = vadd.f32 %v3018, %v3098
        %v3115 = vadd.f32 %v3019, %v3099
        %v3116 = vadd.f32 %v3020, %v3100
        %v3117 = vadd.f32 %v3021, %v3101
        %v3118 = vadd.f32 %v3022, %v3102
        %v3119 = vadd.f32 %v3023, %v3103
        %v3120 = vadd.f32 %v3024, %v3104
        %v3121 = vadd.f32 %v3025, %v3105
        %v3122 = vadd.f32 %v3026, %v3106
        %v3123 = vadd.f32 %v3027, %v3107
        %v3124 = vadd.f32 %v3028, %v3108
        %v3125 = vadd.f32 %v3029, %v3109
        %v3126 = vadd.f32 %v3030, %v3110
        %3127 = vset.pattern.permute.xlu0 3
        %3128 = vperm.xlu0 %3127, %v2119
        %v3129 = vpop.permute.xlu0 %3128
        %3131 = vset.pattern.permute.xlu0 3
        %3132 = vperm.xlu0 %3131, %v2120
        %v3133 = vpop.permute.xlu0 %3132
        %3135 = vset.pattern.permute.xlu0 3
        %3136 = vperm.xlu0 %3135, %v2121
        %v3137 = vpop.permute.xlu0 %3136
        %3139 = vset.pattern.permute.xlu0 3
        %3140 = vperm.xlu0 %3139, %v2122
        %v3141 = vpop.permute.xlu0 %3140
        %3143 = vset.pattern.permute.xlu0 3
        %3144 = vperm.xlu0 %3143, %v2123
        %v3145 = vpop.permute.xlu0 %3144
        %3147 = vset.pattern.permute.xlu0 3
        %3148 = vperm.xlu0 %3147, %v2124
        %v3149 = vpop.permute.xlu0 %3148
        %3151 = vset.pattern.permute.xlu0 3
        %3152 = vperm.xlu0 %3151, %v2125
        %v3153 = vpop.permute.xlu0 %3152
        %3155 = vset.pattern.permute.xlu0 3
        %3156 = vperm.xlu0 %3155, %v2126
        %v3157 = vpop.permute.xlu0 %3156
        %3159 = vset.pattern.permute.xlu0 3
        %3160 = vperm.xlu0 %3159, %v2127
        %v3161 = vpop.permute.xlu0 %3160
        %3163 = vset.pattern.permute.xlu0 3
        %3164 = vperm.xlu0 %3163, %v2128
        %v3165 = vpop.permute.xlu0 %3164
        %3167 = vset.pattern.permute.xlu0 3
        %3168 = vperm.xlu0 %3167, %v2129
        %v3169 = vpop.permute.xlu0 %3168
        %3171 = vset.pattern.permute.xlu0 3
        %3172 = vperm.xlu0 %3171, %v2130
        %v3173 = vpop.permute.xlu0 %3172
        %3175 = vset.pattern.permute.xlu0 3
        %3176 = vperm.xlu0 %3175, %v2131
        %v3177 = vpop.permute.xlu0 %3176
        %3179 = vset.pattern.permute.xlu0 3
        %3180 = vperm.xlu0 %3179, %v2132
        %v3181 = vpop.permute.xlu0 %3180
        %3183 = vset.pattern.permute.xlu0 3
        %3184 = vperm.xlu0 %3183, %v2133
        %v3185 = vpop.permute.xlu0 %3184
        %3187 = vset.pattern.permute.xlu0 3
        %3188 = vperm.xlu0 %3187, %v2134
        %v3189 = vpop.permute.xlu0 %3188
        %v3191 = vmul.f32 %v3129, %v1960
        %v3192 = vmul.f32 %v3133, %v1963
        %v3193 = vmul.f32 %v3137, %v1968
        %v3194 = vmul.f32 %v3141, %v1971
        %v3195 = vmul.f32 %v3145, %v1976
        %v3196 = vmul.f32 %v3149, %v1979
        %v3197 = vmul.f32 %v3153, %v1984
        %v3198 = vmul.f32 %v3157, %v1987
        %v3199 = vmul.f32 %v3161, %v1992
        %v3200 = vmul.f32 %v3165, %v1995
        %v3201 = vmul.f32 %v3169, %v2000
        %v3202 = vmul.f32 %v3173, %v2003
        %v3203 = vmul.f32 %v3177, %v2008
        %v3204 = vmul.f32 %v3181, %v2011
        %v3205 = vmul.f32 %v3185, %v2016
        %v3206 = vmul.f32 %v3189, %v2019
        %v3207 = vadd.f32 %v3111, %v3191
        %v3208 = vadd.f32 %v3112, %v3192
        %v3209 = vadd.f32 %v3113, %v3193
        %v3210 = vadd.f32 %v3114, %v3194
        %v3211 = vadd.f32 %v3115, %v3195
        %v3212 = vadd.f32 %v3116, %v3196
        %v3213 = vadd.f32 %v3117, %v3197
        %v3214 = vadd.f32 %v3118, %v3198
        %v3215 = vadd.f32 %v3119, %v3199
        %v3216 = vadd.f32 %v3120, %v3200
        %v3217 = vadd.f32 %v3121, %v3201
        %v3218 = vadd.f32 %v3122, %v3202
        %v3219 = vadd.f32 %v3123, %v3203
        %v3220 = vadd.f32 %v3124, %v3204
        %v3221 = vadd.f32 %v3125, %v3205
        %v3222 = vadd.f32 %v3126, %v3206
        %v3223 = vadd.f32 %v3207, %v1635
        %v3224 = vadd.f32 %v3208, %v1635
        %v3225 = vadd.f32 %v3209, %v1635
        %v3226 = vadd.f32 %v3210, %v1635
        %v3227 = vadd.f32 %v3211, %v1635
        %v3228 = vadd.f32 %v3212, %v1635
        %v3229 = vadd.f32 %v3213, %v1635
        %v3230 = vadd.f32 %v3214, %v1635
        %v3231 = vadd.f32 %v3215, %v1635
        %v3232 = vadd.f32 %v3216, %v1635
        %v3233 = vadd.f32 %v3217, %v1635
        %v3234 = vadd.f32 %v3218, %v1635
        %v3235 = vadd.f32 %v3219, %v1635
        %v3236 = vadd.f32 %v3220, %v1635
        %v3237 = vadd.f32 %v3221, %v1635
        %v3238 = vadd.f32 %v3222, %v1635
        %vm3239 = vcmp.gt.f32.partialorder %v3223, 0.0
        %vm3240 = vcmp.gt.f32.partialorder %v3224, 0.0
        %vm3241 = vcmp.gt.f32.partialorder %v3225, 0.0
        %vm3242 = vcmp.gt.f32.partialorder %v3226, 0.0
        %vm3243 = vcmp.gt.f32.partialorder %v3227, 0.0
        %vm3244 = vcmp.gt.f32.partialorder %v3228, 0.0
        %vm3245 = vcmp.gt.f32.partialorder %v3229, 0.0
        %vm3246 = vcmp.gt.f32.partialorder %v3230, 0.0
        %vm3247 = vcmp.gt.f32.partialorder %v3231, 0.0
        %vm3248 = vcmp.gt.f32.partialorder %v3232, 0.0
        %vm3249 = vcmp.gt.f32.partialorder %v3233, 0.0
        %vm3250 = vcmp.gt.f32.partialorder %v3234, 0.0
        %vm3251 = vcmp.gt.f32.partialorder %v3235, 0.0
        %vm3252 = vcmp.gt.f32.partialorder %v3236, 0.0
        %vm3253 = vcmp.gt.f32.partialorder %v3237, 0.0
        %vm3254 = vcmp.gt.f32.partialorder %v3238, 0.0
        %v3255 = vmul.f32 %v2054, %v3223
        %v3256 = vmul.f32 %v2054, %v3224
        %v3257 = vmul.f32 %v2054, %v3225
        %v3258 = vmul.f32 %v2054, %v3226
        %v3259 = vmul.f32 %v2054, %v3227
        %v3260 = vmul.f32 %v2054, %v3228
        %v3261 = vmul.f32 %v2054, %v3229
        %v3262 = vmul.f32 %v2054, %v3230
        %v3263 = vmul.f32 %v2054, %v3231
        %v3264 = vmul.f32 %v2054, %v3232
        %v3265 = vmul.f32 %v2054, %v3233
        %v3266 = vmul.f32 %v2054, %v3234
        %v3267 = vmul.f32 %v2054, %v3235
        %v3268 = vmul.f32 %v2054, %v3236
        %v3269 = vmul.f32 %v2054, %v3237
        %v3270 = vmul.f32 %v2054, %v3238
        %v3271 = vsel %vm3239, %v3223, %v3255
        %v3272 = vsel %vm3240, %v3224, %v3256
        %v3273 = vsel %vm3241, %v3225, %v3257
        %v3274 = vsel %vm3242, %v3226, %v3258
        %v3275 = vsel %vm3243, %v3227, %v3259
        %v3276 = vsel %vm3244, %v3228, %v3260
        %v3277 = vsel %vm3245, %v3229, %v3261
        %v3278 = vsel %vm3246, %v3230, %v3262
        %v3279 = vsel %vm3247, %v3231, %v3263
        %v3280 = vsel %vm3248, %v3232, %v3264
        %v3281 = vsel %vm3249, %v3233, %v3265
        %v3282 = vsel %vm3250, %v3234, %v3266
        %v3283 = vsel %vm3251, %v3235, %v3267
        %v3284 = vsel %vm3252, %v3236, %v3268
        %v3285 = vsel %vm3253, %v3237, %v3269
        %v3286 = vsel %vm3254, %v3238, %v3270
        %v3287 = vadd.f32 %v2903, %v3271
        %v3288 = vadd.f32 %v2904, %v3272
        %v3289 = vadd.f32 %v2905, %v3273
        %v3290 = vadd.f32 %v2906, %v3274
        %v3291 = vadd.f32 %v2907, %v3275
        %v3292 = vadd.f32 %v2908, %v3276
        %v3293 = vadd.f32 %v2909, %v3277
        %v3294 = vadd.f32 %v2910, %v3278
        %v3295 = vadd.f32 %v2911, %v3279
        %v3296 = vadd.f32 %v2912, %v3280
        %v3297 = vadd.f32 %v2913, %v3281
        %v3298 = vadd.f32 %v2914, %v3282
        %v3299 = vadd.f32 %v2915, %v3283
        %v3300 = vadd.f32 %v2916, %v3284
        %v3301 = vadd.f32 %v2917, %v3285
        %v3302 = vadd.f32 %v2918, %v3286
        %3304 = vset.pattern.permute.xlu0 1
        %3305 = vperm.xlu0 %3304, %v2135
        %v3306 = vpop.permute.xlu0 %3305
        %3309 = vset.pattern.permute.xlu0 1
        %3310 = vperm.xlu0 %3309, %v2136
        %v3311 = vpop.permute.xlu0 %3310
        %3314 = vset.pattern.permute.xlu0 1
        %3315 = vperm.xlu0 %3314, %v2137
        %v3316 = vpop.permute.xlu0 %3315
        %3319 = vset.pattern.permute.xlu0 1
        %3320 = vperm.xlu0 %3319, %v2138
        %v3321 = vpop.permute.xlu0 %3320
        %3324 = vset.pattern.permute.xlu0 1
        %3325 = vperm.xlu0 %3324, %v2139
        %v3326 = vpop.permute.xlu0 %3325
        %3329 = vset.pattern.permute.xlu0 1
        %3330 = vperm.xlu0 %3329, %v2140
        %v3331 = vpop.permute.xlu0 %3330
        %3334 = vset.pattern.permute.xlu0 1
        %3335 = vperm.xlu0 %3334, %v2141
        %v3336 = vpop.permute.xlu0 %3335
        %3339 = vset.pattern.permute.xlu0 1
        %3340 = vperm.xlu0 %3339, %v2142
        %v3341 = vpop.permute.xlu0 %3340
        %3344 = vset.pattern.permute.xlu0 1
        %3345 = vperm.xlu0 %3344, %v2143
        %v3346 = vpop.permute.xlu0 %3345
        %3349 = vset.pattern.permute.xlu0 1
        %3350 = vperm.xlu0 %3349, %v2144
        %v3351 = vpop.permute.xlu0 %3350
        %3354 = vset.pattern.permute.xlu0 1
        %3355 = vperm.xlu0 %3354, %v2145
        %v3356 = vpop.permute.xlu0 %3355
        %3359 = vset.pattern.permute.xlu0 1
        %3360 = vperm.xlu0 %3359, %v2146
        %v3361 = vpop.permute.xlu0 %3360
        %3364 = vset.pattern.permute.xlu0 1
        %3365 = vperm.xlu0 %3364, %v2147
        %v3366 = vpop.permute.xlu0 %3365
        %3369 = vset.pattern.permute.xlu0 1
        %3370 = vperm.xlu0 %3369, %v2148
        %v3371 = vpop.permute.xlu0 %3370
        %3374 = vset.pattern.permute.xlu0 1
        %3375 = vperm.xlu0 %3374, %v2149
        %v3376 = vpop.permute.xlu0 %3375
        %3379 = vset.pattern.permute.xlu0 1
        %3380 = vperm.xlu0 %3379, %v2150
        %v3381 = vpop.permute.xlu0 %3380
        %v3383 = vmul.f32 %v3306, %v1832
        %v3384 = vmul.f32 %v3311, %v1835
        %v3385 = vmul.f32 %v3316, %v1840
        %v3386 = vmul.f32 %v3321, %v1843
        %v3387 = vmul.f32 %v3326, %v1848
        %v3388 = vmul.f32 %v3331, %v1851
        %v3389 = vmul.f32 %v3336, %v1856
        %v3390 = vmul.f32 %v3341, %v1859
        %v3391 = vmul.f32 %v3346, %v1864
        %v3392 = vmul.f32 %v3351, %v1867
        %v3393 = vmul.f32 %v3356, %v1872
        %v3394 = vmul.f32 %v3361, %v1875
        %v3395 = vmul.f32 %v3366, %v1880
        %v3396 = vmul.f32 %v3371, %v1883
        %v3397 = vmul.f32 %v3376, %v1888
        %v3398 = vmul.f32 %v3381, %v1891
        %v3399 = vadd.f32 %v3383, 0.0
        %v3400 = vadd.f32 %v3384, 0.0
        %v3401 = vadd.f32 %v3385, 0.0
        %v3402 = vadd.f32 %v3386, 0.0
        %v3403 = vadd.f32 %v3387, 0.0
        %v3404 = vadd.f32 %v3388, 0.0
        %v3405 = vadd.f32 %v3389, 0.0
        %v3406 = vadd.f32 %v3390, 0.0
        %v3407 = vadd.f32 %v3391, 0.0
        %v3408 = vadd.f32 %v3392, 0.0
        %v3409 = vadd.f32 %v3393, 0.0
        %v3410 = vadd.f32 %v3394, 0.0
        %v3411 = vadd.f32 %v3395, 0.0
        %v3412 = vadd.f32 %v3396, 0.0
        %v3413 = vadd.f32 %v3397, 0.0
        %v3414 = vadd.f32 %v3398, 0.0
        %3415 = vset.pattern.permute.xlu0 2
        %3416 = vperm.xlu0 %3415, %v2135
        %v3417 = vpop.permute.xlu0 %3416
        %3419 = vset.pattern.permute.xlu0 2
        %3420 = vperm.xlu0 %3419, %v2136
        %v3421 = vpop.permute.xlu0 %3420
        %3423 = vset.pattern.permute.xlu0 2
        %3424 = vperm.xlu0 %3423, %v2137
        %v3425 = vpop.permute.xlu0 %3424
        %3427 = vset.pattern.permute.xlu0 2
        %3428 = vperm.xlu0 %3427, %v2138
        %v3429 = vpop.permute.xlu0 %3428
        %3431 = vset.pattern.permute.xlu0 2
        %3432 = vperm.xlu0 %3431, %v2139
        %v3433 = vpop.permute.xlu0 %3432
        %3435 = vset.pattern.permute.xlu0 2
        %3436 = vperm.xlu0 %3435, %v2140
        %v3437 = vpop.permute.xlu0 %3436
        %3439 = vset.pattern.permute.xlu0 2
        %3440 = vperm.xlu0 %3439, %v2141
        %v3441 = vpop.permute.xlu0 %3440
        %3443 = vset.pattern.permute.xlu0 2
        %3444 = vperm.xlu0 %3443, %v2142
        %v3445 = vpop.permute.xlu0 %3444
        %3447 = vset.pattern.permute.xlu0 2
        %3448 = vperm.xlu0 %3447, %v2143
        %v3449 = vpop.permute.xlu0 %3448
        %3451 = vset.pattern.permute.xlu0 2
        %3452 = vperm.xlu0 %3451, %v2144
        %v3453 = vpop.permute.xlu0 %3452
        %3455 = vset.pattern.permute.xlu0 2
        %3456 = vperm.xlu0 %3455, %v2145
        %v3457 = vpop.permute.xlu0 %3456
        %3459 = vset.pattern.permute.xlu0 2
        %3460 = vperm.xlu0 %3459, %v2146
        %v3461 = vpop.permute.xlu0 %3460
        %3463 = vset.pattern.permute.xlu0 2
        %3464 = vperm.xlu0 %3463, %v2147
        %v3465 = vpop.permute.xlu0 %3464
        %3467 = vset.pattern.permute.xlu0 2
        %3468 = vperm.xlu0 %3467, %v2148
        %v3469 = vpop.permute.xlu0 %3468
        %3471 = vset.pattern.permute.xlu0 2
        %3472 = vperm.xlu0 %3471, %v2149
        %v3473 = vpop.permute.xlu0 %3472
        %3475 = vset.pattern.permute.xlu0 2
        %3476 = vperm.xlu0 %3475, %v2150
        %v3477 = vpop.permute.xlu0 %3476
        %v3479 = vmul.f32 %v3417, %v1896
        %v3480 = vmul.f32 %v3421, %v1899
        %v3481 = vmul.f32 %v3425, %v1904
        %v3482 = vmul.f32 %v3429, %v1907
        %v3483 = vmul.f32 %v3433, %v1912
        %v3484 = vmul.f32 %v3437, %v1915
        %v3485 = vmul.f32 %v3441, %v1920
        %v3486 = vmul.f32 %v3445, %v1923
        %v3487 = vmul.f32 %v3449, %v1928
        %v3488 = vmul.f32 %v3453, %v1931
        %v3489 = vmul.f32 %v3457, %v1936
        %v3490 = vmul.f32 %v3461, %v1939
        %v3491 = vmul.f32 %v3465, %v1944
        %v3492 = vmul.f32 %v3469, %v1947
        %v3493 = vmul.f32 %v3473, %v1952
        %v3494 = vmul.f32 %v3477, %v1955
        %v3495 = vadd.f32 %v3399, %v3479
        %v3496 = vadd.f32 %v3400, %v3480
        %v3497 = vadd.f32 %v3401, %v3481
        %v3498 = vadd.f32 %v3402, %v3482
        %v3499 = vadd.f32 %v3403, %v3483
        %v3500 = vadd.f32 %v3404, %v3484
        %v3501 = vadd.f32 %v3405, %v3485
        %v3502 = vadd.f32 %v3406, %v3486
        %v3503 = vadd.f32 %v3407, %v3487
        %v3504 = vadd.f32 %v3408, %v3488
        %v3505 = vadd.f32 %v3409, %v3489
        %v3506 = vadd.f32 %v3410, %v3490
        %v3507 = vadd.f32 %v3411, %v3491
        %v3508 = vadd.f32 %v3412, %v3492
        %v3509 = vadd.f32 %v3413, %v3493
        %v3510 = vadd.f32 %v3414, %v3494
        %3511 = vset.pattern.permute.xlu0 3
        %3512 = vperm.xlu0 %3511, %v2135
        %v3513 = vpop.permute.xlu0 %3512
        %3515 = vset.pattern.permute.xlu0 3
        %3516 = vperm.xlu0 %3515, %v2136
        %v3517 = vpop.permute.xlu0 %3516
        %3519 = vset.pattern.permute.xlu0 3
        %3520 = vperm.xlu0 %3519, %v2137
        %v3521 = vpop.permute.xlu0 %3520
        %3523 = vset.pattern.permute.xlu0 3
        %3524 = vperm.xlu0 %3523, %v2138
        %v3525 = vpop.permute.xlu0 %3524
        %3527 = vset.pattern.permute.xlu0 3
        %3528 = vperm.xlu0 %3527, %v2139
        %v3529 = vpop.permute.xlu0 %3528
        %3531 = vset.pattern.permute.xlu0 3
        %3532 = vperm.xlu0 %3531, %v2140
        %v3533 = vpop.permute.xlu0 %3532
        %3535 = vset.pattern.permute.xlu0 3
        %3536 = vperm.xlu0 %3535, %v2141
        %v3537 = vpop.permute.xlu0 %3536
        %3539 = vset.pattern.permute.xlu0 3
        %3540 = vperm.xlu0 %3539, %v2142
        %v3541 = vpop.permute.xlu0 %3540
        %3543 = vset.pattern.permute.xlu0 3
        %3544 = vperm.xlu0 %3543, %v2143
        %v3545 = vpop.permute.xlu0 %3544
        %3547 = vset.pattern.permute.xlu0 3
        %3548 = vperm.xlu0 %3547, %v2144
        %v3549 = vpop.permute.xlu0 %3548
        %3551 = vset.pattern.permute.xlu0 3
        %3552 = vperm.xlu0 %3551, %v2145
        %v3553 = vpop.permute.xlu0 %3552
        %3555 = vset.pattern.permute.xlu0 3
        %3556 = vperm.xlu0 %3555, %v2146
        %v3557 = vpop.permute.xlu0 %3556
        %3559 = vset.pattern.permute.xlu0 3
        %3560 = vperm.xlu0 %3559, %v2147
        %v3561 = vpop.permute.xlu0 %3560
        %3563 = vset.pattern.permute.xlu0 3
        %3564 = vperm.xlu0 %3563, %v2148
        %v3565 = vpop.permute.xlu0 %3564
        %3567 = vset.pattern.permute.xlu0 3
        %3568 = vperm.xlu0 %3567, %v2149
        %v3569 = vpop.permute.xlu0 %3568
        %3571 = vset.pattern.permute.xlu0 3
        %3572 = vperm.xlu0 %3571, %v2150
        %v3573 = vpop.permute.xlu0 %3572
        %v3575 = vmul.f32 %v3513, %v1960
        %v3576 = vmul.f32 %v3517, %v1963
        %v3577 = vmul.f32 %v3521, %v1968
        %v3578 = vmul.f32 %v3525, %v1971
        %v3579 = vmul.f32 %v3529, %v1976
        %v3580 = vmul.f32 %v3533, %v1979
        %v3581 = vmul.f32 %v3537, %v1984
        %v3582 = vmul.f32 %v3541, %v1987
        %v3583 = vmul.f32 %v3545, %v1992
        %v3584 = vmul.f32 %v3549, %v1995
        %v3585 = vmul.f32 %v3553, %v2000
        %v3586 = vmul.f32 %v3557, %v2003
        %v3587 = vmul.f32 %v3561, %v2008
        %v3588 = vmul.f32 %v3565, %v2011
        %v3589 = vmul.f32 %v3569, %v2016
        %v3590 = vmul.f32 %v3573, %v2019
        %v3591 = vadd.f32 %v3495, %v3575
        %v3592 = vadd.f32 %v3496, %v3576
        %v3593 = vadd.f32 %v3497, %v3577
        %v3594 = vadd.f32 %v3498, %v3578
        %v3595 = vadd.f32 %v3499, %v3579
        %v3596 = vadd.f32 %v3500, %v3580
        %v3597 = vadd.f32 %v3501, %v3581
        %v3598 = vadd.f32 %v3502, %v3582
        %v3599 = vadd.f32 %v3503, %v3583
        %v3600 = vadd.f32 %v3504, %v3584
        %v3601 = vadd.f32 %v3505, %v3585
        %v3602 = vadd.f32 %v3506, %v3586
        %v3603 = vadd.f32 %v3507, %v3587
        %v3604 = vadd.f32 %v3508, %v3588
        %v3605 = vadd.f32 %v3509, %v3589
        %v3606 = vadd.f32 %v3510, %v3590
        %v3607 = vadd.f32 %v3591, %v1635
        %v3608 = vadd.f32 %v3592, %v1635
        %v3609 = vadd.f32 %v3593, %v1635
        %v3610 = vadd.f32 %v3594, %v1635
        %v3611 = vadd.f32 %v3595, %v1635
        %v3612 = vadd.f32 %v3596, %v1635
        %v3613 = vadd.f32 %v3597, %v1635
        %v3614 = vadd.f32 %v3598, %v1635
        %v3615 = vadd.f32 %v3599, %v1635
        %v3616 = vadd.f32 %v3600, %v1635
        %v3617 = vadd.f32 %v3601, %v1635
        %v3618 = vadd.f32 %v3602, %v1635
        %v3619 = vadd.f32 %v3603, %v1635
        %v3620 = vadd.f32 %v3604, %v1635
        %v3621 = vadd.f32 %v3605, %v1635
        %v3622 = vadd.f32 %v3606, %v1635
        %vm3623 = vcmp.gt.f32.partialorder %v3607, 0.0
        %vm3624 = vcmp.gt.f32.partialorder %v3608, 0.0
        %vm3625 = vcmp.gt.f32.partialorder %v3609, 0.0
        %vm3626 = vcmp.gt.f32.partialorder %v3610, 0.0
        %vm3627 = vcmp.gt.f32.partialorder %v3611, 0.0
        %vm3628 = vcmp.gt.f32.partialorder %v3612, 0.0
        %vm3629 = vcmp.gt.f32.partialorder %v3613, 0.0
        %vm3630 = vcmp.gt.f32.partialorder %v3614, 0.0
        %vm3631 = vcmp.gt.f32.partialorder %v3615, 0.0
        %vm3632 = vcmp.gt.f32.partialorder %v3616, 0.0
        %vm3633 = vcmp.gt.f32.partialorder %v3617, 0.0
        %vm3634 = vcmp.gt.f32.partialorder %v3618, 0.0
        %vm3635 = vcmp.gt.f32.partialorder %v3619, 0.0
        %vm3636 = vcmp.gt.f32.partialorder %v3620, 0.0
        %vm3637 = vcmp.gt.f32.partialorder %v3621, 0.0
        %vm3638 = vcmp.gt.f32.partialorder %v3622, 0.0
        %v3639 = vmul.f32 %v2054, %v3607
        %v3640 = vmul.f32 %v2054, %v3608
        %v3641 = vmul.f32 %v2054, %v3609
        %v3642 = vmul.f32 %v2054, %v3610
        %v3643 = vmul.f32 %v2054, %v3611
        %v3644 = vmul.f32 %v2054, %v3612
        %v3645 = vmul.f32 %v2054, %v3613
        %v3646 = vmul.f32 %v2054, %v3614
        %v3647 = vmul.f32 %v2054, %v3615
        %v3648 = vmul.f32 %v2054, %v3616
        %v3649 = vmul.f32 %v2054, %v3617
        %v3650 = vmul.f32 %v2054, %v3618
        %v3651 = vmul.f32 %v2054, %v3619
        %v3652 = vmul.f32 %v2054, %v3620
        %v3653 = vmul.f32 %v2054, %v3621
        %v3654 = vmul.f32 %v2054, %v3622
        %v3655 = vsel %vm3623, %v3607, %v3639
        %v3656 = vsel %vm3624, %v3608, %v3640
        %v3657 = vsel %vm3625, %v3609, %v3641
        %v3658 = vsel %vm3626, %v3610, %v3642
        %v3659 = vsel %vm3627, %v3611, %v3643
        %v3660 = vsel %vm3628, %v3612, %v3644
        %v3661 = vsel %vm3629, %v3613, %v3645
        %v3662 = vsel %vm3630, %v3614, %v3646
        %v3663 = vsel %vm3631, %v3615, %v3647
        %v3664 = vsel %vm3632, %v3616, %v3648
        %v3665 = vsel %vm3633, %v3617, %v3649
        %v3666 = vsel %vm3634, %v3618, %v3650
        %v3667 = vsel %vm3635, %v3619, %v3651
        %v3668 = vsel %vm3636, %v3620, %v3652
        %v3669 = vsel %vm3637, %v3621, %v3653
        %v3670 = vsel %vm3638, %v3622, %v3654
        %v3671 = vadd.f32 %v3287, %v3655
        %v3672 = vadd.f32 %v3288, %v3656
        %v3673 = vadd.f32 %v3289, %v3657
        %v3674 = vadd.f32 %v3290, %v3658
        %v3675 = vadd.f32 %v3291, %v3659
        %v3676 = vadd.f32 %v3292, %v3660
        %v3677 = vadd.f32 %v3293, %v3661
        %v3678 = vadd.f32 %v3294, %v3662
        %v3679 = vadd.f32 %v3295, %v3663
        %v3680 = vadd.f32 %v3296, %v3664
        %v3681 = vadd.f32 %v3297, %v3665
        %v3682 = vadd.f32 %v3298, %v3666
        %v3683 = vadd.f32 %v3299, %v3667
        %v3684 = vadd.f32 %v3300, %v3668
        %v3685 = vadd.f32 %v3301, %v3669
        %v3686 = vadd.f32 %v3302, %v3670
        %v3687 = vmul.f32 %v3671, 0.25
        %v3688 = vmul.f32 %v3672, 0.25
        %v3689 = vmul.f32 %v3673, 0.25
        %v3690 = vmul.f32 %v3674, 0.25
        %v3691 = vmul.f32 %v3675, 0.25
        %v3692 = vmul.f32 %v3676, 0.25
        %v3693 = vmul.f32 %v3677, 0.25
        %v3694 = vmul.f32 %v3678, 0.25
        %v3695 = vmul.f32 %v3679, 0.25
        %v3696 = vmul.f32 %v3680, 0.25
        %v3697 = vmul.f32 %v3681, 0.25
        %v3698 = vmul.f32 %v3682, 0.25
        %v3699 = vmul.f32 %v3683, 0.25
        %v3700 = vmul.f32 %v3684, 0.25
        %v3701 = vmul.f32 %v3685, 0.25
        %v3702 = vmul.f32 %v3686, 0.25
        %v3703 = vmul.f32 %v3687, %v3687
        %v3704 = vmul.f32 %v3688, %v3688
        %v3705 = vmul.f32 %v3689, %v3689
        %v3706 = vmul.f32 %v3690, %v3690
        %v3707 = vmul.f32 %v3691, %v3691
        %v3708 = vmul.f32 %v3692, %v3692
        %v3709 = vmul.f32 %v3693, %v3693
        %v3710 = vmul.f32 %v3694, %v3694
        %v3711 = vmul.f32 %v3695, %v3695
        %v3712 = vmul.f32 %v3696, %v3696
        %v3713 = vmul.f32 %v3697, %v3697
        %v3714 = vmul.f32 %v3698, %v3698
        %v3715 = vmul.f32 %v3699, %v3699
        %v3716 = vmul.f32 %v3700, %v3700
        %v3717 = vmul.f32 %v3701, %v3701
        %v3718 = vmul.f32 %v3702, %v3702
        %3719 = vadd.xlane.f32.xlu0 %v3703
        %v3720 = vpop.xlane.xlu0 %3719
        %3721 = vadd.xlane.f32.xlu0 %v3704
        %v3722 = vpop.xlane.xlu0 %3721
        %3723 = vadd.xlane.f32.xlu0 %v3705
        %v3724 = vpop.xlane.xlu0 %3723
        %3725 = vadd.xlane.f32.xlu0 %v3706
        %v3726 = vpop.xlane.xlu0 %3725
        %3727 = vadd.xlane.f32.xlu0 %v3707
        %v3728 = vpop.xlane.xlu0 %3727
        %3729 = vadd.xlane.f32.xlu0 %v3708
        %v3730 = vpop.xlane.xlu0 %3729
        %3731 = vadd.xlane.f32.xlu0 %v3709
        %v3732 = vpop.xlane.xlu0 %3731
        %3733 = vadd.xlane.f32.xlu0 %v3710
        %v3734 = vpop.xlane.xlu0 %3733
        %3735 = vadd.xlane.f32.xlu0 %v3711
        %v3736 = vpop.xlane.xlu0 %3735
        %3737 = vadd.xlane.f32.xlu0 %v3712
        %v3738 = vpop.xlane.xlu0 %3737
        %3739 = vadd.xlane.f32.xlu0 %v3713
        %v3740 = vpop.xlane.xlu0 %3739
        %3741 = vadd.xlane.f32.xlu0 %v3714
        %v3742 = vpop.xlane.xlu0 %3741
        %3743 = vadd.xlane.f32.xlu0 %v3715
        %v3744 = vpop.xlane.xlu0 %3743
        %3745 = vadd.xlane.f32.xlu0 %v3716
        %v3746 = vpop.xlane.xlu0 %3745
        %3747 = vadd.xlane.f32.xlu0 %v3717
        %v3748 = vpop.xlane.xlu0 %3747
        %3749 = vadd.xlane.f32.xlu0 %v3718
        %v3750 = vpop.xlane.xlu0 %3749
        %v3751 = vmax.f32 %v3720, 1e-24
        %v3752 = vmax.f32 %v3722, 1e-24
        %v3753 = vmax.f32 %v3724, 1e-24
        %v3754 = vmax.f32 %v3726, 1e-24
        %v3755 = vmax.f32 %v3728, 1e-24
        %v3756 = vmax.f32 %v3730, 1e-24
        %v3757 = vmax.f32 %v3732, 1e-24
        %v3758 = vmax.f32 %v3734, 1e-24
        %v3759 = vmax.f32 %v3736, 1e-24
        %v3760 = vmax.f32 %v3738, 1e-24
        %v3761 = vmax.f32 %v3740, 1e-24
        %v3762 = vmax.f32 %v3742, 1e-24
        %v3763 = vmax.f32 %v3744, 1e-24
        %v3764 = vmax.f32 %v3746, 1e-24
        %v3765 = vmax.f32 %v3748, 1e-24
        %v3766 = vmax.f32 %v3750, 1e-24
        %v3767 = vrsqrt.pop %v3751
        %v3768 = vrsqrt.pop %v3752
        %v3769 = vrsqrt.pop %v3753
        %v3770 = vrsqrt.pop %v3754
        %v3771 = vrsqrt.pop %v3755
        %v3772 = vrsqrt.pop %v3756
        %v3773 = vrsqrt.pop %v3757
        %v3774 = vrsqrt.pop %v3758
        %v3775 = vrsqrt.pop %v3759
        %v3776 = vrsqrt.pop %v3760
        %v3777 = vrsqrt.pop %v3761
        %v3778 = vrsqrt.pop %v3762
        %v3779 = vrsqrt.pop %v3763
        %v3780 = vrsqrt.pop %v3764
        %v3781 = vrsqrt.pop %v3765
        %v3782 = vrsqrt.pop %v3766
        %v3783 = vmul.f32 %v3687, %v3767
        %v3784 = vmul.f32 %v3688, %v3768
        %v3785 = vmul.f32 %v3689, %v3769
        %v3786 = vmul.f32 %v3690, %v3770
        %v3787 = vmul.f32 %v3691, %v3771
        %v3788 = vmul.f32 %v3692, %v3772
        %v3789 = vmul.f32 %v3693, %v3773
        %v3790 = vmul.f32 %v3694, %v3774
        %v3791 = vmul.f32 %v3695, %v3775
        %v3792 = vmul.f32 %v3696, %v3776
        %v3793 = vmul.f32 %v3697, %v3777
        %v3794 = vmul.f32 %v3698, %v3778
        %v3795 = vmul.f32 %v3699, %v3779
        %v3796 = vmul.f32 %v3700, %v3780
        %v3797 = vmul.f32 %v3701, %v3781
        %v3798 = vmul.f32 %v3702, %v3782
        %v3799 = vmul.f32 %v2071, %v2071
        %v3800 = vmul.f32 %v2072, %v2072
        %v3801 = vmul.f32 %v2073, %v2073
        %v3802 = vmul.f32 %v2074, %v2074
        %v3803 = vmul.f32 %v2075, %v2075
        %v3804 = vmul.f32 %v2076, %v2076
        %v3805 = vmul.f32 %v2077, %v2077
        %v3806 = vmul.f32 %v2078, %v2078
        %v3807 = vmul.f32 %v2079, %v2079
        %v3808 = vmul.f32 %v2080, %v2080
        %v3809 = vmul.f32 %v2081, %v2081
        %v3810 = vmul.f32 %v2082, %v2082
        %v3811 = vmul.f32 %v2083, %v2083
        %v3812 = vmul.f32 %v2084, %v2084
        %v3813 = vmul.f32 %v2085, %v2085
        %v3814 = vmul.f32 %v2086, %v2086
        %3815 = vadd.xlane.f32.xlu0 %v3799
        %v3816 = vpop.xlane.xlu0 %3815
        %3817 = vadd.xlane.f32.xlu0 %v3800
        %v3818 = vpop.xlane.xlu0 %3817
        %3819 = vadd.xlane.f32.xlu0 %v3801
        %v3820 = vpop.xlane.xlu0 %3819
        %3821 = vadd.xlane.f32.xlu0 %v3802
        %v3822 = vpop.xlane.xlu0 %3821
        %3823 = vadd.xlane.f32.xlu0 %v3803
        %v3824 = vpop.xlane.xlu0 %3823
        %3825 = vadd.xlane.f32.xlu0 %v3804
        %v3826 = vpop.xlane.xlu0 %3825
        %3827 = vadd.xlane.f32.xlu0 %v3805
        %v3828 = vpop.xlane.xlu0 %3827
        %3829 = vadd.xlane.f32.xlu0 %v3806
        %v3830 = vpop.xlane.xlu0 %3829
        %3831 = vadd.xlane.f32.xlu0 %v3807
        %v3832 = vpop.xlane.xlu0 %3831
        %3833 = vadd.xlane.f32.xlu0 %v3808
        %v3834 = vpop.xlane.xlu0 %3833
        %3835 = vadd.xlane.f32.xlu0 %v3809
        %v3836 = vpop.xlane.xlu0 %3835
        %3837 = vadd.xlane.f32.xlu0 %v3810
        %v3838 = vpop.xlane.xlu0 %3837
        %3839 = vadd.xlane.f32.xlu0 %v3811
        %v3840 = vpop.xlane.xlu0 %3839
        %3841 = vadd.xlane.f32.xlu0 %v3812
        %v3842 = vpop.xlane.xlu0 %3841
        %3843 = vadd.xlane.f32.xlu0 %v3813
        %v3844 = vpop.xlane.xlu0 %3843
        %3845 = vadd.xlane.f32.xlu0 %v3814
        %v3846 = vpop.xlane.xlu0 %3845
        %v3847 = vmax.f32 %v3816, 1e-24
        %v3848 = vmax.f32 %v3818, 1e-24
        %v3849 = vmax.f32 %v3820, 1e-24
        %v3850 = vmax.f32 %v3822, 1e-24
        %v3851 = vmax.f32 %v3824, 1e-24
        %v3852 = vmax.f32 %v3826, 1e-24
        %v3853 = vmax.f32 %v3828, 1e-24
        %v3854 = vmax.f32 %v3830, 1e-24
        %v3855 = vmax.f32 %v3832, 1e-24
        %v3856 = vmax.f32 %v3834, 1e-24
        %v3857 = vmax.f32 %v3836, 1e-24
        %v3858 = vmax.f32 %v3838, 1e-24
        %v3859 = vmax.f32 %v3840, 1e-24
        %v3860 = vmax.f32 %v3842, 1e-24
        %v3861 = vmax.f32 %v3844, 1e-24
        %v3862 = vmax.f32 %v3846, 1e-24
        %v3863 = vrsqrt.pop %v3847
        %v3864 = vrsqrt.pop %v3848
        %v3865 = vrsqrt.pop %v3849
        %v3866 = vrsqrt.pop %v3850
        %v3867 = vrsqrt.pop %v3851
        %v3868 = vrsqrt.pop %v3852
        %v3869 = vrsqrt.pop %v3853
        %v3870 = vrsqrt.pop %v3854
        %v3871 = vrsqrt.pop %v3855
        %v3872 = vrsqrt.pop %v3856
        %v3873 = vrsqrt.pop %v3857
        %v3874 = vrsqrt.pop %v3858
        %v3875 = vrsqrt.pop %v3859
        %v3876 = vrsqrt.pop %v3860
        %v3877 = vrsqrt.pop %v3861
        %v3878 = vrsqrt.pop %v3862
        %v3879 = vmul.f32 %v2071, %v3863
        %v3880 = vmul.f32 %v2072, %v3864
        %v3881 = vmul.f32 %v2073, %v3865
        %v3882 = vmul.f32 %v2074, %v3866
        %v3883 = vmul.f32 %v2075, %v3867
        %v3884 = vmul.f32 %v2076, %v3868
        %v3885 = vmul.f32 %v2077, %v3869
        %v3886 = vmul.f32 %v2078, %v3870
        %v3887 = vmul.f32 %v2079, %v3871
        %v3888 = vmul.f32 %v2080, %v3872
        %v3889 = vmul.f32 %v2081, %v3873
        %v3890 = vmul.f32 %v2082, %v3874
        %v3891 = vmul.f32 %v2083, %v3875
        %v3892 = vmul.f32 %v2084, %v3876
        %v3893 = vmul.f32 %v2085, %v3877
        %v3894 = vmul.f32 %v2086, %v3878
        %v3895 = vld [vmem:[%s1508] sm:$0xff]
        %v3896 = vld [vmem:[%s1508 + $0x8] sm:$0xff]
        %v3897 = vld [vmem:[%s1508 + $0x10] sm:$0xff]
        %v3898 = vld [vmem:[%s1508 + $0x18] sm:$0xff]
        %v3899 = vld [vmem:[%s1508 + $0x20] sm:$0xff]
        %v3900 = vld [vmem:[%s1508 + $0x28] sm:$0xff]
        %v3901 = vld [vmem:[%s1508 + $0x30] sm:$0xff]
        %v3902 = vld [vmem:[%s1508 + $0x38] sm:$0xff]
        %v3903 = vld [vmem:[%s1508 + $0x40] sm:$0xff]
        %v3904 = vld [vmem:[%s1508 + $0x48] sm:$0xff]
        %v3905 = vld [vmem:[%s1508 + $0x50] sm:$0xff]
        %v3906 = vld [vmem:[%s1508 + $0x58] sm:$0xff]
        %v3907 = vld [vmem:[%s1508 + $0x60] sm:$0xff]
        %v3908 = vld [vmem:[%s1508 + $0x68] sm:$0xff]
        %v3909 = vld [vmem:[%s1508 + $0x70] sm:$0xff]
        %v3910 = vld [vmem:[%s1508 + $0x78] sm:$0xff]
        %v3911 = vld [vmem:[%s1508 + $0x80] sm:$0xff]
        %v3912 = vld [vmem:[%s1508 + $0x88] sm:$0xff]
        %v3913 = vld [vmem:[%s1508 + $0x90] sm:$0xff]
        %v3914 = vld [vmem:[%s1508 + $0x98] sm:$0xff]
        %v3915 = vld [vmem:[%s1508 + $0xa0] sm:$0xff]
        %v3916 = vld [vmem:[%s1508 + $0xa8] sm:$0xff]
        %v3917 = vld [vmem:[%s1508 + $0xb0] sm:$0xff]
        %v3918 = vld [vmem:[%s1508 + $0xb8] sm:$0xff]
        %v3919 = vld [vmem:[%s1508 + $0xc0] sm:$0xff]
        %v3920 = vld [vmem:[%s1508 + $0xc8] sm:$0xff]
        %v3921 = vld [vmem:[%s1508 + $0xd0] sm:$0xff]
        %v3922 = vld [vmem:[%s1508 + $0xd8] sm:$0xff]
        %v3923 = vld [vmem:[%s1508 + $0xe0] sm:$0xff]
        %v3924 = vld [vmem:[%s1508 + $0xe8] sm:$0xff]
        %v3925 = vld [vmem:[%s1508 + $0xf0] sm:$0xff]
        %v3926 = vld [vmem:[%s1508 + $0xf8] sm:$0xff]
        %v3927 = vld [vmem:[%s1508 + $0x100] sm:$0xff]
        %v3928 = vld [vmem:[%s1508 + $0x108] sm:$0xff]
        %v3929 = vld [vmem:[%s1508 + $0x110] sm:$0xff]
        %v3930 = vld [vmem:[%s1508 + $0x118] sm:$0xff]
        %v3931 = vld [vmem:[%s1508 + $0x120] sm:$0xff]
        %v3932 = vld [vmem:[%s1508 + $0x128] sm:$0xff]
        %v3933 = vld [vmem:[%s1508 + $0x130] sm:$0xff]
        %v3934 = vld [vmem:[%s1508 + $0x138] sm:$0xff]
        %v3935 = vld [vmem:[%s1508 + $0x140] sm:$0xff]
        %v3936 = vld [vmem:[%s1508 + $0x148] sm:$0xff]
        %v3937 = vld [vmem:[%s1508 + $0x150] sm:$0xff]
        %v3938 = vld [vmem:[%s1508 + $0x158] sm:$0xff]
        %v3939 = vld [vmem:[%s1508 + $0x160] sm:$0xff]
        %v3940 = vld [vmem:[%s1508 + $0x168] sm:$0xff]
        %v3941 = vld [vmem:[%s1508 + $0x170] sm:$0xff]
        %v3942 = vld [vmem:[%s1508 + $0x178] sm:$0xff]
        %v3943 = vld [vmem:[%s1508 + $0x180] sm:$0xff]
        %v3944 = vld [vmem:[%s1508 + $0x188] sm:$0xff]
        %v3945 = vld [vmem:[%s1508 + $0x190] sm:$0xff]
        %v3946 = vld [vmem:[%s1508 + $0x198] sm:$0xff]
        %v3947 = vld [vmem:[%s1508 + $0x1a0] sm:$0xff]
        %v3948 = vld [vmem:[%s1508 + $0x1a8] sm:$0xff]
        %v3949 = vld [vmem:[%s1508 + $0x1b0] sm:$0xff]
        %v3950 = vld [vmem:[%s1508 + $0x1b8] sm:$0xff]
        %v3951 = vld [vmem:[%s1508 + $0x1c0] sm:$0xff]
        %v3952 = vld [vmem:[%s1508 + $0x1c8] sm:$0xff]
        %v3953 = vld [vmem:[%s1508 + $0x1d0] sm:$0xff]
        %v3954 = vld [vmem:[%s1508 + $0x1d8] sm:$0xff]
        %v3955 = vld [vmem:[%s1508 + $0x1e0] sm:$0xff]
        %v3956 = vld [vmem:[%s1508 + $0x1e8] sm:$0xff]
        %v3957 = vld [vmem:[%s1508 + $0x1f0] sm:$0xff]
        %v3958 = vld [vmem:[%s1508 + $0x1f8] sm:$0xff]
        %v3959 = vpack.c.bf16 %v3896, %v3895
        %v3960 = vpack.c.bf16 %v3898, %v3897
        %v3961 = vpack.c.bf16 %v3900, %v3899
        %v3962 = vpack.c.bf16 %v3902, %v3901
        %v3963 = vpack.c.bf16 %v3904, %v3903
        %v3964 = vpack.c.bf16 %v3906, %v3905
        %v3965 = vpack.c.bf16 %v3908, %v3907
        %v3966 = vpack.c.bf16 %v3910, %v3909
        %v3967 = vpack.c.bf16 %v3912, %v3911
        %v3968 = vpack.c.bf16 %v3914, %v3913
        %v3969 = vpack.c.bf16 %v3916, %v3915
        %v3970 = vpack.c.bf16 %v3918, %v3917
        %v3971 = vpack.c.bf16 %v3920, %v3919
        %v3972 = vpack.c.bf16 %v3922, %v3921
        %v3973 = vpack.c.bf16 %v3924, %v3923
        %v3974 = vpack.c.bf16 %v3926, %v3925
        %v3975 = vpack.c.bf16 %v3928, %v3927
        %v3976 = vpack.c.bf16 %v3930, %v3929
        %v3977 = vpack.c.bf16 %v3932, %v3931
        %v3978 = vpack.c.bf16 %v3934, %v3933
        %v3979 = vpack.c.bf16 %v3936, %v3935
        %v3980 = vpack.c.bf16 %v3938, %v3937
        %v3981 = vpack.c.bf16 %v3940, %v3939
        %v3982 = vpack.c.bf16 %v3942, %v3941
        %v3983 = vpack.c.bf16 %v3944, %v3943
        %v3984 = vpack.c.bf16 %v3946, %v3945
        %v3985 = vpack.c.bf16 %v3948, %v3947
        %v3986 = vpack.c.bf16 %v3950, %v3949
        %v3987 = vpack.c.bf16 %v3952, %v3951
        %v3988 = vpack.c.bf16 %v3954, %v3953
        %v3989 = vpack.c.bf16 %v3956, %v3955
        %v3990 = vpack.c.bf16 %v3958, %v3957
        %3991 = vmatprep.subr.bf16.mxu0 0
        %3992 = vmatpush1.bf16.msra.mxu0 %v1605
        %3993 = vmatprep.subr.bf16.mxu0 0
        %3994 = vmatpush1.bf16.msra.mxu0 %v1604
        %3995 = vmatprep.subr.bf16.mxu0 0
        %3996 = vmatpush1.bf16.msra.mxu0 %v1603
        %3997 = vmatprep.subr.bf16.mxu0 0
        %3998 = vmatpush1.bf16.msra.mxu0 %v1602
        %3999 = vmatprep.subr.bf16.mxu0 0
        %4000 = vmatpush1.bf16.msra.mxu0 %v1601
        %4001 = vmatprep.subr.bf16.mxu0 0
        %4002 = vmatpush1.bf16.msra.mxu0 %v1600
        %4003 = vmatprep.subr.bf16.mxu0 0
        %4004 = vmatpush1.bf16.msra.mxu0 %v1599
        %4005 = vmatprep.subr.bf16.mxu0 0
        %4006 = vmatpush1.bf16.msra.mxu0 %v1598
        %4007 = vmatprep.subr.bf16.mxu0 0
        %4008 = vmatpush2.bf16.msra.mxu0 0
        %4009 = vmatprep.subr.bf16.mxu0 0
        %4010 = vmatpush2.bf16.msra.mxu0 0
        %4011 = vmatprep.subr.bf16.mxu0 0
        %4012 = vmatpush2.bf16.msra.mxu0 0
        %4013 = vmatprep.subr.bf16.mxu0 0
        %4014 = vmatpush2.bf16.msra.mxu0 0
        %4015 = vmatprep.subr.bf16.mxu0 0
        %4016 = vmatpush2.bf16.msra.mxu0 0
        %4017 = vmatprep.subr.bf16.mxu0 0
        %4018 = vmatpush2.bf16.msra.mxu0 0
        %4019 = vmatprep.subr.bf16.mxu0 0
        %4020 = vmatpush2.bf16.msra.mxu0 0
        %4021 = vmatprep.subr.bf16.mxu0 0
        %4022 = vmatpush2.bf16.msra.mxu0 0
        %4023 = vmatprep.mubr.bf16.mxu0 0
        %4024 = vmatmul.mubr.bf16.gmra.mxu0 %v3959
        %v4025 = vpop.f32.mrf.mxu0
        %v4026 = vpop.f32.mrf.mxu0
        %v4027 = vpop.f32.mrf.mxu0
        %v4028 = vpop.f32.mrf.mxu0
        %4029 = vmatprep.mubr.bf16.mxu0 0
        %4030 = vmatmul.mubr.bf16.gmra.mxu0 %v3960
        %v4031 = vpop.f32.mrf.mxu0
        %v4032 = vpop.f32.mrf.mxu0
        %v4033 = vpop.f32.mrf.mxu0
        %v4034 = vpop.f32.mrf.mxu0
        %4035 = vmatprep.mubr.bf16.mxu0 0
        %4036 = vmatmul.mubr.bf16.gmra.mxu0 %v3961
        %v4037 = vpop.f32.mrf.mxu0
        %v4038 = vpop.f32.mrf.mxu0
        %v4039 = vpop.f32.mrf.mxu0
        %v4040 = vpop.f32.mrf.mxu0
        %4041 = vmatprep.mubr.bf16.mxu0 0
        %4042 = vmatmul.mubr.bf16.gmra.mxu0 %v3962
        %v4043 = vpop.f32.mrf.mxu0
        %v4044 = vpop.f32.mrf.mxu0
        %v4045 = vpop.f32.mrf.mxu0
        %v4046 = vpop.f32.mrf.mxu0
        %4047 = vmatprep.mubr.bf16.mxu0 0
        %4048 = vmatmul.mubr.bf16.gmra.mxu0 %v3963
        %v4049 = vpop.f32.mrf.mxu0
        %v4050 = vpop.f32.mrf.mxu0
        %v4051 = vpop.f32.mrf.mxu0
        %v4052 = vpop.f32.mrf.mxu0
        %4053 = vmatprep.mubr.bf16.mxu0 0
        %4054 = vmatmul.mubr.bf16.gmra.mxu0 %v3964
        %v4055 = vpop.f32.mrf.mxu0
        %v4056 = vpop.f32.mrf.mxu0
        %v4057 = vpop.f32.mrf.mxu0
        %v4058 = vpop.f32.mrf.mxu0
        %4059 = vmatprep.mubr.bf16.mxu0 0
        %4060 = vmatmul.mubr.bf16.gmra.mxu0 %v3965
        %v4061 = vpop.f32.mrf.mxu0
        %v4062 = vpop.f32.mrf.mxu0
        %v4063 = vpop.f32.mrf.mxu0
        %v4064 = vpop.f32.mrf.mxu0
        %4065 = vmatprep.mubr.bf16.mxu0 0
        %4066 = vmatmul.mubr.bf16.gmra.mxu0 %v3966
        %v4067 = vpop.f32.mrf.mxu0
        %v4068 = vpop.f32.mrf.mxu0
        %v4069 = vpop.f32.mrf.mxu0
        %v4070 = vpop.f32.mrf.mxu0
        %4071 = vmatprep.mubr.bf16.mxu0 0
        %4072 = vmatmul.mubr.bf16.gmra.mxu0 %v3967
        %v4073 = vpop.f32.mrf.mxu0
        %v4074 = vadd.f32 0.0, %v4073
        %v4075 = vpop.f32.mrf.mxu0
        %v4076 = vpop.f32.mrf.mxu0
        %v4077 = vadd.f32 0.0, %v4076
        %v4078 = vpop.f32.mrf.mxu0
        %4079 = vmatprep.mubr.bf16.mxu0 0
        %4080 = vmatmul.mubr.bf16.gmra.mxu0 %v3968
        %v4081 = vpop.f32.mrf.mxu0
        %v4082 = vadd.f32 0.0, %v4081
        %v4083 = vpop.f32.mrf.mxu0
        %v4084 = vpop.f32.mrf.mxu0
        %v4085 = vadd.f32 0.0, %v4084
        %v4086 = vpop.f32.mrf.mxu0
        %4087 = vmatprep.mubr.bf16.mxu0 0
        %4088 = vmatmul.mubr.bf16.gmra.mxu0 %v3969
        %v4089 = vpop.f32.mrf.mxu0
        %v4090 = vadd.f32 0.0, %v4089
        %v4091 = vpop.f32.mrf.mxu0
        %v4092 = vpop.f32.mrf.mxu0
        %v4093 = vadd.f32 0.0, %v4092
        %v4094 = vpop.f32.mrf.mxu0
        %4095 = vmatprep.mubr.bf16.mxu0 0
        %4096 = vmatmul.mubr.bf16.gmra.mxu0 %v3970
        %v4097 = vpop.f32.mrf.mxu0
        %v4098 = vadd.f32 0.0, %v4097
        %v4099 = vpop.f32.mrf.mxu0
        %v4100 = vpop.f32.mrf.mxu0
        %v4101 = vadd.f32 0.0, %v4100
        %v4102 = vpop.f32.mrf.mxu0
        %4103 = vmatprep.mubr.bf16.mxu0 0
        %4104 = vmatmul.mubr.bf16.gmra.mxu0 %v3971
        %v4105 = vpop.f32.mrf.mxu0
        %v4106 = vadd.f32 0.0, %v4105
        %v4107 = vpop.f32.mrf.mxu0
        %v4108 = vpop.f32.mrf.mxu0
        %v4109 = vadd.f32 0.0, %v4108
        %v4110 = vpop.f32.mrf.mxu0
        %4111 = vmatprep.mubr.bf16.mxu0 0
        %4112 = vmatmul.mubr.bf16.gmra.mxu0 %v3972
        %v4113 = vpop.f32.mrf.mxu0
        %v4114 = vadd.f32 0.0, %v4113
        %v4115 = vpop.f32.mrf.mxu0
        %v4116 = vpop.f32.mrf.mxu0
        %v4117 = vadd.f32 0.0, %v4116
        %v4118 = vpop.f32.mrf.mxu0
        %4119 = vmatprep.mubr.bf16.mxu0 0
        %4120 = vmatmul.mubr.bf16.gmra.mxu0 %v3973
        %v4121 = vpop.f32.mrf.mxu0
        %v4122 = vadd.f32 0.0, %v4121
        %v4123 = vpop.f32.mrf.mxu0
        %v4124 = vpop.f32.mrf.mxu0
        %v4125 = vadd.f32 0.0, %v4124
        %v4126 = vpop.f32.mrf.mxu0
        %4127 = vmatprep.mubr.bf16.mxu0 0
        %4128 = vmatmul.mubr.bf16.gmra.mxu0 %v3974
        %v4129 = vpop.f32.mrf.mxu0
        %v4130 = vadd.f32 0.0, %v4129
        %v4131 = vpop.f32.mrf.mxu0
        %v4132 = vpop.f32.mrf.mxu0
        %v4133 = vadd.f32 0.0, %v4132
        %v4134 = vpop.f32.mrf.mxu0
        %4135 = vmatprep.mubr.bf16.mxu0 0
        %4136 = vmatmul.mubr.bf16.gmra.mxu0 %v3975
        %v4137 = vpop.f32.mrf.mxu0
        %v4138 = vadd.f32 0.0, %v4137
        %v4139 = vpop.f32.mrf.mxu0
        %v4140 = vpop.f32.mrf.mxu0
        %v4141 = vadd.f32 0.0, %v4140
        %v4142 = vpop.f32.mrf.mxu0
        %4143 = vmatprep.mubr.bf16.mxu0 0
        %4144 = vmatmul.mubr.bf16.gmra.mxu0 %v3976
        %v4145 = vpop.f32.mrf.mxu0
        %v4146 = vadd.f32 0.0, %v4145
        %v4147 = vpop.f32.mrf.mxu0
        %v4148 = vpop.f32.mrf.mxu0
        %v4149 = vadd.f32 0.0, %v4148
        %v4150 = vpop.f32.mrf.mxu0
        %4151 = vmatprep.mubr.bf16.mxu0 0
        %4152 = vmatmul.mubr.bf16.gmra.mxu0 %v3977
        %v4153 = vpop.f32.mrf.mxu0
        %v4154 = vadd.f32 0.0, %v4153
        %v4155 = vpop.f32.mrf.mxu0
        %v4156 = vpop.f32.mrf.mxu0
        %v4157 = vadd.f32 0.0, %v4156
        %v4158 = vpop.f32.mrf.mxu0
        %4159 = vmatprep.mubr.bf16.mxu0 0
        %4160 = vmatmul.mubr.bf16.gmra.mxu0 %v3978
        %v4161 = vpop.f32.mrf.mxu0
        %v4162 = vadd.f32 0.0, %v4161
        %v4163 = vpop.f32.mrf.mxu0
        %v4164 = vpop.f32.mrf.mxu0
        %v4165 = vadd.f32 0.0, %v4164
        %v4166 = vpop.f32.mrf.mxu0
        %4167 = vmatprep.mubr.bf16.mxu0 0
        %4168 = vmatmul.mubr.bf16.gmra.mxu0 %v3979
        %v4169 = vpop.f32.mrf.mxu0
        %v4170 = vadd.f32 0.0, %v4169
        %v4171 = vpop.f32.mrf.mxu0
        %v4172 = vpop.f32.mrf.mxu0
        %v4173 = vadd.f32 0.0, %v4172
        %v4174 = vpop.f32.mrf.mxu0
        %4175 = vmatprep.mubr.bf16.mxu0 0
        %4176 = vmatmul.mubr.bf16.gmra.mxu0 %v3980
        %v4177 = vpop.f32.mrf.mxu0
        %v4178 = vadd.f32 0.0, %v4177
        %v4179 = vpop.f32.mrf.mxu0
        %v4180 = vpop.f32.mrf.mxu0
        %v4181 = vadd.f32 0.0, %v4180
        %v4182 = vpop.f32.mrf.mxu0
        %4183 = vmatprep.mubr.bf16.mxu0 0
        %4184 = vmatmul.mubr.bf16.gmra.mxu0 %v3981
        %v4185 = vpop.f32.mrf.mxu0
        %v4186 = vadd.f32 0.0, %v4185
        %v4187 = vpop.f32.mrf.mxu0
        %v4188 = vpop.f32.mrf.mxu0
        %v4189 = vadd.f32 0.0, %v4188
        %v4190 = vpop.f32.mrf.mxu0
        %4191 = vmatprep.mubr.bf16.mxu0 0
        %4192 = vmatmul.mubr.bf16.gmra.mxu0 %v3982
        %v4193 = vpop.f32.mrf.mxu0
        %v4194 = vadd.f32 0.0, %v4193
        %v4195 = vpop.f32.mrf.mxu0
        %v4196 = vpop.f32.mrf.mxu0
        %v4197 = vadd.f32 0.0, %v4196
        %v4198 = vpop.f32.mrf.mxu0
        %4199 = vmatprep.mubr.bf16.mxu0 0
        %4200 = vmatmul.mubr.bf16.gmra.mxu0 %v3983
        %v4201 = vpop.f32.mrf.mxu0
        %v4202 = vadd.f32 0.0, %v4201
        %v4203 = vpop.f32.mrf.mxu0
        %v4204 = vpop.f32.mrf.mxu0
        %v4205 = vadd.f32 0.0, %v4204
        %v4206 = vpop.f32.mrf.mxu0
        %4207 = vmatprep.mubr.bf16.mxu0 0
        %4208 = vmatmul.mubr.bf16.gmra.mxu0 %v3984
        %v4209 = vpop.f32.mrf.mxu0
        %v4210 = vadd.f32 0.0, %v4209
        %v4211 = vpop.f32.mrf.mxu0
        %v4212 = vpop.f32.mrf.mxu0
        %v4213 = vadd.f32 0.0, %v4212
        %v4214 = vpop.f32.mrf.mxu0
        %4215 = vmatprep.mubr.bf16.mxu0 0
        %4216 = vmatmul.mubr.bf16.gmra.mxu0 %v3985
        %v4217 = vpop.f32.mrf.mxu0
        %v4218 = vadd.f32 0.0, %v4217
        %v4219 = vpop.f32.mrf.mxu0
        %v4220 = vpop.f32.mrf.mxu0
        %v4221 = vadd.f32 0.0, %v4220
        %v4222 = vpop.f32.mrf.mxu0
        %4223 = vmatprep.mubr.bf16.mxu0 0
        %4224 = vmatmul.mubr.bf16.gmra.mxu0 %v3986
        %v4225 = vpop.f32.mrf.mxu0
        %v4226 = vadd.f32 0.0, %v4225
        %v4227 = vpop.f32.mrf.mxu0
        %v4228 = vpop.f32.mrf.mxu0
        %v4229 = vadd.f32 0.0, %v4228
        %v4230 = vpop.f32.mrf.mxu0
        %4231 = vmatprep.mubr.bf16.mxu0 0
        %4232 = vmatmul.mubr.bf16.gmra.mxu0 %v3987
        %v4233 = vpop.f32.mrf.mxu0
        %v4234 = vadd.f32 0.0, %v4233
        %v4235 = vpop.f32.mrf.mxu0
        %v4236 = vpop.f32.mrf.mxu0
        %v4237 = vadd.f32 0.0, %v4236
        %v4238 = vpop.f32.mrf.mxu0
        %4239 = vmatprep.mubr.bf16.mxu0 0
        %4240 = vmatmul.mubr.bf16.gmra.mxu0 %v3988
        %v4241 = vpop.f32.mrf.mxu0
        %v4242 = vadd.f32 0.0, %v4241
        %v4243 = vpop.f32.mrf.mxu0
        %v4244 = vpop.f32.mrf.mxu0
        %v4245 = vadd.f32 0.0, %v4244
        %v4246 = vpop.f32.mrf.mxu0
        %4247 = vmatprep.mubr.bf16.mxu0 0
        %4248 = vmatmul.mubr.bf16.gmra.mxu0 %v3989
        %v4249 = vpop.f32.mrf.mxu0
        %v4250 = vadd.f32 0.0, %v4249
        %v4251 = vpop.f32.mrf.mxu0
        %v4252 = vpop.f32.mrf.mxu0
        %v4253 = vadd.f32 0.0, %v4252
        %v4254 = vpop.f32.mrf.mxu0
        %4255 = vmatprep.mubr.bf16.mxu0 0
        %4256 = vmatmul.mubr.bf16.gmra.mxu0 %v3990
        %v4257 = vpop.f32.mrf.mxu0
        %v4258 = vadd.f32 0.0, %v4257
        %v4259 = vpop.f32.mrf.mxu0
        %v4260 = vpop.f32.mrf.mxu0
        %v4261 = vadd.f32 0.0, %v4260
        %v4262 = vpop.f32.mrf.mxu0
        %4263 = vdwg.mxu0
        %v4264 = vld [vmem:[%s1522] sm:$0xff]
        %v4265 = vld [vmem:[%s1522 + $0x8] sm:$0xff]
        %v4266 = vld [vmem:[%s1522 + $0x10] sm:$0xff]
        %v4267 = vld [vmem:[%s1522 + $0x18] sm:$0xff]
        %v4268 = vld [vmem:[%s1522 + $0x20] sm:$0xff]
        %v4269 = vld [vmem:[%s1522 + $0x28] sm:$0xff]
        %v4270 = vld [vmem:[%s1522 + $0x30] sm:$0xff]
        %v4271 = vld [vmem:[%s1522 + $0x38] sm:$0xff]
        %v4272 = vld [vmem:[%s1522 + $0x40] sm:$0xff]
        %v4273 = vld [vmem:[%s1522 + $0x48] sm:$0xff]
        %v4274 = vld [vmem:[%s1522 + $0x50] sm:$0xff]
        %v4275 = vld [vmem:[%s1522 + $0x58] sm:$0xff]
        %v4276 = vld [vmem:[%s1522 + $0x60] sm:$0xff]
        %v4277 = vld [vmem:[%s1522 + $0x68] sm:$0xff]
        %v4278 = vld [vmem:[%s1522 + $0x70] sm:$0xff]
        %v4279 = vld [vmem:[%s1522 + $0x78] sm:$0xff]
        %v4280 = vld [vmem:[%s1522 + $0x80] sm:$0xff]
        %v4281 = vld [vmem:[%s1522 + $0x88] sm:$0xff]
        %v4282 = vld [vmem:[%s1522 + $0x90] sm:$0xff]
        %v4283 = vld [vmem:[%s1522 + $0x98] sm:$0xff]
        %v4284 = vld [vmem:[%s1522 + $0xa0] sm:$0xff]
        %v4285 = vld [vmem:[%s1522 + $0xa8] sm:$0xff]
        %v4286 = vld [vmem:[%s1522 + $0xb0] sm:$0xff]
        %v4287 = vld [vmem:[%s1522 + $0xb8] sm:$0xff]
        %v4288 = vld [vmem:[%s1522 + $0xc0] sm:$0xff]
        %v4289 = vld [vmem:[%s1522 + $0xc8] sm:$0xff]
        %v4290 = vld [vmem:[%s1522 + $0xd0] sm:$0xff]
        %v4291 = vld [vmem:[%s1522 + $0xd8] sm:$0xff]
        %v4292 = vld [vmem:[%s1522 + $0xe0] sm:$0xff]
        %v4293 = vld [vmem:[%s1522 + $0xe8] sm:$0xff]
        %v4294 = vld [vmem:[%s1522 + $0xf0] sm:$0xff]
        %v4295 = vld [vmem:[%s1522 + $0xf8] sm:$0xff]
        %v4296 = vld [vmem:[%s1522 + $0x100] sm:$0xff]
        %v4297 = vld [vmem:[%s1522 + $0x108] sm:$0xff]
        %v4298 = vld [vmem:[%s1522 + $0x110] sm:$0xff]
        %v4299 = vld [vmem:[%s1522 + $0x118] sm:$0xff]
        %v4300 = vld [vmem:[%s1522 + $0x120] sm:$0xff]
        %v4301 = vld [vmem:[%s1522 + $0x128] sm:$0xff]
        %v4302 = vld [vmem:[%s1522 + $0x130] sm:$0xff]
        %v4303 = vld [vmem:[%s1522 + $0x138] sm:$0xff]
        %v4304 = vld [vmem:[%s1522 + $0x140] sm:$0xff]
        %v4305 = vld [vmem:[%s1522 + $0x148] sm:$0xff]
        %v4306 = vld [vmem:[%s1522 + $0x150] sm:$0xff]
        %v4307 = vld [vmem:[%s1522 + $0x158] sm:$0xff]
        %v4308 = vld [vmem:[%s1522 + $0x160] sm:$0xff]
        %v4309 = vld [vmem:[%s1522 + $0x168] sm:$0xff]
        %v4310 = vld [vmem:[%s1522 + $0x170] sm:$0xff]
        %v4311 = vld [vmem:[%s1522 + $0x178] sm:$0xff]
        %v4312 = vld [vmem:[%s1522 + $0x180] sm:$0xff]
        %v4313 = vld [vmem:[%s1522 + $0x188] sm:$0xff]
        %v4314 = vld [vmem:[%s1522 + $0x190] sm:$0xff]
        %v4315 = vld [vmem:[%s1522 + $0x198] sm:$0xff]
        %v4316 = vld [vmem:[%s1522 + $0x1a0] sm:$0xff]
        %v4317 = vld [vmem:[%s1522 + $0x1a8] sm:$0xff]
        %v4318 = vld [vmem:[%s1522 + $0x1b0] sm:$0xff]
        %v4319 = vld [vmem:[%s1522 + $0x1b8] sm:$0xff]
        %v4320 = vld [vmem:[%s1522 + $0x1c0] sm:$0xff]
        %v4321 = vld [vmem:[%s1522 + $0x1c8] sm:$0xff]
        %v4322 = vld [vmem:[%s1522 + $0x1d0] sm:$0xff]
        %v4323 = vld [vmem:[%s1522 + $0x1d8] sm:$0xff]
        %v4324 = vld [vmem:[%s1522 + $0x1e0] sm:$0xff]
        %v4325 = vld [vmem:[%s1522 + $0x1e8] sm:$0xff]
        %v4326 = vld [vmem:[%s1522 + $0x1f0] sm:$0xff]
        %v4327 = vld [vmem:[%s1522 + $0x1f8] sm:$0xff]
        %4329 = vset.pattern.permute.xlu0 1
        %4330 = vperm.xlu0 %4329, %v4264
        %v4331 = vpop.permute.xlu0 %4330
        %4334 = vset.pattern.permute.xlu0 1
        %4335 = vperm.xlu0 %4334, %v4265
        %v4336 = vpop.permute.xlu0 %4335
        %4339 = vset.pattern.permute.xlu0 1
        %4340 = vperm.xlu0 %4339, %v4266
        %v4341 = vpop.permute.xlu0 %4340
        %4344 = vset.pattern.permute.xlu0 1
        %4345 = vperm.xlu0 %4344, %v4267
        %v4346 = vpop.permute.xlu0 %4345
        %4349 = vset.pattern.permute.xlu0 1
        %4350 = vperm.xlu0 %4349, %v4268
        %v4351 = vpop.permute.xlu0 %4350
        %4354 = vset.pattern.permute.xlu0 1
        %4355 = vperm.xlu0 %4354, %v4269
        %v4356 = vpop.permute.xlu0 %4355
        %4359 = vset.pattern.permute.xlu0 1
        %4360 = vperm.xlu0 %4359, %v4270
        %v4361 = vpop.permute.xlu0 %4360
        %4364 = vset.pattern.permute.xlu0 1
        %4365 = vperm.xlu0 %4364, %v4271
        %v4366 = vpop.permute.xlu0 %4365
        %4369 = vset.pattern.permute.xlu0 1
        %4370 = vperm.xlu0 %4369, %v4272
        %v4371 = vpop.permute.xlu0 %4370
        %4374 = vset.pattern.permute.xlu0 1
        %4375 = vperm.xlu0 %4374, %v4273
        %v4376 = vpop.permute.xlu0 %4375
        %4379 = vset.pattern.permute.xlu0 1
        %4380 = vperm.xlu0 %4379, %v4274
        %v4381 = vpop.permute.xlu0 %4380
        %4384 = vset.pattern.permute.xlu0 1
        %4385 = vperm.xlu0 %4384, %v4275
        %v4386 = vpop.permute.xlu0 %4385
        %4389 = vset.pattern.permute.xlu0 1
        %4390 = vperm.xlu0 %4389, %v4276
        %v4391 = vpop.permute.xlu0 %4390
        %4394 = vset.pattern.permute.xlu0 1
        %4395 = vperm.xlu0 %4394, %v4277
        %v4396 = vpop.permute.xlu0 %4395
        %4399 = vset.pattern.permute.xlu0 1
        %4400 = vperm.xlu0 %4399, %v4278
        %v4401 = vpop.permute.xlu0 %4400
        %4404 = vset.pattern.permute.xlu0 1
        %4405 = vperm.xlu0 %4404, %v4279
        %v4406 = vpop.permute.xlu0 %4405
        %v4408 = vmul.f32 %v4331, %v4074
        %v4409 = vmul.f32 %v4336, %v4077
        %v4410 = vmul.f32 %v4341, %v4082
        %v4411 = vmul.f32 %v4346, %v4085
        %v4412 = vmul.f32 %v4351, %v4090
        %v4413 = vmul.f32 %v4356, %v4093
        %v4414 = vmul.f32 %v4361, %v4098
        %v4415 = vmul.f32 %v4366, %v4101
        %v4416 = vmul.f32 %v4371, %v4106
        %v4417 = vmul.f32 %v4376, %v4109
        %v4418 = vmul.f32 %v4381, %v4114
        %v4419 = vmul.f32 %v4386, %v4117
        %v4420 = vmul.f32 %v4391, %v4122
        %v4421 = vmul.f32 %v4396, %v4125
        %v4422 = vmul.f32 %v4401, %v4130
        %v4423 = vmul.f32 %v4406, %v4133
        %v4424 = vadd.f32 %v4408, 0.0
        %v4425 = vadd.f32 %v4409, 0.0
        %v4426 = vadd.f32 %v4410, 0.0
        %v4427 = vadd.f32 %v4411, 0.0
        %v4428 = vadd.f32 %v4412, 0.0
        %v4429 = vadd.f32 %v4413, 0.0
        %v4430 = vadd.f32 %v4414, 0.0
        %v4431 = vadd.f32 %v4415, 0.0
        %v4432 = vadd.f32 %v4416, 0.0
        %v4433 = vadd.f32 %v4417, 0.0
        %v4434 = vadd.f32 %v4418, 0.0
        %v4435 = vadd.f32 %v4419, 0.0
        %v4436 = vadd.f32 %v4420, 0.0
        %v4437 = vadd.f32 %v4421, 0.0
        %v4438 = vadd.f32 %v4422, 0.0
        %v4439 = vadd.f32 %v4423, 0.0
        %4440 = vset.pattern.permute.xlu0 2
        %4441 = vperm.xlu0 %4440, %v4264
        %v4442 = vpop.permute.xlu0 %4441
        %4444 = vset.pattern.permute.xlu0 2
        %4445 = vperm.xlu0 %4444, %v4265
        %v4446 = vpop.permute.xlu0 %4445
        %4448 = vset.pattern.permute.xlu0 2
        %4449 = vperm.xlu0 %4448, %v4266
        %v4450 = vpop.permute.xlu0 %4449
        %4452 = vset.pattern.permute.xlu0 2
        %4453 = vperm.xlu0 %4452, %v4267
        %v4454 = vpop.permute.xlu0 %4453
        %4456 = vset.pattern.permute.xlu0 2
        %4457 = vperm.xlu0 %4456, %v4268
        %v4458 = vpop.permute.xlu0 %4457
        %4460 = vset.pattern.permute.xlu0 2
        %4461 = vperm.xlu0 %4460, %v4269
        %v4462 = vpop.permute.xlu0 %4461
        %4464 = vset.pattern.permute.xlu0 2
        %4465 = vperm.xlu0 %4464, %v4270
        %v4466 = vpop.permute.xlu0 %4465
        %4468 = vset.pattern.permute.xlu0 2
        %4469 = vperm.xlu0 %4468, %v4271
        %v4470 = vpop.permute.xlu0 %4469
        %4472 = vset.pattern.permute.xlu0 2
        %4473 = vperm.xlu0 %4472, %v4272
        %v4474 = vpop.permute.xlu0 %4473
        %4476 = vset.pattern.permute.xlu0 2
        %4477 = vperm.xlu0 %4476, %v4273
        %v4478 = vpop.permute.xlu0 %4477
        %4480 = vset.pattern.permute.xlu0 2
        %4481 = vperm.xlu0 %4480, %v4274
        %v4482 = vpop.permute.xlu0 %4481
        %4484 = vset.pattern.permute.xlu0 2
        %4485 = vperm.xlu0 %4484, %v4275
        %v4486 = vpop.permute.xlu0 %4485
        %4488 = vset.pattern.permute.xlu0 2
        %4489 = vperm.xlu0 %4488, %v4276
        %v4490 = vpop.permute.xlu0 %4489
        %4492 = vset.pattern.permute.xlu0 2
        %4493 = vperm.xlu0 %4492, %v4277
        %v4494 = vpop.permute.xlu0 %4493
        %4496 = vset.pattern.permute.xlu0 2
        %4497 = vperm.xlu0 %4496, %v4278
        %v4498 = vpop.permute.xlu0 %4497
        %4500 = vset.pattern.permute.xlu0 2
        %4501 = vperm.xlu0 %4500, %v4279
        %v4502 = vpop.permute.xlu0 %4501
        %v4504 = vmul.f32 %v4442, %v4138
        %v4505 = vmul.f32 %v4446, %v4141
        %v4506 = vmul.f32 %v4450, %v4146
        %v4507 = vmul.f32 %v4454, %v4149
        %v4508 = vmul.f32 %v4458, %v4154
        %v4509 = vmul.f32 %v4462, %v4157
        %v4510 = vmul.f32 %v4466, %v4162
        %v4511 = vmul.f32 %v4470, %v4165
        %v4512 = vmul.f32 %v4474, %v4170
        %v4513 = vmul.f32 %v4478, %v4173
        %v4514 = vmul.f32 %v4482, %v4178
        %v4515 = vmul.f32 %v4486, %v4181
        %v4516 = vmul.f32 %v4490, %v4186
        %v4517 = vmul.f32 %v4494, %v4189
        %v4518 = vmul.f32 %v4498, %v4194
        %v4519 = vmul.f32 %v4502, %v4197
        %v4520 = vadd.f32 %v4424, %v4504
        %v4521 = vadd.f32 %v4425, %v4505
        %v4522 = vadd.f32 %v4426, %v4506
        %v4523 = vadd.f32 %v4427, %v4507
        %v4524 = vadd.f32 %v4428, %v4508
        %v4525 = vadd.f32 %v4429, %v4509
        %v4526 = vadd.f32 %v4430, %v4510
        %v4527 = vadd.f32 %v4431, %v4511
        %v4528 = vadd.f32 %v4432, %v4512
        %v4529 = vadd.f32 %v4433, %v4513
        %v4530 = vadd.f32 %v4434, %v4514
        %v4531 = vadd.f32 %v4435, %v4515
        %v4532 = vadd.f32 %v4436, %v4516
        %v4533 = vadd.f32 %v4437, %v4517
        %v4534 = vadd.f32 %v4438, %v4518
        %v4535 = vadd.f32 %v4439, %v4519
        %4536 = vset.pattern.permute.xlu0 3
        %4537 = vperm.xlu0 %4536, %v4264
        %v4538 = vpop.permute.xlu0 %4537
        %4540 = vset.pattern.permute.xlu0 3
        %4541 = vperm.xlu0 %4540, %v4265
        %v4542 = vpop.permute.xlu0 %4541
        %4544 = vset.pattern.permute.xlu0 3
        %4545 = vperm.xlu0 %4544, %v4266
        %v4546 = vpop.permute.xlu0 %4545
        %4548 = vset.pattern.permute.xlu0 3
        %4549 = vperm.xlu0 %4548, %v4267
        %v4550 = vpop.permute.xlu0 %4549
        %4552 = vset.pattern.permute.xlu0 3
        %4553 = vperm.xlu0 %4552, %v4268
        %v4554 = vpop.permute.xlu0 %4553
        %4556 = vset.pattern.permute.xlu0 3
        %4557 = vperm.xlu0 %4556, %v4269
        %v4558 = vpop.permute.xlu0 %4557
        %4560 = vset.pattern.permute.xlu0 3
        %4561 = vperm.xlu0 %4560, %v4270
        %v4562 = vpop.permute.xlu0 %4561
        %4564 = vset.pattern.permute.xlu0 3
        %4565 = vperm.xlu0 %4564, %v4271
        %v4566 = vpop.permute.xlu0 %4565
        %4568 = vset.pattern.permute.xlu0 3
        %4569 = vperm.xlu0 %4568, %v4272
        %v4570 = vpop.permute.xlu0 %4569
        %4572 = vset.pattern.permute.xlu0 3
        %4573 = vperm.xlu0 %4572, %v4273
        %v4574 = vpop.permute.xlu0 %4573
        %4576 = vset.pattern.permute.xlu0 3
        %4577 = vperm.xlu0 %4576, %v4274
        %v4578 = vpop.permute.xlu0 %4577
        %4580 = vset.pattern.permute.xlu0 3
        %4581 = vperm.xlu0 %4580, %v4275
        %v4582 = vpop.permute.xlu0 %4581
        %4584 = vset.pattern.permute.xlu0 3
        %4585 = vperm.xlu0 %4584, %v4276
        %v4586 = vpop.permute.xlu0 %4585
        %4588 = vset.pattern.permute.xlu0 3
        %4589 = vperm.xlu0 %4588, %v4277
        %v4590 = vpop.permute.xlu0 %4589
        %4592 = vset.pattern.permute.xlu0 3
        %4593 = vperm.xlu0 %4592, %v4278
        %v4594 = vpop.permute.xlu0 %4593
        %4596 = vset.pattern.permute.xlu0 3
        %4597 = vperm.xlu0 %4596, %v4279
        %v4598 = vpop.permute.xlu0 %4597
        %v4600 = vmul.f32 %v4538, %v4202
        %v4601 = vmul.f32 %v4542, %v4205
        %v4602 = vmul.f32 %v4546, %v4210
        %v4603 = vmul.f32 %v4550, %v4213
        %v4604 = vmul.f32 %v4554, %v4218
        %v4605 = vmul.f32 %v4558, %v4221
        %v4606 = vmul.f32 %v4562, %v4226
        %v4607 = vmul.f32 %v4566, %v4229
        %v4608 = vmul.f32 %v4570, %v4234
        %v4609 = vmul.f32 %v4574, %v4237
        %v4610 = vmul.f32 %v4578, %v4242
        %v4611 = vmul.f32 %v4582, %v4245
        %v4612 = vmul.f32 %v4586, %v4250
        %v4613 = vmul.f32 %v4590, %v4253
        %v4614 = vmul.f32 %v4594, %v4258
        %v4615 = vmul.f32 %v4598, %v4261
        %v4616 = vadd.f32 %v4520, %v4600
        %v4617 = vadd.f32 %v4521, %v4601
        %v4618 = vadd.f32 %v4522, %v4602
        %v4619 = vadd.f32 %v4523, %v4603
        %v4620 = vadd.f32 %v4524, %v4604
        %v4621 = vadd.f32 %v4525, %v4605
        %v4622 = vadd.f32 %v4526, %v4606
        %v4623 = vadd.f32 %v4527, %v4607
        %v4624 = vadd.f32 %v4528, %v4608
        %v4625 = vadd.f32 %v4529, %v4609
        %v4626 = vadd.f32 %v4530, %v4610
        %v4627 = vadd.f32 %v4531, %v4611
        %v4628 = vadd.f32 %v4532, %v4612
        %v4629 = vadd.f32 %v4533, %v4613
        %v4630 = vadd.f32 %v4534, %v4614
        %v4631 = vadd.f32 %v4535, %v4615
        %v4632 = vadd.f32 %v4616, %v1635
        %v4633 = vadd.f32 %v4617, %v1635
        %v4634 = vadd.f32 %v4618, %v1635
        %v4635 = vadd.f32 %v4619, %v1635
        %v4636 = vadd.f32 %v4620, %v1635
        %v4637 = vadd.f32 %v4621, %v1635
        %v4638 = vadd.f32 %v4622, %v1635
        %v4639 = vadd.f32 %v4623, %v1635
        %v4640 = vadd.f32 %v4624, %v1635
        %v4641 = vadd.f32 %v4625, %v1635
        %v4642 = vadd.f32 %v4626, %v1635
        %v4643 = vadd.f32 %v4627, %v1635
        %v4644 = vadd.f32 %v4628, %v1635
        %v4645 = vadd.f32 %v4629, %v1635
        %v4646 = vadd.f32 %v4630, %v1635
        %v4647 = vadd.f32 %v4631, %v1635
        %vm4648 = vcmp.gt.f32.partialorder %v4632, 0.0
        %vm4649 = vcmp.gt.f32.partialorder %v4633, 0.0
        %vm4650 = vcmp.gt.f32.partialorder %v4634, 0.0
        %vm4651 = vcmp.gt.f32.partialorder %v4635, 0.0
        %vm4652 = vcmp.gt.f32.partialorder %v4636, 0.0
        %vm4653 = vcmp.gt.f32.partialorder %v4637, 0.0
        %vm4654 = vcmp.gt.f32.partialorder %v4638, 0.0
        %vm4655 = vcmp.gt.f32.partialorder %v4639, 0.0
        %vm4656 = vcmp.gt.f32.partialorder %v4640, 0.0
        %vm4657 = vcmp.gt.f32.partialorder %v4641, 0.0
        %vm4658 = vcmp.gt.f32.partialorder %v4642, 0.0
        %vm4659 = vcmp.gt.f32.partialorder %v4643, 0.0
        %vm4660 = vcmp.gt.f32.partialorder %v4644, 0.0
        %vm4661 = vcmp.gt.f32.partialorder %v4645, 0.0
        %vm4662 = vcmp.gt.f32.partialorder %v4646, 0.0
        %vm4663 = vcmp.gt.f32.partialorder %v4647, 0.0
        %v4664 = vmul.f32 %v2054, %v4632
        %v4665 = vmul.f32 %v2054, %v4633
        %v4666 = vmul.f32 %v2054, %v4634
        %v4667 = vmul.f32 %v2054, %v4635
        %v4668 = vmul.f32 %v2054, %v4636
        %v4669 = vmul.f32 %v2054, %v4637
        %v4670 = vmul.f32 %v2054, %v4638
        %v4671 = vmul.f32 %v2054, %v4639
        %v4672 = vmul.f32 %v2054, %v4640
        %v4673 = vmul.f32 %v2054, %v4641
        %v4674 = vmul.f32 %v2054, %v4642
        %v4675 = vmul.f32 %v2054, %v4643
        %v4676 = vmul.f32 %v2054, %v4644
        %v4677 = vmul.f32 %v2054, %v4645
        %v4678 = vmul.f32 %v2054, %v4646
        %v4679 = vmul.f32 %v2054, %v4647
        %v4680 = vsel %vm4648, %v4632, %v4664
        %v4681 = vsel %vm4649, %v4633, %v4665
        %v4682 = vsel %vm4650, %v4634, %v4666
        %v4683 = vsel %vm4651, %v4635, %v4667
        %v4684 = vsel %vm4652, %v4636, %v4668
        %v4685 = vsel %vm4653, %v4637, %v4669
        %v4686 = vsel %vm4654, %v4638, %v4670
        %v4687 = vsel %vm4655, %v4639, %v4671
        %v4688 = vsel %vm4656, %v4640, %v4672
        %v4689 = vsel %vm4657, %v4641, %v4673
        %v4690 = vsel %vm4658, %v4642, %v4674
        %v4691 = vsel %vm4659, %v4643, %v4675
        %v4692 = vsel %vm4660, %v4644, %v4676
        %v4693 = vsel %vm4661, %v4645, %v4677
        %v4694 = vsel %vm4662, %v4646, %v4678
        %v4695 = vsel %vm4663, %v4647, %v4679
        %v4696 = vadd.f32 %v4680, 0.0
        %v4697 = vadd.f32 %v4681, 0.0
        %v4698 = vadd.f32 %v4682, 0.0
        %v4699 = vadd.f32 %v4683, 0.0
        %v4700 = vadd.f32 %v4684, 0.0
        %v4701 = vadd.f32 %v4685, 0.0
        %v4702 = vadd.f32 %v4686, 0.0
        %v4703 = vadd.f32 %v4687, 0.0
        %v4704 = vadd.f32 %v4688, 0.0
        %v4705 = vadd.f32 %v4689, 0.0
        %v4706 = vadd.f32 %v4690, 0.0
        %v4707 = vadd.f32 %v4691, 0.0
        %v4708 = vadd.f32 %v4692, 0.0
        %v4709 = vadd.f32 %v4693, 0.0
        %v4710 = vadd.f32 %v4694, 0.0
        %v4711 = vadd.f32 %v4695, 0.0
        %4713 = vset.pattern.permute.xlu0 1
        %4714 = vperm.xlu0 %4713, %v4280
        %v4715 = vpop.permute.xlu0 %4714
        %4718 = vset.pattern.permute.xlu0 1
        %4719 = vperm.xlu0 %4718, %v4281
        %v4720 = vpop.permute.xlu0 %4719
        %4723 = vset.pattern.permute.xlu0 1
        %4724 = vperm.xlu0 %4723, %v4282
        %v4725 = vpop.permute.xlu0 %4724
        %4728 = vset.pattern.permute.xlu0 1
        %4729 = vperm.xlu0 %4728, %v4283
        %v4730 = vpop.permute.xlu0 %4729
        %4733 = vset.pattern.permute.xlu0 1
        %4734 = vperm.xlu0 %4733, %v4284
        %v4735 = vpop.permute.xlu0 %4734
        %4738 = vset.pattern.permute.xlu0 1
        %4739 = vperm.xlu0 %4738, %v4285
        %v4740 = vpop.permute.xlu0 %4739
        %4743 = vset.pattern.permute.xlu0 1
        %4744 = vperm.xlu0 %4743, %v4286
        %v4745 = vpop.permute.xlu0 %4744
        %4748 = vset.pattern.permute.xlu0 1
        %4749 = vperm.xlu0 %4748, %v4287
        %v4750 = vpop.permute.xlu0 %4749
        %4753 = vset.pattern.permute.xlu0 1
        %4754 = vperm.xlu0 %4753, %v4288
        %v4755 = vpop.permute.xlu0 %4754
        %4758 = vset.pattern.permute.xlu0 1
        %4759 = vperm.xlu0 %4758, %v4289
        %v4760 = vpop.permute.xlu0 %4759
        %4763 = vset.pattern.permute.xlu0 1
        %4764 = vperm.xlu0 %4763, %v4290
        %v4765 = vpop.permute.xlu0 %4764
        %4768 = vset.pattern.permute.xlu0 1
        %4769 = vperm.xlu0 %4768, %v4291
        %v4770 = vpop.permute.xlu0 %4769
        %4773 = vset.pattern.permute.xlu0 1
        %4774 = vperm.xlu0 %4773, %v4292
        %v4775 = vpop.permute.xlu0 %4774
        %4778 = vset.pattern.permute.xlu0 1
        %4779 = vperm.xlu0 %4778, %v4293
        %v4780 = vpop.permute.xlu0 %4779
        %4783 = vset.pattern.permute.xlu0 1
        %4784 = vperm.xlu0 %4783, %v4294
        %v4785 = vpop.permute.xlu0 %4784
        %4788 = vset.pattern.permute.xlu0 1
        %4789 = vperm.xlu0 %4788, %v4295
        %v4790 = vpop.permute.xlu0 %4789
        %v4792 = vmul.f32 %v4715, %v4074
        %v4793 = vmul.f32 %v4720, %v4077
        %v4794 = vmul.f32 %v4725, %v4082
        %v4795 = vmul.f32 %v4730, %v4085
        %v4796 = vmul.f32 %v4735, %v4090
        %v4797 = vmul.f32 %v4740, %v4093
        %v4798 = vmul.f32 %v4745, %v4098
        %v4799 = vmul.f32 %v4750, %v4101
        %v4800 = vmul.f32 %v4755, %v4106
        %v4801 = vmul.f32 %v4760, %v4109
        %v4802 = vmul.f32 %v4765, %v4114
        %v4803 = vmul.f32 %v4770, %v4117
        %v4804 = vmul.f32 %v4775, %v4122
        %v4805 = vmul.f32 %v4780, %v4125
        %v4806 = vmul.f32 %v4785, %v4130
        %v4807 = vmul.f32 %v4790, %v4133
        %v4808 = vadd.f32 %v4792, 0.0
        %v4809 = vadd.f32 %v4793, 0.0
        %v4810 = vadd.f32 %v4794, 0.0
        %v4811 = vadd.f32 %v4795, 0.0
        %v4812 = vadd.f32 %v4796, 0.0
        %v4813 = vadd.f32 %v4797, 0.0
        %v4814 = vadd.f32 %v4798, 0.0
        %v4815 = vadd.f32 %v4799, 0.0
        %v4816 = vadd.f32 %v4800, 0.0
        %v4817 = vadd.f32 %v4801, 0.0
        %v4818 = vadd.f32 %v4802, 0.0
        %v4819 = vadd.f32 %v4803, 0.0
        %v4820 = vadd.f32 %v4804, 0.0
        %v4821 = vadd.f32 %v4805, 0.0
        %v4822 = vadd.f32 %v4806, 0.0
        %v4823 = vadd.f32 %v4807, 0.0
        %4824 = vset.pattern.permute.xlu0 2
        %4825 = vperm.xlu0 %4824, %v4280
        %v4826 = vpop.permute.xlu0 %4825
        %4828 = vset.pattern.permute.xlu0 2
        %4829 = vperm.xlu0 %4828, %v4281
        %v4830 = vpop.permute.xlu0 %4829
        %4832 = vset.pattern.permute.xlu0 2
        %4833 = vperm.xlu0 %4832, %v4282
        %v4834 = vpop.permute.xlu0 %4833
        %4836 = vset.pattern.permute.xlu0 2
        %4837 = vperm.xlu0 %4836, %v4283
        %v4838 = vpop.permute.xlu0 %4837
        %4840 = vset.pattern.permute.xlu0 2
        %4841 = vperm.xlu0 %4840, %v4284
        %v4842 = vpop.permute.xlu0 %4841
        %4844 = vset.pattern.permute.xlu0 2
        %4845 = vperm.xlu0 %4844, %v4285
        %v4846 = vpop.permute.xlu0 %4845
        %4848 = vset.pattern.permute.xlu0 2
        %4849 = vperm.xlu0 %4848, %v4286
        %v4850 = vpop.permute.xlu0 %4849
        %4852 = vset.pattern.permute.xlu0 2
        %4853 = vperm.xlu0 %4852, %v4287
        %v4854 = vpop.permute.xlu0 %4853
        %4856 = vset.pattern.permute.xlu0 2
        %4857 = vperm.xlu0 %4856, %v4288
        %v4858 = vpop.permute.xlu0 %4857
        %4860 = vset.pattern.permute.xlu0 2
        %4861 = vperm.xlu0 %4860, %v4289
        %v4862 = vpop.permute.xlu0 %4861
        %4864 = vset.pattern.permute.xlu0 2
        %4865 = vperm.xlu0 %4864, %v4290
        %v4866 = vpop.permute.xlu0 %4865
        %4868 = vset.pattern.permute.xlu0 2
        %4869 = vperm.xlu0 %4868, %v4291
        %v4870 = vpop.permute.xlu0 %4869
        %4872 = vset.pattern.permute.xlu0 2
        %4873 = vperm.xlu0 %4872, %v4292
        %v4874 = vpop.permute.xlu0 %4873
        %4876 = vset.pattern.permute.xlu0 2
        %4877 = vperm.xlu0 %4876, %v4293
        %v4878 = vpop.permute.xlu0 %4877
        %4880 = vset.pattern.permute.xlu0 2
        %4881 = vperm.xlu0 %4880, %v4294
        %v4882 = vpop.permute.xlu0 %4881
        %4884 = vset.pattern.permute.xlu0 2
        %4885 = vperm.xlu0 %4884, %v4295
        %v4886 = vpop.permute.xlu0 %4885
        %v4888 = vmul.f32 %v4826, %v4138
        %v4889 = vmul.f32 %v4830, %v4141
        %v4890 = vmul.f32 %v4834, %v4146
        %v4891 = vmul.f32 %v4838, %v4149
        %v4892 = vmul.f32 %v4842, %v4154
        %v4893 = vmul.f32 %v4846, %v4157
        %v4894 = vmul.f32 %v4850, %v4162
        %v4895 = vmul.f32 %v4854, %v4165
        %v4896 = vmul.f32 %v4858, %v4170
        %v4897 = vmul.f32 %v4862, %v4173
        %v4898 = vmul.f32 %v4866, %v4178
        %v4899 = vmul.f32 %v4870, %v4181
        %v4900 = vmul.f32 %v4874, %v4186
        %v4901 = vmul.f32 %v4878, %v4189
        %v4902 = vmul.f32 %v4882, %v4194
        %v4903 = vmul.f32 %v4886, %v4197
        %v4904 = vadd.f32 %v4808, %v4888
        %v4905 = vadd.f32 %v4809, %v4889
        %v4906 = vadd.f32 %v4810, %v4890
        %v4907 = vadd.f32 %v4811, %v4891
        %v4908 = vadd.f32 %v4812, %v4892
        %v4909 = vadd.f32 %v4813, %v4893
        %v4910 = vadd.f32 %v4814, %v4894
        %v4911 = vadd.f32 %v4815, %v4895
        %v4912 = vadd.f32 %v4816, %v4896
        %v4913 = vadd.f32 %v4817, %v4897
        %v4914 = vadd.f32 %v4818, %v4898
        %v4915 = vadd.f32 %v4819, %v4899
        %v4916 = vadd.f32 %v4820, %v4900
        %v4917 = vadd.f32 %v4821, %v4901
        %v4918 = vadd.f32 %v4822, %v4902
        %v4919 = vadd.f32 %v4823, %v4903
        %4920 = vset.pattern.permute.xlu0 3
        %4921 = vperm.xlu0 %4920, %v4280
        %v4922 = vpop.permute.xlu0 %4921
        %4924 = vset.pattern.permute.xlu0 3
        %4925 = vperm.xlu0 %4924, %v4281
        %v4926 = vpop.permute.xlu0 %4925
        %4928 = vset.pattern.permute.xlu0 3
        %4929 = vperm.xlu0 %4928, %v4282
        %v4930 = vpop.permute.xlu0 %4929
        %4932 = vset.pattern.permute.xlu0 3
        %4933 = vperm.xlu0 %4932, %v4283
        %v4934 = vpop.permute.xlu0 %4933
        %4936 = vset.pattern.permute.xlu0 3
        %4937 = vperm.xlu0 %4936, %v4284
        %v4938 = vpop.permute.xlu0 %4937
        %4940 = vset.pattern.permute.xlu0 3
        %4941 = vperm.xlu0 %4940, %v4285
        %v4942 = vpop.permute.xlu0 %4941
        %4944 = vset.pattern.permute.xlu0 3
        %4945 = vperm.xlu0 %4944, %v4286
        %v4946 = vpop.permute.xlu0 %4945
        %4948 = vset.pattern.permute.xlu0 3
        %4949 = vperm.xlu0 %4948, %v4287
        %v4950 = vpop.permute.xlu0 %4949
        %4952 = vset.pattern.permute.xlu0 3
        %4953 = vperm.xlu0 %4952, %v4288
        %v4954 = vpop.permute.xlu0 %4953
        %4956 = vset.pattern.permute.xlu0 3
        %4957 = vperm.xlu0 %4956, %v4289
        %v4958 = vpop.permute.xlu0 %4957
        %4960 = vset.pattern.permute.xlu0 3
        %4961 = vperm.xlu0 %4960, %v4290
        %v4962 = vpop.permute.xlu0 %4961
        %4964 = vset.pattern.permute.xlu0 3
        %4965 = vperm.xlu0 %4964, %v4291
        %v4966 = vpop.permute.xlu0 %4965
        %4968 = vset.pattern.permute.xlu0 3
        %4969 = vperm.xlu0 %4968, %v4292
        %v4970 = vpop.permute.xlu0 %4969
        %4972 = vset.pattern.permute.xlu0 3
        %4973 = vperm.xlu0 %4972, %v4293
        %v4974 = vpop.permute.xlu0 %4973
        %4976 = vset.pattern.permute.xlu0 3
        %4977 = vperm.xlu0 %4976, %v4294
        %v4978 = vpop.permute.xlu0 %4977
        %4980 = vset.pattern.permute.xlu0 3
        %4981 = vperm.xlu0 %4980, %v4295
        %v4982 = vpop.permute.xlu0 %4981
        %v4984 = vmul.f32 %v4922, %v4202
        %v4985 = vmul.f32 %v4926, %v4205
        %v4986 = vmul.f32 %v4930, %v4210
        %v4987 = vmul.f32 %v4934, %v4213
        %v4988 = vmul.f32 %v4938, %v4218
        %v4989 = vmul.f32 %v4942, %v4221
        %v4990 = vmul.f32 %v4946, %v4226
        %v4991 = vmul.f32 %v4950, %v4229
        %v4992 = vmul.f32 %v4954, %v4234
        %v4993 = vmul.f32 %v4958, %v4237
        %v4994 = vmul.f32 %v4962, %v4242
        %v4995 = vmul.f32 %v4966, %v4245
        %v4996 = vmul.f32 %v4970, %v4250
        %v4997 = vmul.f32 %v4974, %v4253
        %v4998 = vmul.f32 %v4978, %v4258
        %v4999 = vmul.f32 %v4982, %v4261
        %v5000 = vadd.f32 %v4904, %v4984
        %v5001 = vadd.f32 %v4905, %v4985
        %v5002 = vadd.f32 %v4906, %v4986
        %v5003 = vadd.f32 %v4907, %v4987
        %v5004 = vadd.f32 %v4908, %v4988
        %v5005 = vadd.f32 %v4909, %v4989
        %v5006 = vadd.f32 %v4910, %v4990
        %v5007 = vadd.f32 %v4911, %v4991
        %v5008 = vadd.f32 %v4912, %v4992
        %v5009 = vadd.f32 %v4913, %v4993
        %v5010 = vadd.f32 %v4914, %v4994
        %v5011 = vadd.f32 %v4915, %v4995
        %v5012 = vadd.f32 %v4916, %v4996
        %v5013 = vadd.f32 %v4917, %v4997
        %v5014 = vadd.f32 %v4918, %v4998
        %v5015 = vadd.f32 %v4919, %v4999
        %v5016 = vadd.f32 %v5000, %v1635
        %v5017 = vadd.f32 %v5001, %v1635
        %v5018 = vadd.f32 %v5002, %v1635
        %v5019 = vadd.f32 %v5003, %v1635
        %v5020 = vadd.f32 %v5004, %v1635
        %v5021 = vadd.f32 %v5005, %v1635
        %v5022 = vadd.f32 %v5006, %v1635
        %v5023 = vadd.f32 %v5007, %v1635
        %v5024 = vadd.f32 %v5008, %v1635
        %v5025 = vadd.f32 %v5009, %v1635
        %v5026 = vadd.f32 %v5010, %v1635
        %v5027 = vadd.f32 %v5011, %v1635
        %v5028 = vadd.f32 %v5012, %v1635
        %v5029 = vadd.f32 %v5013, %v1635
        %v5030 = vadd.f32 %v5014, %v1635
        %v5031 = vadd.f32 %v5015, %v1635
        %vm5032 = vcmp.gt.f32.partialorder %v5016, 0.0
        %vm5033 = vcmp.gt.f32.partialorder %v5017, 0.0
        %vm5034 = vcmp.gt.f32.partialorder %v5018, 0.0
        %vm5035 = vcmp.gt.f32.partialorder %v5019, 0.0
        %vm5036 = vcmp.gt.f32.partialorder %v5020, 0.0
        %vm5037 = vcmp.gt.f32.partialorder %v5021, 0.0
        %vm5038 = vcmp.gt.f32.partialorder %v5022, 0.0
        %vm5039 = vcmp.gt.f32.partialorder %v5023, 0.0
        %vm5040 = vcmp.gt.f32.partialorder %v5024, 0.0
        %vm5041 = vcmp.gt.f32.partialorder %v5025, 0.0
        %vm5042 = vcmp.gt.f32.partialorder %v5026, 0.0
        %vm5043 = vcmp.gt.f32.partialorder %v5027, 0.0
        %vm5044 = vcmp.gt.f32.partialorder %v5028, 0.0
        %vm5045 = vcmp.gt.f32.partialorder %v5029, 0.0
        %vm5046 = vcmp.gt.f32.partialorder %v5030, 0.0
        %vm5047 = vcmp.gt.f32.partialorder %v5031, 0.0
        %v5048 = vmul.f32 %v2054, %v5016
        %v5049 = vmul.f32 %v2054, %v5017
        %v5050 = vmul.f32 %v2054, %v5018
        %v5051 = vmul.f32 %v2054, %v5019
        %v5052 = vmul.f32 %v2054, %v5020
        %v5053 = vmul.f32 %v2054, %v5021
        %v5054 = vmul.f32 %v2054, %v5022
        %v5055 = vmul.f32 %v2054, %v5023
        %v5056 = vmul.f32 %v2054, %v5024
        %v5057 = vmul.f32 %v2054, %v5025
        %v5058 = vmul.f32 %v2054, %v5026
        %v5059 = vmul.f32 %v2054, %v5027
        %v5060 = vmul.f32 %v2054, %v5028
        %v5061 = vmul.f32 %v2054, %v5029
        %v5062 = vmul.f32 %v2054, %v5030
        %v5063 = vmul.f32 %v2054, %v5031
        %v5064 = vsel %vm5032, %v5016, %v5048
        %v5065 = vsel %vm5033, %v5017, %v5049
        %v5066 = vsel %vm5034, %v5018, %v5050
        %v5067 = vsel %vm5035, %v5019, %v5051
        %v5068 = vsel %vm5036, %v5020, %v5052
        %v5069 = vsel %vm5037, %v5021, %v5053
        %v5070 = vsel %vm5038, %v5022, %v5054
        %v5071 = vsel %vm5039, %v5023, %v5055
        %v5072 = vsel %vm5040, %v5024, %v5056
        %v5073 = vsel %vm5041, %v5025, %v5057
        %v5074 = vsel %vm5042, %v5026, %v5058
        %v5075 = vsel %vm5043, %v5027, %v5059
        %v5076 = vsel %vm5044, %v5028, %v5060
        %v5077 = vsel %vm5045, %v5029, %v5061
        %v5078 = vsel %vm5046, %v5030, %v5062
        %v5079 = vsel %vm5047, %v5031, %v5063
        %v5080 = vadd.f32 %v4696, %v5064
        %v5081 = vadd.f32 %v4697, %v5065
        %v5082 = vadd.f32 %v4698, %v5066
        %v5083 = vadd.f32 %v4699, %v5067
        %v5084 = vadd.f32 %v4700, %v5068
        %v5085 = vadd.f32 %v4701, %v5069
        %v5086 = vadd.f32 %v4702, %v5070
        %v5087 = vadd.f32 %v4703, %v5071
        %v5088 = vadd.f32 %v4704, %v5072
        %v5089 = vadd.f32 %v4705, %v5073
        %v5090 = vadd.f32 %v4706, %v5074
        %v5091 = vadd.f32 %v4707, %v5075
        %v5092 = vadd.f32 %v4708, %v5076
        %v5093 = vadd.f32 %v4709, %v5077
        %v5094 = vadd.f32 %v4710, %v5078
        %v5095 = vadd.f32 %v4711, %v5079
        %5097 = vset.pattern.permute.xlu0 1
        %5098 = vperm.xlu0 %5097, %v4296
        %v5099 = vpop.permute.xlu0 %5098
        %5102 = vset.pattern.permute.xlu0 1
        %5103 = vperm.xlu0 %5102, %v4297
        %v5104 = vpop.permute.xlu0 %5103
        %5107 = vset.pattern.permute.xlu0 1
        %5108 = vperm.xlu0 %5107, %v4298
        %v5109 = vpop.permute.xlu0 %5108
        %5112 = vset.pattern.permute.xlu0 1
        %5113 = vperm.xlu0 %5112, %v4299
        %v5114 = vpop.permute.xlu0 %5113
        %5117 = vset.pattern.permute.xlu0 1
        %5118 = vperm.xlu0 %5117, %v4300
        %v5119 = vpop.permute.xlu0 %5118
        %5122 = vset.pattern.permute.xlu0 1
        %5123 = vperm.xlu0 %5122, %v4301
        %v5124 = vpop.permute.xlu0 %5123
        %5127 = vset.pattern.permute.xlu0 1
        %5128 = vperm.xlu0 %5127, %v4302
        %v5129 = vpop.permute.xlu0 %5128
        %5132 = vset.pattern.permute.xlu0 1
        %5133 = vperm.xlu0 %5132, %v4303
        %v5134 = vpop.permute.xlu0 %5133
        %5137 = vset.pattern.permute.xlu0 1
        %5138 = vperm.xlu0 %5137, %v4304
        %v5139 = vpop.permute.xlu0 %5138
        %5142 = vset.pattern.permute.xlu0 1
        %5143 = vperm.xlu0 %5142, %v4305
        %v5144 = vpop.permute.xlu0 %5143
        %5147 = vset.pattern.permute.xlu0 1
        %5148 = vperm.xlu0 %5147, %v4306
        %v5149 = vpop.permute.xlu0 %5148
        %5152 = vset.pattern.permute.xlu0 1
        %5153 = vperm.xlu0 %5152, %v4307
        %v5154 = vpop.permute.xlu0 %5153
        %5157 = vset.pattern.permute.xlu0 1
        %5158 = vperm.xlu0 %5157, %v4308
        %v5159 = vpop.permute.xlu0 %5158
        %5162 = vset.pattern.permute.xlu0 1
        %5163 = vperm.xlu0 %5162, %v4309
        %v5164 = vpop.permute.xlu0 %5163
        %5167 = vset.pattern.permute.xlu0 1
        %5168 = vperm.xlu0 %5167, %v4310
        %v5169 = vpop.permute.xlu0 %5168
        %5172 = vset.pattern.permute.xlu0 1
        %5173 = vperm.xlu0 %5172, %v4311
        %v5174 = vpop.permute.xlu0 %5173
        %v5176 = vmul.f32 %v5099, %v4074
        %v5177 = vmul.f32 %v5104, %v4077
        %v5178 = vmul.f32 %v5109, %v4082
        %v5179 = vmul.f32 %v5114, %v4085
        %v5180 = vmul.f32 %v5119, %v4090
        %v5181 = vmul.f32 %v5124, %v4093
        %v5182 = vmul.f32 %v5129, %v4098
        %v5183 = vmul.f32 %v5134, %v4101
        %v5184 = vmul.f32 %v5139, %v4106
        %v5185 = vmul.f32 %v5144, %v4109
        %v5186 = vmul.f32 %v5149, %v4114
        %v5187 = vmul.f32 %v5154, %v4117
        %v5188 = vmul.f32 %v5159, %v4122
        %v5189 = vmul.f32 %v5164, %v4125
        %v5190 = vmul.f32 %v5169, %v4130
        %v5191 = vmul.f32 %v5174, %v4133
        %v5192 = vadd.f32 %v5176, 0.0
        %v5193 = vadd.f32 %v5177, 0.0
        %v5194 = vadd.f32 %v5178, 0.0
        %v5195 = vadd.f32 %v5179, 0.0
        %v5196 = vadd.f32 %v5180, 0.0
        %v5197 = vadd.f32 %v5181, 0.0
        %v5198 = vadd.f32 %v5182, 0.0
        %v5199 = vadd.f32 %v5183, 0.0
        %v5200 = vadd.f32 %v5184, 0.0
        %v5201 = vadd.f32 %v5185, 0.0
        %v5202 = vadd.f32 %v5186, 0.0
        %v5203 = vadd.f32 %v5187, 0.0
        %v5204 = vadd.f32 %v5188, 0.0
        %v5205 = vadd.f32 %v5189, 0.0
        %v5206 = vadd.f32 %v5190, 0.0
        %v5207 = vadd.f32 %v5191, 0.0
        %5208 = vset.pattern.permute.xlu0 2
        %5209 = vperm.xlu0 %5208, %v4296
        %v5210 = vpop.permute.xlu0 %5209
        %5212 = vset.pattern.permute.xlu0 2
        %5213 = vperm.xlu0 %5212, %v4297
        %v5214 = vpop.permute.xlu0 %5213
        %5216 = vset.pattern.permute.xlu0 2
        %5217 = vperm.xlu0 %5216, %v4298
        %v5218 = vpop.permute.xlu0 %5217
        %5220 = vset.pattern.permute.xlu0 2
        %5221 = vperm.xlu0 %5220, %v4299
        %v5222 = vpop.permute.xlu0 %5221
        %5224 = vset.pattern.permute.xlu0 2
        %5225 = vperm.xlu0 %5224, %v4300
        %v5226 = vpop.permute.xlu0 %5225
        %5228 = vset.pattern.permute.xlu0 2
        %5229 = vperm.xlu0 %5228, %v4301
        %v5230 = vpop.permute.xlu0 %5229
        %5232 = vset.pattern.permute.xlu0 2
        %5233 = vperm.xlu0 %5232, %v4302
        %v5234 = vpop.permute.xlu0 %5233
        %5236 = vset.pattern.permute.xlu0 2
        %5237 = vperm.xlu0 %5236, %v4303
        %v5238 = vpop.permute.xlu0 %5237
        %5240 = vset.pattern.permute.xlu0 2
        %5241 = vperm.xlu0 %5240, %v4304
        %v5242 = vpop.permute.xlu0 %5241
        %5244 = vset.pattern.permute.xlu0 2
        %5245 = vperm.xlu0 %5244, %v4305
        %v5246 = vpop.permute.xlu0 %5245
        %5248 = vset.pattern.permute.xlu0 2
        %5249 = vperm.xlu0 %5248, %v4306
        %v5250 = vpop.permute.xlu0 %5249
        %5252 = vset.pattern.permute.xlu0 2
        %5253 = vperm.xlu0 %5252, %v4307
        %v5254 = vpop.permute.xlu0 %5253
        %5256 = vset.pattern.permute.xlu0 2
        %5257 = vperm.xlu0 %5256, %v4308
        %v5258 = vpop.permute.xlu0 %5257
        %5260 = vset.pattern.permute.xlu0 2
        %5261 = vperm.xlu0 %5260, %v4309
        %v5262 = vpop.permute.xlu0 %5261
        %5264 = vset.pattern.permute.xlu0 2
        %5265 = vperm.xlu0 %5264, %v4310
        %v5266 = vpop.permute.xlu0 %5265
        %5268 = vset.pattern.permute.xlu0 2
        %5269 = vperm.xlu0 %5268, %v4311
        %v5270 = vpop.permute.xlu0 %5269
        %v5272 = vmul.f32 %v5210, %v4138
        %v5273 = vmul.f32 %v5214, %v4141
        %v5274 = vmul.f32 %v5218, %v4146
        %v5275 = vmul.f32 %v5222, %v4149
        %v5276 = vmul.f32 %v5226, %v4154
        %v5277 = vmul.f32 %v5230, %v4157
        %v5278 = vmul.f32 %v5234, %v4162
        %v5279 = vmul.f32 %v5238, %v4165
        %v5280 = vmul.f32 %v5242, %v4170
        %v5281 = vmul.f32 %v5246, %v4173
        %v5282 = vmul.f32 %v5250, %v4178
        %v5283 = vmul.f32 %v5254, %v4181
        %v5284 = vmul.f32 %v5258, %v4186
        %v5285 = vmul.f32 %v5262, %v4189
        %v5286 = vmul.f32 %v5266, %v4194
        %v5287 = vmul.f32 %v5270, %v4197
        %v5288 = vadd.f32 %v5192, %v5272
        %v5289 = vadd.f32 %v5193, %v5273
        %v5290 = vadd.f32 %v5194, %v5274
        %v5291 = vadd.f32 %v5195, %v5275
        %v5292 = vadd.f32 %v5196, %v5276
        %v5293 = vadd.f32 %v5197, %v5277
        %v5294 = vadd.f32 %v5198, %v5278
        %v5295 = vadd.f32 %v5199, %v5279
        %v5296 = vadd.f32 %v5200, %v5280
        %v5297 = vadd.f32 %v5201, %v5281
        %v5298 = vadd.f32 %v5202, %v5282
        %v5299 = vadd.f32 %v5203, %v5283
        %v5300 = vadd.f32 %v5204, %v5284
        %v5301 = vadd.f32 %v5205, %v5285
        %v5302 = vadd.f32 %v5206, %v5286
        %v5303 = vadd.f32 %v5207, %v5287
        %5304 = vset.pattern.permute.xlu0 3
        %5305 = vperm.xlu0 %5304, %v4296
        %v5306 = vpop.permute.xlu0 %5305
        %5308 = vset.pattern.permute.xlu0 3
        %5309 = vperm.xlu0 %5308, %v4297
        %v5310 = vpop.permute.xlu0 %5309
        %5312 = vset.pattern.permute.xlu0 3
        %5313 = vperm.xlu0 %5312, %v4298
        %v5314 = vpop.permute.xlu0 %5313
        %5316 = vset.pattern.permute.xlu0 3
        %5317 = vperm.xlu0 %5316, %v4299
        %v5318 = vpop.permute.xlu0 %5317
        %5320 = vset.pattern.permute.xlu0 3
        %5321 = vperm.xlu0 %5320, %v4300
        %v5322 = vpop.permute.xlu0 %5321
        %5324 = vset.pattern.permute.xlu0 3
        %5325 = vperm.xlu0 %5324, %v4301
        %v5326 = vpop.permute.xlu0 %5325
        %5328 = vset.pattern.permute.xlu0 3
        %5329 = vperm.xlu0 %5328, %v4302
        %v5330 = vpop.permute.xlu0 %5329
        %5332 = vset.pattern.permute.xlu0 3
        %5333 = vperm.xlu0 %5332, %v4303
        %v5334 = vpop.permute.xlu0 %5333
        %5336 = vset.pattern.permute.xlu0 3
        %5337 = vperm.xlu0 %5336, %v4304
        %v5338 = vpop.permute.xlu0 %5337
        %5340 = vset.pattern.permute.xlu0 3
        %5341 = vperm.xlu0 %5340, %v4305
        %v5342 = vpop.permute.xlu0 %5341
        %5344 = vset.pattern.permute.xlu0 3
        %5345 = vperm.xlu0 %5344, %v4306
        %v5346 = vpop.permute.xlu0 %5345
        %5348 = vset.pattern.permute.xlu0 3
        %5349 = vperm.xlu0 %5348, %v4307
        %v5350 = vpop.permute.xlu0 %5349
        %5352 = vset.pattern.permute.xlu0 3
        %5353 = vperm.xlu0 %5352, %v4308
        %v5354 = vpop.permute.xlu0 %5353
        %5356 = vset.pattern.permute.xlu0 3
        %5357 = vperm.xlu0 %5356, %v4309
        %v5358 = vpop.permute.xlu0 %5357
        %5360 = vset.pattern.permute.xlu0 3
        %5361 = vperm.xlu0 %5360, %v4310
        %v5362 = vpop.permute.xlu0 %5361
        %5364 = vset.pattern.permute.xlu0 3
        %5365 = vperm.xlu0 %5364, %v4311
        %v5366 = vpop.permute.xlu0 %5365
        %v5368 = vmul.f32 %v5306, %v4202
        %v5369 = vmul.f32 %v5310, %v4205
        %v5370 = vmul.f32 %v5314, %v4210
        %v5371 = vmul.f32 %v5318, %v4213
        %v5372 = vmul.f32 %v5322, %v4218
        %v5373 = vmul.f32 %v5326, %v4221
        %v5374 = vmul.f32 %v5330, %v4226
        %v5375 = vmul.f32 %v5334, %v4229
        %v5376 = vmul.f32 %v5338, %v4234
        %v5377 = vmul.f32 %v5342, %v4237
        %v5378 = vmul.f32 %v5346, %v4242
        %v5379 = vmul.f32 %v5350, %v4245
        %v5380 = vmul.f32 %v5354, %v4250
        %v5381 = vmul.f32 %v5358, %v4253
        %v5382 = vmul.f32 %v5362, %v4258
        %v5383 = vmul.f32 %v5366, %v4261
        %v5384 = vadd.f32 %v5288, %v5368
        %v5385 = vadd.f32 %v5289, %v5369
        %v5386 = vadd.f32 %v5290, %v5370
        %v5387 = vadd.f32 %v5291, %v5371
        %v5388 = vadd.f32 %v5292, %v5372
        %v5389 = vadd.f32 %v5293, %v5373
        %v5390 = vadd.f32 %v5294, %v5374
        %v5391 = vadd.f32 %v5295, %v5375
        %v5392 = vadd.f32 %v5296, %v5376
        %v5393 = vadd.f32 %v5297, %v5377
        %v5394 = vadd.f32 %v5298, %v5378
        %v5395 = vadd.f32 %v5299, %v5379
        %v5396 = vadd.f32 %v5300, %v5380
        %v5397 = vadd.f32 %v5301, %v5381
        %v5398 = vadd.f32 %v5302, %v5382
        %v5399 = vadd.f32 %v5303, %v5383
        %v5400 = vadd.f32 %v5384, %v1635
        %v5401 = vadd.f32 %v5385, %v1635
        %v5402 = vadd.f32 %v5386, %v1635
        %v5403 = vadd.f32 %v5387, %v1635
        %v5404 = vadd.f32 %v5388, %v1635
        %v5405 = vadd.f32 %v5389, %v1635
        %v5406 = vadd.f32 %v5390, %v1635
        %v5407 = vadd.f32 %v5391, %v1635
        %v5408 = vadd.f32 %v5392, %v1635
        %v5409 = vadd.f32 %v5393, %v1635
        %v5410 = vadd.f32 %v5394, %v1635
        %v5411 = vadd.f32 %v5395, %v1635
        %v5412 = vadd.f32 %v5396, %v1635
        %v5413 = vadd.f32 %v5397, %v1635
        %v5414 = vadd.f32 %v5398, %v1635
        %v5415 = vadd.f32 %v5399, %v1635
        %vm5416 = vcmp.gt.f32.partialorder %v5400, 0.0
        %vm5417 = vcmp.gt.f32.partialorder %v5401, 0.0
        %vm5418 = vcmp.gt.f32.partialorder %v5402, 0.0
        %vm5419 = vcmp.gt.f32.partialorder %v5403, 0.0
        %vm5420 = vcmp.gt.f32.partialorder %v5404, 0.0
        %vm5421 = vcmp.gt.f32.partialorder %v5405, 0.0
        %vm5422 = vcmp.gt.f32.partialorder %v5406, 0.0
        %vm5423 = vcmp.gt.f32.partialorder %v5407, 0.0
        %vm5424 = vcmp.gt.f32.partialorder %v5408, 0.0
        %vm5425 = vcmp.gt.f32.partialorder %v5409, 0.0
        %vm5426 = vcmp.gt.f32.partialorder %v5410, 0.0
        %vm5427 = vcmp.gt.f32.partialorder %v5411, 0.0
        %vm5428 = vcmp.gt.f32.partialorder %v5412, 0.0
        %vm5429 = vcmp.gt.f32.partialorder %v5413, 0.0
        %vm5430 = vcmp.gt.f32.partialorder %v5414, 0.0
        %vm5431 = vcmp.gt.f32.partialorder %v5415, 0.0
        %v5432 = vmul.f32 %v2054, %v5400
        %v5433 = vmul.f32 %v2054, %v5401
        %v5434 = vmul.f32 %v2054, %v5402
        %v5435 = vmul.f32 %v2054, %v5403
        %v5436 = vmul.f32 %v2054, %v5404
        %v5437 = vmul.f32 %v2054, %v5405
        %v5438 = vmul.f32 %v2054, %v5406
        %v5439 = vmul.f32 %v2054, %v5407
        %v5440 = vmul.f32 %v2054, %v5408
        %v5441 = vmul.f32 %v2054, %v5409
        %v5442 = vmul.f32 %v2054, %v5410
        %v5443 = vmul.f32 %v2054, %v5411
        %v5444 = vmul.f32 %v2054, %v5412
        %v5445 = vmul.f32 %v2054, %v5413
        %v5446 = vmul.f32 %v2054, %v5414
        %v5447 = vmul.f32 %v2054, %v5415
        %v5448 = vsel %vm5416, %v5400, %v5432
        %v5449 = vsel %vm5417, %v5401, %v5433
        %v5450 = vsel %vm5418, %v5402, %v5434
        %v5451 = vsel %vm5419, %v5403, %v5435
        %v5452 = vsel %vm5420, %v5404, %v5436
        %v5453 = vsel %vm5421, %v5405, %v5437
        %v5454 = vsel %vm5422, %v5406, %v5438
        %v5455 = vsel %vm5423, %v5407, %v5439
        %v5456 = vsel %vm5424, %v5408, %v5440
        %v5457 = vsel %vm5425, %v5409, %v5441
        %v5458 = vsel %vm5426, %v5410, %v5442
        %v5459 = vsel %vm5427, %v5411, %v5443
        %v5460 = vsel %vm5428, %v5412, %v5444
        %v5461 = vsel %vm5429, %v5413, %v5445
        %v5462 = vsel %vm5430, %v5414, %v5446
        %v5463 = vsel %vm5431, %v5415, %v5447
        %v5464 = vadd.f32 %v5080, %v5448
        %v5465 = vadd.f32 %v5081, %v5449
        %v5466 = vadd.f32 %v5082, %v5450
        %v5467 = vadd.f32 %v5083, %v5451
        %v5468 = vadd.f32 %v5084, %v5452
        %v5469 = vadd.f32 %v5085, %v5453
        %v5470 = vadd.f32 %v5086, %v5454
        %v5471 = vadd.f32 %v5087, %v5455
        %v5472 = vadd.f32 %v5088, %v5456
        %v5473 = vadd.f32 %v5089, %v5457
        %v5474 = vadd.f32 %v5090, %v5458
        %v5475 = vadd.f32 %v5091, %v5459
        %v5476 = vadd.f32 %v5092, %v5460
        %v5477 = vadd.f32 %v5093, %v5461
        %v5478 = vadd.f32 %v5094, %v5462
        %v5479 = vadd.f32 %v5095, %v5463
        %5481 = vset.pattern.permute.xlu0 1
        %5482 = vperm.xlu0 %5481, %v4312
        %v5483 = vpop.permute.xlu0 %5482
        %5486 = vset.pattern.permute.xlu0 1
        %5487 = vperm.xlu0 %5486, %v4313
        %v5488 = vpop.permute.xlu0 %5487
        %5491 = vset.pattern.permute.xlu0 1
        %5492 = vperm.xlu0 %5491, %v4314
        %v5493 = vpop.permute.xlu0 %5492
        %5496 = vset.pattern.permute.xlu0 1
        %5497 = vperm.xlu0 %5496, %v4315
        %v5498 = vpop.permute.xlu0 %5497
        %5501 = vset.pattern.permute.xlu0 1
        %5502 = vperm.xlu0 %5501, %v4316
        %v5503 = vpop.permute.xlu0 %5502
        %5506 = vset.pattern.permute.xlu0 1
        %5507 = vperm.xlu0 %5506, %v4317
        %v5508 = vpop.permute.xlu0 %5507
        %5511 = vset.pattern.permute.xlu0 1
        %5512 = vperm.xlu0 %5511, %v4318
        %v5513 = vpop.permute.xlu0 %5512
        %5516 = vset.pattern.permute.xlu0 1
        %5517 = vperm.xlu0 %5516, %v4319
        %v5518 = vpop.permute.xlu0 %5517
        %5521 = vset.pattern.permute.xlu0 1
        %5522 = vperm.xlu0 %5521, %v4320
        %v5523 = vpop.permute.xlu0 %5522
        %5526 = vset.pattern.permute.xlu0 1
        %5527 = vperm.xlu0 %5526, %v4321
        %v5528 = vpop.permute.xlu0 %5527
        %5531 = vset.pattern.permute.xlu0 1
        %5532 = vperm.xlu0 %5531, %v4322
        %v5533 = vpop.permute.xlu0 %5532
        %5536 = vset.pattern.permute.xlu0 1
        %5537 = vperm.xlu0 %5536, %v4323
        %v5538 = vpop.permute.xlu0 %5537
        %5541 = vset.pattern.permute.xlu0 1
        %5542 = vperm.xlu0 %5541, %v4324
        %v5543 = vpop.permute.xlu0 %5542
        %5546 = vset.pattern.permute.xlu0 1
        %5547 = vperm.xlu0 %5546, %v4325
        %v5548 = vpop.permute.xlu0 %5547
        %5551 = vset.pattern.permute.xlu0 1
        %5552 = vperm.xlu0 %5551, %v4326
        %v5553 = vpop.permute.xlu0 %5552
        %5556 = vset.pattern.permute.xlu0 1
        %5557 = vperm.xlu0 %5556, %v4327
        %v5558 = vpop.permute.xlu0 %5557
        %v5560 = vmul.f32 %v5483, %v4074
        %v5561 = vmul.f32 %v5488, %v4077
        %v5562 = vmul.f32 %v5493, %v4082
        %v5563 = vmul.f32 %v5498, %v4085
        %v5564 = vmul.f32 %v5503, %v4090
        %v5565 = vmul.f32 %v5508, %v4093
        %v5566 = vmul.f32 %v5513, %v4098
        %v5567 = vmul.f32 %v5518, %v4101
        %v5568 = vmul.f32 %v5523, %v4106
        %v5569 = vmul.f32 %v5528, %v4109
        %v5570 = vmul.f32 %v5533, %v4114
        %v5571 = vmul.f32 %v5538, %v4117
        %v5572 = vmul.f32 %v5543, %v4122
        %v5573 = vmul.f32 %v5548, %v4125
        %v5574 = vmul.f32 %v5553, %v4130
        %v5575 = vmul.f32 %v5558, %v4133
        %v5576 = vadd.f32 %v5560, 0.0
        %v5577 = vadd.f32 %v5561, 0.0
        %v5578 = vadd.f32 %v5562, 0.0
        %v5579 = vadd.f32 %v5563, 0.0
        %v5580 = vadd.f32 %v5564, 0.0
        %v5581 = vadd.f32 %v5565, 0.0
        %v5582 = vadd.f32 %v5566, 0.0
        %v5583 = vadd.f32 %v5567, 0.0
        %v5584 = vadd.f32 %v5568, 0.0
        %v5585 = vadd.f32 %v5569, 0.0
        %v5586 = vadd.f32 %v5570, 0.0
        %v5587 = vadd.f32 %v5571, 0.0
        %v5588 = vadd.f32 %v5572, 0.0
        %v5589 = vadd.f32 %v5573, 0.0
        %v5590 = vadd.f32 %v5574, 0.0
        %v5591 = vadd.f32 %v5575, 0.0
        %5592 = vset.pattern.permute.xlu0 2
        %5593 = vperm.xlu0 %5592, %v4312
        %v5594 = vpop.permute.xlu0 %5593
        %5596 = vset.pattern.permute.xlu0 2
        %5597 = vperm.xlu0 %5596, %v4313
        %v5598 = vpop.permute.xlu0 %5597
        %5600 = vset.pattern.permute.xlu0 2
        %5601 = vperm.xlu0 %5600, %v4314
        %v5602 = vpop.permute.xlu0 %5601
        %5604 = vset.pattern.permute.xlu0 2
        %5605 = vperm.xlu0 %5604, %v4315
        %v5606 = vpop.permute.xlu0 %5605
        %5608 = vset.pattern.permute.xlu0 2
        %5609 = vperm.xlu0 %5608, %v4316
        %v5610 = vpop.permute.xlu0 %5609
        %5612 = vset.pattern.permute.xlu0 2
        %5613 = vperm.xlu0 %5612, %v4317
        %v5614 = vpop.permute.xlu0 %5613
        %5616 = vset.pattern.permute.xlu0 2
        %5617 = vperm.xlu0 %5616, %v4318
        %v5618 = vpop.permute.xlu0 %5617
        %5620 = vset.pattern.permute.xlu0 2
        %5621 = vperm.xlu0 %5620, %v4319
        %v5622 = vpop.permute.xlu0 %5621
        %5624 = vset.pattern.permute.xlu0 2
        %5625 = vperm.xlu0 %5624, %v4320
        %v5626 = vpop.permute.xlu0 %5625
        %5628 = vset.pattern.permute.xlu0 2
        %5629 = vperm.xlu0 %5628, %v4321
        %v5630 = vpop.permute.xlu0 %5629
        %5632 = vset.pattern.permute.xlu0 2
        %5633 = vperm.xlu0 %5632, %v4322
        %v5634 = vpop.permute.xlu0 %5633
        %5636 = vset.pattern.permute.xlu0 2
        %5637 = vperm.xlu0 %5636, %v4323
        %v5638 = vpop.permute.xlu0 %5637
        %5640 = vset.pattern.permute.xlu0 2
        %5641 = vperm.xlu0 %5640, %v4324
        %v5642 = vpop.permute.xlu0 %5641
        %5644 = vset.pattern.permute.xlu0 2
        %5645 = vperm.xlu0 %5644, %v4325
        %v5646 = vpop.permute.xlu0 %5645
        %5648 = vset.pattern.permute.xlu0 2
        %5649 = vperm.xlu0 %5648, %v4326
        %v5650 = vpop.permute.xlu0 %5649
        %5652 = vset.pattern.permute.xlu0 2
        %5653 = vperm.xlu0 %5652, %v4327
        %v5654 = vpop.permute.xlu0 %5653
        %v5656 = vmul.f32 %v5594, %v4138
        %v5657 = vmul.f32 %v5598, %v4141
        %v5658 = vmul.f32 %v5602, %v4146
        %v5659 = vmul.f32 %v5606, %v4149
        %v5660 = vmul.f32 %v5610, %v4154
        %v5661 = vmul.f32 %v5614, %v4157
        %v5662 = vmul.f32 %v5618, %v4162
        %v5663 = vmul.f32 %v5622, %v4165
        %v5664 = vmul.f32 %v5626, %v4170
        %v5665 = vmul.f32 %v5630, %v4173
        %v5666 = vmul.f32 %v5634, %v4178
        %v5667 = vmul.f32 %v5638, %v4181
        %v5668 = vmul.f32 %v5642, %v4186
        %v5669 = vmul.f32 %v5646, %v4189
        %v5670 = vmul.f32 %v5650, %v4194
        %v5671 = vmul.f32 %v5654, %v4197
        %v5672 = vadd.f32 %v5576, %v5656
        %v5673 = vadd.f32 %v5577, %v5657
        %v5674 = vadd.f32 %v5578, %v5658
        %v5675 = vadd.f32 %v5579, %v5659
        %v5676 = vadd.f32 %v5580, %v5660
        %v5677 = vadd.f32 %v5581, %v5661
        %v5678 = vadd.f32 %v5582, %v5662
        %v5679 = vadd.f32 %v5583, %v5663
        %v5680 = vadd.f32 %v5584, %v5664
        %v5681 = vadd.f32 %v5585, %v5665
        %v5682 = vadd.f32 %v5586, %v5666
        %v5683 = vadd.f32 %v5587, %v5667
        %v5684 = vadd.f32 %v5588, %v5668
        %v5685 = vadd.f32 %v5589, %v5669
        %v5686 = vadd.f32 %v5590, %v5670
        %v5687 = vadd.f32 %v5591, %v5671
        %5688 = vset.pattern.permute.xlu0 3
        %5689 = vperm.xlu0 %5688, %v4312
        %v5690 = vpop.permute.xlu0 %5689
        %5692 = vset.pattern.permute.xlu0 3
        %5693 = vperm.xlu0 %5692, %v4313
        %v5694 = vpop.permute.xlu0 %5693
        %5696 = vset.pattern.permute.xlu0 3
        %5697 = vperm.xlu0 %5696, %v4314
        %v5698 = vpop.permute.xlu0 %5697
        %5700 = vset.pattern.permute.xlu0 3
        %5701 = vperm.xlu0 %5700, %v4315
        %v5702 = vpop.permute.xlu0 %5701
        %5704 = vset.pattern.permute.xlu0 3
        %5705 = vperm.xlu0 %5704, %v4316
        %v5706 = vpop.permute.xlu0 %5705
        %5708 = vset.pattern.permute.xlu0 3
        %5709 = vperm.xlu0 %5708, %v4317
        %v5710 = vpop.permute.xlu0 %5709
        %5712 = vset.pattern.permute.xlu0 3
        %5713 = vperm.xlu0 %5712, %v4318
        %v5714 = vpop.permute.xlu0 %5713
        %5716 = vset.pattern.permute.xlu0 3
        %5717 = vperm.xlu0 %5716, %v4319
        %v5718 = vpop.permute.xlu0 %5717
        %5720 = vset.pattern.permute.xlu0 3
        %5721 = vperm.xlu0 %5720, %v4320
        %v5722 = vpop.permute.xlu0 %5721
        %5724 = vset.pattern.permute.xlu0 3
        %5725 = vperm.xlu0 %5724, %v4321
        %v5726 = vpop.permute.xlu0 %5725
        %5728 = vset.pattern.permute.xlu0 3
        %5729 = vperm.xlu0 %5728, %v4322
        %v5730 = vpop.permute.xlu0 %5729
        %5732 = vset.pattern.permute.xlu0 3
        %5733 = vperm.xlu0 %5732, %v4323
        %v5734 = vpop.permute.xlu0 %5733
        %5736 = vset.pattern.permute.xlu0 3
        %5737 = vperm.xlu0 %5736, %v4324
        %v5738 = vpop.permute.xlu0 %5737
        %5740 = vset.pattern.permute.xlu0 3
        %5741 = vperm.xlu0 %5740, %v4325
        %v5742 = vpop.permute.xlu0 %5741
        %5744 = vset.pattern.permute.xlu0 3
        %5745 = vperm.xlu0 %5744, %v4326
        %v5746 = vpop.permute.xlu0 %5745
        %5748 = vset.pattern.permute.xlu0 3
        %5749 = vperm.xlu0 %5748, %v4327
        %v5750 = vpop.permute.xlu0 %5749
        %v5752 = vmul.f32 %v5690, %v4202
        %v5753 = vmul.f32 %v5694, %v4205
        %v5754 = vmul.f32 %v5698, %v4210
        %v5755 = vmul.f32 %v5702, %v4213
        %v5756 = vmul.f32 %v5706, %v4218
        %v5757 = vmul.f32 %v5710, %v4221
        %v5758 = vmul.f32 %v5714, %v4226
        %v5759 = vmul.f32 %v5718, %v4229
        %v5760 = vmul.f32 %v5722, %v4234
        %v5761 = vmul.f32 %v5726, %v4237
        %v5762 = vmul.f32 %v5730, %v4242
        %v5763 = vmul.f32 %v5734, %v4245
        %v5764 = vmul.f32 %v5738, %v4250
        %v5765 = vmul.f32 %v5742, %v4253
        %v5766 = vmul.f32 %v5746, %v4258
        %v5767 = vmul.f32 %v5750, %v4261
        %v5768 = vadd.f32 %v5672, %v5752
        %v5769 = vadd.f32 %v5673, %v5753
        %v5770 = vadd.f32 %v5674, %v5754
        %v5771 = vadd.f32 %v5675, %v5755
        %v5772 = vadd.f32 %v5676, %v5756
        %v5773 = vadd.f32 %v5677, %v5757
        %v5774 = vadd.f32 %v5678, %v5758
        %v5775 = vadd.f32 %v5679, %v5759
        %v5776 = vadd.f32 %v5680, %v5760
        %v5777 = vadd.f32 %v5681, %v5761
        %v5778 = vadd.f32 %v5682, %v5762
        %v5779 = vadd.f32 %v5683, %v5763
        %v5780 = vadd.f32 %v5684, %v5764
        %v5781 = vadd.f32 %v5685, %v5765
        %v5782 = vadd.f32 %v5686, %v5766
        %v5783 = vadd.f32 %v5687, %v5767
        %v5784 = vadd.f32 %v5768, %v1635
        %v5785 = vadd.f32 %v5769, %v1635
        %v5786 = vadd.f32 %v5770, %v1635
        %v5787 = vadd.f32 %v5771, %v1635
        %v5788 = vadd.f32 %v5772, %v1635
        %v5789 = vadd.f32 %v5773, %v1635
        %v5790 = vadd.f32 %v5774, %v1635
        %v5791 = vadd.f32 %v5775, %v1635
        %v5792 = vadd.f32 %v5776, %v1635
        %v5793 = vadd.f32 %v5777, %v1635
        %v5794 = vadd.f32 %v5778, %v1635
        %v5795 = vadd.f32 %v5779, %v1635
        %v5796 = vadd.f32 %v5780, %v1635
        %v5797 = vadd.f32 %v5781, %v1635
        %v5798 = vadd.f32 %v5782, %v1635
        %v5799 = vadd.f32 %v5783, %v1635
        %vm5800 = vcmp.gt.f32.partialorder %v5784, 0.0
        %vm5801 = vcmp.gt.f32.partialorder %v5785, 0.0
        %vm5802 = vcmp.gt.f32.partialorder %v5786, 0.0
        %vm5803 = vcmp.gt.f32.partialorder %v5787, 0.0
        %vm5804 = vcmp.gt.f32.partialorder %v5788, 0.0
        %vm5805 = vcmp.gt.f32.partialorder %v5789, 0.0
        %vm5806 = vcmp.gt.f32.partialorder %v5790, 0.0
        %vm5807 = vcmp.gt.f32.partialorder %v5791, 0.0
        %vm5808 = vcmp.gt.f32.partialorder %v5792, 0.0
        %vm5809 = vcmp.gt.f32.partialorder %v5793, 0.0
        %vm5810 = vcmp.gt.f32.partialorder %v5794, 0.0
        %vm5811 = vcmp.gt.f32.partialorder %v5795, 0.0
        %vm5812 = vcmp.gt.f32.partialorder %v5796, 0.0
        %vm5813 = vcmp.gt.f32.partialorder %v5797, 0.0
        %vm5814 = vcmp.gt.f32.partialorder %v5798, 0.0
        %vm5815 = vcmp.gt.f32.partialorder %v5799, 0.0
        %v5816 = vmul.f32 %v2054, %v5784
        %v5817 = vmul.f32 %v2054, %v5785
        %v5818 = vmul.f32 %v2054, %v5786
        %v5819 = vmul.f32 %v2054, %v5787
        %v5820 = vmul.f32 %v2054, %v5788
        %v5821 = vmul.f32 %v2054, %v5789
        %v5822 = vmul.f32 %v2054, %v5790
        %v5823 = vmul.f32 %v2054, %v5791
        %v5824 = vmul.f32 %v2054, %v5792
        %v5825 = vmul.f32 %v2054, %v5793
        %v5826 = vmul.f32 %v2054, %v5794
        %v5827 = vmul.f32 %v2054, %v5795
        %v5828 = vmul.f32 %v2054, %v5796
        %v5829 = vmul.f32 %v2054, %v5797
        %v5830 = vmul.f32 %v2054, %v5798
        %v5831 = vmul.f32 %v2054, %v5799
        %v5832 = vsel %vm5800, %v5784, %v5816
        %v5833 = vsel %vm5801, %v5785, %v5817
        %v5834 = vsel %vm5802, %v5786, %v5818
        %v5835 = vsel %vm5803, %v5787, %v5819
        %v5836 = vsel %vm5804, %v5788, %v5820
        %v5837 = vsel %vm5805, %v5789, %v5821
        %v5838 = vsel %vm5806, %v5790, %v5822
        %v5839 = vsel %vm5807, %v5791, %v5823
        %v5840 = vsel %vm5808, %v5792, %v5824
        %v5841 = vsel %vm5809, %v5793, %v5825
        %v5842 = vsel %vm5810, %v5794, %v5826
        %v5843 = vsel %vm5811, %v5795, %v5827
        %v5844 = vsel %vm5812, %v5796, %v5828
        %v5845 = vsel %vm5813, %v5797, %v5829
        %v5846 = vsel %vm5814, %v5798, %v5830
        %v5847 = vsel %vm5815, %v5799, %v5831
        %v5848 = vadd.f32 %v5464, %v5832
        %v5849 = vadd.f32 %v5465, %v5833
        %v5850 = vadd.f32 %v5466, %v5834
        %v5851 = vadd.f32 %v5467, %v5835
        %v5852 = vadd.f32 %v5468, %v5836
        %v5853 = vadd.f32 %v5469, %v5837
        %v5854 = vadd.f32 %v5470, %v5838
        %v5855 = vadd.f32 %v5471, %v5839
        %v5856 = vadd.f32 %v5472, %v5840
        %v5857 = vadd.f32 %v5473, %v5841
        %v5858 = vadd.f32 %v5474, %v5842
        %v5859 = vadd.f32 %v5475, %v5843
        %v5860 = vadd.f32 %v5476, %v5844
        %v5861 = vadd.f32 %v5477, %v5845
        %v5862 = vadd.f32 %v5478, %v5846
        %v5863 = vadd.f32 %v5479, %v5847
        %v5864 = vmul.f32 %v5848, 0.25
        %v5865 = vmul.f32 %v5849, 0.25
        %v5866 = vmul.f32 %v5850, 0.25
        %v5867 = vmul.f32 %v5851, 0.25
        %v5868 = vmul.f32 %v5852, 0.25
        %v5869 = vmul.f32 %v5853, 0.25
        %v5870 = vmul.f32 %v5854, 0.25
        %v5871 = vmul.f32 %v5855, 0.25
        %v5872 = vmul.f32 %v5856, 0.25
        %v5873 = vmul.f32 %v5857, 0.25
        %v5874 = vmul.f32 %v5858, 0.25
        %v5875 = vmul.f32 %v5859, 0.25
        %v5876 = vmul.f32 %v5860, 0.25
        %v5877 = vmul.f32 %v5861, 0.25
        %v5878 = vmul.f32 %v5862, 0.25
        %v5879 = vmul.f32 %v5863, 0.25
        %v5880 = vmul.f32 %v5864, %v5864
        %v5881 = vmul.f32 %v5865, %v5865
        %v5882 = vmul.f32 %v5866, %v5866
        %v5883 = vmul.f32 %v5867, %v5867
        %v5884 = vmul.f32 %v5868, %v5868
        %v5885 = vmul.f32 %v5869, %v5869
        %v5886 = vmul.f32 %v5870, %v5870
        %v5887 = vmul.f32 %v5871, %v5871
        %v5888 = vmul.f32 %v5872, %v5872
        %v5889 = vmul.f32 %v5873, %v5873
        %v5890 = vmul.f32 %v5874, %v5874
        %v5891 = vmul.f32 %v5875, %v5875
        %v5892 = vmul.f32 %v5876, %v5876
        %v5893 = vmul.f32 %v5877, %v5877
        %v5894 = vmul.f32 %v5878, %v5878
        %v5895 = vmul.f32 %v5879, %v5879
        %5896 = vadd.xlane.f32.xlu0 %v5880
        %v5897 = vpop.xlane.xlu0 %5896
        %5898 = vadd.xlane.f32.xlu0 %v5881
        %v5899 = vpop.xlane.xlu0 %5898
        %5900 = vadd.xlane.f32.xlu0 %v5882
        %v5901 = vpop.xlane.xlu0 %5900
        %5902 = vadd.xlane.f32.xlu0 %v5883
        %v5903 = vpop.xlane.xlu0 %5902
        %5904 = vadd.xlane.f32.xlu0 %v5884
        %v5905 = vpop.xlane.xlu0 %5904
        %5906 = vadd.xlane.f32.xlu0 %v5885
        %v5907 = vpop.xlane.xlu0 %5906
        %5908 = vadd.xlane.f32.xlu0 %v5886
        %v5909 = vpop.xlane.xlu0 %5908
        %5910 = vadd.xlane.f32.xlu0 %v5887
        %v5911 = vpop.xlane.xlu0 %5910
        %5912 = vadd.xlane.f32.xlu0 %v5888
        %v5913 = vpop.xlane.xlu0 %5912
        %5914 = vadd.xlane.f32.xlu0 %v5889
        %v5915 = vpop.xlane.xlu0 %5914
        %5916 = vadd.xlane.f32.xlu0 %v5890
        %v5917 = vpop.xlane.xlu0 %5916
        %5918 = vadd.xlane.f32.xlu0 %v5891
        %v5919 = vpop.xlane.xlu0 %5918
        %5920 = vadd.xlane.f32.xlu0 %v5892
        %v5921 = vpop.xlane.xlu0 %5920
        %5922 = vadd.xlane.f32.xlu0 %v5893
        %v5923 = vpop.xlane.xlu0 %5922
        %5924 = vadd.xlane.f32.xlu0 %v5894
        %v5925 = vpop.xlane.xlu0 %5924
        %5926 = vadd.xlane.f32.xlu0 %v5895
        %v5927 = vpop.xlane.xlu0 %5926
        %v5928 = vmax.f32 %v5897, 1e-24
        %v5929 = vmax.f32 %v5899, 1e-24
        %v5930 = vmax.f32 %v5901, 1e-24
        %v5931 = vmax.f32 %v5903, 1e-24
        %v5932 = vmax.f32 %v5905, 1e-24
        %v5933 = vmax.f32 %v5907, 1e-24
        %v5934 = vmax.f32 %v5909, 1e-24
        %v5935 = vmax.f32 %v5911, 1e-24
        %v5936 = vmax.f32 %v5913, 1e-24
        %v5937 = vmax.f32 %v5915, 1e-24
        %v5938 = vmax.f32 %v5917, 1e-24
        %v5939 = vmax.f32 %v5919, 1e-24
        %v5940 = vmax.f32 %v5921, 1e-24
        %v5941 = vmax.f32 %v5923, 1e-24
        %v5942 = vmax.f32 %v5925, 1e-24
        %v5943 = vmax.f32 %v5927, 1e-24
        %v5944 = vrsqrt.pop %v5928
        %v5945 = vrsqrt.pop %v5929
        %v5946 = vrsqrt.pop %v5930
        %v5947 = vrsqrt.pop %v5931
        %v5948 = vrsqrt.pop %v5932
        %v5949 = vrsqrt.pop %v5933
        %v5950 = vrsqrt.pop %v5934
        %v5951 = vrsqrt.pop %v5935
        %v5952 = vrsqrt.pop %v5936
        %v5953 = vrsqrt.pop %v5937
        %v5954 = vrsqrt.pop %v5938
        %v5955 = vrsqrt.pop %v5939
        %v5956 = vrsqrt.pop %v5940
        %v5957 = vrsqrt.pop %v5941
        %v5958 = vrsqrt.pop %v5942
        %v5959 = vrsqrt.pop %v5943
        %v5960 = vmul.f32 %v5864, %v5944
        %v5961 = vmul.f32 %v5865, %v5945
        %v5962 = vmul.f32 %v5866, %v5946
        %v5963 = vmul.f32 %v5867, %v5947
        %v5964 = vmul.f32 %v5868, %v5948
        %v5965 = vmul.f32 %v5869, %v5949
        %v5966 = vmul.f32 %v5870, %v5950
        %v5967 = vmul.f32 %v5871, %v5951
        %v5968 = vmul.f32 %v5872, %v5952
        %v5969 = vmul.f32 %v5873, %v5953
        %v5970 = vmul.f32 %v5874, %v5954
        %v5971 = vmul.f32 %v5875, %v5955
        %v5972 = vmul.f32 %v5876, %v5956
        %v5973 = vmul.f32 %v5877, %v5957
        %v5974 = vmul.f32 %v5878, %v5958
        %v5975 = vmul.f32 %v5879, %v5959
        %v5976 = vpack.c.bf16 %v3784, %v3783
        %v5977 = vpack.c.bf16 %v3786, %v3785
        %v5978 = vpack.c.bf16 %v3788, %v3787
        %v5979 = vpack.c.bf16 %v3790, %v3789
        %v5980 = vpack.c.bf16 %v3792, %v3791
        %v5981 = vpack.c.bf16 %v3794, %v3793
        %v5982 = vpack.c.bf16 %v3796, %v3795
        %v5983 = vpack.c.bf16 %v3798, %v3797
        %5984 = vmatprep.subr.bf16.mxu0 0
        %5985 = vmatpush1.bf16.msra.mxu0 %v1629
        %5986 = vmatprep.subr.bf16.mxu0 0
        %5987 = vmatpush1.bf16.msra.mxu0 %v1628
        %5988 = vmatprep.subr.bf16.mxu0 0
        %5989 = vmatpush1.bf16.msra.mxu0 %v1627
        %5990 = vmatprep.subr.bf16.mxu0 0
        %5991 = vmatpush1.bf16.msra.mxu0 %v1626
        %5992 = vmatprep.subr.bf16.mxu0 0
        %5993 = vmatpush1.bf16.msra.mxu0 %v1625
        %5994 = vmatprep.subr.bf16.mxu0 0
        %5995 = vmatpush1.bf16.msra.mxu0 %v1624
        %5996 = vmatprep.subr.bf16.mxu0 0
        %5997 = vmatpush1.bf16.msra.mxu0 %v1623
        %5998 = vmatprep.subr.bf16.mxu0 0
        %5999 = vmatpush1.bf16.msra.mxu0 %v1622
        %6000 = vmatprep.subr.bf16.mxu0 0
        %6001 = vmatpush2.bf16.msra.mxu0 0
        %6002 = vmatprep.subr.bf16.mxu0 0
        %6003 = vmatpush2.bf16.msra.mxu0 0
        %6004 = vmatprep.subr.bf16.mxu0 0
        %6005 = vmatpush2.bf16.msra.mxu0 0
        %6006 = vmatprep.subr.bf16.mxu0 0
        %6007 = vmatpush2.bf16.msra.mxu0 0
        %6008 = vmatprep.subr.bf16.mxu0 0
        %6009 = vmatpush2.bf16.msra.mxu0 0
        %6010 = vmatprep.subr.bf16.mxu0 0
        %6011 = vmatpush2.bf16.msra.mxu0 0
        %6012 = vmatprep.subr.bf16.mxu0 0
        %6013 = vmatpush2.bf16.msra.mxu0 0
        %6014 = vmatprep.subr.bf16.mxu0 0
        %6015 = vmatpush2.bf16.msra.mxu0 0
        %6016 = vmatprep.mubr.bf16.mxu0 0
        %6017 = vmatmul.mubr.bf16.gmra.mxu0 %v5976
        %v6018 = vpop.f32.mrf.mxu0
        %v6019 = vadd.f32 0.0, %v6018
        %v6020 = vpop.f32.mrf.mxu0
        %v6021 = vpop.f32.mrf.mxu0
        %v6022 = vadd.f32 0.0, %v6021
        %v6023 = vpop.f32.mrf.mxu0
        %6024 = vmatprep.mubr.bf16.mxu0 0
        %6025 = vmatmul.mubr.bf16.gmra.mxu0 %v5977
        %v6026 = vpop.f32.mrf.mxu0
        %v6027 = vadd.f32 0.0, %v6026
        %v6028 = vpop.f32.mrf.mxu0
        %v6029 = vpop.f32.mrf.mxu0
        %v6030 = vadd.f32 0.0, %v6029
        %v6031 = vpop.f32.mrf.mxu0
        %6032 = vmatprep.mubr.bf16.mxu0 0
        %6033 = vmatmul.mubr.bf16.gmra.mxu0 %v5978
        %v6034 = vpop.f32.mrf.mxu0
        %v6035 = vadd.f32 0.0, %v6034
        %v6036 = vpop.f32.mrf.mxu0
        %v6037 = vpop.f32.mrf.mxu0
        %v6038 = vadd.f32 0.0, %v6037
        %v6039 = vpop.f32.mrf.mxu0
        %6040 = vmatprep.mubr.bf16.mxu0 0
        %6041 = vmatmul.mubr.bf16.gmra.mxu0 %v5979
        %v6042 = vpop.f32.mrf.mxu0
        %v6043 = vadd.f32 0.0, %v6042
        %v6044 = vpop.f32.mrf.mxu0
        %v6045 = vpop.f32.mrf.mxu0
        %v6046 = vadd.f32 0.0, %v6045
        %v6047 = vpop.f32.mrf.mxu0
        %6048 = vmatprep.mubr.bf16.mxu0 0
        %6049 = vmatmul.mubr.bf16.gmra.mxu0 %v5980
        %v6050 = vpop.f32.mrf.mxu0
        %v6051 = vadd.f32 0.0, %v6050
        %v6052 = vpop.f32.mrf.mxu0
        %v6053 = vpop.f32.mrf.mxu0
        %v6054 = vadd.f32 0.0, %v6053
        %v6055 = vpop.f32.mrf.mxu0
        %6056 = vmatprep.mubr.bf16.mxu0 0
        %6057 = vmatmul.mubr.bf16.gmra.mxu0 %v5981
        %v6058 = vpop.f32.mrf.mxu0
        %v6059 = vadd.f32 0.0, %v6058
        %v6060 = vpop.f32.mrf.mxu0
        %v6061 = vpop.f32.mrf.mxu0
        %v6062 = vadd.f32 0.0, %v6061
        %v6063 = vpop.f32.mrf.mxu0
        %6064 = vmatprep.mubr.bf16.mxu0 0
        %6065 = vmatmul.mubr.bf16.gmra.mxu0 %v5982
        %v6066 = vpop.f32.mrf.mxu0
        %v6067 = vadd.f32 0.0, %v6066
        %v6068 = vpop.f32.mrf.mxu0
        %v6069 = vpop.f32.mrf.mxu0
        %v6070 = vadd.f32 0.0, %v6069
        %v6071 = vpop.f32.mrf.mxu0
        %6072 = vmatprep.mubr.bf16.mxu0 0
        %6073 = vmatmul.mubr.bf16.gmra.mxu0 %v5983
        %v6074 = vpop.f32.mrf.mxu0
        %v6075 = vadd.f32 0.0, %v6074
        %v6076 = vpop.f32.mrf.mxu0
        %v6077 = vpop.f32.mrf.mxu0
        %v6078 = vadd.f32 0.0, %v6077
        %v6079 = vpop.f32.mrf.mxu0
        %6080 = vdwg.mxu0
        %v6081 = vpack.c.bf16 %v5961, %v5960
        %v6082 = vpack.c.bf16 %v5963, %v5962
        %v6083 = vpack.c.bf16 %v5965, %v5964
        %v6084 = vpack.c.bf16 %v5967, %v5966
        %v6085 = vpack.c.bf16 %v5969, %v5968
        %v6086 = vpack.c.bf16 %v5971, %v5970
        %v6087 = vpack.c.bf16 %v5973, %v5972
        %v6088 = vpack.c.bf16 %v5975, %v5974
        %6089 = vmatprep.subr.bf16.mxu0 0
        %6090 = vmatpush1.bf16.msra.mxu0 %v1629
        %6091 = vmatprep.subr.bf16.mxu0 0
        %6092 = vmatpush1.bf16.msra.mxu0 %v1628
        %6093 = vmatprep.subr.bf16.mxu0 0
        %6094 = vmatpush1.bf16.msra.mxu0 %v1627
        %6095 = vmatprep.subr.bf16.mxu0 0
        %6096 = vmatpush1.bf16.msra.mxu0 %v1626
        %6097 = vmatprep.subr.bf16.mxu0 0
        %6098 = vmatpush1.bf16.msra.mxu0 %v1625
        %6099 = vmatprep.subr.bf16.mxu0 0
        %6100 = vmatpush1.bf16.msra.mxu0 %v1624
        %6101 = vmatprep.subr.bf16.mxu0 0
        %6102 = vmatpush1.bf16.msra.mxu0 %v1623
        %6103 = vmatprep.subr.bf16.mxu0 0
        %6104 = vmatpush1.bf16.msra.mxu0 %v1622
        %6105 = vmatprep.subr.bf16.mxu0 0
        %6106 = vmatpush2.bf16.msra.mxu0 0
        %6107 = vmatprep.subr.bf16.mxu0 0
        %6108 = vmatpush2.bf16.msra.mxu0 0
        %6109 = vmatprep.subr.bf16.mxu0 0
        %6110 = vmatpush2.bf16.msra.mxu0 0
        %6111 = vmatprep.subr.bf16.mxu0 0
        %6112 = vmatpush2.bf16.msra.mxu0 0
        %6113 = vmatprep.subr.bf16.mxu0 0
        %6114 = vmatpush2.bf16.msra.mxu0 0
        %6115 = vmatprep.subr.bf16.mxu0 0
        %6116 = vmatpush2.bf16.msra.mxu0 0
        %6117 = vmatprep.subr.bf16.mxu0 0
        %6118 = vmatpush2.bf16.msra.mxu0 0
        %6119 = vmatprep.subr.bf16.mxu0 0
        %6120 = vmatpush2.bf16.msra.mxu0 0
        %6121 = vmatprep.mubr.bf16.mxu0 0
        %6122 = vmatmul.mubr.bf16.gmra.mxu0 %v6081
        %v6123 = vpop.f32.mrf.mxu0
        %v6124 = vadd.f32 0.0, %v6123
        %v6125 = vpop.f32.mrf.mxu0
        %v6126 = vpop.f32.mrf.mxu0
        %v6127 = vadd.f32 0.0, %v6126
        %v6128 = vpop.f32.mrf.mxu0
        %6129 = vmatprep.mubr.bf16.mxu0 0
        %6130 = vmatmul.mubr.bf16.gmra.mxu0 %v6082
        %v6131 = vpop.f32.mrf.mxu0
        %v6132 = vadd.f32 0.0, %v6131
        %v6133 = vpop.f32.mrf.mxu0
        %v6134 = vpop.f32.mrf.mxu0
        %v6135 = vadd.f32 0.0, %v6134
        %v6136 = vpop.f32.mrf.mxu0
        %6137 = vmatprep.mubr.bf16.mxu0 0
        %6138 = vmatmul.mubr.bf16.gmra.mxu0 %v6083
        %v6139 = vpop.f32.mrf.mxu0
        %v6140 = vadd.f32 0.0, %v6139
        %v6141 = vpop.f32.mrf.mxu0
        %v6142 = vpop.f32.mrf.mxu0
        %v6143 = vadd.f32 0.0, %v6142
        %v6144 = vpop.f32.mrf.mxu0
        %6145 = vmatprep.mubr.bf16.mxu0 0
        %6146 = vmatmul.mubr.bf16.gmra.mxu0 %v6084
        %v6147 = vpop.f32.mrf.mxu0
        %v6148 = vadd.f32 0.0, %v6147
        %v6149 = vpop.f32.mrf.mxu0
        %v6150 = vpop.f32.mrf.mxu0
        %v6151 = vadd.f32 0.0, %v6150
        %v6152 = vpop.f32.mrf.mxu0
        %6153 = vmatprep.mubr.bf16.mxu0 0
        %6154 = vmatmul.mubr.bf16.gmra.mxu0 %v6085
        %v6155 = vpop.f32.mrf.mxu0
        %v6156 = vadd.f32 0.0, %v6155
        %v6157 = vpop.f32.mrf.mxu0
        %v6158 = vpop.f32.mrf.mxu0
        %v6159 = vadd.f32 0.0, %v6158
        %v6160 = vpop.f32.mrf.mxu0
        %6161 = vmatprep.mubr.bf16.mxu0 0
        %6162 = vmatmul.mubr.bf16.gmra.mxu0 %v6086
        %v6163 = vpop.f32.mrf.mxu0
        %v6164 = vadd.f32 0.0, %v6163
        %v6165 = vpop.f32.mrf.mxu0
        %v6166 = vpop.f32.mrf.mxu0
        %v6167 = vadd.f32 0.0, %v6166
        %v6168 = vpop.f32.mrf.mxu0
        %6169 = vmatprep.mubr.bf16.mxu0 0
        %6170 = vmatmul.mubr.bf16.gmra.mxu0 %v6087
        %v6171 = vpop.f32.mrf.mxu0
        %v6172 = vadd.f32 0.0, %v6171
        %v6173 = vpop.f32.mrf.mxu0
        %v6174 = vpop.f32.mrf.mxu0
        %v6175 = vadd.f32 0.0, %v6174
        %v6176 = vpop.f32.mrf.mxu0
        %6177 = vmatprep.mubr.bf16.mxu0 0
        %6178 = vmatmul.mubr.bf16.gmra.mxu0 %v6088
        %v6179 = vpop.f32.mrf.mxu0
        %v6180 = vadd.f32 0.0, %v6179
        %v6181 = vpop.f32.mrf.mxu0
        %v6182 = vpop.f32.mrf.mxu0
        %v6183 = vadd.f32 0.0, %v6182
        %v6184 = vpop.f32.mrf.mxu0
        %6185 = vdwg.mxu0
        %v6186 = vmul.f32 %v6019, %v3879
        %v6187 = vmul.f32 %v6022, %v3880
        %v6188 = vmul.f32 %v6027, %v3881
        %v6189 = vmul.f32 %v6030, %v3882
        %v6190 = vmul.f32 %v6035, %v3883
        %v6191 = vmul.f32 %v6038, %v3884
        %v6192 = vmul.f32 %v6043, %v3885
        %v6193 = vmul.f32 %v6046, %v3886
        %v6194 = vmul.f32 %v6051, %v3887
        %v6195 = vmul.f32 %v6054, %v3888
        %v6196 = vmul.f32 %v6059, %v3889
        %v6197 = vmul.f32 %v6062, %v3890
        %v6198 = vmul.f32 %v6067, %v3891
        %v6199 = vmul.f32 %v6070, %v3892
        %v6200 = vmul.f32 %v6075, %v3893
        %v6201 = vmul.f32 %v6078, %v3894
        %6202 = vadd.xlane.f32.xlu0 %v6186
        %v6203 = vpop.xlane.xlu0 %6202
        %6204 = vadd.xlane.f32.xlu0 %v6187
        %v6205 = vpop.xlane.xlu0 %6204
        %6206 = vadd.xlane.f32.xlu0 %v6188
        %v6207 = vpop.xlane.xlu0 %6206
        %6208 = vadd.xlane.f32.xlu0 %v6189
        %v6209 = vpop.xlane.xlu0 %6208
        %6210 = vadd.xlane.f32.xlu0 %v6190
        %v6211 = vpop.xlane.xlu0 %6210
        %6212 = vadd.xlane.f32.xlu0 %v6191
        %v6213 = vpop.xlane.xlu0 %6212
        %6214 = vadd.xlane.f32.xlu0 %v6192
        %v6215 = vpop.xlane.xlu0 %6214
        %6216 = vadd.xlane.f32.xlu0 %v6193
        %v6217 = vpop.xlane.xlu0 %6216
        %6218 = vadd.xlane.f32.xlu0 %v6194
        %v6219 = vpop.xlane.xlu0 %6218
        %6220 = vadd.xlane.f32.xlu0 %v6195
        %v6221 = vpop.xlane.xlu0 %6220
        %6222 = vadd.xlane.f32.xlu0 %v6196
        %v6223 = vpop.xlane.xlu0 %6222
        %6224 = vadd.xlane.f32.xlu0 %v6197
        %v6225 = vpop.xlane.xlu0 %6224
        %6226 = vadd.xlane.f32.xlu0 %v6198
        %v6227 = vpop.xlane.xlu0 %6226
        %6228 = vadd.xlane.f32.xlu0 %v6199
        %v6229 = vpop.xlane.xlu0 %6228
        %6230 = vadd.xlane.f32.xlu0 %v6200
        %v6231 = vpop.xlane.xlu0 %6230
        %6232 = vadd.xlane.f32.xlu0 %v6201
        %v6233 = vpop.xlane.xlu0 %6232
        %v6234 = vstv %s1581
        %v6235 = vadd.f32 %v6203, %v6234
        %v6236 = vadd.f32 %v6205, %v6234
        %v6237 = vadd.f32 %v6207, %v6234
        %v6238 = vadd.f32 %v6209, %v6234
        %v6239 = vadd.f32 %v6211, %v6234
        %v6240 = vadd.f32 %v6213, %v6234
        %v6241 = vadd.f32 %v6215, %v6234
        %v6242 = vadd.f32 %v6217, %v6234
        %v6243 = vadd.f32 %v6219, %v6234
        %v6244 = vadd.f32 %v6221, %v6234
        %v6245 = vadd.f32 %v6223, %v6234
        %v6246 = vadd.f32 %v6225, %v6234
        %v6247 = vadd.f32 %v6227, %v6234
        %v6248 = vadd.f32 %v6229, %v6234
        %v6249 = vadd.f32 %v6231, %v6234
        %v6250 = vadd.f32 %v6233, %v6234
        %v6267 = vlaneseq
        %v6268 = vand.u32 %v6267, 127
        %v6269 = vlaneseq
        %v6270 = vshrl.u32 %v6269, 7
        %v6271 = vsub.s32 %v6268, %v6270
        %v6272 = vrot.slane %v6235, %v6271
        %v6273 = vadd.s32 %v6268, 4294967288
        %v6274 = vlaneseq
        %v6275 = vshrl.u32 %v6274, 7
        %v6276 = vsub.s32 %v6273, %v6275
        %v6277 = vrot.slane %v6236, %v6276
        %vm6278 = vcmask 130112
        %v6279 = vsel %vm6278, %v6277, %v6272
        %v6280 = vadd.s32 %v6268, 4294967280
        %v6281 = vlaneseq
        %v6282 = vshrl.u32 %v6281, 7
        %v6283 = vsub.s32 %v6280, %v6282
        %v6284 = vrot.slane %v6237, %v6283
        %vm6285 = vcmask 195712
        %v6286 = vsel %vm6285, %v6284, %v6279
        %v6287 = vadd.s32 %v6268, 4294967272
        %v6288 = vlaneseq
        %v6289 = vshrl.u32 %v6288, 7
        %v6290 = vsub.s32 %v6287, %v6289
        %v6291 = vrot.slane %v6238, %v6290
        %vm6292 = vcmask 261312
        %v6293 = vsel %vm6292, %v6291, %v6286
        %v6294 = vadd.s32 %v6268, 4294967264
        %v6295 = vlaneseq
        %v6296 = vshrl.u32 %v6295, 7
        %v6297 = vsub.s32 %v6294, %v6296
        %v6298 = vrot.slane %v6239, %v6297
        %vm6299 = vcmask 326912
        %v6300 = vsel %vm6299, %v6298, %v6293
        %v6301 = vadd.s32 %v6268, 4294967256
        %v6302 = vlaneseq
        %v6303 = vshrl.u32 %v6302, 7
        %v6304 = vsub.s32 %v6301, %v6303
        %v6305 = vrot.slane %v6240, %v6304
        %vm6306 = vcmask 392512
        %v6307 = vsel %vm6306, %v6305, %v6300
        %v6308 = vadd.s32 %v6268, 4294967248
        %v6309 = vlaneseq
        %v6310 = vshrl.u32 %v6309, 7
        %v6311 = vsub.s32 %v6308, %v6310
        %v6312 = vrot.slane %v6241, %v6311
        %vm6313 = vcmask 458112
        %v6314 = vsel %vm6313, %v6312, %v6307
        %v6315 = vadd.s32 %v6268, 4294967240
        %v6316 = vlaneseq
        %v6317 = vshrl.u32 %v6316, 7
        %v6318 = vsub.s32 %v6315, %v6317
        %v6319 = vrot.slane %v6242, %v6318
        %vm6320 = vcmask 523712
        %v6321 = vsel %vm6320, %v6319, %v6314
        %v6322 = vadd.s32 %v6268, 4294967232
        %v6323 = vlaneseq
        %v6324 = vshrl.u32 %v6323, 7
        %v6325 = vsub.s32 %v6322, %v6324
        %v6326 = vrot.slane %v6243, %v6325
        %vm6327 = vcmask 589312
        %v6328 = vsel %vm6327, %v6326, %v6321
        %v6329 = vadd.s32 %v6268, 4294967224
        %v6330 = vlaneseq
        %v6331 = vshrl.u32 %v6330, 7
        %v6332 = vsub.s32 %v6329, %v6331
        %v6333 = vrot.slane %v6244, %v6332
        %vm6334 = vcmask 654912
        %v6335 = vsel %vm6334, %v6333, %v6328
        %v6336 = vadd.s32 %v6268, 4294967216
        %v6337 = vlaneseq
        %v6338 = vshrl.u32 %v6337, 7
        %v6339 = vsub.s32 %v6336, %v6338
        %v6340 = vrot.slane %v6245, %v6339
        %vm6341 = vcmask 720512
        %v6342 = vsel %vm6341, %v6340, %v6335
        %v6343 = vadd.s32 %v6268, 4294967208
        %v6344 = vlaneseq
        %v6345 = vshrl.u32 %v6344, 7
        %v6346 = vsub.s32 %v6343, %v6345
        %v6347 = vrot.slane %v6246, %v6346
        %vm6348 = vcmask 786112
        %v6349 = vsel %vm6348, %v6347, %v6342
        %v6350 = vadd.s32 %v6268, 4294967200
        %v6351 = vlaneseq
        %v6352 = vshrl.u32 %v6351, 7
        %v6353 = vsub.s32 %v6350, %v6352
        %v6354 = vrot.slane %v6247, %v6353
        %vm6355 = vcmask 851712
        %v6356 = vsel %vm6355, %v6354, %v6349
        %v6357 = vadd.s32 %v6268, 4294967192
        %v6358 = vlaneseq
        %v6359 = vshrl.u32 %v6358, 7
        %v6360 = vsub.s32 %v6357, %v6359
        %v6361 = vrot.slane %v6248, %v6360
        %vm6362 = vcmask 917312
        %v6363 = vsel %vm6362, %v6361, %v6356
        %v6364 = vadd.s32 %v6268, 4294967184
        %v6365 = vlaneseq
        %v6366 = vshrl.u32 %v6365, 7
        %v6367 = vsub.s32 %v6364, %v6366
        %v6368 = vrot.slane %v6249, %v6367
        %vm6369 = vcmask 982912
        %v6370 = vsel %vm6369, %v6368, %v6363
        %v6371 = vadd.s32 %v6268, 4294967176
        %v6372 = vlaneseq
        %v6373 = vshrl.u32 %v6372, 7
        %v6374 = vsub.s32 %v6371, %v6373
        %v6375 = vrot.slane %v6250, %v6374
        %vm6376 = vcmask 1048512
        %v6377 = vsel %vm6376, %v6375, %v6370
        %6379 = vst [vmem:[%s1574] sm:$0x1] %v6377
        %v6380 = vmul.f32 %v6124, %v3879
        %v6381 = vmul.f32 %v6127, %v3880
        %v6382 = vmul.f32 %v6132, %v3881
        %v6383 = vmul.f32 %v6135, %v3882
        %v6384 = vmul.f32 %v6140, %v3883
        %v6385 = vmul.f32 %v6143, %v3884
        %v6386 = vmul.f32 %v6148, %v3885
        %v6387 = vmul.f32 %v6151, %v3886
        %v6388 = vmul.f32 %v6156, %v3887
        %v6389 = vmul.f32 %v6159, %v3888
        %v6390 = vmul.f32 %v6164, %v3889
        %v6391 = vmul.f32 %v6167, %v3890
        %v6392 = vmul.f32 %v6172, %v3891
        %v6393 = vmul.f32 %v6175, %v3892
        %v6394 = vmul.f32 %v6180, %v3893
        %v6395 = vmul.f32 %v6183, %v3894
        %6396 = vadd.xlane.f32.xlu0 %v6380
        %v6397 = vpop.xlane.xlu0 %6396
        %6398 = vadd.xlane.f32.xlu0 %v6381
        %v6399 = vpop.xlane.xlu0 %6398
        %6400 = vadd.xlane.f32.xlu0 %v6382
        %v6401 = vpop.xlane.xlu0 %6400
        %6402 = vadd.xlane.f32.xlu0 %v6383
        %v6403 = vpop.xlane.xlu0 %6402
        %6404 = vadd.xlane.f32.xlu0 %v6384
        %v6405 = vpop.xlane.xlu0 %6404
        %6406 = vadd.xlane.f32.xlu0 %v6385
        %v6407 = vpop.xlane.xlu0 %6406
        %6408 = vadd.xlane.f32.xlu0 %v6386
        %v6409 = vpop.xlane.xlu0 %6408
        %6410 = vadd.xlane.f32.xlu0 %v6387
        %v6411 = vpop.xlane.xlu0 %6410
        %6412 = vadd.xlane.f32.xlu0 %v6388
        %v6413 = vpop.xlane.xlu0 %6412
        %6414 = vadd.xlane.f32.xlu0 %v6389
        %v6415 = vpop.xlane.xlu0 %6414
        %6416 = vadd.xlane.f32.xlu0 %v6390
        %v6417 = vpop.xlane.xlu0 %6416
        %6418 = vadd.xlane.f32.xlu0 %v6391
        %v6419 = vpop.xlane.xlu0 %6418
        %6420 = vadd.xlane.f32.xlu0 %v6392
        %v6421 = vpop.xlane.xlu0 %6420
        %6422 = vadd.xlane.f32.xlu0 %v6393
        %v6423 = vpop.xlane.xlu0 %6422
        %6424 = vadd.xlane.f32.xlu0 %v6394
        %v6425 = vpop.xlane.xlu0 %6424
        %6426 = vadd.xlane.f32.xlu0 %v6395
        %v6427 = vpop.xlane.xlu0 %6426
        %v6428 = vadd.f32 %v6397, %v6234
        %v6429 = vadd.f32 %v6399, %v6234
        %v6430 = vadd.f32 %v6401, %v6234
        %v6431 = vadd.f32 %v6403, %v6234
        %v6432 = vadd.f32 %v6405, %v6234
        %v6433 = vadd.f32 %v6407, %v6234
        %v6434 = vadd.f32 %v6409, %v6234
        %v6435 = vadd.f32 %v6411, %v6234
        %v6436 = vadd.f32 %v6413, %v6234
        %v6437 = vadd.f32 %v6415, %v6234
        %v6438 = vadd.f32 %v6417, %v6234
        %v6439 = vadd.f32 %v6419, %v6234
        %v6440 = vadd.f32 %v6421, %v6234
        %v6441 = vadd.f32 %v6423, %v6234
        %v6442 = vadd.f32 %v6425, %v6234
        %v6443 = vadd.f32 %v6427, %v6234
        %v6460 = vlaneseq
        %v6461 = vshrl.u32 %v6460, 7
        %v6462 = vsub.s32 %v6268, %v6461
        %v6463 = vrot.slane %v6428, %v6462
        %v6464 = vlaneseq
        %v6465 = vshrl.u32 %v6464, 7
        %v6466 = vsub.s32 %v6273, %v6465
        %v6467 = vrot.slane %v6429, %v6466
        %v6468 = vsel %vm6278, %v6467, %v6463
        %v6469 = vlaneseq
        %v6470 = vshrl.u32 %v6469, 7
        %v6471 = vsub.s32 %v6280, %v6470
        %v6472 = vrot.slane %v6430, %v6471
        %v6473 = vsel %vm6285, %v6472, %v6468
        %v6474 = vlaneseq
        %v6475 = vshrl.u32 %v6474, 7
        %v6476 = vsub.s32 %v6287, %v6475
        %v6477 = vrot.slane %v6431, %v6476
        %v6478 = vsel %vm6292, %v6477, %v6473
        %v6479 = vlaneseq
        %v6480 = vshrl.u32 %v6479, 7
        %v6481 = vsub.s32 %v6294, %v6480
        %v6482 = vrot.slane %v6432, %v6481
        %v6483 = vsel %vm6299, %v6482, %v6478
        %v6484 = vlaneseq
        %v6485 = vshrl.u32 %v6484, 7
        %v6486 = vsub.s32 %v6301, %v6485
        %v6487 = vrot.slane %v6433, %v6486
        %v6488 = vsel %vm6306, %v6487, %v6483
        %v6489 = vlaneseq
        %v6490 = vshrl.u32 %v6489, 7
        %v6491 = vsub.s32 %v6308, %v6490
        %v6492 = vrot.slane %v6434, %v6491
        %v6493 = vsel %vm6313, %v6492, %v6488
        %v6494 = vlaneseq
        %v6495 = vshrl.u32 %v6494, 7
        %v6496 = vsub.s32 %v6315, %v6495
        %v6497 = vrot.slane %v6435, %v6496
        %v6498 = vsel %vm6320, %v6497, %v6493
        %v6499 = vlaneseq
        %v6500 = vshrl.u32 %v6499, 7
        %v6501 = vsub.s32 %v6322, %v6500
        %v6502 = vrot.slane %v6436, %v6501
        %v6503 = vsel %vm6327, %v6502, %v6498
        %v6504 = vlaneseq
        %v6505 = vshrl.u32 %v6504, 7
        %v6506 = vsub.s32 %v6329, %v6505
        %v6507 = vrot.slane %v6437, %v6506
        %v6508 = vsel %vm6334, %v6507, %v6503
        %v6509 = vlaneseq
        %v6510 = vshrl.u32 %v6509, 7
        %v6511 = vsub.s32 %v6336, %v6510
        %v6512 = vrot.slane %v6438, %v6511
        %v6513 = vsel %vm6341, %v6512, %v6508
        %v6514 = vlaneseq
        %v6515 = vshrl.u32 %v6514, 7
        %v6516 = vsub.s32 %v6343, %v6515
        %v6517 = vrot.slane %v6439, %v6516
        %v6518 = vsel %vm6348, %v6517, %v6513
        %v6519 = vlaneseq
        %v6520 = vshrl.u32 %v6519, 7
        %v6521 = vsub.s32 %v6350, %v6520
        %v6522 = vrot.slane %v6440, %v6521
        %v6523 = vsel %vm6355, %v6522, %v6518
        %v6524 = vlaneseq
        %v6525 = vshrl.u32 %v6524, 7
        %v6526 = vsub.s32 %v6357, %v6525
        %v6527 = vrot.slane %v6441, %v6526
        %v6528 = vsel %vm6362, %v6527, %v6523
        %v6529 = vlaneseq
        %v6530 = vshrl.u32 %v6529, 7
        %v6531 = vsub.s32 %v6364, %v6530
        %v6532 = vrot.slane %v6442, %v6531
        %v6533 = vsel %vm6369, %v6532, %v6528
        %v6534 = vlaneseq
        %v6535 = vshrl.u32 %v6534, 7
        %v6536 = vsub.s32 %v6371, %v6535
        %v6537 = vrot.slane %v6443, %v6536
        %v6538 = vsel %vm6376, %v6537, %v6533
        %6540 = vst [vmem:[%s1574 + $0x1] sm:$0x1] %v6538
        %s6541 = sand.u32 %s244, 1
        %s6542 = scalar_lea.sflag [#allocation10], %s6541
        %s6543 = sand.u32 %s244, 1
        %s6544 = smul.addr %s6543, 2
        %s6545 = scalar_lea.vmem [#allocation13], %s6544
        // Predicated region
        $region217: #{tpu_custom_call.1} parent=191 // pred_check
          %p6546 = pneg %p254
        $region218: #{tpu_custom_call.1} parent=191 // pred_check_branch
          %6548 = sbr.rel (%p6546) target = $region220
        $region219: #{tpu_custom_call.1} parent=191 // pred_region
          %s6550 = ssub.s32 32, 32
          %6551 = vsyncadd %s6542, %s6550
          %s6552 = smul.addr %s27, 32
          %s6553 = scalar_lea.hbm %s9, %s6552
          %s6555 = sshll.u32 %s6545, 4
          %s6556 = int_to_ptr.vmem [resolvable:$true] %s6555
          %6558 = dma.vmem_to_hbm [thread:$0]  %s6556, 32, %s6553, %s6542
        $region220: #{tpu_custom_call.1} parent=191 // pred_fallthru
          _
      $region192: #{tpu_custom_call.1} parent=5 // pred_fallthru
        _
      %p6559 = scmp.le.s32.totalorder 2, %s22
      // Predicated region
      $region221: #{tpu_custom_call.1} parent=5 // pred_check
        %p6560 = pneg %p6559
      $region222: #{tpu_custom_call.1} parent=5 // pred_check_branch
        %6562 = sbr.rel (%p6560) target = $region224
      $region223: #{tpu_custom_call.1} parent=5 // pred_region
        %s6563 = ssub.s32 %s22, 2
        // Predicated region
        $region225: #{tpu_custom_call.1} parent=223 // pred_check
          %p6564 = pneg %p260
        $region226: #{tpu_custom_call.1} parent=223 // pred_check_branch
          %6566 = sbr.rel (%p6564) target = $region228
        $region227: #{tpu_custom_call.1} parent=223 // pred_region
          %s6567 = sand.u32 %s245, 1
          %s6568 = scalar_lea.sflag [#allocation10], %s6567
          %s6569 = sand.u32 %s245, 1
          %s6570 = smul.addr %s6569, 2
          %s6571 = scalar_lea.vmem [#allocation13], %s6570
          %6572 = dma.done %s6568, 32
        $region228: #{tpu_custom_call.1} parent=223 // pred_fallthru
          _
      $region224: #{tpu_custom_call.1} parent=5 // pred_fallthru
        _
    $region6: #{tpu_custom_call.1} parent=1 // loop_footer
      %s26 = sadd.s32 1, %s22
    $region7: #{tpu_custom_call.1} parent=1 // loop_footer_branch
      %21 = sbr.rel target = $region3
    $region8: #{tpu_custom_call.1} parent=1 // loop_exit
      _
    %6573 = vsyncpa [#allocation9], 1
    %s6574 = scalar_lea.sflag [#allocation9], 1
    %6575 = vsyncpa %s6574, 1
    %6576 = vsyncpa [#allocation12], 1
    %6577 = vsyncpa [#allocation10], 1
    %s6578 = scalar_lea.sflag [#allocation10], 1
    %6579 = vsyncpa %s6578, 1

</llo_original>
